<compile_context>
chip_gen: v6e
topology: v6e:2x2x1
jax: 0.10.0
libtpu: 0.0.40
codegen_flags: <defaults>
</compile_context>

<pallas_src>
import numpy as np
import jax
import jax.numpy as jnp
from jax.experimental import pallas as pl
from jax.experimental.pallas import tpu as pltpu


def _round_up(x, m):
    return ((x + m - 1) // m) * m


# ----------------------- fused GenConvBlock kernel ---------------------------

def _make_conv_block_kernel(n_layers, Wp, Lp):
    # Tap (dy, dx) of a 3x3 'same' conv == shift by s = (dy-1)*Wp + (dx-1) in
    # the flattened zero-padded image (borders stay exactly zero via the mask).
    shifts = [(dy - 1) * Wp + (dx - 1) for dy in range(3) for dx in range(3)]

    def kernel(x_ref, m_ref, *args):
        # x_ref : (1, Cin_pad, Lp) f32   zero-padded, flattened, lane-padded image
        # m_ref : (1, Lp)          f32   interior mask (1 inside, 0 on halo/pad)
        # args  : (w0, b0, ..., w_{L-1}, b_{L-1}, o_ref)
        #   w_l : (Cout_pad_l, 9*Cin_pad_l) bf16 ;  b_l : (Cout_pad_l, 1) f32
        # o_ref : (1, Cout_pad_last, Lp) f32
        o_ref = args[-1]
        mask = m_ref[...]                                   # (1, Lp)
        x = x_ref[0]                                        # (Cin_pad, Lp) f32
        for li in range(n_layers):
            w_ref = args[2 * li]
            b_ref = args[2 * li + 1]
            # Stack all 9 taps along the contraction dim -> ONE MXU dot per
            # layer.  Channel counts are pre-padded to multiples of 8 so each
            # rolled piece is sublane-aligned and the concat stays copy-cheap.
            taps = [x if s == 0 else pltpu.roll(x, shift=(-s) % Lp, axis=1)
                    for s in shifts]
            # TODO(synk): roll in bf16 (halves XLU traffic) once packed-dtype
            # lane rotates are verified on the target toolchain.
            xs = jnp.concatenate(taps, axis=0).astype(jnp.bfloat16)  # (9*Cin, Lp)
            y = jnp.dot(w_ref[...], xs, preferred_element_type=jnp.float32)
            y = y + b_ref[...]                              # (Cout_pad, Lp)
            if li < n_layers - 1:
                y = jnp.maximum(y, 0.0)
            # Re-zero halo + lane-pad cells so the next layer's shifted taps
            # read exact zeros (roll wraparound only ever lands here).
            x = y * mask
        o_ref[0] = x.astype(o_ref.dtype)

    return kernel


def conv_block(x_nchw, packed_layers, out_ch):
    """GenConvBlock: k 3x3 'same' convs (ReLU after all but the last), fused
    into a single pallas_call with the activation resident on-chip."""
    N, Cin, H, W = x_nchw.shape
    Hp, Wp = H + 2, W + 2
    Lraw = Hp * Wp
    Lp = _round_up(Lraw, 128)                 # lane-dense spatial axis
    cin_pad = packed_layers[0][0].shape[1] // 9
    cout_pad = packed_layers[-1][0].shape[0]

    # Zero-pad channels (sublane alignment) + spatial halo, flatten, lane-pad.
    xp = jnp.pad(x_nchw, ((0, 0), (0, cin_pad - Cin), (1, 1), (1, 1)))
    xf = jnp.pad(xp.reshape(N, cin_pad, Lraw), ((0, 0), (0, 0), (0, Lp - Lraw)))

    # Interior mask (compile-time constant).
    m = np.zeros((Hp, Wp), np.float32)
    m[1:H + 1, 1:W + 1] = 1.0
    mask = jnp.asarray(np.pad(m.reshape(-1), (0, Lp - Lraw)).reshape(1, Lp))

    in_specs = [
        pl.BlockSpec((1, cin_pad, Lp), lambda n: (n, 0, 0)),
        pl.BlockSpec((1, Lp), lambda n: (0, 0)),
    ]
    flat_params = []
    for wp_, bp_ in packed_layers:            # wp_: (cout_pad, 9*cin_pad) bf16
        co, k9ci = wp_.shape
        flat_params += [wp_, bp_]
        in_specs += [
            pl.BlockSpec((co, k9ci), lambda n: (0, 0)),
            pl.BlockSpec((co, 1), lambda n: (0, 0)),
        ]

    kern = _make_conv_block_kernel(len(packed_layers), Wp, Lp)
    # TODO(synk): at large images (v7x 64 MiB VMEM), tile the flattened spatial
    # axis with a 1-row halo instead of whole-image residency, and pack batch
    # into the lane axis for more grid parallelism at small channel counts.
    out = pl.pallas_call(
        kern,
        out_shape=jax.ShapeDtypeStruct((N, cout_pad, Lp), jnp.float32),
        grid=(N,),
        in_specs=in_specs,
        out_specs=pl.BlockSpec((1, cout_pad, Lp), lambda n: (n, 0, 0)),
        compiler_params=pltpu.CompilerParams(dimension_semantics=("parallel",)),
    )(xf, mask, *flat_params)

    out = out[:, :out_ch, :Lraw].reshape(N, out_ch, Hp, Wp)[:, :, 1:H + 1, 1:W + 1]
    return out


# ------------------------------ ifft1 kernel ---------------------------------

def _idft_kernel(x_ref, fr_ref, fi_ref, o_ref):
    # x_ref : (2, H, W) f32 (real, imag planes of one image)
    # fr/fi : (W, Wout) bf16 IDFT cos/sin tables (lane-padded to >=128 cols)
    # o_ref : (2, H, Wout) f32
    xr = x_ref[0].astype(jnp.bfloat16)
    xi = x_ref[1].astype(jnp.bfloat16)
    fr = fr_ref[...]
    fi = fi_ref[...]
    o_ref[0] = (jnp.dot(xr, fr, preferred_element_type=jnp.float32)
                - jnp.dot(xi, fi, preferred_element_type=jnp.float32))
    o_ref[1] = (jnp.dot(xr, fi, preferred_element_type=jnp.float32)
                + jnp.dot(xi, fr, preferred_element_type=jnp.float32))


def ifft1_width(rec_nchw):
    """1-D inverse DFT along kx (width) on the (real, imag) channel pair as
    real matmuls against precomputed bf16 cos/sin tables (f32 accumulation).
    TODO(synk): the reference ifft1's fftshift/ifftshift convention is assumed
    to be a plain (un-shifted) inverse DFT with 1/W normalization."""
    N, C, H, W = rec_nchw.shape
    assert C == 2
    Wout = _round_up(W, 128)                  # lane-dense output, sliced after

    k = np.arange(W)
    ang = 2.0 * np.pi * np.outer(k, k) / W
    fr = np.zeros((W, Wout), np.float32)
    fi = np.zeros((W, Wout), np.float32)
    fr[:, :W] = np.cos(ang) / W
    fi[:, :W] = np.sin(ang) / W
    fr = jnp.asarray(fr, jnp.bfloat16)        # trace-time constants
    fi = jnp.asarray(fi, jnp.bfloat16)

    x = rec_nchw.reshape(N * 2, H, W)         # free reshape, no transpose/concat
    y = pl.pallas_call(
        _idft_kernel,
        out_shape=jax.ShapeDtypeStruct((N * 2, H, Wout), jnp.float32),
        grid=(N,),
        in_specs=[
            pl.BlockSpec((2, H, W), lambda n: (n, 0, 0)),
            pl.BlockSpec((W, Wout), lambda n: (0, 0)),     # resident
            pl.BlockSpec((W, Wout), lambda n: (0, 0)),     # resident
        ],
        out_specs=pl.BlockSpec((2, H, Wout), lambda n: (n, 0, 0)),
        compiler_params=pltpu.CompilerParams(dimension_semantics=("parallel",)),
    )(x, fr, fi)
    return y.reshape(N, 2, H, Wout)[..., :W]


# -------------------------------- FC kernel ----------------------------------

def _mlp_kernel(x_ref, w1_ref, b1_ref, w2_ref, b2_ref, w3_ref, b3_ref, o_ref):
    h = jnp.dot(x_ref[...].astype(jnp.bfloat16), w1_ref[...],
                preferred_element_type=jnp.float32) + b1_ref[...]
    h = jnp.maximum(h, 0.0).astype(jnp.bfloat16)
    h = jnp.dot(h, w2_ref[...], preferred_element_type=jnp.float32) + b2_ref[...]
    h = jnp.maximum(h, 0.0).astype(jnp.bfloat16)
    o_ref[...] = (jnp.dot(h, w3_ref[...], preferred_element_type=jnp.float32)
                  + b3_ref[...]).astype(o_ref.dtype)


def fc_block(x, fc):
    """GenFcBlock([in_ch*H, 1024, 1024, out_ch*H]) fused into one kernel,
    grid-tiled over rows with all three pre-cast bf16 weights VMEM-resident.
    The last layer is lane-padded to a multiple of 128 (dense stores)."""
    M, Din = x.shape
    H1, H2, Dp = fc["w1"].shape[1], fc["w2"].shape[1], fc["w3"].shape[1]

    tm = min(512, M)                          # large row tiles
    if M > 8 and M // tm < 2:                 # keep >=2 grid steps (v7x megacore)
        tm = _round_up((M + 1) // 2, 8)

    # TODO(synk): on v5e, add pipeline_mode=pl.Buffered(1) to the constant-index
    # weight specs to avoid double-buffering resident weights under tight VMEM.
    return pl.pallas_call(
        _mlp_kernel,
        out_shape=jax.ShapeDtypeStruct((M, Dp), jnp.float32),
        grid=(pl.cdiv(M, tm),),
        in_specs=[
            pl.BlockSpec((tm, Din), lambda i: (i, 0)),
            pl.BlockSpec((Din, H1), lambda i: (0, 0)),
            pl.BlockSpec((1, H1), lambda i: (0, 0)),
            pl.BlockSpec((H1, H2), lambda i: (0, 0)),
            pl.BlockSpec((1, H2), lambda i: (0, 0)),
            pl.BlockSpec((H2, Dp), lambda i: (0, 0)),
            pl.BlockSpec((1, Dp), lambda i: (0, 0)),
        ],
        out_specs=pl.BlockSpec((tm, Dp), lambda i: (i, 0)),
        compiler_params=pltpu.CompilerParams(
            dimension_semantics=("parallel",),
            vmem_limit_bytes=32 * 1024 * 1024),
    )(x, fc["w1"], fc["b1"], fc["w2"], fc["b2"], fc["w3"], fc["b3"])


# ------------------------------- DOTA forward --------------------------------

def fftshift2(x):
    return jnp.roll(x, (x.shape[-2] // 2, x.shape[-1] // 2), axis=(-2, -1))


def dota_forward(params, opt, kspace_us, mask):
    N, C, H, W = kspace_us.shape
    in_ch, out_ch = opt["in_ch"], opt["out_ch"]
    assert (C, H, W) == (in_ch, opt["im_height"], opt["im_width"])
    del mask  # dota_dc == 0 -> data-consistency branch disabled

    rec = fftshift2(kspace_us)
    rec = conv_block(rec, params["conv_K"], out_ch)   # k-space conv block
    rec = ifft1_width(rec)                            # ifft1(rec, 1) along kx

    # Per-kx-column FC (loop in the original), batched since weights are shared.
    # Rows ordered (n, kx); features ordered (ch, ky).
    # TODO(synk): fuse this transpose / the IDFT epilogue into one kernel to
    # drop an extra HBM pass at production image sizes.
    x = jnp.transpose(rec, (0, 3, 1, 2)).reshape(N * W, in_ch * H)
    y = fc_block(x, params["fc"])[:, :out_ch * H]
    rec = jnp.transpose(y.reshape(N, W, out_ch, H), (0, 2, 3, 1))

    rec = rec + conv_block(rec, params["conv_I"], out_ch)   # image-domain residual

    # TODO(synk): DataConsist and AbsLayer branches are disabled via the config
    # (opt.dota_dc = 0, opt.abs_layer = False), matching the reference forward.
    return rec


# ------------------------------ parameter init -------------------------------

def init_params(key, opt):
    keys = iter(jax.random.split(key, 64))

    def dense_init(shape, fan_in):
        return (jax.random.normal(next(keys), shape, jnp.float32)
                / jnp.sqrt(jnp.float32(fan_in)))

    def conv_block_params(depth, cin, cout, fm):
        chans = [cin] + [fm] * (depth - 1) + [cout]
        layers = []
        for li in range(depth):
            ci, co = chans[li], chans[li + 1]
            w = dense_init((3, 3, ci, co), 9 * ci)       # HWIO
            b = jnp.zeros((co,), jnp.float32)
            layers.append((w, b))
        return layers

    dims = [opt["in_ch"] * opt["im_height"], 1024, 1024,
            opt["out_ch"] * opt["im_height"]]
    fc = []
    for li in range(3):
        w = dense_init((dims[li], dims[li + 1]), dims[li])
        b = jnp.zeros((dims[li + 1],), jnp.float32)
        fc.append((w, b))

    return {
        "conv_K": conv_block_params(opt["k"], opt["in_ch"], opt["out_ch"], opt["fm"]),
        "conv_I": conv_block_params(opt["i"], opt["in_ch"], opt["out_ch"], opt["fm"]),
        "fc": fc,
    }


def pack_params(params):
    """One-time repack (run OUTSIDE the jitted forward): conv weights become
    (Cout_pad, 9*Cin_pad) bf16 rows matching the in-kernel tap stacking (with
    channels zero-padded to multiples of 8 for sublane alignment); FC weights
    become bf16 with the last layer lane-padded to a multiple of 128."""
    def pack_conv(layers):
        packed = []
        for w, b in layers:                    # w: (3, 3, ci, co) HWIO
            ci, co = w.shape[2], w.shape[3]
            cip, cop = _round_up(ci, 8), _round_up(co, 8)
            wpad = jnp.pad(w, ((0, 0), (0, 0), (0, cip - ci), (0, cop - co)))
            wp = (jnp.transpose(wpad, (3, 0, 1, 2))
                  .reshape(cop, 9 * cip).astype(jnp.bfloat16))
            bp = jnp.pad(b, (0, cop - co)).reshape(cop, 1).astype(jnp.float32)
            packed.append((wp, bp))
        return packed

    (w1, b1), (w2, b2), (w3, b3) = params["fc"]
    dout = w3.shape[1]
    dp = _round_up(dout, 128)
    w3p = jnp.zeros((w3.shape[0], dp), jnp.float32).at[:, :dout].set(w3)
    b3p = jnp.zeros((dp,), jnp.float32).at[:dout].set(b3)
    fc = {
        "w1": w1.astype(jnp.bfloat16), "b1": b1.reshape(1, -1).astype(jnp.float32),
        "w2": w2.astype(jnp.bfloat16), "b2": b2.reshape(1, -1).astype(jnp.float32),
        "w3": w3p.astype(jnp.bfloat16), "b3": b3p.reshape(1, -1).astype(jnp.float32),
    }
    return {"conv_K": pack_conv(params["conv_K"]),
            "conv_I": pack_conv(params["conv_I"]),
            "fc": fc}


# ----------------------------------- main ------------------------------------

if __name__ == "__main__":
    opt = dict(im_height=16, im_width=16, in_ch=2, out_ch=2,
               k=3, i=3, fm=8, abs_layer=False, dota_dc=0)

    key = jax.random.PRNGKey(0)
    kp, kx_key, km = jax.random.split(key, 3)
    params = pack_params(init_params(kp, opt))   # one-time repack, outside jit

    batch = 2
    kspace_us = jax.random.normal(
        kx_key, (batch, opt["in_ch"], opt["im_height"], opt["im_width"]), jnp.float32)
    mask = (jax.random.uniform(
        km, (batch, 1, opt["im_height"], opt["im_width"])) > 0.5).astype(jnp.float32)

    fwd = jax.jit(lambda p, ks, m: dota_forward(p, opt, ks, m))
    out = jax.block_until_ready(fwd(params, kspace_us, mask))
    assert out.shape == (batch, opt["out_ch"], opt["im_height"], opt["im_width"])
    assert out.dtype == jnp.float32
    print("KERNEL_OK")
</pallas_src>

<mosaic_0001>
module attributes {stable_mosaic.version = 11 : i64} {
  func.func @_idft_kernel(%arg0: i32, %arg1: memref<2x16x16xf32, #tpu.memory_space<vmem>>, %arg2: memref<16x128xbf16, #tpu.memory_space<vmem>>, %arg3: memref<16x128xbf16, #tpu.memory_space<vmem>>, %arg4: memref<2x16x128xf32, #tpu.memory_space<vmem>>) attributes {dimension_semantics = [#tpu.dimension_semantics<parallel>], iteration_bounds = array<i64: 2>, scalar_prefetch = 0 : i64, scratch_operands = 0 : i64, tpu.core_type = #tpu.core_type<tc>, window_params = [{transform_indices = @transform_0, window_bounds = array<i64: 2, 16, 16>}, {pipeline_mode = #tpu.pipeline_mode<synchronous>, transform_indices = @transform_1, window_bounds = array<i64: 16, 128>}, {pipeline_mode = #tpu.pipeline_mode<synchronous>, transform_indices = @transform_2, window_bounds = array<i64: 16, 128>}, {transform_indices = @transform_3, window_bounds = array<i64: 2, 16, 128>}]} {
    %c0 = arith.constant 0 : index
    %c0_0 = arith.constant 0 : index
    %c0_1 = arith.constant 0 : index
    %0 = vector.load %arg1[%c0, %c0_0, %c0_1] : memref<2x16x16xf32, #tpu.memory_space<vmem>>, vector<1x16x16xf32>
    %1 = vector.shape_cast %0 : vector<1x16x16xf32> to vector<16x16xf32>
    %2 = arith.truncf %1 : vector<16x16xf32> to vector<16x16xbf16>
    %c1 = arith.constant 1 : index
    %c0_2 = arith.constant 0 : index
    %c0_3 = arith.constant 0 : index
    %3 = vector.load %arg1[%c1, %c0_2, %c0_3] : memref<2x16x16xf32, #tpu.memory_space<vmem>>, vector<1x16x16xf32>
    %4 = vector.shape_cast %3 : vector<1x16x16xf32> to vector<16x16xf32>
    %5 = arith.truncf %4 : vector<16x16xf32> to vector<16x16xbf16>
    %c0_4 = arith.constant 0 : index
    %c0_5 = arith.constant 0 : index
    %6 = vector.load %arg2[%c0_4, %c0_5] : memref<16x128xbf16, #tpu.memory_space<vmem>>, vector<16x128xbf16>
    %c0_6 = arith.constant 0 : index
    %c0_7 = arith.constant 0 : index
    %7 = vector.load %arg3[%c0_6, %c0_7] : memref<16x128xbf16, #tpu.memory_space<vmem>>, vector<16x128xbf16>
    %cst = arith.constant dense<0.000000e+00> : vector<16x128xf32>
    %8 = tpu.matmul %2, %6, %cst {dimension_numbers = #tpu.dot_dimension_numbers<[1], [0], [0], [1], [0, 0, 1, 1], [], []>} : vector<16x16xbf16>, vector<16x128xbf16>, vector<16x128xf32> -> vector<16x128xf32>
    %cst_8 = arith.constant dense<0.000000e+00> : vector<16x128xf32>
    %9 = tpu.matmul %5, %7, %cst_8 {dimension_numbers = #tpu.dot_dimension_numbers<[1], [0], [0], [1], [0, 0, 1, 1], [], []>} : vector<16x16xbf16>, vector<16x128xbf16>, vector<16x128xf32> -> vector<16x128xf32>
    %10 = arith.subf %8, %9 : vector<16x128xf32>
    %c0_9 = arith.constant 0 : index
    %c0_10 = arith.constant 0 : index
    %c0_11 = arith.constant 0 : index
    %11 = vector.load %arg4[%c0_9, %c0_10, %c0_11] : memref<2x16x128xf32, #tpu.memory_space<vmem>>, vector<1x16x128xf32>
    %12 = vector.shape_cast %11 : vector<1x16x128xf32> to vector<16x128xf32>
    %13 = vector.shape_cast %10 : vector<16x128xf32> to vector<1x16x128xf32>
    tpu.vector_store %arg4[%c0_9, %c0_10, %c0_11], %13 {strides = array<i32>} : memref<2x16x128xf32, #tpu.memory_space<vmem>>, vector<1x16x128xf32>,
    %cst_12 = arith.constant dense<0.000000e+00> : vector<16x128xf32>
    %14 = tpu.matmul %2, %7, %cst_12 {dimension_numbers = #tpu.dot_dimension_numbers<[1], [0], [0], [1], [0, 0, 1, 1], [], []>} : vector<16x16xbf16>, vector<16x128xbf16>, vector<16x128xf32> -> vector<16x128xf32>
    %cst_13 = arith.constant dense<0.000000e+00> : vector<16x128xf32>
    %15 = tpu.matmul %5, %6, %cst_13 {dimension_numbers = #tpu.dot_dimension_numbers<[1], [0], [0], [1], [0, 0, 1, 1], [], []>} : vector<16x16xbf16>, vector<16x128xbf16>, vector<16x128xf32> -> vector<16x128xf32>
    %16 = arith.addf %14, %15 : vector<16x128xf32>
    %c1_14 = arith.constant 1 : index
    %c0_15 = arith.constant 0 : index
    %c0_16 = arith.constant 0 : index
    %17 = vector.load %arg4[%c1_14, %c0_15, %c0_16] : memref<2x16x128xf32, #tpu.memory_space<vmem>>, vector<1x16x128xf32>
    %18 = vector.shape_cast %17 : vector<1x16x128xf32> to vector<16x128xf32>
    %19 = vector.shape_cast %16 : vector<16x128xf32> to vector<1x16x128xf32>
    tpu.vector_store %arg4[%c1_14, %c0_15, %c0_16], %19 {strides = array<i32>} : memref<2x16x128xf32, #tpu.memory_space<vmem>>, vector<1x16x128xf32>,
    return
  }
  func.func @transform_0(%arg0: i32) -> (i32, i32, i32) {
    %c0_i32 = arith.constant 0 : i32
    %c0_i32_0 = arith.constant 0 : i32
    %c0_i32_1 = arith.constant 0 : i32
    return %arg0, %c0_i32, %c0_i32_0 : i32, i32, i32
  }
  func.func @transform_1(%arg0: i32) -> (i32, i32) {
    %c0_i32 = arith.constant 0 : i32
    %c0_i32_0 = arith.constant 0 : i32
    %c0_i32_1 = arith.constant 0 : i32
    return %c0_i32, %c0_i32_0 : i32, i32
  }
  func.func @transform_2(%arg0: i32) -> (i32, i32) {
    %c0_i32 = arith.constant 0 : i32
    %c0_i32_0 = arith.constant 0 : i32
    %c0_i32_1 = arith.constant 0 : i32
    return %c0_i32, %c0_i32_0 : i32, i32
  }
  func.func @transform_3(%arg0: i32) -> (i32, i32, i32) {
    %c0_i32 = arith.constant 0 : i32
    %c0_i32_0 = arith.constant 0 : i32
    %c0_i32_1 = arith.constant 0 : i32
    return %arg0, %c0_i32, %c0_i32_0 : i32, i32, i32
  }
}

module attributes {stable_mosaic.version = 11 : i64} {
  func.func @kernel(%arg0: i32, %arg1: memref<1x8x384xf32, #tpu.memory_space<vmem>>, %arg2: memref<1x384xf32, #tpu.memory_space<vmem>>, %arg3: memref<8x72xbf16, #tpu.memory_space<vmem>>, %arg4: memref<8x1xf32, #tpu.memory_space<vmem>>, %arg5: memref<8x72xbf16, #tpu.memory_space<vmem>>, %arg6: memref<8x1xf32, #tpu.memory_space<vmem>>, %arg7: memref<8x72xbf16, #tpu.memory_space<vmem>>, %arg8: memref<8x1xf32, #tpu.memory_space<vmem>>, %arg9: memref<1x8x384xf32, #tpu.memory_space<vmem>>) attributes {dimension_semantics = [#tpu.dimension_semantics<parallel>], iteration_bounds = array<i64: 2>, scalar_prefetch = 0 : i64, scratch_operands = 0 : i64, tpu.core_type = #tpu.core_type<tc>, window_params = [{transform_indices = @transform_0, window_bounds = array<i64: 1, 8, 384>}, {pipeline_mode = #tpu.pipeline_mode<synchronous>, transform_indices = @transform_1, window_bounds = array<i64: 1, 384>}, {pipeline_mode = #tpu.pipeline_mode<synchronous>, transform_indices = @transform_2, window_bounds = array<i64: 8, 72>}, {pipeline_mode = #tpu.pipeline_mode<synchronous>, transform_indices = @transform_3, window_bounds = array<i64: 8, 1>}, {pipeline_mode = #tpu.pipeline_mode<synchronous>, transform_indices = @transform_4, window_bounds = array<i64: 8, 72>}, {pipeline_mode = #tpu.pipeline_mode<synchronous>, transform_indices = @transform_5, window_bounds = array<i64: 8, 1>}, {pipeline_mode = #tpu.pipeline_mode<synchronous>, transform_indices = @transform_6, window_bounds = array<i64: 8, 72>}, {pipeline_mode = #tpu.pipeline_mode<synchronous>, transform_indices = @transform_7, window_bounds = array<i64: 8, 1>}, {transform_indices = @transform_8, window_bounds = array<i64: 1, 8, 384>}]} {
    %c0 = arith.constant 0 : index
    %c0_0 = arith.constant 0 : index
    %0 = vector.load %arg2[%c0, %c0_0] : memref<1x384xf32, #tpu.memory_space<vmem>>, vector<1x384xf32>
    %c0_1 = arith.constant 0 : index
    %c0_2 = arith.constant 0 : index
    %c0_3 = arith.constant 0 : index
    %1 = vector.load %arg1[%c0_1, %c0_2, %c0_3] : memref<1x8x384xf32, #tpu.memory_space<vmem>>, vector<1x8x384xf32>
    %2 = vector.shape_cast %1 : vector<1x8x384xf32> to vector<8x384xf32>
    %c19_i32 = arith.constant 19 : i32
    %3 = tpu.dynamic_rotate %2 by %c19_i32 dim 1 : vector<8x384xf32>, i32 -> vector<8x384xf32>
    %c18_i32 = arith.constant 18 : i32
    %4 = tpu.dynamic_rotate %2 by %c18_i32 dim 1 : vector<8x384xf32>, i32 -> vector<8x384xf32>
    %c17_i32 = arith.constant 17 : i32
    %5 = tpu.dynamic_rotate %2 by %c17_i32 dim 1 : vector<8x384xf32>, i32 -> vector<8x384xf32>
    %c1_i32 = arith.constant 1 : i32
    %6 = tpu.dynamic_rotate %2 by %c1_i32 dim 1 : vector<8x384xf32>, i32 -> vector<8x384xf32>
    %c383_i32 = arith.constant 383 : i32
    %7 = tpu.dynamic_rotate %2 by %c383_i32 dim 1 : vector<8x384xf32>, i32 -> vector<8x384xf32>
    %c367_i32 = arith.constant 367 : i32
    %8 = tpu.dynamic_rotate %2 by %c367_i32 dim 1 : vector<8x384xf32>, i32 -> vector<8x384xf32>
    %c366_i32 = arith.constant 366 : i32
    %9 = tpu.dynamic_rotate %2 by %c366_i32 dim 1 : vector<8x384xf32>, i32 -> vector<8x384xf32>
    %c365_i32 = arith.constant 365 : i32
    %10 = tpu.dynamic_rotate %2 by %c365_i32 dim 1 : vector<8x384xf32>, i32 -> vector<8x384xf32>
    %11 = tpu.concatenate %3, %4, %5, %6, %2, %7, %8, %9, %10 in 0 : vector<8x384xf32>, vector<8x384xf32>, vector<8x384xf32>, vector<8x384xf32>, vector<8x384xf32>, vector<8x384xf32>, vector<8x384xf32>, vector<8x384xf32>, vector<8x384xf32> -> vector<72x384xf32>
    %12 = arith.truncf %11 : vector<72x384xf32> to vector<72x384xbf16>
    %c0_4 = arith.constant 0 : index
    %c0_5 = arith.constant 0 : index
    %13 = vector.load %arg3[%c0_4, %c0_5] : memref<8x72xbf16, #tpu.memory_space<vmem>>, vector<8x72xbf16>
    %cst = arith.constant dense<0.000000e+00> : vector<8x384xf32>
    %14 = tpu.matmul %13, %12, %cst {dimension_numbers = #tpu.dot_dimension_numbers<[1], [0], [0], [1], [0, 0, 1, 1], [], []>} : vector<8x72xbf16>, vector<72x384xbf16>, vector<8x384xf32> -> vector<8x384xf32>
    %c0_6 = arith.constant 0 : index
    %c0_7 = arith.constant 0 : index
    %15 = vector.load %arg4[%c0_6, %c0_7] : memref<8x1xf32, #tpu.memory_space<vmem>>, vector<8x1xf32>
    %16 = vector.broadcast %15 : vector<8x1xf32> to vector<8x384xf32>
    %17 = arith.addf %14, %16 : vector<8x384xf32>
    %cst_8 = arith.constant 0.000000e+00 : f32
    %18 = vector.broadcast %cst_8 : f32 to vector<8x384xf32>
    %19 = arith.maximumf %17, %18 : vector<8x384xf32>
    %20 = vector.broadcast %0 : vector<1x384xf32> to vector<8x384xf32>
    %21 = arith.mulf %19, %20 : vector<8x384xf32>
    %c19_i32_9 = arith.constant 19 : i32
    %22 = tpu.dynamic_rotate %21 by %c19_i32_9 dim 1 : vector<8x384xf32>, i32 -> vector<8x384xf32>
    %c18_i32_10 = arith.constant 18 : i32
    %23 = tpu.dynamic_rotate %21 by %c18_i32_10 dim 1 : vector<8x384xf32>, i32 -> vector<8x384xf32>
    %c17_i32_11 = arith.constant 17 : i32
    %24 = tpu.dynamic_rotate %21 by %c17_i32_11 dim 1 : vector<8x384xf32>, i32 -> vector<8x384xf32>
    %c1_i32_12 = arith.constant 1 : i32
    %25 = tpu.dynamic_rotate %21 by %c1_i32_12 dim 1 : vector<8x384xf32>, i32 -> vector<8x384xf32>
    %c383_i32_13 = arith.constant 383 : i32
    %26 = tpu.dynamic_rotate %21 by %c383_i32_13 dim 1 : vector<8x384xf32>, i32 -> vector<8x384xf32>
    %c367_i32_14 = arith.constant 367 : i32
    %27 = tpu.dynamic_rotate %21 by %c367_i32_14 dim 1 : vector<8x384xf32>, i32 -> vector<8x384xf32>
    %c366_i32_15 = arith.constant 366 : i32
    %28 = tpu.dynamic_rotate %21 by %c366_i32_15 dim 1 : vector<8x384xf32>, i32 -> vector<8x384xf32>
    %c365_i32_16 = arith.constant 365 : i32
    %29 = tpu.dynamic_rotate %21 by %c365_i32_16 dim 1 : vector<8x384xf32>, i32 -> vector<8x384xf32>
    %30 = tpu.concatenate %22, %23, %24, %25, %21, %26, %27, %28, %29 in 0 : vector<8x384xf32>, vector<8x384xf32>, vector<8x384xf32>, vector<8x384xf32>, vector<8x384xf32>, vector<8x384xf32>, vector<8x384xf32>, vector<8x384xf32>, vector<8x384xf32> -> vector<72x384xf32>
    %31 = arith.truncf %30 : vector<72x384xf32> to vector<72x384xbf16>
    %c0_17 = arith.constant 0 : index
    %c0_18 = arith.constant 0 : index
    %32 = vector.load %arg5[%c0_17, %c0_18] : memref<8x72xbf16, #tpu.memory_space<vmem>>, vector<8x72xbf16>
    %cst_19 = arith.constant dense<0.000000e+00> : vector<8x384xf32>
    %33 = tpu.matmul %32, %31, %cst_19 {dimension_numbers = #tpu.dot_dimension_numbers<[1], [0], [0], [1], [0, 0, 1, 1], [], []>} : vector<8x72xbf16>, vector<72x384xbf16>, vector<8x384xf32> -> vector<8x384xf32>
    %c0_20 = arith.constant 0 : index
    %c0_21 = arith.constant 0 : index
    %34 = vector.load %arg6[%c0_20, %c0_21] : memref<8x1xf32, #tpu.memory_space<vmem>>, vector<8x1xf32>
    %35 = vector.broadcast %34 : vector<8x1xf32> to vector<8x384xf32>
    %36 = arith.addf %33, %35 : vector<8x384xf32>
    %cst_22 = arith.constant 0.000000e+00 : f32
    %37 = vector.broadcast %cst_22 : f32 to vector<8x384xf32>
    %38 = arith.maximumf %36, %37 : vector<8x384xf32>
    %39 = vector.broadcast %0 : vector<1x384xf32> to vector<8x384xf32>
    %40 = arith.mulf %38, %39 : vector<8x384xf32>
    %c19_i32_23 = arith.constant 19 : i32
    %41 = tpu.dynamic_rotate %40 by %c19_i32_23 dim 1 : vector<8x384xf32>, i32 -> vector<8x384xf32>
    %c18_i32_24 = arith.constant 18 : i32
    %42 = tpu.dynamic_rotate %40 by %c18_i32_24 dim 1 : vector<8x384xf32>, i32 -> vector<8x384xf32>
    %c17_i32_25 = arith.constant 17 : i32
    %43 = tpu.dynamic_rotate %40 by %c17_i32_25 dim 1 : vector<8x384xf32>, i32 -> vector<8x384xf32>
    %c1_i32_26 = arith.constant 1 : i32
    %44 = tpu.dynamic_rotate %40 by %c1_i32_26 dim 1 : vector<8x384xf32>, i32 -> vector<8x384xf32>
    %c383_i32_27 = arith.constant 383 : i32
    %45 = tpu.dynamic_rotate %40 by %c383_i32_27 dim 1 : vector<8x384xf32>, i32 -> vector<8x384xf32>
    %c367_i32_28 = arith.constant 367 : i32
    %46 = tpu.dynamic_rotate %40 by %c367_i32_28 dim 1 : vector<8x384xf32>, i32 -> vector<8x384xf32>
    %c366_i32_29 = arith.constant 366 : i32
    %47 = tpu.dynamic_rotate %40 by %c366_i32_29 dim 1 : vector<8x384xf32>, i32 -> vector<8x384xf32>
    %c365_i32_30 = arith.constant 365 : i32
    %48 = tpu.dynamic_rotate %40 by %c365_i32_30 dim 1 : vector<8x384xf32>, i32 -> vector<8x384xf32>
    %49 = tpu.concatenate %41, %42, %43, %44, %40, %45, %46, %47, %48 in 0 : vector<8x384xf32>, vector<8x384xf32>, vector<8x384xf32>, vector<8x384xf32>, vector<8x384xf32>, vector<8x384xf32>, vector<8x384xf32>, vector<8x384xf32>, vector<8x384xf32> -> vector<72x384xf32>
    %50 = arith.truncf %49 : vector<72x384xf32> to vector<72x384xbf16>
    %c0_31 = arith.constant 0 : index
    %c0_32 = arith.constant 0 : index
    %51 = vector.load %arg7[%c0_31, %c0_32] : memref<8x72xbf16, #tpu.memory_space<vmem>>, vector<8x72xbf16>
    %cst_33 = arith.constant dense<0.000000e+00> : vector<8x384xf32>
    %52 = tpu.matmul %51, %50, %cst_33 {dimension_numbers = #tpu.dot_dimension_numbers<[1], [0], [0], [1], [0, 0, 1, 1], [], []>} : vector<8x72xbf16>, vector<72x384xbf16>, vector<8x384xf32> -> vector<8x384xf32>
    %c0_34 = arith.constant 0 : index
    %c0_35 = arith.constant 0 : index
    %53 = vector.load %arg8[%c0_34, %c0_35] : memref<8x1xf32, #tpu.memory_space<vmem>>, vector<8x1xf32>
    %54 = vector.broadcast %53 : vector<8x1xf32> to vector<8x384xf32>
    %55 = arith.addf %52, %54 : vector<8x384xf32>
    %56 = vector.broadcast %0 : vector<1x384xf32> to vector<8x384xf32>
    %57 = arith.mulf %55, %56 : vector<8x384xf32>
    %c0_36 = arith.constant 0 : index
    %c0_37 = arith.constant 0 : index
    %c0_38 = arith.constant 0 : index
    %58 = vector.load %arg9[%c0_36, %c0_37, %c0_38] : memref<1x8x384xf32, #tpu.memory_space<vmem>>, vector<1x8x384xf32>
    %59 = vector.shape_cast %58 : vector<1x8x384xf32> to vector<8x384xf32>
    %60 = vector.shape_cast %57 : vector<8x384xf32> to vector<1x8x384xf32>
    tpu.vector_store %arg9[%c0_36, %c0_37, %c0_38], %60 {strides = array<i32>} : memref<1x8x384xf32, #tpu.memory_space<vmem>>, vector<1x8x384xf32>,
    return
  }
  func.func @transform_0(%arg0: i32) -> (i32, i32, i32) {
    %c0_i32 = arith.constant 0 : i32
    %c0_i32_0 = arith.constant 0 : i32
    %c0_i32_1 = arith.constant 0 : i32
    return %arg0, %c0_i32, %c0_i32_0 : i32, i32, i32
  }
  func.func @transform_1(%arg0: i32) -> (i32, i32) {
    %c0_i32 = arith.constant 0 : i32
    %c0_i32_0 = arith.constant 0 : i32
    %c0_i32_1 = arith.constant 0 : i32
    return %c0_i32, %c0_i32_0 : i32, i32
  }
  func.func @transform_2(%arg0: i32) -> (i32, i32) {
    %c0_i32 = arith.constant 0 : i32
    %c0_i32_0 = arith.constant 0 : i32
    %c0_i32_1 = arith.constant 0 : i32
    return %c0_i32, %c0_i32_0 : i32, i32
  }
  func.func @transform_3(%arg0: i32) -> (i32, i32) {
    %c0_i32 = arith.constant 0 : i32
    %c0_i32_0 = arith.constant 0 : i32
    %c0_i32_1 = arith.constant 0 : i32
    return %c0_i32, %c0_i32_0 : i32, i32
  }
  func.func @transform_4(%arg0: i32) -> (i32, i32) {
    %c0_i32 = arith.constant 0 : i32
    %c0_i32_0 = arith.constant 0 : i32
    %c0_i32_1 = arith.constant 0 : i32
    return %c0_i32, %c0_i32_0 : i32, i32
  }
  func.func @transform_5(%arg0: i32) -> (i32, i32) {
    %c0_i32 = arith.constant 0 : i32
    %c0_i32_0 = arith.constant 0 : i32
    %c0_i32_1 = arith.constant 0 : i32
    return %c0_i32, %c0_i32_0 : i32, i32
  }
  func.func @transform_6(%arg0: i32) -> (i32, i32) {
    %c0_i32 = arith.constant 0 : i32
    %c0_i32_0 = arith.constant 0 : i32
    %c0_i32_1 = arith.constant 0 : i32
    return %c0_i32, %c0_i32_0 : i32, i32
  }
  func.func @transform_7(%arg0: i32) -> (i32, i32) {
    %c0_i32 = arith.constant 0 : i32
    %c0_i32_0 = arith.constant 0 : i32
    %c0_i32_1 = arith.constant 0 : i32
    return %c0_i32, %c0_i32_0 : i32, i32
  }
  func.func @transform_8(%arg0: i32) -> (i32, i32, i32) {
    %c0_i32 = arith.constant 0 : i32
    %c0_i32_0 = arith.constant 0 : i32
    %c0_i32_1 = arith.constant 0 : i32
    return %arg0, %c0_i32, %c0_i32_0 : i32, i32, i32
  }
}

module attributes {stable_mosaic.version = 11 : i64} {
  func.func @_mlp_kernel(%arg0: i32, %arg1: memref<16x32xf32, #tpu.memory_space<vmem>>, %arg2: memref<32x1024xbf16, #tpu.memory_space<vmem>>, %arg3: memref<1x1024xf32, #tpu.memory_space<vmem>>, %arg4: memref<1024x1024xbf16, #tpu.memory_space<vmem>>, %arg5: memref<1x1024xf32, #tpu.memory_space<vmem>>, %arg6: memref<1024x128xbf16, #tpu.memory_space<vmem>>, %arg7: memref<1x128xf32, #tpu.memory_space<vmem>>, %arg8: memref<16x128xf32, #tpu.memory_space<vmem>>) attributes {dimension_semantics = [#tpu.dimension_semantics<parallel>], iteration_bounds = array<i64: 2>, scalar_prefetch = 0 : i64, scratch_operands = 0 : i64, tpu.core_type = #tpu.core_type<tc>, window_params = [{transform_indices = @transform_0, window_bounds = array<i64: 16, 32>}, {pipeline_mode = #tpu.pipeline_mode<synchronous>, transform_indices = @transform_1, window_bounds = array<i64: 32, 1024>}, {pipeline_mode = #tpu.pipeline_mode<synchronous>, transform_indices = @transform_2, window_bounds = array<i64: 1, 1024>}, {pipeline_mode = #tpu.pipeline_mode<synchronous>, transform_indices = @transform_3, window_bounds = array<i64: 1024, 1024>}, {pipeline_mode = #tpu.pipeline_mode<synchronous>, transform_indices = @transform_4, window_bounds = array<i64: 1, 1024>}, {pipeline_mode = #tpu.pipeline_mode<synchronous>, transform_indices = @transform_5, window_bounds = array<i64: 1024, 128>}, {pipeline_mode = #tpu.pipeline_mode<synchronous>, transform_indices = @transform_6, window_bounds = array<i64: 1, 128>}, {transform_indices = @transform_7, window_bounds = array<i64: 16, 128>}]} {
    %c0 = arith.constant 0 : index
    %c0_0 = arith.constant 0 : index
    %0 = vector.load %arg1[%c0, %c0_0] : memref<16x32xf32, #tpu.memory_space<vmem>>, vector<16x32xf32>
    %1 = arith.truncf %0 : vector<16x32xf32> to vector<16x32xbf16>
    %c0_1 = arith.constant 0 : index
    %c0_2 = arith.constant 0 : index
    %2 = vector.load %arg2[%c0_1, %c0_2] : memref<32x1024xbf16, #tpu.memory_space<vmem>>, vector<32x1024xbf16>
    %cst = arith.constant dense<0.000000e+00> : vector<16x1024xf32>
    %3 = tpu.matmul %1, %2, %cst {dimension_numbers = #tpu.dot_dimension_numbers<[1], [0], [0], [1], [0, 0, 1, 1], [], []>} : vector<16x32xbf16>, vector<32x1024xbf16>, vector<16x1024xf32> -> vector<16x1024xf32>
    %c0_3 = arith.constant 0 : index
    %c0_4 = arith.constant 0 : index
    %4 = vector.load %arg3[%c0_3, %c0_4] : memref<1x1024xf32, #tpu.memory_space<vmem>>, vector<1x1024xf32>
    %5 = vector.broadcast %4 : vector<1x1024xf32> to vector<16x1024xf32>
    %6 = arith.addf %3, %5 : vector<16x1024xf32>
    %cst_5 = arith.constant 0.000000e+00 : f32
    %7 = vector.broadcast %cst_5 : f32 to vector<16x1024xf32>
    %8 = arith.maximumf %6, %7 : vector<16x1024xf32>
    %9 = arith.truncf %8 : vector<16x1024xf32> to vector<16x1024xbf16>
    %c0_6 = arith.constant 0 : index
    %c0_7 = arith.constant 0 : index
    %10 = vector.load %arg4[%c0_6, %c0_7] : memref<1024x1024xbf16, #tpu.memory_space<vmem>>, vector<1024x1024xbf16>
    %cst_8 = arith.constant dense<0.000000e+00> : vector<16x1024xf32>
    %11 = tpu.matmul %9, %10, %cst_8 {dimension_numbers = #tpu.dot_dimension_numbers<[1], [0], [0], [1], [0, 0, 1, 1], [], []>} : vector<16x1024xbf16>, vector<1024x1024xbf16>, vector<16x1024xf32> -> vector<16x1024xf32>
    %c0_9 = arith.constant 0 : index
    %c0_10 = arith.constant 0 : index
    %12 = vector.load %arg5[%c0_9, %c0_10] : memref<1x1024xf32, #tpu.memory_space<vmem>>, vector<1x1024xf32>
    %13 = vector.broadcast %12 : vector<1x1024xf32> to vector<16x1024xf32>
    %14 = arith.addf %11, %13 : vector<16x1024xf32>
    %cst_11 = arith.constant 0.000000e+00 : f32
    %15 = vector.broadcast %cst_11 : f32 to vector<16x1024xf32>
    %16 = arith.maximumf %14, %15 : vector<16x1024xf32>
    %17 = arith.truncf %16 : vector<16x1024xf32> to vector<16x1024xbf16>
    %c0_12 = arith.constant 0 : index
    %c0_13 = arith.constant 0 : index
    %18 = vector.load %arg6[%c0_12, %c0_13] : memref<1024x128xbf16, #tpu.memory_space<vmem>>, vector<1024x128xbf16>
    %cst_14 = arith.constant dense<0.000000e+00> : vector<16x128xf32>
    %19 = tpu.matmul %17, %18, %cst_14 {dimension_numbers = #tpu.dot_dimension_numbers<[1], [0], [0], [1], [0, 0, 1, 1], [], []>} : vector<16x1024xbf16>, vector<1024x128xbf16>, vector<16x128xf32> -> vector<16x128xf32>
    %c0_15 = arith.constant 0 : index
    %c0_16 = arith.constant 0 : index
    %20 = vector.load %arg7[%c0_15, %c0_16] : memref<1x128xf32, #tpu.memory_space<vmem>>, vector<1x128xf32>
    %21 = vector.broadcast %20 : vector<1x128xf32> to vector<16x128xf32>
    %22 = arith.addf %19, %21 : vector<16x128xf32>
    %c0_17 = arith.constant 0 : index
    %c0_18 = arith.constant 0 : index
    %23 = vector.load %arg8[%c0_17, %c0_18] : memref<16x128xf32, #tpu.memory_space<vmem>>, vector<16x128xf32>
    tpu.vector_store %arg8[%c0_17, %c0_18], %22 {strides = array<i32>} : memref<16x128xf32, #tpu.memory_space<vmem>>, vector<16x128xf32>,
    return
  }
  func.func @transform_0(%arg0: i32) -> (i32, i32) {
    %c0_i32 = arith.constant 0 : i32
    %c0_i32_0 = arith.constant 0 : i32
    return %arg0, %c0_i32 : i32, i32
  }
  func.func @transform_1(%arg0: i32) -> (i32, i32) {
    %c0_i32 = arith.constant 0 : i32
    %c0_i32_0 = arith.constant 0 : i32
    %c0_i32_1 = arith.constant 0 : i32
    return %c0_i32, %c0_i32_0 : i32, i32
  }
  func.func @transform_2(%arg0: i32) -> (i32, i32) {
    %c0_i32 = arith.constant 0 : i32
    %c0_i32_0 = arith.constant 0 : i32
    %c0_i32_1 = arith.constant 0 : i32
    return %c0_i32, %c0_i32_0 : i32, i32
  }
  func.func @transform_3(%arg0: i32) -> (i32, i32) {
    %c0_i32 = arith.constant 0 : i32
    %c0_i32_0 = arith.constant 0 : i32
    %c0_i32_1 = arith.constant 0 : i32
    return %c0_i32, %c0_i32_0 : i32, i32
  }
  func.func @transform_4(%arg0: i32) -> (i32, i32) {
    %c0_i32 = arith.constant 0 : i32
    %c0_i32_0 = arith.constant 0 : i32
    %c0_i32_1 = arith.constant 0 : i32
    return %c0_i32, %c0_i32_0 : i32, i32
  }
  func.func @transform_5(%arg0: i32) -> (i32, i32) {
    %c0_i32 = arith.constant 0 : i32
    %c0_i32_0 = arith.constant 0 : i32
    %c0_i32_1 = arith.constant 0 : i32
    return %c0_i32, %c0_i32_0 : i32, i32
  }
  func.func @transform_6(%arg0: i32) -> (i32, i32) {
    %c0_i32 = arith.constant 0 : i32
    %c0_i32_0 = arith.constant 0 : i32
    %c0_i32_1 = arith.constant 0 : i32
    return %c0_i32, %c0_i32_0 : i32, i32
  }
  func.func @transform_7(%arg0: i32) -> (i32, i32) {
    %c0_i32 = arith.constant 0 : i32
    %c0_i32_0 = arith.constant 0 : i32
    return %arg0, %c0_i32 : i32, i32
  }
}

module attributes {stable_mosaic.version = 11 : i64} {
  func.func @kernel(%arg0: i32, %arg1: memref<1x8x384xf32, #tpu.memory_space<vmem>>, %arg2: memref<1x384xf32, #tpu.memory_space<vmem>>, %arg3: memref<8x72xbf16, #tpu.memory_space<vmem>>, %arg4: memref<8x1xf32, #tpu.memory_space<vmem>>, %arg5: memref<8x72xbf16, #tpu.memory_space<vmem>>, %arg6: memref<8x1xf32, #tpu.memory_space<vmem>>, %arg7: memref<8x72xbf16, #tpu.memory_space<vmem>>, %arg8: memref<8x1xf32, #tpu.memory_space<vmem>>, %arg9: memref<1x8x384xf32, #tpu.memory_space<vmem>>) attributes {dimension_semantics = [#tpu.dimension_semantics<parallel>], iteration_bounds = array<i64: 2>, scalar_prefetch = 0 : i64, scratch_operands = 0 : i64, tpu.core_type = #tpu.core_type<tc>, window_params = [{transform_indices = @transform_0, window_bounds = array<i64: 1, 8, 384>}, {pipeline_mode = #tpu.pipeline_mode<synchronous>, transform_indices = @transform_1, window_bounds = array<i64: 1, 384>}, {pipeline_mode = #tpu.pipeline_mode<synchronous>, transform_indices = @transform_2, window_bounds = array<i64: 8, 72>}, {pipeline_mode = #tpu.pipeline_mode<synchronous>, transform_indices = @transform_3, window_bounds = array<i64: 8, 1>}, {pipeline_mode = #tpu.pipeline_mode<synchronous>, transform_indices = @transform_4, window_bounds = array<i64: 8, 72>}, {pipeline_mode = #tpu.pipeline_mode<synchronous>, transform_indices = @transform_5, window_bounds = array<i64: 8, 1>}, {pipeline_mode = #tpu.pipeline_mode<synchronous>, transform_indices = @transform_6, window_bounds = array<i64: 8, 72>}, {pipeline_mode = #tpu.pipeline_mode<synchronous>, transform_indices = @transform_7, window_bounds = array<i64: 8, 1>}, {transform_indices = @transform_8, window_bounds = array<i64: 1, 8, 384>}]} {
    %c0 = arith.constant 0 : index
    %c0_0 = arith.constant 0 : index
    %0 = vector.load %arg2[%c0, %c0_0] : memref<1x384xf32, #tpu.memory_space<vmem>>, vector<1x384xf32>
    %c0_1 = arith.constant 0 : index
    %c0_2 = arith.constant 0 : index
    %c0_3 = arith.constant 0 : index
    %1 = vector.load %arg1[%c0_1, %c0_2, %c0_3] : memref<1x8x384xf32, #tpu.memory_space<vmem>>, vector<1x8x384xf32>
    %2 = vector.shape_cast %1 : vector<1x8x384xf32> to vector<8x384xf32>
    %c19_i32 = arith.constant 19 : i32
    %3 = tpu.dynamic_rotate %2 by %c19_i32 dim 1 : vector<8x384xf32>, i32 -> vector<8x384xf32>
    %c18_i32 = arith.constant 18 : i32
    %4 = tpu.dynamic_rotate %2 by %c18_i32 dim 1 : vector<8x384xf32>, i32 -> vector<8x384xf32>
    %c17_i32 = arith.constant 17 : i32
    %5 = tpu.dynamic_rotate %2 by %c17_i32 dim 1 : vector<8x384xf32>, i32 -> vector<8x384xf32>
    %c1_i32 = arith.constant 1 : i32
    %6 = tpu.dynamic_rotate %2 by %c1_i32 dim 1 : vector<8x384xf32>, i32 -> vector<8x384xf32>
    %c383_i32 = arith.constant 383 : i32
    %7 = tpu.dynamic_rotate %2 by %c383_i32 dim 1 : vector<8x384xf32>, i32 -> vector<8x384xf32>
    %c367_i32 = arith.constant 367 : i32
    %8 = tpu.dynamic_rotate %2 by %c367_i32 dim 1 : vector<8x384xf32>, i32 -> vector<8x384xf32>
    %c366_i32 = arith.constant 366 : i32
    %9 = tpu.dynamic_rotate %2 by %c366_i32 dim 1 : vector<8x384xf32>, i32 -> vector<8x384xf32>
    %c365_i32 = arith.constant 365 : i32
    %10 = tpu.dynamic_rotate %2 by %c365_i32 dim 1 : vector<8x384xf32>, i32 -> vector<8x384xf32>
    %11 = tpu.concatenate %3, %4, %5, %6, %2, %7, %8, %9, %10 in 0 : vector<8x384xf32>, vector<8x384xf32>, vector<8x384xf32>, vector<8x384xf32>, vector<8x384xf32>, vector<8x384xf32>, vector<8x384xf32>, vector<8x384xf32>, vector<8x384xf32> -> vector<72x384xf32>
    %12 = arith.truncf %11 : vector<72x384xf32> to vector<72x384xbf16>
    %c0_4 = arith.constant 0 : index
    %c0_5 = arith.constant 0 : index
    %13 = vector.load %arg3[%c0_4, %c0_5] : memref<8x72xbf16, #tpu.memory_space<vmem>>, vector<8x72xbf16>
    %cst = arith.constant dense<0.000000e+00> : vector<8x384xf32>
    %14 = tpu.matmul %13, %12, %cst {dimension_numbers = #tpu.dot_dimension_numbers<[1], [0], [0], [1], [0, 0, 1, 1], [], []>} : vector<8x72xbf16>, vector<72x384xbf16>, vector<8x384xf32> -> vector<8x384xf32>
    %c0_6 = arith.constant 0 : index
    %c0_7 = arith.constant 0 : index
    %15 = vector.load %arg4[%c0_6, %c0_7] : memref<8x1xf32, #tpu.memory_space<vmem>>, vector<8x1xf32>
    %16 = vector.broadcast %15 : vector<8x1xf32> to vector<8x384xf32>
    %17 = arith.addf %14, %16 : vector<8x384xf32>
    %cst_8 = arith.constant 0.000000e+00 : f32
    %18 = vector.broadcast %cst_8 : f32 to vector<8x384xf32>
    %19 = arith.maximumf %17, %18 : vector<8x384xf32>
    %20 = vector.broadcast %0 : vector<1x384xf32> to vector<8x384xf32>
    %21 = arith.mulf %19, %20 : vector<8x384xf32>
    %c19_i32_9 = arith.constant 19 : i32
    %22 = tpu.dynamic_rotate %21 by %c19_i32_9 dim 1 : vector<8x384xf32>, i32 -> vector<8x384xf32>
    %c18_i32_10 = arith.constant 18 : i32
    %23 = tpu.dynamic_rotate %21 by %c18_i32_10 dim 1 : vector<8x384xf32>, i32 -> vector<8x384xf32>
    %c17_i32_11 = arith.constant 17 : i32
    %24 = tpu.dynamic_rotate %21 by %c17_i32_11 dim 1 : vector<8x384xf32>, i32 -> vector<8x384xf32>
    %c1_i32_12 = arith.constant 1 : i32
    %25 = tpu.dynamic_rotate %21 by %c1_i32_12 dim 1 : vector<8x384xf32>, i32 -> vector<8x384xf32>
    %c383_i32_13 = arith.constant 383 : i32
    %26 = tpu.dynamic_rotate %21 by %c383_i32_13 dim 1 : vector<8x384xf32>, i32 -> vector<8x384xf32>
    %c367_i32_14 = arith.constant 367 : i32
    %27 = tpu.dynamic_rotate %21 by %c367_i32_14 dim 1 : vector<8x384xf32>, i32 -> vector<8x384xf32>
    %c366_i32_15 = arith.constant 366 : i32
    %28 = tpu.dynamic_rotate %21 by %c366_i32_15 dim 1 : vector<8x384xf32>, i32 -> vector<8x384xf32>
    %c365_i32_16 = arith.constant 365 : i32
    %29 = tpu.dynamic_rotate %21 by %c365_i32_16 dim 1 : vector<8x384xf32>, i32 -> vector<8x384xf32>
    %30 = tpu.concatenate %22, %23, %24, %25, %21, %26, %27, %28, %29 in 0 : vector<8x384xf32>, vector<8x384xf32>, vector<8x384xf32>, vector<8x384xf32>, vector<8x384xf32>, vector<8x384xf32>, vector<8x384xf32>, vector<8x384xf32>, vector<8x384xf32> -> vector<72x384xf32>
    %31 = arith.truncf %30 : vector<72x384xf32> to vector<72x384xbf16>
    %c0_17 = arith.constant 0 : index
    %c0_18 = arith.constant 0 : index
    %32 = vector.load %arg5[%c0_17, %c0_18] : memref<8x72xbf16, #tpu.memory_space<vmem>>, vector<8x72xbf16>
    %cst_19 = arith.constant dense<0.000000e+00> : vector<8x384xf32>
    %33 = tpu.matmul %32, %31, %cst_19 {dimension_numbers = #tpu.dot_dimension_numbers<[1], [0], [0], [1], [0, 0, 1, 1], [], []>} : vector<8x72xbf16>, vector<72x384xbf16>, vector<8x384xf32> -> vector<8x384xf32>
    %c0_20 = arith.constant 0 : index
    %c0_21 = arith.constant 0 : index
    %34 = vector.load %arg6[%c0_20, %c0_21] : memref<8x1xf32, #tpu.memory_space<vmem>>, vector<8x1xf32>
    %35 = vector.broadcast %34 : vector<8x1xf32> to vector<8x384xf32>
    %36 = arith.addf %33, %35 : vector<8x384xf32>
    %cst_22 = arith.constant 0.000000e+00 : f32
    %37 = vector.broadcast %cst_22 : f32 to vector<8x384xf32>
    %38 = arith.maximumf %36, %37 : vector<8x384xf32>
    %39 = vector.broadcast %0 : vector<1x384xf32> to vector<8x384xf32>
    %40 = arith.mulf %38, %39 : vector<8x384xf32>
    %c19_i32_23 = arith.constant 19 : i32
    %41 = tpu.dynamic_rotate %40 by %c19_i32_23 dim 1 : vector<8x384xf32>, i32 -> vector<8x384xf32>
    %c18_i32_24 = arith.constant 18 : i32
    %42 = tpu.dynamic_rotate %40 by %c18_i32_24 dim 1 : vector<8x384xf32>, i32 -> vector<8x384xf32>
    %c17_i32_25 = arith.constant 17 : i32
    %43 = tpu.dynamic_rotate %40 by %c17_i32_25 dim 1 : vector<8x384xf32>, i32 -> vector<8x384xf32>
    %c1_i32_26 = arith.constant 1 : i32
    %44 = tpu.dynamic_rotate %40 by %c1_i32_26 dim 1 : vector<8x384xf32>, i32 -> vector<8x384xf32>
    %c383_i32_27 = arith.constant 383 : i32
    %45 = tpu.dynamic_rotate %40 by %c383_i32_27 dim 1 : vector<8x384xf32>, i32 -> vector<8x384xf32>
    %c367_i32_28 = arith.constant 367 : i32
    %46 = tpu.dynamic_rotate %40 by %c367_i32_28 dim 1 : vector<8x384xf32>, i32 -> vector<8x384xf32>
    %c366_i32_29 = arith.constant 366 : i32
    %47 = tpu.dynamic_rotate %40 by %c366_i32_29 dim 1 : vector<8x384xf32>, i32 -> vector<8x384xf32>
    %c365_i32_30 = arith.constant 365 : i32
    %48 = tpu.dynamic_rotate %40 by %c365_i32_30 dim 1 : vector<8x384xf32>, i32 -> vector<8x384xf32>
    %49 = tpu.concatenate %41, %42, %43, %44, %40, %45, %46, %47, %48 in 0 : vector<8x384xf32>, vector<8x384xf32>, vector<8x384xf32>, vector<8x384xf32>, vector<8x384xf32>, vector<8x384xf32>, vector<8x384xf32>, vector<8x384xf32>, vector<8x384xf32> -> vector<72x384xf32>
    %50 = arith.truncf %49 : vector<72x384xf32> to vector<72x384xbf16>
    %c0_31 = arith.constant 0 : index
    %c0_32 = arith.constant 0 : index
    %51 = vector.load %arg7[%c0_31, %c0_32] : memref<8x72xbf16, #tpu.memory_space<vmem>>, vector<8x72xbf16>
    %cst_33 = arith.constant dense<0.000000e+00> : vector<8x384xf32>
    %52 = tpu.matmul %51, %50, %cst_33 {dimension_numbers = #tpu.dot_dimension_numbers<[1], [0], [0], [1], [0, 0, 1, 1], [], []>} : vector<8x72xbf16>, vector<72x384xbf16>, vector<8x384xf32> -> vector<8x384xf32>
    %c0_34 = arith.constant 0 : index
    %c0_35 = arith.constant 0 : index
    %53 = vector.load %arg8[%c0_34, %c0_35] : memref<8x1xf32, #tpu.memory_space<vmem>>, vector<8x1xf32>
    %54 = vector.broadcast %53 : vector<8x1xf32> to vector<8x384xf32>
    %55 = arith.addf %52, %54 : vector<8x384xf32>
    %56 = vector.broadcast %0 : vector<1x384xf32> to vector<8x384xf32>
    %57 = arith.mulf %55, %56 : vector<8x384xf32>
    %c0_36 = arith.constant 0 : index
    %c0_37 = arith.constant 0 : index
    %c0_38 = arith.constant 0 : index
    %58 = vector.load %arg9[%c0_36, %c0_37, %c0_38] : memref<1x8x384xf32, #tpu.memory_space<vmem>>, vector<1x8x384xf32>
    %59 = vector.shape_cast %58 : vector<1x8x384xf32> to vector<8x384xf32>
    %60 = vector.shape_cast %57 : vector<8x384xf32> to vector<1x8x384xf32>
    tpu.vector_store %arg9[%c0_36, %c0_37, %c0_38], %60 {strides = array<i32>} : memref<1x8x384xf32, #tpu.memory_space<vmem>>, vector<1x8x384xf32>,
    return
  }
  func.func @transform_0(%arg0: i32) -> (i32, i32, i32) {
    %c0_i32 = arith.constant 0 : i32
    %c0_i32_0 = arith.constant 0 : i32
    %c0_i32_1 = arith.constant 0 : i32
    return %arg0, %c0_i32, %c0_i32_0 : i32, i32, i32
  }
  func.func @transform_1(%arg0: i32) -> (i32, i32) {
    %c0_i32 = arith.constant 0 : i32
    %c0_i32_0 = arith.constant 0 : i32
    %c0_i32_1 = arith.constant 0 : i32
    return %c0_i32, %c0_i32_0 : i32, i32
  }
  func.func @transform_2(%arg0: i32) -> (i32, i32) {
    %c0_i32 = arith.constant 0 : i32
    %c0_i32_0 = arith.constant 0 : i32
    %c0_i32_1 = arith.constant 0 : i32
    return %c0_i32, %c0_i32_0 : i32, i32
  }
  func.func @transform_3(%arg0: i32) -> (i32, i32) {
    %c0_i32 = arith.constant 0 : i32
    %c0_i32_0 = arith.constant 0 : i32
    %c0_i32_1 = arith.constant 0 : i32
    return %c0_i32, %c0_i32_0 : i32, i32
  }
  func.func @transform_4(%arg0: i32) -> (i32, i32) {
    %c0_i32 = arith.constant 0 : i32
    %c0_i32_0 = arith.constant 0 : i32
    %c0_i32_1 = arith.constant 0 : i32
    return %c0_i32, %c0_i32_0 : i32, i32
  }
  func.func @transform_5(%arg0: i32) -> (i32, i32) {
    %c0_i32 = arith.constant 0 : i32
    %c0_i32_0 = arith.constant 0 : i32
    %c0_i32_1 = arith.constant 0 : i32
    return %c0_i32, %c0_i32_0 : i32, i32
  }
  func.func @transform_6(%arg0: i32) -> (i32, i32) {
    %c0_i32 = arith.constant 0 : i32
    %c0_i32_0 = arith.constant 0 : i32
    %c0_i32_1 = arith.constant 0 : i32
    return %c0_i32, %c0_i32_0 : i32, i32
  }
  func.func @transform_7(%arg0: i32) -> (i32, i32) {
    %c0_i32 = arith.constant 0 : i32
    %c0_i32_0 = arith.constant 0 : i32
    %c0_i32_1 = arith.constant 0 : i32
    return %c0_i32, %c0_i32_0 : i32, i32
  }
  func.func @transform_8(%arg0: i32) -> (i32, i32, i32) {
    %c0_i32 = arith.constant 0 : i32
    %c0_i32_0 = arith.constant 0 : i32
    %c0_i32_1 = arith.constant 0 : i32
    return %arg0, %c0_i32, %c0_i32_0 : i32, i32, i32
  }
}

</mosaic_0001>

<llo_original>
// kernel: _lambda_.5
$region0: #{_lambda_.5}
  #allocation0 [shape = 'u32[]', space=smem, size = 0x4, offset = 0x4, fixed_abs, tag = 'smem constant byte address 0x4 - core index']
  #allocation1 [shape = 'u32[144,128]{1,0:T(1,128)}', space=vmem, size = 0x12000, scoped, tag = 'internal scratch']
  %s0 = inlined_call_operand.vmem [shape: f32[4,16,16], index: 0, kind: input, shape index: {}]
  %s1 = inlined_call_operand.hbm [shape: bf16[16,128], index: 1, kind: input, shape index: {}]
  %s2 = inlined_call_operand.hbm [shape: bf16[16,128], index: 2, kind: input, shape index: {}]
  %s3 = inlined_call_operand.vmem [shape: f32[4,16,128], index: 3, kind: output, shape index: {}]
  %s4 = sld [smem:[#allocation0]]
  $region53: #{_lambda_.5} parent=0
    _
  %s6 = ssub.s32 1, %s4
  %s7 = scalar_select 0, %s6, %s4
  $region1: #{_lambda_.5} parent=0
    #allocation2 [shape = 'u8[4096]{0}', space=vmem, size = 0x1000, scoped, tag = 'input window, operand 1, single buffered']
    #allocation3 [shape = 's32[2]{0}', space=sflag, size = 0x8, scoped, tag = 'scoped memory for _lambda_.5']
    #allocation4 [shape = 'u8[4096]{0}', space=vmem, size = 0x1000, scoped, tag = 'input window, operand 2, single buffered']
    #allocation5 [shape = 's32[1]{0}', space=sflag, size = 0x4, scoped, tag = 'scoped memory for _lambda_.5']
    %8 = vsyncpa [#allocation3], 0
    %9 = vsyncpa [#allocation5], 0
    loop: start=0, step=1, limit=4
    $region2: #{_lambda_.5} parent=1 // loop_pre_header
      _
    $region3: #{_lambda_.5} parent=1 // loop_header
      %s11 = sphi 0, %s15
      %p12 = scmp.ge.s32.totalorder %s11, 4
      %s21 = sphi 0, %s23
      %s24 = sphi 0, %s21
      %s25 = sphi 0, %s24
      %s41 = sphi 0, %s25
      %s45 = sphi 0, %s45
      %s47 = sphi 0, %s45
      %s48 = sphi 0, %s47
      %s62 = sphi 0, %s48
      %s66 = sphi 0, %s66
      %s68 = sphi 0, %s66
      %s69 = sphi 0, %s68
      %s83 = sphi 0, %s69
      %s89 = sphi 0, %s91
      %s92 = sphi 0, %s89
      %s93 = sphi 0, %s92
      %s109 = sphi 0, %s93
    $region4: #{_lambda_.5} parent=1 // loop_header_branch
      %14 = sbr.rel (%p12) target = $region8
    $region5: #{_lambda_.5} parent=1 // loop_body
      %s16 = ssub.s32 %s11, 1
      %s17 = ssub.s32 %s11, 2
      %s18 = sadd.s32 %s11, 1
      %s19 = ssub.s32 %s11, %s18
      %p20 = scmp.eq.s32.totalorder %s19, 0
      %s22 = sadd.s32 %s21, 1
      %s23 = scalar_select %p20, %s21, %s22
      %p26 = pneg %p20
      %p27 = scmp.eq.s32.totalorder %s11, 1
      %p28 = por %p26, %p27
      %p29 = scmp.ne.s32.totalorder %s21, %s24
      %p30 = scmp.eq.s32.totalorder %s11, 0
      %p31 = por %p29, %p30
      %p32 = scmp.ne.s32.totalorder %s21, %s24
      %p33 = scmp.eq.s32.totalorder %s16, 1
      %p34 = por %p32, %p33
      %p35 = scmp.ne.s32.totalorder %s24, %s25
      %p36 = scmp.eq.s32.totalorder %s16, 0
      %p37 = por %p35, %p36
      %p38 = scmp.ne.s32.totalorder %s24, %s25
      %p39 = scmp.eq.s32.totalorder %s17, 1
      %p40 = por %p38, %p39
      %p42 = scmp.ne.s32.totalorder %s25, %s41
      %p43 = scmp.eq.s32.totalorder %s17, 0
      %p44 = por %p42, %p43
      %s46 = sadd.s32 %s45, 1
      %p49 = scmp.eq.s32.totalorder %s11, 1
      %p50 = scmp.ne.s32.totalorder %s45, %s47
      %p51 = scmp.eq.s32.totalorder %s11, 0
      %p52 = por %p50, %p51
      %p53 = scmp.ne.s32.totalorder %s45, %s47
      %p54 = scmp.eq.s32.totalorder %s16, 1
      %p55 = por %p53, %p54
      %p56 = scmp.ne.s32.totalorder %s47, %s48
      %p57 = scmp.eq.s32.totalorder %s16, 0
      %p58 = por %p56, %p57
      %p59 = scmp.ne.s32.totalorder %s47, %s48
      %p60 = scmp.eq.s32.totalorder %s17, 1
      %p61 = por %p59, %p60
      %p63 = scmp.ne.s32.totalorder %s48, %s62
      %p64 = scmp.eq.s32.totalorder %s17, 0
      %p65 = por %p63, %p64
      %s67 = sadd.s32 %s66, 1
      %p70 = scmp.eq.s32.totalorder %s11, 1
      %p71 = scmp.ne.s32.totalorder %s66, %s68
      %p72 = scmp.eq.s32.totalorder %s11, 0
      %p73 = por %p71, %p72
      %p74 = scmp.ne.s32.totalorder %s66, %s68
      %p75 = scmp.eq.s32.totalorder %s16, 1
      %p76 = por %p74, %p75
      %p77 = scmp.ne.s32.totalorder %s68, %s69
      %p78 = scmp.eq.s32.totalorder %s16, 0
      %p79 = por %p77, %p78
      %p80 = scmp.ne.s32.totalorder %s68, %s69
      %p81 = scmp.eq.s32.totalorder %s17, 1
      %p82 = por %p80, %p81
      %p84 = scmp.ne.s32.totalorder %s69, %s83
      %p85 = scmp.eq.s32.totalorder %s17, 0
      %p86 = por %p84, %p85
      %s87 = ssub.s32 %s11, %s18
      %p88 = scmp.eq.s32.totalorder %s87, 0
      %s90 = sadd.s32 %s89, 1
      %s91 = scalar_select %p88, %s89, %s90
      %p94 = pneg %p88
      %p95 = scmp.eq.s32.totalorder %s11, 1
      %p96 = por %p94, %p95
      %p97 = scmp.ne.s32.totalorder %s89, %s92
      %p98 = scmp.eq.s32.totalorder %s11, 0
      %p99 = por %p97, %p98
      %p100 = scmp.ne.s32.totalorder %s89, %s92
      %p101 = scmp.eq.s32.totalorder %s16, 1
      %p102 = por %p100, %p101
      %p103 = scmp.ne.s32.totalorder %s92, %s93
      %p104 = scmp.eq.s32.totalorder %s16, 0
      %p105 = por %p103, %p104
      %p106 = scmp.ne.s32.totalorder %s92, %s93
      %p107 = scmp.eq.s32.totalorder %s17, 1
      %p108 = por %p106, %p107
      %p110 = scmp.ne.s32.totalorder %s93, %s109
      %p111 = scmp.eq.s32.totalorder %s17, 0
      %p112 = por %p110, %p111
      %p113 = scmp.le.s32.totalorder 1, %s11
      %p114 = scmp.lt.s32.totalorder %s11, 3
      %p115 = pnand %p113, %p114
      %p116 = pneg %p115
      // Predicated region
      $region9: #{_lambda_.5} parent=5 // pred_check
        _
      $region10: #{_lambda_.5} parent=5 // pred_check_branch
        %118 = sbr.rel (%p115) target = $region12
      $region11: #{_lambda_.5} parent=5 // pred_region
        %s119 = ssub.s32 %s11, 1
        // Predicated region
        $region13: #{_lambda_.5} parent=11 // pred_check
          %p120 = pneg %p58
        $region14: #{_lambda_.5} parent=11 // pred_check_branch
          %122 = sbr.rel (%p120) target = $region16
        $region15: #{_lambda_.5} parent=11 // pred_region
          %s124 = ssub.s32 128, 128
          %125 = vsyncadd [#allocation3], %s124
          %s126 = sshll.u32 [#allocation2], 4
          %s127 = int_to_ptr.vmem [resolvable:$true] %s126
          %132 = dma.hbm_to_vmem [thread:$0]  %s1, 128, %s127, [#allocation3], 64, 64, 4
        $region16: #{_lambda_.5} parent=11 // pred_fallthru
          _
        // Predicated region
        $region17: #{_lambda_.5} parent=11 // pred_check
          %p133 = pneg %p79
        $region18: #{_lambda_.5} parent=11 // pred_check_branch
          %135 = sbr.rel (%p133) target = $region20
        $region19: #{_lambda_.5} parent=11 // pred_region
          %s137 = ssub.s32 128, 128
          %138 = vsyncadd [#allocation5], %s137
          %s139 = sshll.u32 [#allocation4], 4
          %s140 = int_to_ptr.vmem [resolvable:$true] %s139
          %145 = dma.hbm_to_vmem [thread:$0]  %s2, 128, %s140, [#allocation5], 64, 64, 4
        $region20: #{_lambda_.5} parent=11 // pred_fallthru
          _
      $region12: #{_lambda_.5} parent=5 // pred_fallthru
        _
      %p146 = scmp.lt.s32.totalorder %s11, 2
      // Predicated region
      $region21: #{_lambda_.5} parent=5 // pred_check
        %p147 = pneg %p146
      $region22: #{_lambda_.5} parent=5 // pred_check_branch
        %149 = sbr.rel (%p147) target = $region24
      $region23: #{_lambda_.5} parent=5 // pred_region
        // Predicated region
        $region25: #{_lambda_.5} parent=23 // pred_check
          %p150 = pneg %p31
        $region26: #{_lambda_.5} parent=23 // pred_check_branch
          %152 = sbr.rel (%p150) target = $region28
        $region27: #{_lambda_.5} parent=23 // pred_region
          %s153 = smul.u32 2, %s11
          %p154 = scmp.lt.s32.totalorder %s153, 3
          %s155 = scalar_select %p154, %s153, 3
          %s156 = smul.addr %s155, 2
          %s157 = smul.addr %s156, 8
          %s158 = scalar_lea.vmem %s0, %s157
          %s159 = smul.u32 2, %s11
        $region28: #{_lambda_.5} parent=23 // pred_fallthru
          _
      $region24: #{_lambda_.5} parent=5 // pred_fallthru
        _
      %p160 = scmp.le.s32.totalorder 1, %s11
      %p161 = scmp.lt.s32.totalorder %s11, 3
      %p162 = pnand %p160, %p161
      %p163 = pneg %p162
      // Predicated region
      $region29: #{_lambda_.5} parent=5 // pred_check
        _
      $region30: #{_lambda_.5} parent=5 // pred_check_branch
        %165 = sbr.rel (%p162) target = $region32
      $region31: #{_lambda_.5} parent=5 // pred_region
        %s166 = ssub.s32 %s11, 1
        // Predicated region
        $region33: #{_lambda_.5} parent=31 // pred_check
          %p167 = pneg %p58
        $region34: #{_lambda_.5} parent=31 // pred_check_branch
          %169 = sbr.rel (%p167) target = $region36
        $region35: #{_lambda_.5} parent=31 // pred_region
          %170 = dma.done [#allocation3], 128
        $region36: #{_lambda_.5} parent=31 // pred_fallthru
          _
        // Predicated region
        $region37: #{_lambda_.5} parent=31 // pred_check
          %p171 = pneg %p79
        $region38: #{_lambda_.5} parent=31 // pred_check_branch
          %173 = sbr.rel (%p171) target = $region40
        $region39: #{_lambda_.5} parent=31 // pred_region
          %174 = dma.done [#allocation5], 128
        $region40: #{_lambda_.5} parent=31 // pred_fallthru
          _
        %s175 = smul.u32 2, %s16
        %p176 = scmp.lt.s32.totalorder %s175, 3
        %s177 = scalar_select %p176, %s175, 3
        %s178 = smul.addr %s177, 2
        %s179 = smul.addr %s178, 8
        %s180 = scalar_lea.vmem %s0, %s179
        %p181 = pneg %p37
        %p182 = pneg %p34
        %p183 = pneg %p58
        %p184 = pneg %p55
        %p185 = pneg %p79
        %p186 = pneg %p76
        %p187 = pneg %p105
        %p188 = pneg %p102
        %s189 = smul.u32 2, %s16
        %p190 = scmp.lt.s32.totalorder %s189, 3
        %s191 = scalar_select %p190, %s189, 3
        %s192 = smul.addr %s191, 2
        %s193 = smul.addr %s192, 8
        %s194 = scalar_lea.vmem %s3, %s193
        %s195 = smul.u32 2, %s16
        %p196 = scmp.lt.s32.totalorder %s195, 3
        %s197 = scalar_select %p196, %s195, 3
        %s198 = smul.addr %s197, 2
        %s199 = smul.addr %s198, 8
        %s200 = scalar_lea.vmem %s0, %s199
        %s201 = smul.u32 2, %s16
        %s202 = smul.u32 2, %s16
        %p203 = scmp.lt.s32.totalorder %s202, 3
        %s204 = scalar_select %p203, %s202, 3
        %s205 = smul.addr %s204, 2
        %s206 = smul.addr %s205, 8
        %s207 = scalar_lea.vmem %s3, %s206
        %s208 = smul.u32 2, %s16
        %v210 = vld [vmem:[%s200] sm:$0xff]
        %v211 = vld [vmem:[%s200 + $0x8] sm:$0xff]
        %v212 = vpack.c.bf16 %v211, %v210
        %s213 = scalar_lea.vmem %s200, 16
        %v214 = vld [vmem:[%s213] sm:$0xff]
        %v215 = vld [vmem:[%s213 + $0x8] sm:$0xff]
        %v216 = vpack.c.bf16 %v215, %v214
        %v217 = vld [vmem:[#allocation2] sm:$0xf]
        %v218 = vld [vmem:[#allocation2 + $0x4] sm:$0xf]
        %v219 = vld [vmem:[#allocation4] sm:$0xf]
        %v220 = vld [vmem:[#allocation4 + $0x4] sm:$0xf]
        %v223 = vunpack.c.l.b16 %v217
        %v224 = vunpack.c.l.b16 %v218
        %v225 = vpack.c.b16 %v224, %v223
        %vm227 = vcmask 130048
        %v229 = vsel %vm227, %v212, 0
        %231 = vmatprep.subr.bf16.mxu0 0
        %232 = vmatpush1.bf16.msra.mxu0 0
        %233 = vmatprep.subr.bf16.mxu0 0
        %234 = vmatpush1.bf16.msra.mxu0 0
        %235 = vmatprep.subr.bf16.mxu0 0
        %236 = vmatpush1.bf16.msra.mxu0 0
        %237 = vmatprep.subr.bf16.mxu0 0
        %238 = vmatpush1.bf16.msra.mxu0 0
        %239 = vmatprep.subr.bf16.mxu0 0
        %240 = vmatpush1.bf16.msra.mxu0 0
        %241 = vmatprep.subr.bf16.mxu0 0
        %242 = vmatpush1.bf16.msra.mxu0 0
        %243 = vmatprep.subr.bf16.mxu0 0
        %244 = vmatpush1.bf16.msra.mxu0 0
        %245 = vmatprep.subr.bf16.mxu0 0
        %246 = vmatpush1.bf16.msra.mxu0 %v225
        %247 = vmatprep.subr.bf16.mxu0 0
        %248 = vmatpush2.bf16.msra.mxu0 0
        %249 = vmatprep.subr.bf16.mxu0 0
        %250 = vmatpush2.bf16.msra.mxu0 0
        %251 = vmatprep.subr.bf16.mxu0 0
        %252 = vmatpush2.bf16.msra.mxu0 0
        %253 = vmatprep.subr.bf16.mxu0 0
        %254 = vmatpush2.bf16.msra.mxu0 0
        %255 = vmatprep.subr.bf16.mxu0 0
        %256 = vmatpush2.bf16.msra.mxu0 0
        %257 = vmatprep.subr.bf16.mxu0 0
        %258 = vmatpush2.bf16.msra.mxu0 0
        %259 = vmatprep.subr.bf16.mxu0 0
        %260 = vmatpush2.bf16.msra.mxu0 0
        %261 = vmatprep.subr.bf16.mxu0 0
        %262 = vmatpush2.bf16.msra.mxu0 0
        %263 = vmatprep.mubr.bf16.mxu0 0
        %264 = vmatmul.mubr.bf16.gmra.mxu0 %v229
        %v265 = vpop.f32.mrf.mxu0
        %v266 = vadd.f32 0.0, %v265
        %v267 = vpop.f32.mrf.mxu0
        %v268 = vpop.f32.mrf.mxu0
        %v269 = vadd.f32 0.0, %v268
        %v270 = vpop.f32.mrf.mxu0
        %271 = vdwg.mxu0
        %v274 = vunpack.c.l.b16 %v219
        %v275 = vunpack.c.l.b16 %v220
        %v276 = vpack.c.b16 %v275, %v274
        %v279 = vsel %vm227, %v216, 0
        %281 = vmatprep.subr.bf16.mxu0 0
        %282 = vmatpush1.bf16.msra.mxu0 0
        %283 = vmatprep.subr.bf16.mxu0 0
        %284 = vmatpush1.bf16.msra.mxu0 0
        %285 = vmatprep.subr.bf16.mxu0 0
        %286 = vmatpush1.bf16.msra.mxu0 0
        %287 = vmatprep.subr.bf16.mxu0 0
        %288 = vmatpush1.bf16.msra.mxu0 0
        %289 = vmatprep.subr.bf16.mxu0 0
        %290 = vmatpush1.bf16.msra.mxu0 0
        %291 = vmatprep.subr.bf16.mxu0 0
        %292 = vmatpush1.bf16.msra.mxu0 0
        %293 = vmatprep.subr.bf16.mxu0 0
        %294 = vmatpush1.bf16.msra.mxu0 0
        %295 = vmatprep.subr.bf16.mxu0 0
        %296 = vmatpush1.bf16.msra.mxu0 %v276
        %297 = vmatprep.subr.bf16.mxu0 0
        %298 = vmatpush2.bf16.msra.mxu0 0
        %299 = vmatprep.subr.bf16.mxu0 0
        %300 = vmatpush2.bf16.msra.mxu0 0
        %301 = vmatprep.subr.bf16.mxu0 0
        %302 = vmatpush2.bf16.msra.mxu0 0
        %303 = vmatprep.subr.bf16.mxu0 0
        %304 = vmatpush2.bf16.msra.mxu0 0
        %305 = vmatprep.subr.bf16.mxu0 0
        %306 = vmatpush2.bf16.msra.mxu0 0
        %307 = vmatprep.subr.bf16.mxu0 0
        %308 = vmatpush2.bf16.msra.mxu0 0
        %309 = vmatprep.subr.bf16.mxu0 0
        %310 = vmatpush2.bf16.msra.mxu0 0
        %311 = vmatprep.subr.bf16.mxu0 0
        %312 = vmatpush2.bf16.msra.mxu0 0
        %313 = vmatprep.mubr.bf16.mxu0 0
        %314 = vmatmul.mubr.bf16.gmra.mxu0 %v279
        %v315 = vpop.f32.mrf.mxu0
        %v316 = vadd.f32 0.0, %v315
        %v317 = vpop.f32.mrf.mxu0
        %v318 = vpop.f32.mrf.mxu0
        %v319 = vadd.f32 0.0, %v318
        %v320 = vpop.f32.mrf.mxu0
        %321 = vdwg.mxu0
        %v322 = vsub.f32 %v266, %v316
        %v323 = vsub.f32 %v269, %v319
        %324 = vst [vmem:[%s207] sm:$0xff] %v322
        %325 = vst [vmem:[%s207 + $0x8] sm:$0xff] %v323
        %326 = vmatprep.subr.bf16.mxu0 0
        %327 = vmatpush1.bf16.msra.mxu0 0
        %328 = vmatprep.subr.bf16.mxu0 0
        %329 = vmatpush1.bf16.msra.mxu0 0
        %330 = vmatprep.subr.bf16.mxu0 0
        %331 = vmatpush1.bf16.msra.mxu0 0
        %332 = vmatprep.subr.bf16.mxu0 0
        %333 = vmatpush1.bf16.msra.mxu0 0
        %334 = vmatprep.subr.bf16.mxu0 0
        %335 = vmatpush1.bf16.msra.mxu0 0
        %336 = vmatprep.subr.bf16.mxu0 0
        %337 = vmatpush1.bf16.msra.mxu0 0
        %338 = vmatprep.subr.bf16.mxu0 0
        %339 = vmatpush1.bf16.msra.mxu0 0
        %340 = vmatprep.subr.bf16.mxu0 0
        %341 = vmatpush1.bf16.msra.mxu0 %v225
        %342 = vmatprep.subr.bf16.mxu0 0
        %343 = vmatpush2.bf16.msra.mxu0 0
        %344 = vmatprep.subr.bf16.mxu0 0
        %345 = vmatpush2.bf16.msra.mxu0 0
        %346 = vmatprep.subr.bf16.mxu0 0
        %347 = vmatpush2.bf16.msra.mxu0 0
        %348 = vmatprep.subr.bf16.mxu0 0
        %349 = vmatpush2.bf16.msra.mxu0 0
        %350 = vmatprep.subr.bf16.mxu0 0
        %351 = vmatpush2.bf16.msra.mxu0 0
        %352 = vmatprep.subr.bf16.mxu0 0
        %353 = vmatpush2.bf16.msra.mxu0 0
        %354 = vmatprep.subr.bf16.mxu0 0
        %355 = vmatpush2.bf16.msra.mxu0 0
        %356 = vmatprep.subr.bf16.mxu0 0
        %357 = vmatpush2.bf16.msra.mxu0 0
        %358 = vmatprep.mubr.bf16.mxu0 0
        %359 = vmatmul.mubr.bf16.gmra.mxu0 %v279
        %v360 = vpop.f32.mrf.mxu0
        %v361 = vadd.f32 0.0, %v360
        %v362 = vpop.f32.mrf.mxu0
        %v363 = vpop.f32.mrf.mxu0
        %v364 = vadd.f32 0.0, %v363
        %v365 = vpop.f32.mrf.mxu0
        %366 = vdwg.mxu0
        %367 = vmatprep.subr.bf16.mxu0 0
        %368 = vmatpush1.bf16.msra.mxu0 0
        %369 = vmatprep.subr.bf16.mxu0 0
        %370 = vmatpush1.bf16.msra.mxu0 0
        %371 = vmatprep.subr.bf16.mxu0 0
        %372 = vmatpush1.bf16.msra.mxu0 0
        %373 = vmatprep.subr.bf16.mxu0 0
        %374 = vmatpush1.bf16.msra.mxu0 0
        %375 = vmatprep.subr.bf16.mxu0 0
        %376 = vmatpush1.bf16.msra.mxu0 0
        %377 = vmatprep.subr.bf16.mxu0 0
        %378 = vmatpush1.bf16.msra.mxu0 0
        %379 = vmatprep.subr.bf16.mxu0 0
        %380 = vmatpush1.bf16.msra.mxu0 0
        %381 = vmatprep.subr.bf16.mxu0 0
        %382 = vmatpush1.bf16.msra.mxu0 %v276
        %383 = vmatprep.subr.bf16.mxu0 0
        %384 = vmatpush2.bf16.msra.mxu0 0
        %385 = vmatprep.subr.bf16.mxu0 0
        %386 = vmatpush2.bf16.msra.mxu0 0
        %387 = vmatprep.subr.bf16.mxu0 0
        %388 = vmatpush2.bf16.msra.mxu0 0
        %389 = vmatprep.subr.bf16.mxu0 0
        %390 = vmatpush2.bf16.msra.mxu0 0
        %391 = vmatprep.subr.bf16.mxu0 0
        %392 = vmatpush2.bf16.msra.mxu0 0
        %393 = vmatprep.subr.bf16.mxu0 0
        %394 = vmatpush2.bf16.msra.mxu0 0
        %395 = vmatprep.subr.bf16.mxu0 0
        %396 = vmatpush2.bf16.msra.mxu0 0
        %397 = vmatprep.subr.bf16.mxu0 0
        %398 = vmatpush2.bf16.msra.mxu0 0
        %399 = vmatprep.mubr.bf16.mxu0 0
        %400 = vmatmul.mubr.bf16.gmra.mxu0 %v229
        %v401 = vpop.f32.mrf.mxu0
        %v402 = vadd.f32 %v361, %v401
        %v403 = vpop.f32.mrf.mxu0
        %v404 = vpop.f32.mrf.mxu0
        %v405 = vadd.f32 %v364, %v404
        %v406 = vpop.f32.mrf.mxu0
        %407 = vdwg.mxu0
        %s408 = scalar_lea.vmem %s207, 16
        %409 = vst [vmem:[%s408] sm:$0xff] %v402
        %410 = vst [vmem:[%s408 + $0x8] sm:$0xff] %v405
        %s411 = smul.u32 2, %s16
        %p412 = scmp.lt.s32.totalorder %s411, 3
        %s413 = scalar_select %p412, %s411, 3
        %s414 = smul.addr %s413, 2
        %s415 = smul.addr %s414, 8
        %s416 = scalar_lea.vmem %s3, %s415
        // Predicated region
        $region41: #{_lambda_.5} parent=31 // pred_check
          %p417 = pneg %p102
        $region42: #{_lambda_.5} parent=31 // pred_check_branch
          %419 = sbr.rel (%p417) target = $region44
        $region43: #{_lambda_.5} parent=31 // pred_region
          %s420 = smul.u32 2, %s16
        $region44: #{_lambda_.5} parent=31 // pred_fallthru
          _
      $region32: #{_lambda_.5} parent=5 // pred_fallthru
        _
      %p421 = scmp.le.s32.totalorder 2, %s11
      // Predicated region
      $region45: #{_lambda_.5} parent=5 // pred_check
        %p422 = pneg %p421
      $region46: #{_lambda_.5} parent=5 // pred_check_branch
        %424 = sbr.rel (%p422) target = $region48
      $region47: #{_lambda_.5} parent=5 // pred_region
        %s425 = ssub.s32 %s11, 2
        // Predicated region
        $region49: #{_lambda_.5} parent=47 // pred_check
          %p426 = pneg %p108
        $region50: #{_lambda_.5} parent=47 // pred_check_branch
          %428 = sbr.rel (%p426) target = $region52
        $region51: #{_lambda_.5} parent=47 // pred_region
          %s429 = smul.u32 2, %s17
          %p430 = scmp.lt.s32.totalorder %s429, 3
          %s431 = scalar_select %p430, %s429, 3
          %s432 = smul.addr %s431, 2
          %s433 = smul.addr %s432, 8
          %s434 = scalar_lea.vmem %s3, %s433
        $region52: #{_lambda_.5} parent=47 // pred_fallthru
          _
      $region48: #{_lambda_.5} parent=5 // pred_fallthru
        _
    $region6: #{_lambda_.5} parent=1 // loop_footer
      %s15 = sadd.s32 1, %s11
    $region7: #{_lambda_.5} parent=1 // loop_footer_branch
      %10 = sbr.rel target = $region3
    $region8: #{_lambda_.5} parent=1 // loop_exit
      _
    %435 = vsyncpa [#allocation3], 1
    %s436 = scalar_lea.sflag [#allocation3], 1
    %437 = vsyncpa %s436, 1
    %438 = vsyncpa [#allocation5], 1

// kernel: _lambda_.4
$region0: #{_lambda_.4}
  #allocation0 [shape = 'u32[]', space=smem, size = 0x4, offset = 0x4, fixed_abs, tag = 'smem constant byte address 0x4 - core index']
  #allocation1 [shape = 'u32[144,128]{1,0:T(1,128)}', space=vmem, size = 0x12000, scoped, tag = 'internal scratch']
  %s0 = inlined_call_operand.vmem [shape: f32[2,8,384], index: 0, kind: input, shape index: {}]
  %s1 = inlined_call_operand.hbm [shape: f32[1,384], index: 1, kind: input, shape index: {}]
  %s2 = inlined_call_operand.hbm [shape: bf16[8,72], index: 2, kind: input, shape index: {}]
  %s3 = inlined_call_operand.vmem [shape: f32[8,1], index: 3, kind: input, shape index: {}]
  %s4 = inlined_call_operand.hbm [shape: bf16[8,72], index: 4, kind: input, shape index: {}]
  %s5 = inlined_call_operand.vmem [shape: f32[8,1], index: 5, kind: input, shape index: {}]
  %s6 = inlined_call_operand.hbm [shape: bf16[8,72], index: 6, kind: input, shape index: {}]
  %s7 = inlined_call_operand.vmem [shape: f32[8,1], index: 7, kind: input, shape index: {}]
  %s8 = inlined_call_operand.vmem [shape: f32[2,8,384], index: 8, kind: output, shape index: {}]
  %s9 = sld [smem:[#allocation0]]
  $region81: #{_lambda_.4} parent=0
    _
  %s11 = ssub.s32 1, %s9
  %s12 = scalar_select 0, %s11, %s9
  $region1: #{_lambda_.4} parent=0
    #allocation2 [shape = 'u8[1536]{0}', space=vmem, size = 0x800, scoped, tag = 'input window, operand 1, single buffered']
    #allocation3 [shape = 's32[2]{0}', space=sflag, size = 0x8, scoped, tag = 'scoped memory for _lambda_.4']
    #allocation4 [shape = 'u8[2048]{0}', space=vmem, size = 0x800, scoped, tag = 'input window, operand 2, single buffered']
    #allocation5 [shape = 's32[1]{0}', space=sflag, size = 0x4, scoped, tag = 'scoped memory for _lambda_.4']
    #allocation6 [shape = 'u8[2048]{0}', space=vmem, size = 0x800, scoped, tag = 'input window, operand 4, single buffered']
    #allocation7 [shape = 'u8[2048]{0}', space=vmem, size = 0x800, scoped, tag = 'input window, operand 6, single buffered']
    #allocation8 [shape = 's32[1]{0}', space=sflag, size = 0x4, scoped, tag = 'scoped memory for _lambda_.4']
    %13 = vsyncpa [#allocation3], 0
    %14 = vsyncpa [#allocation5], 0
    %15 = vsyncpa [#allocation8], 0
    loop: start=0, step=1, limit=4
    $region2: #{_lambda_.4} parent=1 // loop_pre_header
      _
    $region3: #{_lambda_.4} parent=1 // loop_header
      %s17 = sphi 0, %s21
      %p18 = scmp.ge.s32.totalorder %s17, 4
      %s27 = sphi 0, %s29
      %s30 = sphi 0, %s27
      %s31 = sphi 0, %s30
      %s47 = sphi 0, %s31
      %s51 = sphi 0, %s51
      %s53 = sphi 0, %s51
      %s54 = sphi 0, %s53
      %s68 = sphi 0, %s54
      %s72 = sphi 0, %s72
      %s74 = sphi 0, %s72
      %s75 = sphi 0, %s74
      %s89 = sphi 0, %s75
      %s93 = sphi 0, %s93
      %s95 = sphi 0, %s93
      %s96 = sphi 0, %s95
      %s110 = sphi 0, %s96
      %s114 = sphi 0, %s114
      %s116 = sphi 0, %s114
      %s117 = sphi 0, %s116
      %s131 = sphi 0, %s117
      %s135 = sphi 0, %s135
      %s137 = sphi 0, %s135
      %s138 = sphi 0, %s137
      %s152 = sphi 0, %s138
      %s156 = sphi 0, %s156
      %s158 = sphi 0, %s156
      %s159 = sphi 0, %s158
      %s173 = sphi 0, %s159
      %s177 = sphi 0, %s177
      %s179 = sphi 0, %s177
      %s180 = sphi 0, %s179
      %s194 = sphi 0, %s180
      %s200 = sphi 0, %s202
      %s203 = sphi 0, %s200
      %s204 = sphi 0, %s203
      %s220 = sphi 0, %s204
    $region4: #{_lambda_.4} parent=1 // loop_header_branch
      %20 = sbr.rel (%p18) target = $region8
    $region5: #{_lambda_.4} parent=1 // loop_body
      %s22 = ssub.s32 %s17, 1
      %s23 = ssub.s32 %s17, 2
      %s24 = sadd.s32 %s17, 1
      %s25 = ssub.s32 %s17, %s24
      %p26 = scmp.eq.s32.totalorder %s25, 0
      %s28 = sadd.s32 %s27, 1
      %s29 = scalar_select %p26, %s27, %s28
      %p32 = pneg %p26
      %p33 = scmp.eq.s32.totalorder %s17, 1
      %p34 = por %p32, %p33
      %p35 = scmp.ne.s32.totalorder %s27, %s30
      %p36 = scmp.eq.s32.totalorder %s17, 0
      %p37 = por %p35, %p36
      %p38 = scmp.ne.s32.totalorder %s27, %s30
      %p39 = scmp.eq.s32.totalorder %s22, 1
      %p40 = por %p38, %p39
      %p41 = scmp.ne.s32.totalorder %s30, %s31
      %p42 = scmp.eq.s32.totalorder %s22, 0
      %p43 = por %p41, %p42
      %p44 = scmp.ne.s32.totalorder %s30, %s31
      %p45 = scmp.eq.s32.totalorder %s23, 1
      %p46 = por %p44, %p45
      %p48 = scmp.ne.s32.totalorder %s31, %s47
      %p49 = scmp.eq.s32.totalorder %s23, 0
      %p50 = por %p48, %p49
      %s52 = sadd.s32 %s51, 1
      %p55 = scmp.eq.s32.totalorder %s17, 1
      %p56 = scmp.ne.s32.totalorder %s51, %s53
      %p57 = scmp.eq.s32.totalorder %s17, 0
      %p58 = por %p56, %p57
      %p59 = scmp.ne.s32.totalorder %s51, %s53
      %p60 = scmp.eq.s32.totalorder %s22, 1
      %p61 = por %p59, %p60
      %p62 = scmp.ne.s32.totalorder %s53, %s54
      %p63 = scmp.eq.s32.totalorder %s22, 0
      %p64 = por %p62, %p63
      %p65 = scmp.ne.s32.totalorder %s53, %s54
      %p66 = scmp.eq.s32.totalorder %s23, 1
      %p67 = por %p65, %p66
      %p69 = scmp.ne.s32.totalorder %s54, %s68
      %p70 = scmp.eq.s32.totalorder %s23, 0
      %p71 = por %p69, %p70
      %s73 = sadd.s32 %s72, 1
      %p76 = scmp.eq.s32.totalorder %s17, 1
      %p77 = scmp.ne.s32.totalorder %s72, %s74
      %p78 = scmp.eq.s32.totalorder %s17, 0
      %p79 = por %p77, %p78
      %p80 = scmp.ne.s32.totalorder %s72, %s74
      %p81 = scmp.eq.s32.totalorder %s22, 1
      %p82 = por %p80, %p81
      %p83 = scmp.ne.s32.totalorder %s74, %s75
      %p84 = scmp.eq.s32.totalorder %s22, 0
      %p85 = por %p83, %p84
      %p86 = scmp.ne.s32.totalorder %s74, %s75
      %p87 = scmp.eq.s32.totalorder %s23, 1
      %p88 = por %p86, %p87
      %p90 = scmp.ne.s32.totalorder %s75, %s89
      %p91 = scmp.eq.s32.totalorder %s23, 0
      %p92 = por %p90, %p91
      %s94 = sadd.s32 %s93, 1
      %p97 = scmp.eq.s32.totalorder %s17, 1
      %p98 = scmp.ne.s32.totalorder %s93, %s95
      %p99 = scmp.eq.s32.totalorder %s17, 0
      %p100 = por %p98, %p99
      %p101 = scmp.ne.s32.totalorder %s93, %s95
      %p102 = scmp.eq.s32.totalorder %s22, 1
      %p103 = por %p101, %p102
      %p104 = scmp.ne.s32.totalorder %s95, %s96
      %p105 = scmp.eq.s32.totalorder %s22, 0
      %p106 = por %p104, %p105
      %p107 = scmp.ne.s32.totalorder %s95, %s96
      %p108 = scmp.eq.s32.totalorder %s23, 1
      %p109 = por %p107, %p108
      %p111 = scmp.ne.s32.totalorder %s96, %s110
      %p112 = scmp.eq.s32.totalorder %s23, 0
      %p113 = por %p111, %p112
      %s115 = sadd.s32 %s114, 1
      %p118 = scmp.eq.s32.totalorder %s17, 1
      %p119 = scmp.ne.s32.totalorder %s114, %s116
      %p120 = scmp.eq.s32.totalorder %s17, 0
      %p121 = por %p119, %p120
      %p122 = scmp.ne.s32.totalorder %s114, %s116
      %p123 = scmp.eq.s32.totalorder %s22, 1
      %p124 = por %p122, %p123
      %p125 = scmp.ne.s32.totalorder %s116, %s117
      %p126 = scmp.eq.s32.totalorder %s22, 0
      %p127 = por %p125, %p126
      %p128 = scmp.ne.s32.totalorder %s116, %s117
      %p129 = scmp.eq.s32.totalorder %s23, 1
      %p130 = por %p128, %p129
      %p132 = scmp.ne.s32.totalorder %s117, %s131
      %p133 = scmp.eq.s32.totalorder %s23, 0
      %p134 = por %p132, %p133
      %s136 = sadd.s32 %s135, 1
      %p139 = scmp.eq.s32.totalorder %s17, 1
      %p140 = scmp.ne.s32.totalorder %s135, %s137
      %p141 = scmp.eq.s32.totalorder %s17, 0
      %p142 = por %p140, %p141
      %p143 = scmp.ne.s32.totalorder %s135, %s137
      %p144 = scmp.eq.s32.totalorder %s22, 1
      %p145 = por %p143, %p144
      %p146 = scmp.ne.s32.totalorder %s137, %s138
      %p147 = scmp.eq.s32.totalorder %s22, 0
      %p148 = por %p146, %p147
      %p149 = scmp.ne.s32.totalorder %s137, %s138
      %p150 = scmp.eq.s32.totalorder %s23, 1
      %p151 = por %p149, %p150
      %p153 = scmp.ne.s32.totalorder %s138, %s152
      %p154 = scmp.eq.s32.totalorder %s23, 0
      %p155 = por %p153, %p154
      %s157 = sadd.s32 %s156, 1
      %p160 = scmp.eq.s32.totalorder %s17, 1
      %p161 = scmp.ne.s32.totalorder %s156, %s158
      %p162 = scmp.eq.s32.totalorder %s17, 0
      %p163 = por %p161, %p162
      %p164 = scmp.ne.s32.totalorder %s156, %s158
      %p165 = scmp.eq.s32.totalorder %s22, 1
      %p166 = por %p164, %p165
      %p167 = scmp.ne.s32.totalorder %s158, %s159
      %p168 = scmp.eq.s32.totalorder %s22, 0
      %p169 = por %p167, %p168
      %p170 = scmp.ne.s32.totalorder %s158, %s159
      %p171 = scmp.eq.s32.totalorder %s23, 1
      %p172 = por %p170, %p171
      %p174 = scmp.ne.s32.totalorder %s159, %s173
      %p175 = scmp.eq.s32.totalorder %s23, 0
      %p176 = por %p174, %p175
      %s178 = sadd.s32 %s177, 1
      %p181 = scmp.eq.s32.totalorder %s17, 1
      %p182 = scmp.ne.s32.totalorder %s177, %s179
      %p183 = scmp.eq.s32.totalorder %s17, 0
      %p184 = por %p182, %p183
      %p185 = scmp.ne.s32.totalorder %s177, %s179
      %p186 = scmp.eq.s32.totalorder %s22, 1
      %p187 = por %p185, %p186
      %p188 = scmp.ne.s32.totalorder %s179, %s180
      %p189 = scmp.eq.s32.totalorder %s22, 0
      %p190 = por %p188, %p189
      %p191 = scmp.ne.s32.totalorder %s179, %s180
      %p192 = scmp.eq.s32.totalorder %s23, 1
      %p193 = por %p191, %p192
      %p195 = scmp.ne.s32.totalorder %s180, %s194
      %p196 = scmp.eq.s32.totalorder %s23, 0
      %p197 = por %p195, %p196
      %s198 = ssub.s32 %s17, %s24
      %p199 = scmp.eq.s32.totalorder %s198, 0
      %s201 = sadd.s32 %s200, 1
      %s202 = scalar_select %p199, %s200, %s201
      %p205 = pneg %p199
      %p206 = scmp.eq.s32.totalorder %s17, 1
      %p207 = por %p205, %p206
      %p208 = scmp.ne.s32.totalorder %s200, %s203
      %p209 = scmp.eq.s32.totalorder %s17, 0
      %p210 = por %p208, %p209
      %p211 = scmp.ne.s32.totalorder %s200, %s203
      %p212 = scmp.eq.s32.totalorder %s22, 1
      %p213 = por %p211, %p212
      %p214 = scmp.ne.s32.totalorder %s203, %s204
      %p215 = scmp.eq.s32.totalorder %s22, 0
      %p216 = por %p214, %p215
      %p217 = scmp.ne.s32.totalorder %s203, %s204
      %p218 = scmp.eq.s32.totalorder %s23, 1
      %p219 = por %p217, %p218
      %p221 = scmp.ne.s32.totalorder %s204, %s220
      %p222 = scmp.eq.s32.totalorder %s23, 0
      %p223 = por %p221, %p222
      %p224 = scmp.le.s32.totalorder 1, %s17
      %p225 = scmp.lt.s32.totalorder %s17, 3
      %p226 = pnand %p224, %p225
      %p227 = pneg %p226
      // Predicated region
      $region9: #{_lambda_.4} parent=5 // pred_check
        _
      $region10: #{_lambda_.4} parent=5 // pred_check_branch
        %229 = sbr.rel (%p226) target = $region12
      $region11: #{_lambda_.4} parent=5 // pred_region
        %s230 = ssub.s32 %s17, 1
        // Predicated region
        $region13: #{_lambda_.4} parent=11 // pred_check
          %p231 = pneg %p64
        $region14: #{_lambda_.4} parent=11 // pred_check_branch
          %233 = sbr.rel (%p231) target = $region16
        $region15: #{_lambda_.4} parent=11 // pred_region
          %s235 = ssub.s32 48, 48
          %236 = vsyncadd [#allocation3], %s235
          %s238 = sshll.u32 [#allocation2], 4
          %s239 = int_to_ptr.vmem [resolvable:$true] %s238
          %241 = dma.hbm_to_vmem [thread:$0]  %s1, 48, %s239, [#allocation3]
        $region16: #{_lambda_.4} parent=11 // pred_fallthru
          _
        // Predicated region
        $region17: #{_lambda_.4} parent=11 // pred_check
          %p242 = pneg %p85
        $region18: #{_lambda_.4} parent=11 // pred_check_branch
          %244 = sbr.rel (%p242) target = $region20
        $region19: #{_lambda_.4} parent=11 // pred_region
          %s246 = ssub.s32 64, 64
          %247 = vsyncadd [#allocation5], %s246
          %s249 = sshll.u32 [#allocation4], 4
          %s250 = int_to_ptr.vmem [resolvable:$true] %s249
          %252 = dma.hbm_to_vmem [thread:$0]  %s2, 64, %s250, [#allocation5]
        $region20: #{_lambda_.4} parent=11 // pred_fallthru
          _
        // Predicated region
        $region21: #{_lambda_.4} parent=11 // pred_check
          %p253 = pneg %p106
        $region22: #{_lambda_.4} parent=11 // pred_check_branch
          %255 = sbr.rel (%p253) target = $region24
        $region23: #{_lambda_.4} parent=11 // pred_region
          _
        $region24: #{_lambda_.4} parent=11 // pred_fallthru
          _
        // Predicated region
        $region25: #{_lambda_.4} parent=11 // pred_check
          %p256 = pneg %p127
        $region26: #{_lambda_.4} parent=11 // pred_check_branch
          %258 = sbr.rel (%p256) target = $region28
        $region27: #{_lambda_.4} parent=11 // pred_region
          %s260 = ssub.s32 64, 64
          %261 = vsyncadd [#allocation5], %s260
          %s263 = sshll.u32 [#allocation6], 4
          %s264 = int_to_ptr.vmem [resolvable:$true] %s263
          %266 = dma.hbm_to_vmem [thread:$0]  %s4, 64, %s264, [#allocation5]
        $region28: #{_lambda_.4} parent=11 // pred_fallthru
          _
        // Predicated region
        $region29: #{_lambda_.4} parent=11 // pred_check
          %p267 = pneg %p148
        $region30: #{_lambda_.4} parent=11 // pred_check_branch
          %269 = sbr.rel (%p267) target = $region32
        $region31: #{_lambda_.4} parent=11 // pred_region
          _
        $region32: #{_lambda_.4} parent=11 // pred_fallthru
          _
        // Predicated region
        $region33: #{_lambda_.4} parent=11 // pred_check
          %p270 = pneg %p169
        $region34: #{_lambda_.4} parent=11 // pred_check_branch
          %272 = sbr.rel (%p270) target = $region36
        $region35: #{_lambda_.4} parent=11 // pred_region
          %s274 = ssub.s32 64, 64
          %275 = vsyncadd [#allocation8], %s274
          %s277 = sshll.u32 [#allocation7], 4
          %s278 = int_to_ptr.vmem [resolvable:$true] %s277
          %280 = dma.hbm_to_vmem [thread:$0]  %s6, 64, %s278, [#allocation8]
        $region36: #{_lambda_.4} parent=11 // pred_fallthru
          _
        // Predicated region
        $region37: #{_lambda_.4} parent=11 // pred_check
          %p281 = pneg %p190
        $region38: #{_lambda_.4} parent=11 // pred_check_branch
          %283 = sbr.rel (%p281) target = $region40
        $region39: #{_lambda_.4} parent=11 // pred_region
          _
        $region40: #{_lambda_.4} parent=11 // pred_fallthru
          _
      $region12: #{_lambda_.4} parent=5 // pred_fallthru
        _
      %p284 = scmp.lt.s32.totalorder %s17, 2
      // Predicated region
      $region41: #{_lambda_.4} parent=5 // pred_check
        %p285 = pneg %p284
      $region42: #{_lambda_.4} parent=5 // pred_check_branch
        %287 = sbr.rel (%p285) target = $region44
      $region43: #{_lambda_.4} parent=5 // pred_region
        // Predicated region
        $region45: #{_lambda_.4} parent=43 // pred_check
          %p288 = pneg %p37
        $region46: #{_lambda_.4} parent=43 // pred_check_branch
          %290 = sbr.rel (%p288) target = $region48
        $region47: #{_lambda_.4} parent=43 // pred_region
          %p291 = scmp.lt.s32.totalorder %s17, 1
          %s292 = scalar_select %p291, %s17, 1
          %s293 = smul.addr %s292, 3
          %s294 = smul.addr %s293, 8
          %s295 = scalar_lea.vmem %s0, %s294
        $region48: #{_lambda_.4} parent=43 // pred_fallthru
          _
      $region44: #{_lambda_.4} parent=5 // pred_fallthru
        _
      %p296 = scmp.le.s32.totalorder 1, %s17
      %p297 = scmp.lt.s32.totalorder %s17, 3
      %p298 = pnand %p296, %p297
      %p299 = pneg %p298
      // Predicated region
      $region49: #{_lambda_.4} parent=5 // pred_check
        _
      $region50: #{_lambda_.4} parent=5 // pred_check_branch
        %301 = sbr.rel (%p298) target = $region52
      $region51: #{_lambda_.4} parent=5 // pred_region
        %s302 = ssub.s32 %s17, 1
        // Predicated region
        $region53: #{_lambda_.4} parent=51 // pred_check
          %p303 = pneg %p64
        $region54: #{_lambda_.4} parent=51 // pred_check_branch
          %305 = sbr.rel (%p303) target = $region56
        $region55: #{_lambda_.4} parent=51 // pred_region
          %306 = dma.done [#allocation3], 48
        $region56: #{_lambda_.4} parent=51 // pred_fallthru
          _
        // Predicated region
        $region57: #{_lambda_.4} parent=51 // pred_check
          %p307 = pneg %p85
        $region58: #{_lambda_.4} parent=51 // pred_check_branch
          %309 = sbr.rel (%p307) target = $region60
        $region59: #{_lambda_.4} parent=51 // pred_region
          %310 = dma.done [#allocation5], 64
        $region60: #{_lambda_.4} parent=51 // pred_fallthru
          _
        // Predicated region
        $region61: #{_lambda_.4} parent=51 // pred_check
          %p311 = pneg %p127
        $region62: #{_lambda_.4} parent=51 // pred_check_branch
          %313 = sbr.rel (%p311) target = $region64
        $region63: #{_lambda_.4} parent=51 // pred_region
          %314 = dma.done [#allocation5], 64
        $region64: #{_lambda_.4} parent=51 // pred_fallthru
          _
        // Predicated region
        $region65: #{_lambda_.4} parent=51 // pred_check
          %p315 = pneg %p169
        $region66: #{_lambda_.4} parent=51 // pred_check_branch
          %317 = sbr.rel (%p315) target = $region68
        $region67: #{_lambda_.4} parent=51 // pred_region
          %318 = dma.done [#allocation8], 64
        $region68: #{_lambda_.4} parent=51 // pred_fallthru
          _
        %p319 = scmp.lt.s32.totalorder %s22, 1
        %s320 = scalar_select %p319, %s22, 1
        %s321 = smul.addr %s320, 3
        %s322 = smul.addr %s321, 8
        %s323 = scalar_lea.vmem %s0, %s322
        %p324 = pneg %p43
        %p325 = pneg %p40
        %p326 = pneg %p64
        %p327 = pneg %p61
        %p328 = pneg %p85
        %p329 = pneg %p82
        %p330 = pneg %p106
        %p331 = pneg %p103
        %p332 = pneg %p127
        %p333 = pneg %p124
        %p334 = pneg %p148
        %p335 = pneg %p145
        %p336 = pneg %p169
        %p337 = pneg %p166
        %p338 = pneg %p190
        %p339 = pneg %p187
        %p340 = pneg %p216
        %p341 = pneg %p213
        %p342 = scmp.lt.s32.totalorder %s22, 1
        %s343 = scalar_select %p342, %s22, 1
        %s344 = smul.addr %s343, 3
        %s345 = smul.addr %s344, 8
        %s346 = scalar_lea.vmem %s8, %s345
        %p347 = scmp.lt.s32.totalorder %s22, 1
        %s348 = scalar_select %p347, %s22, 1
        %s349 = smul.addr %s348, 3
        %s350 = smul.addr %s349, 8
        %s351 = scalar_lea.vmem %s0, %s350
        %p352 = scmp.lt.s32.totalorder %s22, 1
        %s353 = scalar_select %p352, %s22, 1
        %s354 = smul.addr %s353, 3
        %s355 = smul.addr %s354, 8
        %s356 = scalar_lea.vmem %s8, %s355
        %v358 = vld [vmem:[#allocation2] sm:$0x7]
        %v359 = vld [vmem:[%s351] sm:$0xff]
        %v360 = vld [vmem:[%s351 + $0x8] sm:$0xff]
        %v361 = vld [vmem:[%s351 + $0x10] sm:$0xff]
        %362 = vrot.lane.b32.xlu0 %v359, 19
        %v363 = vpop.permute.xlu0 %362
        %364 = vrot.lane.b32.xlu0 %v360, 19
        %v365 = vpop.permute.xlu0 %364
        %366 = vrot.lane.b32.xlu0 %v361, 19
        %v367 = vpop.permute.xlu0 %366
        %v368 = vlaneseq
        %v369 = vand.u32 %v368, 127
        %vm370 = vcmp.lt.s32.totalorder %v369, 19
        %v371 = vsel %vm370, %v365, %v367
        %v372 = vsel %vm370, %v363, %v365
        %v373 = vsel %vm370, %v367, %v363
        %374 = vrot.lane.b32.xlu0 %v359, 18
        %v375 = vpop.permute.xlu0 %374
        %376 = vrot.lane.b32.xlu0 %v360, 18
        %v377 = vpop.permute.xlu0 %376
        %378 = vrot.lane.b32.xlu0 %v361, 18
        %v379 = vpop.permute.xlu0 %378
        %vm380 = vcmp.lt.s32.totalorder %v369, 18
        %v381 = vsel %vm380, %v377, %v379
        %v382 = vsel %vm380, %v375, %v377
        %v383 = vsel %vm380, %v379, %v375
        %384 = vrot.lane.b32.xlu0 %v359, 17
        %v385 = vpop.permute.xlu0 %384
        %386 = vrot.lane.b32.xlu0 %v360, 17
        %v387 = vpop.permute.xlu0 %386
        %388 = vrot.lane.b32.xlu0 %v361, 17
        %v389 = vpop.permute.xlu0 %388
        %vm390 = vcmp.lt.s32.totalorder %v369, 17
        %v391 = vsel %vm390, %v387, %v389
        %v392 = vsel %vm390, %v385, %v387
        %v393 = vsel %vm390, %v389, %v385
        %394 = vrot.lane.b32.xlu0 %v359, 1
        %v395 = vpop.permute.xlu0 %394
        %396 = vrot.lane.b32.xlu0 %v360, 1
        %v397 = vpop.permute.xlu0 %396
        %398 = vrot.lane.b32.xlu0 %v361, 1
        %v399 = vpop.permute.xlu0 %398
        %vm400 = vcmp.lt.s32.totalorder %v369, 1
        %v401 = vsel %vm400, %v397, %v399
        %v402 = vsel %vm400, %v395, %v397
        %v403 = vsel %vm400, %v399, %v395
        %404 = vrot.lane.b32.xlu0 %v359, 127
        %v405 = vpop.permute.xlu0 %404
        %406 = vrot.lane.b32.xlu0 %v360, 127
        %v407 = vpop.permute.xlu0 %406
        %408 = vrot.lane.b32.xlu0 %v361, 127
        %v409 = vpop.permute.xlu0 %408
        %vm410 = vcmp.lt.s32.totalorder %v369, 127
        %v411 = vsel %vm410, %v407, %v409
        %v412 = vsel %vm410, %v405, %v407
        %v413 = vsel %vm410, %v409, %v405
        %414 = vrot.lane.b32.xlu0 %v359, 111
        %v415 = vpop.permute.xlu0 %414
        %416 = vrot.lane.b32.xlu0 %v360, 111
        %v417 = vpop.permute.xlu0 %416
        %418 = vrot.lane.b32.xlu0 %v361, 111
        %v419 = vpop.permute.xlu0 %418
        %vm420 = vcmp.lt.s32.totalorder %v369, 111
        %v421 = vsel %vm420, %v417, %v419
        %v422 = vsel %vm420, %v415, %v417
        %v423 = vsel %vm420, %v419, %v415
        %424 = vrot.lane.b32.xlu0 %v359, 110
        %v425 = vpop.permute.xlu0 %424
        %426 = vrot.lane.b32.xlu0 %v360, 110
        %v427 = vpop.permute.xlu0 %426
        %428 = vrot.lane.b32.xlu0 %v361, 110
        %v429 = vpop.permute.xlu0 %428
        %vm430 = vcmp.lt.s32.totalorder %v369, 110
        %v431 = vsel %vm430, %v427, %v429
        %v432 = vsel %vm430, %v425, %v427
        %v433 = vsel %vm430, %v429, %v425
        %434 = vrot.lane.b32.xlu0 %v359, 109
        %v435 = vpop.permute.xlu0 %434
        %436 = vrot.lane.b32.xlu0 %v360, 109
        %v437 = vpop.permute.xlu0 %436
        %438 = vrot.lane.b32.xlu0 %v361, 109
        %v439 = vpop.permute.xlu0 %438
        %vm440 = vcmp.lt.s32.totalorder %v369, 109
        %v441 = vsel %vm440, %v437, %v439
        %v442 = vsel %vm440, %v435, %v437
        %v443 = vsel %vm440, %v439, %v435
        %v444 = vpack.c.bf16 %v383, %v373
        %v445 = vpack.c.bf16 %v382, %v372
        %v446 = vpack.c.bf16 %v381, %v371
        %v447 = vpack.c.bf16 %v403, %v393
        %v448 = vpack.c.bf16 %v402, %v392
        %v449 = vpack.c.bf16 %v401, %v391
        %v450 = vpack.c.bf16 %v412, %v359
        %v451 = vpack.c.bf16 %v411, %v360
        %v452 = vpack.c.bf16 %v413, %v361
        %v453 = vpack.c.bf16 %v432, %v422
        %v454 = vpack.c.bf16 %v431, %v421
        %v455 = vpack.c.bf16 %v433, %v423
        %v456 = vpack.c.bf16 %v442, %v442
        %v457 = vpack.c.bf16 %v441, %v441
        %v458 = vpack.c.bf16 %v443, %v443
        %v459 = vld [vmem:[#allocation4] sm:$0xf]
        %v460 = vld [vmem:[%s3] sm:$0xff]
        %462 = vset.pattern.permute.xlu0 0
        %463 = vperm.xlu0 %462, %v460
        %v464 = vpop.permute.xlu0 %463
        %vm466 = vcmask 588800
        %v468 = vsel %vm466, %v459, 0
        %vm470 = vcmask 1043456
        %v472 = vsel %vm470, %v456, 0
        %v475 = vsel %vm470, %v457, 0
        %v478 = vsel %vm470, %v458, 0
        %480 = vmatprep.subr.bf16.mxu0 0
        %481 = vmatpush1.bf16.msra.mxu0 0
        %482 = vmatprep.subr.bf16.mxu0 0
        %483 = vmatpush1.bf16.msra.mxu0 0
        %484 = vmatprep.subr.bf16.mxu0 0
        %485 = vmatpush1.bf16.msra.mxu0 0
        %486 = vmatprep.subr.bf16.mxu0 %v475
        %487 = vmatpush1.bf16.msra.mxu0 %v472
        %488 = vmatprep.subr.bf16.mxu0 %v454
        %489 = vmatpush1.bf16.msra.mxu0 %v453
        %490 = vmatprep.subr.bf16.mxu0 %v451
        %491 = vmatpush1.bf16.msra.mxu0 %v450
        %492 = vmatprep.subr.bf16.mxu0 %v448
        %493 = vmatpush1.bf16.msra.mxu0 %v447
        %494 = vmatprep.subr.bf16.mxu0 %v445
        %495 = vmatpush1.bf16.msra.mxu0 %v444
        %496 = vmatprep.subr.bf16.mxu0 0
        %497 = vmatpush2.bf16.msra.mxu0 0
        %498 = vmatprep.subr.bf16.mxu0 0
        %499 = vmatpush2.bf16.msra.mxu0 0
        %500 = vmatprep.subr.bf16.mxu0 0
        %501 = vmatpush2.bf16.msra.mxu0 0
        %502 = vmatprep.subr.bf16.mxu0 0
        %503 = vmatpush2.bf16.msra.mxu0 0
        %504 = vmatprep.subr.bf16.mxu0 0
        %505 = vmatpush2.bf16.msra.mxu0 0
        %506 = vmatprep.subr.bf16.mxu0 0
        %507 = vmatpush2.bf16.msra.mxu0 0
        %508 = vmatprep.subr.bf16.mxu0 0
        %509 = vmatpush2.bf16.msra.mxu0 0
        %510 = vmatprep.subr.bf16.mxu0 0
        %511 = vmatpush2.bf16.msra.mxu0 0
        %512 = vmatprep.mubr.bf16.mxu0 0
        %513 = vmatmul.mubr.bf16.gmra.mxu0 %v468
        %v514 = vpop.f32.mrf.mxu0
        %v515 = vadd.f32 %v464, %v514
        %v516 = vpop.f32.mrf.mxu0
        %v517 = vadd.f32 %v464, %v516
        %v518 = vpop.f32.mrf.mxu0
        %v519 = vpop.f32.mrf.mxu0
        %520 = vdwg.mxu0
        %521 = vmatprep.subr.bf16.mxu0 0
        %522 = vmatpush1.bf16.msra.mxu0 0
        %523 = vmatprep.subr.bf16.mxu0 0
        %524 = vmatpush1.bf16.msra.mxu0 0
        %525 = vmatprep.subr.bf16.mxu0 0
        %526 = vmatpush1.bf16.msra.mxu0 0
        %527 = vmatprep.subr.bf16.mxu0 0
        %528 = vmatpush1.bf16.msra.mxu0 %v478
        %529 = vmatprep.subr.bf16.mxu0 0
        %530 = vmatpush1.bf16.msra.mxu0 %v455
        %531 = vmatprep.subr.bf16.mxu0 0
        %532 = vmatpush1.bf16.msra.mxu0 %v452
        %533 = vmatprep.subr.bf16.mxu0 0
        %534 = vmatpush1.bf16.msra.mxu0 %v449
        %535 = vmatprep.subr.bf16.mxu0 0
        %536 = vmatpush1.bf16.msra.mxu0 %v446
        %537 = vmatprep.subr.bf16.mxu0 0
        %538 = vmatpush2.bf16.msra.mxu0 0
        %539 = vmatprep.subr.bf16.mxu0 0
        %540 = vmatpush2.bf16.msra.mxu0 0
        %541 = vmatprep.subr.bf16.mxu0 0
        %542 = vmatpush2.bf16.msra.mxu0 0
        %543 = vmatprep.subr.bf16.mxu0 0
        %544 = vmatpush2.bf16.msra.mxu0 0
        %545 = vmatprep.subr.bf16.mxu0 0
        %546 = vmatpush2.bf16.msra.mxu0 0
        %547 = vmatprep.subr.bf16.mxu0 0
        %548 = vmatpush2.bf16.msra.mxu0 0
        %549 = vmatprep.subr.bf16.mxu0 0
        %550 = vmatpush2.bf16.msra.mxu0 0
        %551 = vmatprep.subr.bf16.mxu0 0
        %552 = vmatpush2.bf16.msra.mxu0 0
        %553 = vmatprep.mubr.bf16.mxu0 0
        %554 = vmatmul.mubr.bf16.gmra.mxu0 %v468
        %v555 = vpop.f32.mrf.mxu0
        %v556 = vadd.f32 %v464, %v555
        %v557 = vpop.f32.mrf.mxu0
        %v558 = vpop.f32.mrf.mxu0
        %v559 = vpop.f32.mrf.mxu0
        %560 = vdwg.mxu0
        %v561 = vmax.f32 %v515, 0.0
        %v562 = vmax.f32 %v517, 0.0
        %v563 = vmax.f32 %v556, 0.0
        %v565 = vlaneseq
        %v566 = vshrl.u32 %v565, 7
        %v567 = vsub.s32 0, %v566
        %v568 = vrot.slane %v358, %v567
        %v569 = vlaneseq
        %v570 = vshrl.u32 %v569, 7
        %v571 = vsub.s32 1, %v570
        %v572 = vrot.slane %v358, %v571
        %v573 = vlaneseq
        %v574 = vshrl.u32 %v573, 7
        %v575 = vsub.s32 2, %v574
        %v576 = vrot.slane %v358, %v575
        %v580 = vmul.f32 %v561, %v568
        %v581 = vmul.f32 %v562, %v572
        %v582 = vmul.f32 %v563, %v576
        %583 = vrot.lane.b32.xlu0 %v580, 19
        %v584 = vpop.permute.xlu0 %583
        %585 = vrot.lane.b32.xlu0 %v581, 19
        %v586 = vpop.permute.xlu0 %585
        %587 = vrot.lane.b32.xlu0 %v582, 19
        %v588 = vpop.permute.xlu0 %587
        %v589 = vsel %vm370, %v586, %v588
        %v590 = vsel %vm370, %v584, %v586
        %v591 = vsel %vm370, %v588, %v584
        %592 = vrot.lane.b32.xlu0 %v580, 18
        %v593 = vpop.permute.xlu0 %592
        %594 = vrot.lane.b32.xlu0 %v581, 18
        %v595 = vpop.permute.xlu0 %594
        %596 = vrot.lane.b32.xlu0 %v582, 18
        %v597 = vpop.permute.xlu0 %596
        %v598 = vsel %vm380, %v595, %v597
        %v599 = vsel %vm380, %v593, %v595
        %v600 = vsel %vm380, %v597, %v593
        %601 = vrot.lane.b32.xlu0 %v580, 17
        %v602 = vpop.permute.xlu0 %601
        %603 = vrot.lane.b32.xlu0 %v581, 17
        %v604 = vpop.permute.xlu0 %603
        %605 = vrot.lane.b32.xlu0 %v582, 17
        %v606 = vpop.permute.xlu0 %605
        %v607 = vsel %vm390, %v604, %v606
        %v608 = vsel %vm390, %v602, %v604
        %v609 = vsel %vm390, %v606, %v602
        %610 = vrot.lane.b32.xlu0 %v580, 1
        %v611 = vpop.permute.xlu0 %610
        %612 = vrot.lane.b32.xlu0 %v581, 1
        %v613 = vpop.permute.xlu0 %612
        %614 = vrot.lane.b32.xlu0 %v582, 1
        %v615 = vpop.permute.xlu0 %614
        %v616 = vsel %vm400, %v613, %v615
        %v617 = vsel %vm400, %v611, %v613
        %v618 = vsel %vm400, %v615, %v611
        %619 = vrot.lane.b32.xlu0 %v580, 127
        %v620 = vpop.permute.xlu0 %619
        %621 = vrot.lane.b32.xlu0 %v581, 127
        %v622 = vpop.permute.xlu0 %621
        %623 = vrot.lane.b32.xlu0 %v582, 127
        %v624 = vpop.permute.xlu0 %623
        %v625 = vsel %vm410, %v622, %v624
        %v626 = vsel %vm410, %v620, %v622
        %v627 = vsel %vm410, %v624, %v620
        %628 = vrot.lane.b32.xlu0 %v580, 111
        %v629 = vpop.permute.xlu0 %628
        %630 = vrot.lane.b32.xlu0 %v581, 111
        %v631 = vpop.permute.xlu0 %630
        %632 = vrot.lane.b32.xlu0 %v582, 111
        %v633 = vpop.permute.xlu0 %632
        %v634 = vsel %vm420, %v631, %v633
        %v635 = vsel %vm420, %v629, %v631
        %v636 = vsel %vm420, %v633, %v629
        %637 = vrot.lane.b32.xlu0 %v580, 110
        %v638 = vpop.permute.xlu0 %637
        %639 = vrot.lane.b32.xlu0 %v581, 110
        %v640 = vpop.permute.xlu0 %639
        %641 = vrot.lane.b32.xlu0 %v582, 110
        %v642 = vpop.permute.xlu0 %641
        %v643 = vsel %vm430, %v640, %v642
        %v644 = vsel %vm430, %v638, %v640
        %v645 = vsel %vm430, %v642, %v638
        %646 = vrot.lane.b32.xlu0 %v580, 109
        %v647 = vpop.permute.xlu0 %646
        %648 = vrot.lane.b32.xlu0 %v581, 109
        %v649 = vpop.permute.xlu0 %648
        %650 = vrot.lane.b32.xlu0 %v582, 109
        %v651 = vpop.permute.xlu0 %650
        %v652 = vsel %vm440, %v649, %v651
        %v653 = vsel %vm440, %v647, %v649
        %v654 = vsel %vm440, %v651, %v647
        %v655 = vpack.c.bf16 %v600, %v591
        %v656 = vpack.c.bf16 %v599, %v590
        %v657 = vpack.c.bf16 %v598, %v589
        %v658 = vpack.c.bf16 %v618, %v609
        %v659 = vpack.c.bf16 %v617, %v608
        %v660 = vpack.c.bf16 %v616, %v607
        %v661 = vpack.c.bf16 %v626, %v580
        %v662 = vpack.c.bf16 %v625, %v581
        %v663 = vpack.c.bf16 %v627, %v582
        %v664 = vpack.c.bf16 %v644, %v635
        %v665 = vpack.c.bf16 %v643, %v634
        %v666 = vpack.c.bf16 %v645, %v636
        %v667 = vpack.c.bf16 %v653, %v653
        %v668 = vpack.c.bf16 %v652, %v652
        %v669 = vpack.c.bf16 %v654, %v654
        %v670 = vld [vmem:[#allocation6] sm:$0xf]
        %v671 = vld [vmem:[%s5] sm:$0xff]
        %673 = vset.pattern.permute.xlu0 0
        %674 = vperm.xlu0 %673, %v671
        %v675 = vpop.permute.xlu0 %674
        %v678 = vsel %vm466, %v670, 0
        %v681 = vsel %vm470, %v667, 0
        %v684 = vsel %vm470, %v668, 0
        %v687 = vsel %vm470, %v669, 0
        %689 = vmatprep.subr.bf16.mxu0 0
        %690 = vmatpush1.bf16.msra.mxu0 0
        %691 = vmatprep.subr.bf16.mxu0 0
        %692 = vmatpush1.bf16.msra.mxu0 0
        %693 = vmatprep.subr.bf16.mxu0 0
        %694 = vmatpush1.bf16.msra.mxu0 0
        %695 = vmatprep.subr.bf16.mxu0 %v684
        %696 = vmatpush1.bf16.msra.mxu0 %v681
        %697 = vmatprep.subr.bf16.mxu0 %v665
        %698 = vmatpush1.bf16.msra.mxu0 %v664
        %699 = vmatprep.subr.bf16.mxu0 %v662
        %700 = vmatpush1.bf16.msra.mxu0 %v661
        %701 = vmatprep.subr.bf16.mxu0 %v659
        %702 = vmatpush1.bf16.msra.mxu0 %v658
        %703 = vmatprep.subr.bf16.mxu0 %v656
        %704 = vmatpush1.bf16.msra.mxu0 %v655
        %705 = vmatprep.subr.bf16.mxu0 0
        %706 = vmatpush2.bf16.msra.mxu0 0
        %707 = vmatprep.subr.bf16.mxu0 0
        %708 = vmatpush2.bf16.msra.mxu0 0
        %709 = vmatprep.subr.bf16.mxu0 0
        %710 = vmatpush2.bf16.msra.mxu0 0
        %711 = vmatprep.subr.bf16.mxu0 0
        %712 = vmatpush2.bf16.msra.mxu0 0
        %713 = vmatprep.subr.bf16.mxu0 0
        %714 = vmatpush2.bf16.msra.mxu0 0
        %715 = vmatprep.subr.bf16.mxu0 0
        %716 = vmatpush2.bf16.msra.mxu0 0
        %717 = vmatprep.subr.bf16.mxu0 0
        %718 = vmatpush2.bf16.msra.mxu0 0
        %719 = vmatprep.subr.bf16.mxu0 0
        %720 = vmatpush2.bf16.msra.mxu0 0
        %721 = vmatprep.mubr.bf16.mxu0 0
        %722 = vmatmul.mubr.bf16.gmra.mxu0 %v678
        %v723 = vpop.f32.mrf.mxu0
        %v724 = vadd.f32 %v675, %v723
        %v725 = vpop.f32.mrf.mxu0
        %v726 = vadd.f32 %v675, %v725
        %v727 = vpop.f32.mrf.mxu0
        %v728 = vpop.f32.mrf.mxu0
        %729 = vdwg.mxu0
        %730 = vmatprep.subr.bf16.mxu0 0
        %731 = vmatpush1.bf16.msra.mxu0 0
        %732 = vmatprep.subr.bf16.mxu0 0
        %733 = vmatpush1.bf16.msra.mxu0 0
        %734 = vmatprep.subr.bf16.mxu0 0
        %735 = vmatpush1.bf16.msra.mxu0 0
        %736 = vmatprep.subr.bf16.mxu0 0
        %737 = vmatpush1.bf16.msra.mxu0 %v687
        %738 = vmatprep.subr.bf16.mxu0 0
        %739 = vmatpush1.bf16.msra.mxu0 %v666
        %740 = vmatprep.subr.bf16.mxu0 0
        %741 = vmatpush1.bf16.msra.mxu0 %v663
        %742 = vmatprep.subr.bf16.mxu0 0
        %743 = vmatpush1.bf16.msra.mxu0 %v660
        %744 = vmatprep.subr.bf16.mxu0 0
        %745 = vmatpush1.bf16.msra.mxu0 %v657
        %746 = vmatprep.subr.bf16.mxu0 0
        %747 = vmatpush2.bf16.msra.mxu0 0
        %748 = vmatprep.subr.bf16.mxu0 0
        %749 = vmatpush2.bf16.msra.mxu0 0
        %750 = vmatprep.subr.bf16.mxu0 0
        %751 = vmatpush2.bf16.msra.mxu0 0
        %752 = vmatprep.subr.bf16.mxu0 0
        %753 = vmatpush2.bf16.msra.mxu0 0
        %754 = vmatprep.subr.bf16.mxu0 0
        %755 = vmatpush2.bf16.msra.mxu0 0
        %756 = vmatprep.subr.bf16.mxu0 0
        %757 = vmatpush2.bf16.msra.mxu0 0
        %758 = vmatprep.subr.bf16.mxu0 0
        %759 = vmatpush2.bf16.msra.mxu0 0
        %760 = vmatprep.subr.bf16.mxu0 0
        %761 = vmatpush2.bf16.msra.mxu0 0
        %762 = vmatprep.mubr.bf16.mxu0 0
        %763 = vmatmul.mubr.bf16.gmra.mxu0 %v678
        %v764 = vpop.f32.mrf.mxu0
        %v765 = vadd.f32 %v675, %v764
        %v766 = vpop.f32.mrf.mxu0
        %v767 = vpop.f32.mrf.mxu0
        %v768 = vpop.f32.mrf.mxu0
        %769 = vdwg.mxu0
        %v770 = vmax.f32 %v724, 0.0
        %v771 = vmax.f32 %v726, 0.0
        %v772 = vmax.f32 %v765, 0.0
        %v773 = vmul.f32 %v770, %v568
        %v774 = vmul.f32 %v771, %v572
        %v775 = vmul.f32 %v772, %v576
        %776 = vrot.lane.b32.xlu0 %v773, 19
        %v777 = vpop.permute.xlu0 %776
        %778 = vrot.lane.b32.xlu0 %v774, 19
        %v779 = vpop.permute.xlu0 %778
        %780 = vrot.lane.b32.xlu0 %v775, 19
        %v781 = vpop.permute.xlu0 %780
        %v782 = vsel %vm370, %v779, %v781
        %v783 = vsel %vm370, %v777, %v779
        %v784 = vsel %vm370, %v781, %v777
        %785 = vrot.lane.b32.xlu0 %v773, 18
        %v786 = vpop.permute.xlu0 %785
        %787 = vrot.lane.b32.xlu0 %v774, 18
        %v788 = vpop.permute.xlu0 %787
        %789 = vrot.lane.b32.xlu0 %v775, 18
        %v790 = vpop.permute.xlu0 %789
        %v791 = vsel %vm380, %v788, %v790
        %v792 = vsel %vm380, %v786, %v788
        %v793 = vsel %vm380, %v790, %v786
        %794 = vrot.lane.b32.xlu0 %v773, 17
        %v795 = vpop.permute.xlu0 %794
        %796 = vrot.lane.b32.xlu0 %v774, 17
        %v797 = vpop.permute.xlu0 %796
        %798 = vrot.lane.b32.xlu0 %v775, 17
        %v799 = vpop.permute.xlu0 %798
        %v800 = vsel %vm390, %v797, %v799
        %v801 = vsel %vm390, %v795, %v797
        %v802 = vsel %vm390, %v799, %v795
        %803 = vrot.lane.b32.xlu0 %v773, 1
        %v804 = vpop.permute.xlu0 %803
        %805 = vrot.lane.b32.xlu0 %v774, 1
        %v806 = vpop.permute.xlu0 %805
        %807 = vrot.lane.b32.xlu0 %v775, 1
        %v808 = vpop.permute.xlu0 %807
        %v809 = vsel %vm400, %v806, %v808
        %v810 = vsel %vm400, %v804, %v806
        %v811 = vsel %vm400, %v808, %v804
        %812 = vrot.lane.b32.xlu0 %v773, 127
        %v813 = vpop.permute.xlu0 %812
        %814 = vrot.lane.b32.xlu0 %v774, 127
        %v815 = vpop.permute.xlu0 %814
        %816 = vrot.lane.b32.xlu0 %v775, 127
        %v817 = vpop.permute.xlu0 %816
        %v818 = vsel %vm410, %v815, %v817
        %v819 = vsel %vm410, %v813, %v815
        %v820 = vsel %vm410, %v817, %v813
        %821 = vrot.lane.b32.xlu0 %v773, 111
        %v822 = vpop.permute.xlu0 %821
        %823 = vrot.lane.b32.xlu0 %v774, 111
        %v824 = vpop.permute.xlu0 %823
        %825 = vrot.lane.b32.xlu0 %v775, 111
        %v826 = vpop.permute.xlu0 %825
        %v827 = vsel %vm420, %v824, %v826
        %v828 = vsel %vm420, %v822, %v824
        %v829 = vsel %vm420, %v826, %v822
        %830 = vrot.lane.b32.xlu0 %v773, 110
        %v831 = vpop.permute.xlu0 %830
        %832 = vrot.lane.b32.xlu0 %v774, 110
        %v833 = vpop.permute.xlu0 %832
        %834 = vrot.lane.b32.xlu0 %v775, 110
        %v835 = vpop.permute.xlu0 %834
        %v836 = vsel %vm430, %v833, %v835
        %v837 = vsel %vm430, %v831, %v833
        %v838 = vsel %vm430, %v835, %v831
        %839 = vrot.lane.b32.xlu0 %v773, 109
        %v840 = vpop.permute.xlu0 %839
        %841 = vrot.lane.b32.xlu0 %v774, 109
        %v842 = vpop.permute.xlu0 %841
        %843 = vrot.lane.b32.xlu0 %v775, 109
        %v844 = vpop.permute.xlu0 %843
        %v845 = vsel %vm440, %v842, %v844
        %v846 = vsel %vm440, %v840, %v842
        %v847 = vsel %vm440, %v844, %v840
        %v848 = vpack.c.bf16 %v793, %v784
        %v849 = vpack.c.bf16 %v792, %v783
        %v850 = vpack.c.bf16 %v791, %v782
        %v851 = vpack.c.bf16 %v811, %v802
        %v852 = vpack.c.bf16 %v810, %v801
        %v853 = vpack.c.bf16 %v809, %v800
        %v854 = vpack.c.bf16 %v819, %v773
        %v855 = vpack.c.bf16 %v818, %v774
        %v856 = vpack.c.bf16 %v820, %v775
        %v857 = vpack.c.bf16 %v837, %v828
        %v858 = vpack.c.bf16 %v836, %v827
        %v859 = vpack.c.bf16 %v838, %v829
        %v860 = vpack.c.bf16 %v846, %v846
        %v861 = vpack.c.bf16 %v845, %v845
        %v862 = vpack.c.bf16 %v847, %v847
        %v863 = vld [vmem:[#allocation7] sm:$0xf]
        %v864 = vld [vmem:[%s7] sm:$0xff]
        %866 = vset.pattern.permute.xlu0 0
        %867 = vperm.xlu0 %866, %v864
        %v868 = vpop.permute.xlu0 %867
        %v871 = vsel %vm466, %v863, 0
        %v874 = vsel %vm470, %v860, 0
        %v877 = vsel %vm470, %v861, 0
        %v880 = vsel %vm470, %v862, 0
        %882 = vmatprep.subr.bf16.mxu0 0
        %883 = vmatpush1.bf16.msra.mxu0 0
        %884 = vmatprep.subr.bf16.mxu0 0
        %885 = vmatpush1.bf16.msra.mxu0 0
        %886 = vmatprep.subr.bf16.mxu0 0
        %887 = vmatpush1.bf16.msra.mxu0 0
        %888 = vmatprep.subr.bf16.mxu0 %v877
        %889 = vmatpush1.bf16.msra.mxu0 %v874
        %890 = vmatprep.subr.bf16.mxu0 %v858
        %891 = vmatpush1.bf16.msra.mxu0 %v857
        %892 = vmatprep.subr.bf16.mxu0 %v855
        %893 = vmatpush1.bf16.msra.mxu0 %v854
        %894 = vmatprep.subr.bf16.mxu0 %v852
        %895 = vmatpush1.bf16.msra.mxu0 %v851
        %896 = vmatprep.subr.bf16.mxu0 %v849
        %897 = vmatpush1.bf16.msra.mxu0 %v848
        %898 = vmatprep.subr.bf16.mxu0 0
        %899 = vmatpush2.bf16.msra.mxu0 0
        %900 = vmatprep.subr.bf16.mxu0 0
        %901 = vmatpush2.bf16.msra.mxu0 0
        %902 = vmatprep.subr.bf16.mxu0 0
        %903 = vmatpush2.bf16.msra.mxu0 0
        %904 = vmatprep.subr.bf16.mxu0 0
        %905 = vmatpush2.bf16.msra.mxu0 0
        %906 = vmatprep.subr.bf16.mxu0 0
        %907 = vmatpush2.bf16.msra.mxu0 0
        %908 = vmatprep.subr.bf16.mxu0 0
        %909 = vmatpush2.bf16.msra.mxu0 0
        %910 = vmatprep.subr.bf16.mxu0 0
        %911 = vmatpush2.bf16.msra.mxu0 0
        %912 = vmatprep.subr.bf16.mxu0 0
        %913 = vmatpush2.bf16.msra.mxu0 0
        %914 = vmatprep.mubr.bf16.mxu0 0
        %915 = vmatmul.mubr.bf16.gmra.mxu0 %v871
        %v916 = vpop.f32.mrf.mxu0
        %v917 = vadd.f32 %v868, %v916
        %v918 = vpop.f32.mrf.mxu0
        %v919 = vadd.f32 %v868, %v918
        %v920 = vpop.f32.mrf.mxu0
        %v921 = vpop.f32.mrf.mxu0
        %922 = vdwg.mxu0
        %923 = vmatprep.subr.bf16.mxu0 0
        %924 = vmatpush1.bf16.msra.mxu0 0
        %925 = vmatprep.subr.bf16.mxu0 0
        %926 = vmatpush1.bf16.msra.mxu0 0
        %927 = vmatprep.subr.bf16.mxu0 0
        %928 = vmatpush1.bf16.msra.mxu0 0
        %929 = vmatprep.subr.bf16.mxu0 0
        %930 = vmatpush1.bf16.msra.mxu0 %v880
        %931 = vmatprep.subr.bf16.mxu0 0
        %932 = vmatpush1.bf16.msra.mxu0 %v859
        %933 = vmatprep.subr.bf16.mxu0 0
        %934 = vmatpush1.bf16.msra.mxu0 %v856
        %935 = vmatprep.subr.bf16.mxu0 0
        %936 = vmatpush1.bf16.msra.mxu0 %v853
        %937 = vmatprep.subr.bf16.mxu0 0
        %938 = vmatpush1.bf16.msra.mxu0 %v850
        %939 = vmatprep.subr.bf16.mxu0 0
        %940 = vmatpush2.bf16.msra.mxu0 0
        %941 = vmatprep.subr.bf16.mxu0 0
        %942 = vmatpush2.bf16.msra.mxu0 0
        %943 = vmatprep.subr.bf16.mxu0 0
        %944 = vmatpush2.bf16.msra.mxu0 0
        %945 = vmatprep.subr.bf16.mxu0 0
        %946 = vmatpush2.bf16.msra.mxu0 0
        %947 = vmatprep.subr.bf16.mxu0 0
        %948 = vmatpush2.bf16.msra.mxu0 0
        %949 = vmatprep.subr.bf16.mxu0 0
        %950 = vmatpush2.bf16.msra.mxu0 0
        %951 = vmatprep.subr.bf16.mxu0 0
        %952 = vmatpush2.bf16.msra.mxu0 0
        %953 = vmatprep.subr.bf16.mxu0 0
        %954 = vmatpush2.bf16.msra.mxu0 0
        %955 = vmatprep.mubr.bf16.mxu0 0
        %956 = vmatmul.mubr.bf16.gmra.mxu0 %v871
        %v957 = vpop.f32.mrf.mxu0
        %v958 = vadd.f32 %v868, %v957
        %v959 = vpop.f32.mrf.mxu0
        %v960 = vpop.f32.mrf.mxu0
        %v961 = vpop.f32.mrf.mxu0
        %962 = vdwg.mxu0
        %v963 = vmul.f32 %v917, %v568
        %v964 = vmul.f32 %v919, %v572
        %v965 = vmul.f32 %v958, %v576
        %966 = vst [vmem:[%s356] sm:$0xff] %v963
        %967 = vst [vmem:[%s356 + $0x8] sm:$0xff] %v964
        %968 = vst [vmem:[%s356 + $0x10] sm:$0xff] %v965
        %p969 = scmp.lt.s32.totalorder %s22, 1
        %s970 = scalar_select %p969, %s22, 1
        %s971 = smul.addr %s970, 3
        %s972 = smul.addr %s971, 8
        %s973 = scalar_lea.vmem %s8, %s972
        // Predicated region
        $region69: #{_lambda_.4} parent=51 // pred_check
          %p974 = pneg %p213
        $region70: #{_lambda_.4} parent=51 // pred_check_branch
          %976 = sbr.rel (%p974) target = $region72
        $region71: #{_lambda_.4} parent=51 // pred_region
          _
        $region72: #{_lambda_.4} parent=51 // pred_fallthru
          _
      $region52: #{_lambda_.4} parent=5 // pred_fallthru
        _
      %p977 = scmp.le.s32.totalorder 2, %s17
      // Predicated region
      $region73: #{_lambda_.4} parent=5 // pred_check
        %p978 = pneg %p977
      $region74: #{_lambda_.4} parent=5 // pred_check_branch
        %980 = sbr.rel (%p978) target = $region76
      $region75: #{_lambda_.4} parent=5 // pred_region
        %s981 = ssub.s32 %s17, 2
        // Predicated region
        $region77: #{_lambda_.4} parent=75 // pred_check
          %p982 = pneg %p219
        $region78: #{_lambda_.4} parent=75 // pred_check_branch
          %984 = sbr.rel (%p982) target = $region80
        $region79: #{_lambda_.4} parent=75 // pred_region
          %p985 = scmp.lt.s32.totalorder %s23, 1
          %s986 = scalar_select %p985, %s23, 1
          %s987 = smul.addr %s986, 3
          %s988 = smul.addr %s987, 8
          %s989 = scalar_lea.vmem %s8, %s988
        $region80: #{_lambda_.4} parent=75 // pred_fallthru
          _
      $region76: #{_lambda_.4} parent=5 // pred_fallthru
        _
    $region6: #{_lambda_.4} parent=1 // loop_footer
      %s21 = sadd.s32 1, %s17
    $region7: #{_lambda_.4} parent=1 // loop_footer_branch
      %16 = sbr.rel target = $region3
    $region8: #{_lambda_.4} parent=1 // loop_exit
      _
    %990 = vsyncpa [#allocation3], 1
    %s991 = scalar_lea.sflag [#allocation3], 1
    %992 = vsyncpa %s991, 1
    %993 = vsyncpa [#allocation5], 1
    %994 = vsyncpa [#allocation8], 1

// kernel: _lambda_.7
$region0: #{_lambda_.7}
  #allocation0 [shape = 'u32[]', space=smem, size = 0x4, offset = 0x4, fixed_abs, tag = 'smem constant byte address 0x4 - core index']
  #allocation1 [shape = 'u32[144,128]{1,0:T(1,128)}', space=vmem, size = 0x12000, scoped, tag = 'internal scratch']
  %s0 = inlined_call_operand.vmem [shape: f32[2,8,384], index: 0, kind: input, shape index: {}]
  %s1 = inlined_call_operand.vmem [shape: f32[1,384], index: 1, kind: input, shape index: {}]
  %s2 = inlined_call_operand.vmem [shape: bf16[8,72], index: 2, kind: input, shape index: {}]
  %s3 = inlined_call_operand.vmem [shape: f32[8,1], index: 3, kind: input, shape index: {}]
  %s4 = inlined_call_operand.vmem [shape: bf16[8,72], index: 4, kind: input, shape index: {}]
  %s5 = inlined_call_operand.vmem [shape: f32[8,1], index: 5, kind: input, shape index: {}]
  %s6 = inlined_call_operand.vmem [shape: bf16[8,72], index: 6, kind: input, shape index: {}]
  %s7 = inlined_call_operand.vmem [shape: f32[8,1], index: 7, kind: input, shape index: {}]
  %s8 = inlined_call_operand.vmem [shape: f32[2,8,384], index: 8, kind: output, shape index: {}]
  %s9 = sld [smem:[#allocation0]]
  $region65: #{_lambda_.7} parent=0
    _
  %s11 = ssub.s32 1, %s9
  %s12 = scalar_select 0, %s11, %s9
  loop: start=0, step=1, limit=4
  $region2: #{_lambda_.7} parent=0 // loop_pre_header
    _
  $region3: #{_lambda_.7} parent=0 // loop_header
    %s14 = sphi 0, %s18
    %p15 = scmp.ge.s32.totalorder %s14, 4
    %s24 = sphi 0, %s26
    %s27 = sphi 0, %s24
    %s28 = sphi 0, %s27
    %s44 = sphi 0, %s28
    %s48 = sphi 0, %s48
    %s50 = sphi 0, %s48
    %s51 = sphi 0, %s50
    %s65 = sphi 0, %s51
    %s69 = sphi 0, %s69
    %s71 = sphi 0, %s69
    %s72 = sphi 0, %s71
    %s86 = sphi 0, %s72
    %s90 = sphi 0, %s90
    %s92 = sphi 0, %s90
    %s93 = sphi 0, %s92
    %s107 = sphi 0, %s93
    %s111 = sphi 0, %s111
    %s113 = sphi 0, %s111
    %s114 = sphi 0, %s113
    %s128 = sphi 0, %s114
    %s132 = sphi 0, %s132
    %s134 = sphi 0, %s132
    %s135 = sphi 0, %s134
    %s149 = sphi 0, %s135
    %s153 = sphi 0, %s153
    %s155 = sphi 0, %s153
    %s156 = sphi 0, %s155
    %s170 = sphi 0, %s156
    %s174 = sphi 0, %s174
    %s176 = sphi 0, %s174
    %s177 = sphi 0, %s176
    %s191 = sphi 0, %s177
    %s197 = sphi 0, %s199
    %s200 = sphi 0, %s197
    %s201 = sphi 0, %s200
    %s217 = sphi 0, %s201
  $region4: #{_lambda_.7} parent=0 // loop_header_branch
    %17 = sbr.rel (%p15) target = $region8
  $region5: #{_lambda_.7} parent=0 // loop_body
    %s19 = ssub.s32 %s14, 1
    %s20 = ssub.s32 %s14, 2
    %s21 = sadd.s32 %s14, 1
    %s22 = ssub.s32 %s14, %s21
    %p23 = scmp.eq.s32.totalorder %s22, 0
    %s25 = sadd.s32 %s24, 1
    %s26 = scalar_select %p23, %s24, %s25
    %p29 = pneg %p23
    %p30 = scmp.eq.s32.totalorder %s14, 1
    %p31 = por %p29, %p30
    %p32 = scmp.ne.s32.totalorder %s24, %s27
    %p33 = scmp.eq.s32.totalorder %s14, 0
    %p34 = por %p32, %p33
    %p35 = scmp.ne.s32.totalorder %s24, %s27
    %p36 = scmp.eq.s32.totalorder %s19, 1
    %p37 = por %p35, %p36
    %p38 = scmp.ne.s32.totalorder %s27, %s28
    %p39 = scmp.eq.s32.totalorder %s19, 0
    %p40 = por %p38, %p39
    %p41 = scmp.ne.s32.totalorder %s27, %s28
    %p42 = scmp.eq.s32.totalorder %s20, 1
    %p43 = por %p41, %p42
    %p45 = scmp.ne.s32.totalorder %s28, %s44
    %p46 = scmp.eq.s32.totalorder %s20, 0
    %p47 = por %p45, %p46
    %s49 = sadd.s32 %s48, 1
    %p52 = scmp.eq.s32.totalorder %s14, 1
    %p53 = scmp.ne.s32.totalorder %s48, %s50
    %p54 = scmp.eq.s32.totalorder %s14, 0
    %p55 = por %p53, %p54
    %p56 = scmp.ne.s32.totalorder %s48, %s50
    %p57 = scmp.eq.s32.totalorder %s19, 1
    %p58 = por %p56, %p57
    %p59 = scmp.ne.s32.totalorder %s50, %s51
    %p60 = scmp.eq.s32.totalorder %s19, 0
    %p61 = por %p59, %p60
    %p62 = scmp.ne.s32.totalorder %s50, %s51
    %p63 = scmp.eq.s32.totalorder %s20, 1
    %p64 = por %p62, %p63
    %p66 = scmp.ne.s32.totalorder %s51, %s65
    %p67 = scmp.eq.s32.totalorder %s20, 0
    %p68 = por %p66, %p67
    %s70 = sadd.s32 %s69, 1
    %p73 = scmp.eq.s32.totalorder %s14, 1
    %p74 = scmp.ne.s32.totalorder %s69, %s71
    %p75 = scmp.eq.s32.totalorder %s14, 0
    %p76 = por %p74, %p75
    %p77 = scmp.ne.s32.totalorder %s69, %s71
    %p78 = scmp.eq.s32.totalorder %s19, 1
    %p79 = por %p77, %p78
    %p80 = scmp.ne.s32.totalorder %s71, %s72
    %p81 = scmp.eq.s32.totalorder %s19, 0
    %p82 = por %p80, %p81
    %p83 = scmp.ne.s32.totalorder %s71, %s72
    %p84 = scmp.eq.s32.totalorder %s20, 1
    %p85 = por %p83, %p84
    %p87 = scmp.ne.s32.totalorder %s72, %s86
    %p88 = scmp.eq.s32.totalorder %s20, 0
    %p89 = por %p87, %p88
    %s91 = sadd.s32 %s90, 1
    %p94 = scmp.eq.s32.totalorder %s14, 1
    %p95 = scmp.ne.s32.totalorder %s90, %s92
    %p96 = scmp.eq.s32.totalorder %s14, 0
    %p97 = por %p95, %p96
    %p98 = scmp.ne.s32.totalorder %s90, %s92
    %p99 = scmp.eq.s32.totalorder %s19, 1
    %p100 = por %p98, %p99
    %p101 = scmp.ne.s32.totalorder %s92, %s93
    %p102 = scmp.eq.s32.totalorder %s19, 0
    %p103 = por %p101, %p102
    %p104 = scmp.ne.s32.totalorder %s92, %s93
    %p105 = scmp.eq.s32.totalorder %s20, 1
    %p106 = por %p104, %p105
    %p108 = scmp.ne.s32.totalorder %s93, %s107
    %p109 = scmp.eq.s32.totalorder %s20, 0
    %p110 = por %p108, %p109
    %s112 = sadd.s32 %s111, 1
    %p115 = scmp.eq.s32.totalorder %s14, 1
    %p116 = scmp.ne.s32.totalorder %s111, %s113
    %p117 = scmp.eq.s32.totalorder %s14, 0
    %p118 = por %p116, %p117
    %p119 = scmp.ne.s32.totalorder %s111, %s113
    %p120 = scmp.eq.s32.totalorder %s19, 1
    %p121 = por %p119, %p120
    %p122 = scmp.ne.s32.totalorder %s113, %s114
    %p123 = scmp.eq.s32.totalorder %s19, 0
    %p124 = por %p122, %p123
    %p125 = scmp.ne.s32.totalorder %s113, %s114
    %p126 = scmp.eq.s32.totalorder %s20, 1
    %p127 = por %p125, %p126
    %p129 = scmp.ne.s32.totalorder %s114, %s128
    %p130 = scmp.eq.s32.totalorder %s20, 0
    %p131 = por %p129, %p130
    %s133 = sadd.s32 %s132, 1
    %p136 = scmp.eq.s32.totalorder %s14, 1
    %p137 = scmp.ne.s32.totalorder %s132, %s134
    %p138 = scmp.eq.s32.totalorder %s14, 0
    %p139 = por %p137, %p138
    %p140 = scmp.ne.s32.totalorder %s132, %s134
    %p141 = scmp.eq.s32.totalorder %s19, 1
    %p142 = por %p140, %p141
    %p143 = scmp.ne.s32.totalorder %s134, %s135
    %p144 = scmp.eq.s32.totalorder %s19, 0
    %p145 = por %p143, %p144
    %p146 = scmp.ne.s32.totalorder %s134, %s135
    %p147 = scmp.eq.s32.totalorder %s20, 1
    %p148 = por %p146, %p147
    %p150 = scmp.ne.s32.totalorder %s135, %s149
    %p151 = scmp.eq.s32.totalorder %s20, 0
    %p152 = por %p150, %p151
    %s154 = sadd.s32 %s153, 1
    %p157 = scmp.eq.s32.totalorder %s14, 1
    %p158 = scmp.ne.s32.totalorder %s153, %s155
    %p159 = scmp.eq.s32.totalorder %s14, 0
    %p160 = por %p158, %p159
    %p161 = scmp.ne.s32.totalorder %s153, %s155
    %p162 = scmp.eq.s32.totalorder %s19, 1
    %p163 = por %p161, %p162
    %p164 = scmp.ne.s32.totalorder %s155, %s156
    %p165 = scmp.eq.s32.totalorder %s19, 0
    %p166 = por %p164, %p165
    %p167 = scmp.ne.s32.totalorder %s155, %s156
    %p168 = scmp.eq.s32.totalorder %s20, 1
    %p169 = por %p167, %p168
    %p171 = scmp.ne.s32.totalorder %s156, %s170
    %p172 = scmp.eq.s32.totalorder %s20, 0
    %p173 = por %p171, %p172
    %s175 = sadd.s32 %s174, 1
    %p178 = scmp.eq.s32.totalorder %s14, 1
    %p179 = scmp.ne.s32.totalorder %s174, %s176
    %p180 = scmp.eq.s32.totalorder %s14, 0
    %p181 = por %p179, %p180
    %p182 = scmp.ne.s32.totalorder %s174, %s176
    %p183 = scmp.eq.s32.totalorder %s19, 1
    %p184 = por %p182, %p183
    %p185 = scmp.ne.s32.totalorder %s176, %s177
    %p186 = scmp.eq.s32.totalorder %s19, 0
    %p187 = por %p185, %p186
    %p188 = scmp.ne.s32.totalorder %s176, %s177
    %p189 = scmp.eq.s32.totalorder %s20, 1
    %p190 = por %p188, %p189
    %p192 = scmp.ne.s32.totalorder %s177, %s191
    %p193 = scmp.eq.s32.totalorder %s20, 0
    %p194 = por %p192, %p193
    %s195 = ssub.s32 %s14, %s21
    %p196 = scmp.eq.s32.totalorder %s195, 0
    %s198 = sadd.s32 %s197, 1
    %s199 = scalar_select %p196, %s197, %s198
    %p202 = pneg %p196
    %p203 = scmp.eq.s32.totalorder %s14, 1
    %p204 = por %p202, %p203
    %p205 = scmp.ne.s32.totalorder %s197, %s200
    %p206 = scmp.eq.s32.totalorder %s14, 0
    %p207 = por %p205, %p206
    %p208 = scmp.ne.s32.totalorder %s197, %s200
    %p209 = scmp.eq.s32.totalorder %s19, 1
    %p210 = por %p208, %p209
    %p211 = scmp.ne.s32.totalorder %s200, %s201
    %p212 = scmp.eq.s32.totalorder %s19, 0
    %p213 = por %p211, %p212
    %p214 = scmp.ne.s32.totalorder %s200, %s201
    %p215 = scmp.eq.s32.totalorder %s20, 1
    %p216 = por %p214, %p215
    %p218 = scmp.ne.s32.totalorder %s201, %s217
    %p219 = scmp.eq.s32.totalorder %s20, 0
    %p220 = por %p218, %p219
    %p221 = scmp.le.s32.totalorder 1, %s14
    %p222 = scmp.lt.s32.totalorder %s14, 3
    %p223 = pnand %p221, %p222
    %p224 = pneg %p223
    // Predicated region
    $region9: #{_lambda_.7} parent=5 // pred_check
      _
    $region10: #{_lambda_.7} parent=5 // pred_check_branch
      %226 = sbr.rel (%p223) target = $region12
    $region11: #{_lambda_.7} parent=5 // pred_region
      %s227 = ssub.s32 %s14, 1
      // Predicated region
      $region13: #{_lambda_.7} parent=11 // pred_check
        %p228 = pneg %p61
      $region14: #{_lambda_.7} parent=11 // pred_check_branch
        %230 = sbr.rel (%p228) target = $region16
      $region15: #{_lambda_.7} parent=11 // pred_region
        _
      $region16: #{_lambda_.7} parent=11 // pred_fallthru
        _
      // Predicated region
      $region17: #{_lambda_.7} parent=11 // pred_check
        %p231 = pneg %p82
      $region18: #{_lambda_.7} parent=11 // pred_check_branch
        %233 = sbr.rel (%p231) target = $region20
      $region19: #{_lambda_.7} parent=11 // pred_region
        _
      $region20: #{_lambda_.7} parent=11 // pred_fallthru
        _
      // Predicated region
      $region21: #{_lambda_.7} parent=11 // pred_check
        %p234 = pneg %p103
      $region22: #{_lambda_.7} parent=11 // pred_check_branch
        %236 = sbr.rel (%p234) target = $region24
      $region23: #{_lambda_.7} parent=11 // pred_region
        _
      $region24: #{_lambda_.7} parent=11 // pred_fallthru
        _
      // Predicated region
      $region25: #{_lambda_.7} parent=11 // pred_check
        %p237 = pneg %p124
      $region26: #{_lambda_.7} parent=11 // pred_check_branch
        %239 = sbr.rel (%p237) target = $region28
      $region27: #{_lambda_.7} parent=11 // pred_region
        _
      $region28: #{_lambda_.7} parent=11 // pred_fallthru
        _
      // Predicated region
      $region29: #{_lambda_.7} parent=11 // pred_check
        %p240 = pneg %p145
      $region30: #{_lambda_.7} parent=11 // pred_check_branch
        %242 = sbr.rel (%p240) target = $region32
      $region31: #{_lambda_.7} parent=11 // pred_region
        _
      $region32: #{_lambda_.7} parent=11 // pred_fallthru
        _
      // Predicated region
      $region33: #{_lambda_.7} parent=11 // pred_check
        %p243 = pneg %p166
      $region34: #{_lambda_.7} parent=11 // pred_check_branch
        %245 = sbr.rel (%p243) target = $region36
      $region35: #{_lambda_.7} parent=11 // pred_region
        _
      $region36: #{_lambda_.7} parent=11 // pred_fallthru
        _
      // Predicated region
      $region37: #{_lambda_.7} parent=11 // pred_check
        %p246 = pneg %p187
      $region38: #{_lambda_.7} parent=11 // pred_check_branch
        %248 = sbr.rel (%p246) target = $region40
      $region39: #{_lambda_.7} parent=11 // pred_region
        _
      $region40: #{_lambda_.7} parent=11 // pred_fallthru
        _
    $region12: #{_lambda_.7} parent=5 // pred_fallthru
      _
    %p249 = scmp.lt.s32.totalorder %s14, 2
    // Predicated region
    $region41: #{_lambda_.7} parent=5 // pred_check
      %p250 = pneg %p249
    $region42: #{_lambda_.7} parent=5 // pred_check_branch
      %252 = sbr.rel (%p250) target = $region44
    $region43: #{_lambda_.7} parent=5 // pred_region
      // Predicated region
      $region45: #{_lambda_.7} parent=43 // pred_check
        %p253 = pneg %p34
      $region46: #{_lambda_.7} parent=43 // pred_check_branch
        %255 = sbr.rel (%p253) target = $region48
      $region47: #{_lambda_.7} parent=43 // pred_region
        %p256 = scmp.lt.s32.totalorder %s14, 1
        %s257 = scalar_select %p256, %s14, 1
        %s258 = smul.addr %s257, 3
        %s259 = smul.addr %s258, 8
        %s260 = scalar_lea.vmem %s0, %s259
      $region48: #{_lambda_.7} parent=43 // pred_fallthru
        _
    $region44: #{_lambda_.7} parent=5 // pred_fallthru
      _
    %p261 = scmp.le.s32.totalorder 1, %s14
    %p262 = scmp.lt.s32.totalorder %s14, 3
    %p263 = pnand %p261, %p262
    %p264 = pneg %p263
    // Predicated region
    $region49: #{_lambda_.7} parent=5 // pred_check
      _
    $region50: #{_lambda_.7} parent=5 // pred_check_branch
      %266 = sbr.rel (%p263) target = $region52
    $region51: #{_lambda_.7} parent=5 // pred_region
      %s267 = ssub.s32 %s14, 1
      %p268 = scmp.lt.s32.totalorder %s19, 1
      %s269 = scalar_select %p268, %s19, 1
      %s270 = smul.addr %s269, 3
      %s271 = smul.addr %s270, 8
      %s272 = scalar_lea.vmem %s0, %s271
      %p273 = pneg %p40
      %p274 = pneg %p37
      %p275 = pneg %p61
      %p276 = pneg %p58
      %p277 = pneg %p82
      %p278 = pneg %p79
      %p279 = pneg %p103
      %p280 = pneg %p100
      %p281 = pneg %p124
      %p282 = pneg %p121
      %p283 = pneg %p145
      %p284 = pneg %p142
      %p285 = pneg %p166
      %p286 = pneg %p163
      %p287 = pneg %p187
      %p288 = pneg %p184
      %p289 = pneg %p213
      %p290 = pneg %p210
      %p291 = scmp.lt.s32.totalorder %s19, 1
      %s292 = scalar_select %p291, %s19, 1
      %s293 = smul.addr %s292, 3
      %s294 = smul.addr %s293, 8
      %s295 = scalar_lea.vmem %s8, %s294
      %p296 = scmp.lt.s32.totalorder %s19, 1
      %s297 = scalar_select %p296, %s19, 1
      %s298 = smul.addr %s297, 3
      %s299 = smul.addr %s298, 8
      %s300 = scalar_lea.vmem %s0, %s299
      %p301 = scmp.lt.s32.totalorder %s19, 1
      %s302 = scalar_select %p301, %s19, 1
      %s303 = smul.addr %s302, 3
      %s304 = smul.addr %s303, 8
      %s305 = scalar_lea.vmem %s8, %s304
      %v307 = vld [vmem:[%s1] sm:$0x7]
      %v308 = vld [vmem:[%s300] sm:$0xff]
      %v309 = vld [vmem:[%s300 + $0x8] sm:$0xff]
      %v310 = vld [vmem:[%s300 + $0x10] sm:$0xff]
      %311 = vrot.lane.b32.xlu0 %v308, 19
      %v312 = vpop.permute.xlu0 %311
      %313 = vrot.lane.b32.xlu0 %v309, 19
      %v314 = vpop.permute.xlu0 %313
      %315 = vrot.lane.b32.xlu0 %v310, 19
      %v316 = vpop.permute.xlu0 %315
      %v317 = vlaneseq
      %v318 = vand.u32 %v317, 127
      %vm319 = vcmp.lt.s32.totalorder %v318, 19
      %v320 = vsel %vm319, %v314, %v316
      %v321 = vsel %vm319, %v312, %v314
      %v322 = vsel %vm319, %v316, %v312
      %323 = vrot.lane.b32.xlu0 %v308, 18
      %v324 = vpop.permute.xlu0 %323
      %325 = vrot.lane.b32.xlu0 %v309, 18
      %v326 = vpop.permute.xlu0 %325
      %327 = vrot.lane.b32.xlu0 %v310, 18
      %v328 = vpop.permute.xlu0 %327
      %vm329 = vcmp.lt.s32.totalorder %v318, 18
      %v330 = vsel %vm329, %v326, %v328
      %v331 = vsel %vm329, %v324, %v326
      %v332 = vsel %vm329, %v328, %v324
      %333 = vrot.lane.b32.xlu0 %v308, 17
      %v334 = vpop.permute.xlu0 %333
      %335 = vrot.lane.b32.xlu0 %v309, 17
      %v336 = vpop.permute.xlu0 %335
      %337 = vrot.lane.b32.xlu0 %v310, 17
      %v338 = vpop.permute.xlu0 %337
      %vm339 = vcmp.lt.s32.totalorder %v318, 17
      %v340 = vsel %vm339, %v336, %v338
      %v341 = vsel %vm339, %v334, %v336
      %v342 = vsel %vm339, %v338, %v334
      %343 = vrot.lane.b32.xlu0 %v308, 1
      %v344 = vpop.permute.xlu0 %343
      %345 = vrot.lane.b32.xlu0 %v309, 1
      %v346 = vpop.permute.xlu0 %345
      %347 = vrot.lane.b32.xlu0 %v310, 1
      %v348 = vpop.permute.xlu0 %347
      %vm349 = vcmp.lt.s32.totalorder %v318, 1
      %v350 = vsel %vm349, %v346, %v348
      %v351 = vsel %vm349, %v344, %v346
      %v352 = vsel %vm349, %v348, %v344
      %353 = vrot.lane.b32.xlu0 %v308, 127
      %v354 = vpop.permute.xlu0 %353
      %355 = vrot.lane.b32.xlu0 %v309, 127
      %v356 = vpop.permute.xlu0 %355
      %357 = vrot.lane.b32.xlu0 %v310, 127
      %v358 = vpop.permute.xlu0 %357
      %vm359 = vcmp.lt.s32.totalorder %v318, 127
      %v360 = vsel %vm359, %v356, %v358
      %v361 = vsel %vm359, %v354, %v356
      %v362 = vsel %vm359, %v358, %v354
      %363 = vrot.lane.b32.xlu0 %v308, 111
      %v364 = vpop.permute.xlu0 %363
      %365 = vrot.lane.b32.xlu0 %v309, 111
      %v366 = vpop.permute.xlu0 %365
      %367 = vrot.lane.b32.xlu0 %v310, 111
      %v368 = vpop.permute.xlu0 %367
      %vm369 = vcmp.lt.s32.totalorder %v318, 111
      %v370 = vsel %vm369, %v366, %v368
      %v371 = vsel %vm369, %v364, %v366
      %v372 = vsel %vm369, %v368, %v364
      %373 = vrot.lane.b32.xlu0 %v308, 110
      %v374 = vpop.permute.xlu0 %373
      %375 = vrot.lane.b32.xlu0 %v309, 110
      %v376 = vpop.permute.xlu0 %375
      %377 = vrot.lane.b32.xlu0 %v310, 110
      %v378 = vpop.permute.xlu0 %377
      %vm379 = vcmp.lt.s32.totalorder %v318, 110
      %v380 = vsel %vm379, %v376, %v378
      %v381 = vsel %vm379, %v374, %v376
      %v382 = vsel %vm379, %v378, %v374
      %383 = vrot.lane.b32.xlu0 %v308, 109
      %v384 = vpop.permute.xlu0 %383
      %385 = vrot.lane.b32.xlu0 %v309, 109
      %v386 = vpop.permute.xlu0 %385
      %387 = vrot.lane.b32.xlu0 %v310, 109
      %v388 = vpop.permute.xlu0 %387
      %vm389 = vcmp.lt.s32.totalorder %v318, 109
      %v390 = vsel %vm389, %v386, %v388
      %v391 = vsel %vm389, %v384, %v386
      %v392 = vsel %vm389, %v388, %v384
      %v393 = vpack.c.bf16 %v332, %v322
      %v394 = vpack.c.bf16 %v331, %v321
      %v395 = vpack.c.bf16 %v330, %v320
      %v396 = vpack.c.bf16 %v352, %v342
      %v397 = vpack.c.bf16 %v351, %v341
      %v398 = vpack.c.bf16 %v350, %v340
      %v399 = vpack.c.bf16 %v361, %v308
      %v400 = vpack.c.bf16 %v360, %v309
      %v401 = vpack.c.bf16 %v362, %v310
      %v402 = vpack.c.bf16 %v381, %v371
      %v403 = vpack.c.bf16 %v380, %v370
      %v404 = vpack.c.bf16 %v382, %v372
      %v405 = vpack.c.bf16 %v391, %v391
      %v406 = vpack.c.bf16 %v390, %v390
      %v407 = vpack.c.bf16 %v392, %v392
      %v408 = vld [vmem:[%s2] sm:$0xf]
      %v409 = vld [vmem:[%s3] sm:$0xff]
      %411 = vset.pattern.permute.xlu0 0
      %412 = vperm.xlu0 %411, %v409
      %v413 = vpop.permute.xlu0 %412
      %vm415 = vcmask 588800
      %v417 = vsel %vm415, %v408, 0
      %vm419 = vcmask 1043456
      %v421 = vsel %vm419, %v405, 0
      %v424 = vsel %vm419, %v406, 0
      %v427 = vsel %vm419, %v407, 0
      %429 = vmatprep.subr.bf16.mxu0 0
      %430 = vmatpush1.bf16.msra.mxu0 0
      %431 = vmatprep.subr.bf16.mxu0 0
      %432 = vmatpush1.bf16.msra.mxu0 0
      %433 = vmatprep.subr.bf16.mxu0 0
      %434 = vmatpush1.bf16.msra.mxu0 0
      %435 = vmatprep.subr.bf16.mxu0 %v424
      %436 = vmatpush1.bf16.msra.mxu0 %v421
      %437 = vmatprep.subr.bf16.mxu0 %v403
      %438 = vmatpush1.bf16.msra.mxu0 %v402
      %439 = vmatprep.subr.bf16.mxu0 %v400
      %440 = vmatpush1.bf16.msra.mxu0 %v399
      %441 = vmatprep.subr.bf16.mxu0 %v397
      %442 = vmatpush1.bf16.msra.mxu0 %v396
      %443 = vmatprep.subr.bf16.mxu0 %v394
      %444 = vmatpush1.bf16.msra.mxu0 %v393
      %445 = vmatprep.subr.bf16.mxu0 0
      %446 = vmatpush2.bf16.msra.mxu0 0
      %447 = vmatprep.subr.bf16.mxu0 0
      %448 = vmatpush2.bf16.msra.mxu0 0
      %449 = vmatprep.subr.bf16.mxu0 0
      %450 = vmatpush2.bf16.msra.mxu0 0
      %451 = vmatprep.subr.bf16.mxu0 0
      %452 = vmatpush2.bf16.msra.mxu0 0
      %453 = vmatprep.subr.bf16.mxu0 0
      %454 = vmatpush2.bf16.msra.mxu0 0
      %455 = vmatprep.subr.bf16.mxu0 0
      %456 = vmatpush2.bf16.msra.mxu0 0
      %457 = vmatprep.subr.bf16.mxu0 0
      %458 = vmatpush2.bf16.msra.mxu0 0
      %459 = vmatprep.subr.bf16.mxu0 0
      %460 = vmatpush2.bf16.msra.mxu0 0
      %461 = vmatprep.mubr.bf16.mxu0 0
      %462 = vmatmul.mubr.bf16.gmra.mxu0 %v417
      %v463 = vpop.f32.mrf.mxu0
      %v464 = vadd.f32 %v413, %v463
      %v465 = vpop.f32.mrf.mxu0
      %v466 = vadd.f32 %v413, %v465
      %v467 = vpop.f32.mrf.mxu0
      %v468 = vpop.f32.mrf.mxu0
      %469 = vdwg.mxu0
      %470 = vmatprep.subr.bf16.mxu0 0
      %471 = vmatpush1.bf16.msra.mxu0 0
      %472 = vmatprep.subr.bf16.mxu0 0
      %473 = vmatpush1.bf16.msra.mxu0 0
      %474 = vmatprep.subr.bf16.mxu0 0
      %475 = vmatpush1.bf16.msra.mxu0 0
      %476 = vmatprep.subr.bf16.mxu0 0
      %477 = vmatpush1.bf16.msra.mxu0 %v427
      %478 = vmatprep.subr.bf16.mxu0 0
      %479 = vmatpush1.bf16.msra.mxu0 %v404
      %480 = vmatprep.subr.bf16.mxu0 0
      %481 = vmatpush1.bf16.msra.mxu0 %v401
      %482 = vmatprep.subr.bf16.mxu0 0
      %483 = vmatpush1.bf16.msra.mxu0 %v398
      %484 = vmatprep.subr.bf16.mxu0 0
      %485 = vmatpush1.bf16.msra.mxu0 %v395
      %486 = vmatprep.subr.bf16.mxu0 0
      %487 = vmatpush2.bf16.msra.mxu0 0
      %488 = vmatprep.subr.bf16.mxu0 0
      %489 = vmatpush2.bf16.msra.mxu0 0
      %490 = vmatprep.subr.bf16.mxu0 0
      %491 = vmatpush2.bf16.msra.mxu0 0
      %492 = vmatprep.subr.bf16.mxu0 0
      %493 = vmatpush2.bf16.msra.mxu0 0
      %494 = vmatprep.subr.bf16.mxu0 0
      %495 = vmatpush2.bf16.msra.mxu0 0
      %496 = vmatprep.subr.bf16.mxu0 0
      %497 = vmatpush2.bf16.msra.mxu0 0
      %498 = vmatprep.subr.bf16.mxu0 0
      %499 = vmatpush2.bf16.msra.mxu0 0
      %500 = vmatprep.subr.bf16.mxu0 0
      %501 = vmatpush2.bf16.msra.mxu0 0
      %502 = vmatprep.mubr.bf16.mxu0 0
      %503 = vmatmul.mubr.bf16.gmra.mxu0 %v417
      %v504 = vpop.f32.mrf.mxu0
      %v505 = vadd.f32 %v413, %v504
      %v506 = vpop.f32.mrf.mxu0
      %v507 = vpop.f32.mrf.mxu0
      %v508 = vpop.f32.mrf.mxu0
      %509 = vdwg.mxu0
      %v510 = vmax.f32 %v464, 0.0
      %v511 = vmax.f32 %v466, 0.0
      %v512 = vmax.f32 %v505, 0.0
      %v514 = vlaneseq
      %v515 = vshrl.u32 %v514, 7
      %v516 = vsub.s32 0, %v515
      %v517 = vrot.slane %v307, %v516
      %v518 = vlaneseq
      %v519 = vshrl.u32 %v518, 7
      %v520 = vsub.s32 1, %v519
      %v521 = vrot.slane %v307, %v520
      %v522 = vlaneseq
      %v523 = vshrl.u32 %v522, 7
      %v524 = vsub.s32 2, %v523
      %v525 = vrot.slane %v307, %v524
      %v529 = vmul.f32 %v510, %v517
      %v530 = vmul.f32 %v511, %v521
      %v531 = vmul.f32 %v512, %v525
      %532 = vrot.lane.b32.xlu0 %v529, 19
      %v533 = vpop.permute.xlu0 %532
      %534 = vrot.lane.b32.xlu0 %v530, 19
      %v535 = vpop.permute.xlu0 %534
      %536 = vrot.lane.b32.xlu0 %v531, 19
      %v537 = vpop.permute.xlu0 %536
      %v538 = vsel %vm319, %v535, %v537
      %v539 = vsel %vm319, %v533, %v535
      %v540 = vsel %vm319, %v537, %v533
      %541 = vrot.lane.b32.xlu0 %v529, 18
      %v542 = vpop.permute.xlu0 %541
      %543 = vrot.lane.b32.xlu0 %v530, 18
      %v544 = vpop.permute.xlu0 %543
      %545 = vrot.lane.b32.xlu0 %v531, 18
      %v546 = vpop.permute.xlu0 %545
      %v547 = vsel %vm329, %v544, %v546
      %v548 = vsel %vm329, %v542, %v544
      %v549 = vsel %vm329, %v546, %v542
      %550 = vrot.lane.b32.xlu0 %v529, 17
      %v551 = vpop.permute.xlu0 %550
      %552 = vrot.lane.b32.xlu0 %v530, 17
      %v553 = vpop.permute.xlu0 %552
      %554 = vrot.lane.b32.xlu0 %v531, 17
      %v555 = vpop.permute.xlu0 %554
      %v556 = vsel %vm339, %v553, %v555
      %v557 = vsel %vm339, %v551, %v553
      %v558 = vsel %vm339, %v555, %v551
      %559 = vrot.lane.b32.xlu0 %v529, 1
      %v560 = vpop.permute.xlu0 %559
      %561 = vrot.lane.b32.xlu0 %v530, 1
      %v562 = vpop.permute.xlu0 %561
      %563 = vrot.lane.b32.xlu0 %v531, 1
      %v564 = vpop.permute.xlu0 %563
      %v565 = vsel %vm349, %v562, %v564
      %v566 = vsel %vm349, %v560, %v562
      %v567 = vsel %vm349, %v564, %v560
      %568 = vrot.lane.b32.xlu0 %v529, 127
      %v569 = vpop.permute.xlu0 %568
      %570 = vrot.lane.b32.xlu0 %v530, 127
      %v571 = vpop.permute.xlu0 %570
      %572 = vrot.lane.b32.xlu0 %v531, 127
      %v573 = vpop.permute.xlu0 %572
      %v574 = vsel %vm359, %v571, %v573
      %v575 = vsel %vm359, %v569, %v571
      %v576 = vsel %vm359, %v573, %v569
      %577 = vrot.lane.b32.xlu0 %v529, 111
      %v578 = vpop.permute.xlu0 %577
      %579 = vrot.lane.b32.xlu0 %v530, 111
      %v580 = vpop.permute.xlu0 %579
      %581 = vrot.lane.b32.xlu0 %v531, 111
      %v582 = vpop.permute.xlu0 %581
      %v583 = vsel %vm369, %v580, %v582
      %v584 = vsel %vm369, %v578, %v580
      %v585 = vsel %vm369, %v582, %v578
      %586 = vrot.lane.b32.xlu0 %v529, 110
      %v587 = vpop.permute.xlu0 %586
      %588 = vrot.lane.b32.xlu0 %v530, 110
      %v589 = vpop.permute.xlu0 %588
      %590 = vrot.lane.b32.xlu0 %v531, 110
      %v591 = vpop.permute.xlu0 %590
      %v592 = vsel %vm379, %v589, %v591
      %v593 = vsel %vm379, %v587, %v589
      %v594 = vsel %vm379, %v591, %v587
      %595 = vrot.lane.b32.xlu0 %v529, 109
      %v596 = vpop.permute.xlu0 %595
      %597 = vrot.lane.b32.xlu0 %v530, 109
      %v598 = vpop.permute.xlu0 %597
      %599 = vrot.lane.b32.xlu0 %v531, 109
      %v600 = vpop.permute.xlu0 %599
      %v601 = vsel %vm389, %v598, %v600
      %v602 = vsel %vm389, %v596, %v598
      %v603 = vsel %vm389, %v600, %v596
      %v604 = vpack.c.bf16 %v549, %v540
      %v605 = vpack.c.bf16 %v548, %v539
      %v606 = vpack.c.bf16 %v547, %v538
      %v607 = vpack.c.bf16 %v567, %v558
      %v608 = vpack.c.bf16 %v566, %v557
      %v609 = vpack.c.bf16 %v565, %v556
      %v610 = vpack.c.bf16 %v575, %v529
      %v611 = vpack.c.bf16 %v574, %v530
      %v612 = vpack.c.bf16 %v576, %v531
      %v613 = vpack.c.bf16 %v593, %v584
      %v614 = vpack.c.bf16 %v592, %v583
      %v615 = vpack.c.bf16 %v594, %v585
      %v616 = vpack.c.bf16 %v602, %v602
      %v617 = vpack.c.bf16 %v601, %v601
      %v618 = vpack.c.bf16 %v603, %v603
      %v619 = vld [vmem:[%s4] sm:$0xf]
      %v620 = vld [vmem:[%s5] sm:$0xff]
      %622 = vset.pattern.permute.xlu0 0
      %623 = vperm.xlu0 %622, %v620
      %v624 = vpop.permute.xlu0 %623
      %v627 = vsel %vm415, %v619, 0
      %v630 = vsel %vm419, %v616, 0
      %v633 = vsel %vm419, %v617, 0
      %v636 = vsel %vm419, %v618, 0
      %638 = vmatprep.subr.bf16.mxu0 0
      %639 = vmatpush1.bf16.msra.mxu0 0
      %640 = vmatprep.subr.bf16.mxu0 0
      %641 = vmatpush1.bf16.msra.mxu0 0
      %642 = vmatprep.subr.bf16.mxu0 0
      %643 = vmatpush1.bf16.msra.mxu0 0
      %644 = vmatprep.subr.bf16.mxu0 %v633
      %645 = vmatpush1.bf16.msra.mxu0 %v630
      %646 = vmatprep.subr.bf16.mxu0 %v614
      %647 = vmatpush1.bf16.msra.mxu0 %v613
      %648 = vmatprep.subr.bf16.mxu0 %v611
      %649 = vmatpush1.bf16.msra.mxu0 %v610
      %650 = vmatprep.subr.bf16.mxu0 %v608
      %651 = vmatpush1.bf16.msra.mxu0 %v607
      %652 = vmatprep.subr.bf16.mxu0 %v605
      %653 = vmatpush1.bf16.msra.mxu0 %v604
      %654 = vmatprep.subr.bf16.mxu0 0
      %655 = vmatpush2.bf16.msra.mxu0 0
      %656 = vmatprep.subr.bf16.mxu0 0
      %657 = vmatpush2.bf16.msra.mxu0 0
      %658 = vmatprep.subr.bf16.mxu0 0
      %659 = vmatpush2.bf16.msra.mxu0 0
      %660 = vmatprep.subr.bf16.mxu0 0
      %661 = vmatpush2.bf16.msra.mxu0 0
      %662 = vmatprep.subr.bf16.mxu0 0
      %663 = vmatpush2.bf16.msra.mxu0 0
      %664 = vmatprep.subr.bf16.mxu0 0
      %665 = vmatpush2.bf16.msra.mxu0 0
      %666 = vmatprep.subr.bf16.mxu0 0
      %667 = vmatpush2.bf16.msra.mxu0 0
      %668 = vmatprep.subr.bf16.mxu0 0
      %669 = vmatpush2.bf16.msra.mxu0 0
      %670 = vmatprep.mubr.bf16.mxu0 0
      %671 = vmatmul.mubr.bf16.gmra.mxu0 %v627
      %v672 = vpop.f32.mrf.mxu0
      %v673 = vadd.f32 %v624, %v672
      %v674 = vpop.f32.mrf.mxu0
      %v675 = vadd.f32 %v624, %v674
      %v676 = vpop.f32.mrf.mxu0
      %v677 = vpop.f32.mrf.mxu0
      %678 = vdwg.mxu0
      %679 = vmatprep.subr.bf16.mxu0 0
      %680 = vmatpush1.bf16.msra.mxu0 0
      %681 = vmatprep.subr.bf16.mxu0 0
      %682 = vmatpush1.bf16.msra.mxu0 0
      %683 = vmatprep.subr.bf16.mxu0 0
      %684 = vmatpush1.bf16.msra.mxu0 0
      %685 = vmatprep.subr.bf16.mxu0 0
      %686 = vmatpush1.bf16.msra.mxu0 %v636
      %687 = vmatprep.subr.bf16.mxu0 0
      %688 = vmatpush1.bf16.msra.mxu0 %v615
      %689 = vmatprep.subr.bf16.mxu0 0
      %690 = vmatpush1.bf16.msra.mxu0 %v612
      %691 = vmatprep.subr.bf16.mxu0 0
      %692 = vmatpush1.bf16.msra.mxu0 %v609
      %693 = vmatprep.subr.bf16.mxu0 0
      %694 = vmatpush1.bf16.msra.mxu0 %v606
      %695 = vmatprep.subr.bf16.mxu0 0
      %696 = vmatpush2.bf16.msra.mxu0 0
      %697 = vmatprep.subr.bf16.mxu0 0
      %698 = vmatpush2.bf16.msra.mxu0 0
      %699 = vmatprep.subr.bf16.mxu0 0
      %700 = vmatpush2.bf16.msra.mxu0 0
      %701 = vmatprep.subr.bf16.mxu0 0
      %702 = vmatpush2.bf16.msra.mxu0 0
      %703 = vmatprep.subr.bf16.mxu0 0
      %704 = vmatpush2.bf16.msra.mxu0 0
      %705 = vmatprep.subr.bf16.mxu0 0
      %706 = vmatpush2.bf16.msra.mxu0 0
      %707 = vmatprep.subr.bf16.mxu0 0
      %708 = vmatpush2.bf16.msra.mxu0 0
      %709 = vmatprep.subr.bf16.mxu0 0
      %710 = vmatpush2.bf16.msra.mxu0 0
      %711 = vmatprep.mubr.bf16.mxu0 0
      %712 = vmatmul.mubr.bf16.gmra.mxu0 %v627
      %v713 = vpop.f32.mrf.mxu0
      %v714 = vadd.f32 %v624, %v713
      %v715 = vpop.f32.mrf.mxu0
      %v716 = vpop.f32.mrf.mxu0
      %v717 = vpop.f32.mrf.mxu0
      %718 = vdwg.mxu0
      %v719 = vmax.f32 %v673, 0.0
      %v720 = vmax.f32 %v675, 0.0
      %v721 = vmax.f32 %v714, 0.0
      %v722 = vmul.f32 %v719, %v517
      %v723 = vmul.f32 %v720, %v521
      %v724 = vmul.f32 %v721, %v525
      %725 = vrot.lane.b32.xlu0 %v722, 19
      %v726 = vpop.permute.xlu0 %725
      %727 = vrot.lane.b32.xlu0 %v723, 19
      %v728 = vpop.permute.xlu0 %727
      %729 = vrot.lane.b32.xlu0 %v724, 19
      %v730 = vpop.permute.xlu0 %729
      %v731 = vsel %vm319, %v728, %v730
      %v732 = vsel %vm319, %v726, %v728
      %v733 = vsel %vm319, %v730, %v726
      %734 = vrot.lane.b32.xlu0 %v722, 18
      %v735 = vpop.permute.xlu0 %734
      %736 = vrot.lane.b32.xlu0 %v723, 18
      %v737 = vpop.permute.xlu0 %736
      %738 = vrot.lane.b32.xlu0 %v724, 18
      %v739 = vpop.permute.xlu0 %738
      %v740 = vsel %vm329, %v737, %v739
      %v741 = vsel %vm329, %v735, %v737
      %v742 = vsel %vm329, %v739, %v735
      %743 = vrot.lane.b32.xlu0 %v722, 17
      %v744 = vpop.permute.xlu0 %743
      %745 = vrot.lane.b32.xlu0 %v723, 17
      %v746 = vpop.permute.xlu0 %745
      %747 = vrot.lane.b32.xlu0 %v724, 17
      %v748 = vpop.permute.xlu0 %747
      %v749 = vsel %vm339, %v746, %v748
      %v750 = vsel %vm339, %v744, %v746
      %v751 = vsel %vm339, %v748, %v744
      %752 = vrot.lane.b32.xlu0 %v722, 1
      %v753 = vpop.permute.xlu0 %752
      %754 = vrot.lane.b32.xlu0 %v723, 1
      %v755 = vpop.permute.xlu0 %754
      %756 = vrot.lane.b32.xlu0 %v724, 1
      %v757 = vpop.permute.xlu0 %756
      %v758 = vsel %vm349, %v755, %v757
      %v759 = vsel %vm349, %v753, %v755
      %v760 = vsel %vm349, %v757, %v753
      %761 = vrot.lane.b32.xlu0 %v722, 127
      %v762 = vpop.permute.xlu0 %761
      %763 = vrot.lane.b32.xlu0 %v723, 127
      %v764 = vpop.permute.xlu0 %763
      %765 = vrot.lane.b32.xlu0 %v724, 127
      %v766 = vpop.permute.xlu0 %765
      %v767 = vsel %vm359, %v764, %v766
      %v768 = vsel %vm359, %v762, %v764
      %v769 = vsel %vm359, %v766, %v762
      %770 = vrot.lane.b32.xlu0 %v722, 111
      %v771 = vpop.permute.xlu0 %770
      %772 = vrot.lane.b32.xlu0 %v723, 111
      %v773 = vpop.permute.xlu0 %772
      %774 = vrot.lane.b32.xlu0 %v724, 111
      %v775 = vpop.permute.xlu0 %774
      %v776 = vsel %vm369, %v773, %v775
      %v777 = vsel %vm369, %v771, %v773
      %v778 = vsel %vm369, %v775, %v771
      %779 = vrot.lane.b32.xlu0 %v722, 110
      %v780 = vpop.permute.xlu0 %779
      %781 = vrot.lane.b32.xlu0 %v723, 110
      %v782 = vpop.permute.xlu0 %781
      %783 = vrot.lane.b32.xlu0 %v724, 110
      %v784 = vpop.permute.xlu0 %783
      %v785 = vsel %vm379, %v782, %v784
      %v786 = vsel %vm379, %v780, %v782
      %v787 = vsel %vm379, %v784, %v780
      %788 = vrot.lane.b32.xlu0 %v722, 109
      %v789 = vpop.permute.xlu0 %788
      %790 = vrot.lane.b32.xlu0 %v723, 109
      %v791 = vpop.permute.xlu0 %790
      %792 = vrot.lane.b32.xlu0 %v724, 109
      %v793 = vpop.permute.xlu0 %792
      %v794 = vsel %vm389, %v791, %v793
      %v795 = vsel %vm389, %v789, %v791
      %v796 = vsel %vm389, %v793, %v789
      %v797 = vpack.c.bf16 %v742, %v733
      %v798 = vpack.c.bf16 %v741, %v732
      %v799 = vpack.c.bf16 %v740, %v731
      %v800 = vpack.c.bf16 %v760, %v751
      %v801 = vpack.c.bf16 %v759, %v750
      %v802 = vpack.c.bf16 %v758, %v749
      %v803 = vpack.c.bf16 %v768, %v722
      %v804 = vpack.c.bf16 %v767, %v723
      %v805 = vpack.c.bf16 %v769, %v724
      %v806 = vpack.c.bf16 %v786, %v777
      %v807 = vpack.c.bf16 %v785, %v776
      %v808 = vpack.c.bf16 %v787, %v778
      %v809 = vpack.c.bf16 %v795, %v795
      %v810 = vpack.c.bf16 %v794, %v794
      %v811 = vpack.c.bf16 %v796, %v796
      %v812 = vld [vmem:[%s6] sm:$0xf]
      %v813 = vld [vmem:[%s7] sm:$0xff]
      %815 = vset.pattern.permute.xlu0 0
      %816 = vperm.xlu0 %815, %v813
      %v817 = vpop.permute.xlu0 %816
      %v820 = vsel %vm415, %v812, 0
      %v823 = vsel %vm419, %v809, 0
      %v826 = vsel %vm419, %v810, 0
      %v829 = vsel %vm419, %v811, 0
      %831 = vmatprep.subr.bf16.mxu0 0
      %832 = vmatpush1.bf16.msra.mxu0 0
      %833 = vmatprep.subr.bf16.mxu0 0
      %834 = vmatpush1.bf16.msra.mxu0 0
      %835 = vmatprep.subr.bf16.mxu0 0
      %836 = vmatpush1.bf16.msra.mxu0 0
      %837 = vmatprep.subr.bf16.mxu0 %v826
      %838 = vmatpush1.bf16.msra.mxu0 %v823
      %839 = vmatprep.subr.bf16.mxu0 %v807
      %840 = vmatpush1.bf16.msra.mxu0 %v806
      %841 = vmatprep.subr.bf16.mxu0 %v804
      %842 = vmatpush1.bf16.msra.mxu0 %v803
      %843 = vmatprep.subr.bf16.mxu0 %v801
      %844 = vmatpush1.bf16.msra.mxu0 %v800
      %845 = vmatprep.subr.bf16.mxu0 %v798
      %846 = vmatpush1.bf16.msra.mxu0 %v797
      %847 = vmatprep.subr.bf16.mxu0 0
      %848 = vmatpush2.bf16.msra.mxu0 0
      %849 = vmatprep.subr.bf16.mxu0 0
      %850 = vmatpush2.bf16.msra.mxu0 0
      %851 = vmatprep.subr.bf16.mxu0 0
      %852 = vmatpush2.bf16.msra.mxu0 0
      %853 = vmatprep.subr.bf16.mxu0 0
      %854 = vmatpush2.bf16.msra.mxu0 0
      %855 = vmatprep.subr.bf16.mxu0 0
      %856 = vmatpush2.bf16.msra.mxu0 0
      %857 = vmatprep.subr.bf16.mxu0 0
      %858 = vmatpush2.bf16.msra.mxu0 0
      %859 = vmatprep.subr.bf16.mxu0 0
      %860 = vmatpush2.bf16.msra.mxu0 0
      %861 = vmatprep.subr.bf16.mxu0 0
      %862 = vmatpush2.bf16.msra.mxu0 0
      %863 = vmatprep.mubr.bf16.mxu0 0
      %864 = vmatmul.mubr.bf16.gmra.mxu0 %v820
      %v865 = vpop.f32.mrf.mxu0
      %v866 = vadd.f32 %v817, %v865
      %v867 = vpop.f32.mrf.mxu0
      %v868 = vadd.f32 %v817, %v867
      %v869 = vpop.f32.mrf.mxu0
      %v870 = vpop.f32.mrf.mxu0
      %871 = vdwg.mxu0
      %872 = vmatprep.subr.bf16.mxu0 0
      %873 = vmatpush1.bf16.msra.mxu0 0
      %874 = vmatprep.subr.bf16.mxu0 0
      %875 = vmatpush1.bf16.msra.mxu0 0
      %876 = vmatprep.subr.bf16.mxu0 0
      %877 = vmatpush1.bf16.msra.mxu0 0
      %878 = vmatprep.subr.bf16.mxu0 0
      %879 = vmatpush1.bf16.msra.mxu0 %v829
      %880 = vmatprep.subr.bf16.mxu0 0
      %881 = vmatpush1.bf16.msra.mxu0 %v808
      %882 = vmatprep.subr.bf16.mxu0 0
      %883 = vmatpush1.bf16.msra.mxu0 %v805
      %884 = vmatprep.subr.bf16.mxu0 0
      %885 = vmatpush1.bf16.msra.mxu0 %v802
      %886 = vmatprep.subr.bf16.mxu0 0
      %887 = vmatpush1.bf16.msra.mxu0 %v799
      %888 = vmatprep.subr.bf16.mxu0 0
      %889 = vmatpush2.bf16.msra.mxu0 0
      %890 = vmatprep.subr.bf16.mxu0 0
      %891 = vmatpush2.bf16.msra.mxu0 0
      %892 = vmatprep.subr.bf16.mxu0 0
      %893 = vmatpush2.bf16.msra.mxu0 0
      %894 = vmatprep.subr.bf16.mxu0 0
      %895 = vmatpush2.bf16.msra.mxu0 0
      %896 = vmatprep.subr.bf16.mxu0 0
      %897 = vmatpush2.bf16.msra.mxu0 0
      %898 = vmatprep.subr.bf16.mxu0 0
      %899 = vmatpush2.bf16.msra.mxu0 0
      %900 = vmatprep.subr.bf16.mxu0 0
      %901 = vmatpush2.bf16.msra.mxu0 0
      %902 = vmatprep.subr.bf16.mxu0 0
      %903 = vmatpush2.bf16.msra.mxu0 0
      %904 = vmatprep.mubr.bf16.mxu0 0
      %905 = vmatmul.mubr.bf16.gmra.mxu0 %v820
      %v906 = vpop.f32.mrf.mxu0
      %v907 = vadd.f32 %v817, %v906
      %v908 = vpop.f32.mrf.mxu0
      %v909 = vpop.f32.mrf.mxu0
      %v910 = vpop.f32.mrf.mxu0
      %911 = vdwg.mxu0
      %v912 = vmul.f32 %v866, %v517
      %v913 = vmul.f32 %v868, %v521
      %v914 = vmul.f32 %v907, %v525
      %915 = vst [vmem:[%s305] sm:$0xff] %v912
      %916 = vst [vmem:[%s305 + $0x8] sm:$0xff] %v913
      %917 = vst [vmem:[%s305 + $0x10] sm:$0xff] %v914
      %p918 = scmp.lt.s32.totalorder %s19, 1
      %s919 = scalar_select %p918, %s19, 1
      %s920 = smul.addr %s919, 3
      %s921 = smul.addr %s920, 8
      %s922 = scalar_lea.vmem %s8, %s921
      // Predicated region
      $region53: #{_lambda_.7} parent=51 // pred_check
        %p923 = pneg %p210
      $region54: #{_lambda_.7} parent=51 // pred_check_branch
        %925 = sbr.rel (%p923) target = $region56
      $region55: #{_lambda_.7} parent=51 // pred_region
        _
      $region56: #{_lambda_.7} parent=51 // pred_fallthru
        _
    $region52: #{_lambda_.7} parent=5 // pred_fallthru
      _
    %p926 = scmp.le.s32.totalorder 2, %s14
    // Predicated region
    $region57: #{_lambda_.7} parent=5 // pred_check
      %p927 = pneg %p926
    $region58: #{_lambda_.7} parent=5 // pred_check_branch
      %929 = sbr.rel (%p927) target = $region60
    $region59: #{_lambda_.7} parent=5 // pred_region
      %s930 = ssub.s32 %s14, 2
      // Predicated region
      $region61: #{_lambda_.7} parent=59 // pred_check
        %p931 = pneg %p216
      $region62: #{_lambda_.7} parent=59 // pred_check_branch
        %933 = sbr.rel (%p931) target = $region64
      $region63: #{_lambda_.7} parent=59 // pred_region
        %p934 = scmp.lt.s32.totalorder %s20, 1
        %s935 = scalar_select %p934, %s20, 1
        %s936 = smul.addr %s935, 3
        %s937 = smul.addr %s936, 8
        %s938 = scalar_lea.vmem %s8, %s937
      $region64: #{_lambda_.7} parent=59 // pred_fallthru
        _
    $region60: #{_lambda_.7} parent=5 // pred_fallthru
      _
  $region6: #{_lambda_.7} parent=0 // loop_footer
    %s18 = sadd.s32 1, %s14
  $region7: #{_lambda_.7} parent=0 // loop_footer_branch
    %13 = sbr.rel target = $region3
  $region8: #{_lambda_.7} parent=0 // loop_exit
    _

// kernel: _lambda_.6
$region0: #{_lambda_.6}
  #allocation0 [shape = 'u32[]', space=smem, size = 0x4, offset = 0x4, fixed_abs, tag = 'smem constant byte address 0x4 - core index']
  #allocation1 [shape = 'u32[144,128]{1,0:T(1,128)}', space=vmem, size = 0x12000, scoped, tag = 'internal scratch']
  %s0 = inlined_call_operand.vmem [shape: f32[32,32], index: 0, kind: input, shape index: {}]
  %s1 = inlined_call_operand.hbm [shape: bf16[32,1024], index: 1, kind: input, shape index: {}]
  %s2 = inlined_call_operand.hbm [shape: f32[1,1024], index: 2, kind: input, shape index: {}]
  %s3 = inlined_call_operand.hbm [shape: bf16[1024,1024], index: 3, kind: input, shape index: {}]
  %s4 = inlined_call_operand.hbm [shape: f32[1,1024], index: 4, kind: input, shape index: {}]
  %s5 = inlined_call_operand.hbm [shape: bf16[1024,128], index: 5, kind: input, shape index: {}]
  %s6 = inlined_call_operand.hbm [shape: f32[1,128], index: 6, kind: input, shape index: {}]
  %s7 = inlined_call_operand.vmem [shape: f32[32,128], index: 7, kind: output, shape index: {}]
  %s8 = sld [smem:[#allocation0]]
  $region85: #{_lambda_.6} parent=0
    _
  %s10 = ssub.s32 1, %s8
  %s11 = scalar_select 0, %s10, %s8
  $region1: #{_lambda_.6} parent=0
    #allocation2 [shape = 'u8[65536]{0}', space=vmem, size = 0x10000, scoped, tag = 'input window, operand 1, single buffered']
    #allocation3 [shape = 's32[2]{0}', space=sflag, size = 0x8, scoped, tag = 'scoped memory for _lambda_.6']
    #allocation4 [shape = 'u8[4096]{0}', space=vmem, size = 0x1000, scoped, tag = 'input window, operand 2, single buffered']
    #allocation5 [shape = 's32[1]{0}', space=sflag, size = 0x4, scoped, tag = 'scoped memory for _lambda_.6']
    #allocation6 [shape = 'u8[2097152]{0}', space=vmem, size = 0x200000, scoped, tag = 'input window, operand 3, single buffered']
    #allocation7 [shape = 'u8[4096]{0}', space=vmem, size = 0x1000, scoped, tag = 'input window, operand 4, single buffered']
    #allocation8 [shape = 's32[1]{0}', space=sflag, size = 0x4, scoped, tag = 'scoped memory for _lambda_.6']
    #allocation9 [shape = 'u8[262144]{0}', space=vmem, size = 0x40000, scoped, tag = 'input window, operand 5, single buffered']
    #allocation10 [shape = 'u8[512]{0}', space=vmem, size = 0x400, scoped, tag = 'input window, operand 6, single buffered']
    #allocation11 [shape = 's32[1]{0}', space=sflag, size = 0x4, scoped, tag = 'scoped memory for _lambda_.6']
    %12 = vsyncpa [#allocation3], 0
    %13 = vsyncpa [#allocation5], 0
    %14 = vsyncpa [#allocation8], 0
    %15 = vsyncpa [#allocation11], 0
    loop: start=0, step=1, limit=4
    $region2: #{_lambda_.6} parent=1 // loop_pre_header
      _
    $region3: #{_lambda_.6} parent=1 // loop_header
      %s17 = sphi 0, %s21
      %p18 = scmp.ge.s32.totalorder %s17, 4
      %s27 = sphi 0, %s29
      %s30 = sphi 0, %s27
      %s31 = sphi 0, %s30
      %s47 = sphi 0, %s31
      %s51 = sphi 0, %s51
      %s53 = sphi 0, %s51
      %s54 = sphi 0, %s53
      %s68 = sphi 0, %s54
      %s72 = sphi 0, %s72
      %s74 = sphi 0, %s72
      %s75 = sphi 0, %s74
      %s89 = sphi 0, %s75
      %s93 = sphi 0, %s93
      %s95 = sphi 0, %s93
      %s96 = sphi 0, %s95
      %s110 = sphi 0, %s96
      %s114 = sphi 0, %s114
      %s116 = sphi 0, %s114
      %s117 = sphi 0, %s116
      %s131 = sphi 0, %s117
      %s135 = sphi 0, %s135
      %s137 = sphi 0, %s135
      %s138 = sphi 0, %s137
      %s152 = sphi 0, %s138
      %s156 = sphi 0, %s156
      %s158 = sphi 0, %s156
      %s159 = sphi 0, %s158
      %s173 = sphi 0, %s159
      %s179 = sphi 0, %s181
      %s182 = sphi 0, %s179
      %s183 = sphi 0, %s182
      %s199 = sphi 0, %s183
    $region4: #{_lambda_.6} parent=1 // loop_header_branch
      %20 = sbr.rel (%p18) target = $region8
    $region5: #{_lambda_.6} parent=1 // loop_body
      %s22 = ssub.s32 %s17, 1
      %s23 = ssub.s32 %s17, 2
      %s24 = sadd.s32 %s17, 1
      %s25 = ssub.s32 %s17, %s24
      %p26 = scmp.eq.s32.totalorder %s25, 0
      %s28 = sadd.s32 %s27, 1
      %s29 = scalar_select %p26, %s27, %s28
      %p32 = pneg %p26
      %p33 = scmp.eq.s32.totalorder %s17, 1
      %p34 = por %p32, %p33
      %p35 = scmp.ne.s32.totalorder %s27, %s30
      %p36 = scmp.eq.s32.totalorder %s17, 0
      %p37 = por %p35, %p36
      %p38 = scmp.ne.s32.totalorder %s27, %s30
      %p39 = scmp.eq.s32.totalorder %s22, 1
      %p40 = por %p38, %p39
      %p41 = scmp.ne.s32.totalorder %s30, %s31
      %p42 = scmp.eq.s32.totalorder %s22, 0
      %p43 = por %p41, %p42
      %p44 = scmp.ne.s32.totalorder %s30, %s31
      %p45 = scmp.eq.s32.totalorder %s23, 1
      %p46 = por %p44, %p45
      %p48 = scmp.ne.s32.totalorder %s31, %s47
      %p49 = scmp.eq.s32.totalorder %s23, 0
      %p50 = por %p48, %p49
      %s52 = sadd.s32 %s51, 1
      %p55 = scmp.eq.s32.totalorder %s17, 1
      %p56 = scmp.ne.s32.totalorder %s51, %s53
      %p57 = scmp.eq.s32.totalorder %s17, 0
      %p58 = por %p56, %p57
      %p59 = scmp.ne.s32.totalorder %s51, %s53
      %p60 = scmp.eq.s32.totalorder %s22, 1
      %p61 = por %p59, %p60
      %p62 = scmp.ne.s32.totalorder %s53, %s54
      %p63 = scmp.eq.s32.totalorder %s22, 0
      %p64 = por %p62, %p63
      %p65 = scmp.ne.s32.totalorder %s53, %s54
      %p66 = scmp.eq.s32.totalorder %s23, 1
      %p67 = por %p65, %p66
      %p69 = scmp.ne.s32.totalorder %s54, %s68
      %p70 = scmp.eq.s32.totalorder %s23, 0
      %p71 = por %p69, %p70
      %s73 = sadd.s32 %s72, 1
      %p76 = scmp.eq.s32.totalorder %s17, 1
      %p77 = scmp.ne.s32.totalorder %s72, %s74
      %p78 = scmp.eq.s32.totalorder %s17, 0
      %p79 = por %p77, %p78
      %p80 = scmp.ne.s32.totalorder %s72, %s74
      %p81 = scmp.eq.s32.totalorder %s22, 1
      %p82 = por %p80, %p81
      %p83 = scmp.ne.s32.totalorder %s74, %s75
      %p84 = scmp.eq.s32.totalorder %s22, 0
      %p85 = por %p83, %p84
      %p86 = scmp.ne.s32.totalorder %s74, %s75
      %p87 = scmp.eq.s32.totalorder %s23, 1
      %p88 = por %p86, %p87
      %p90 = scmp.ne.s32.totalorder %s75, %s89
      %p91 = scmp.eq.s32.totalorder %s23, 0
      %p92 = por %p90, %p91
      %s94 = sadd.s32 %s93, 1
      %p97 = scmp.eq.s32.totalorder %s17, 1
      %p98 = scmp.ne.s32.totalorder %s93, %s95
      %p99 = scmp.eq.s32.totalorder %s17, 0
      %p100 = por %p98, %p99
      %p101 = scmp.ne.s32.totalorder %s93, %s95
      %p102 = scmp.eq.s32.totalorder %s22, 1
      %p103 = por %p101, %p102
      %p104 = scmp.ne.s32.totalorder %s95, %s96
      %p105 = scmp.eq.s32.totalorder %s22, 0
      %p106 = por %p104, %p105
      %p107 = scmp.ne.s32.totalorder %s95, %s96
      %p108 = scmp.eq.s32.totalorder %s23, 1
      %p109 = por %p107, %p108
      %p111 = scmp.ne.s32.totalorder %s96, %s110
      %p112 = scmp.eq.s32.totalorder %s23, 0
      %p113 = por %p111, %p112
      %s115 = sadd.s32 %s114, 1
      %p118 = scmp.eq.s32.totalorder %s17, 1
      %p119 = scmp.ne.s32.totalorder %s114, %s116
      %p120 = scmp.eq.s32.totalorder %s17, 0
      %p121 = por %p119, %p120
      %p122 = scmp.ne.s32.totalorder %s114, %s116
      %p123 = scmp.eq.s32.totalorder %s22, 1
      %p124 = por %p122, %p123
      %p125 = scmp.ne.s32.totalorder %s116, %s117
      %p126 = scmp.eq.s32.totalorder %s22, 0
      %p127 = por %p125, %p126
      %p128 = scmp.ne.s32.totalorder %s116, %s117
      %p129 = scmp.eq.s32.totalorder %s23, 1
      %p130 = por %p128, %p129
      %p132 = scmp.ne.s32.totalorder %s117, %s131
      %p133 = scmp.eq.s32.totalorder %s23, 0
      %p134 = por %p132, %p133
      %s136 = sadd.s32 %s135, 1
      %p139 = scmp.eq.s32.totalorder %s17, 1
      %p140 = scmp.ne.s32.totalorder %s135, %s137
      %p141 = scmp.eq.s32.totalorder %s17, 0
      %p142 = por %p140, %p141
      %p143 = scmp.ne.s32.totalorder %s135, %s137
      %p144 = scmp.eq.s32.totalorder %s22, 1
      %p145 = por %p143, %p144
      %p146 = scmp.ne.s32.totalorder %s137, %s138
      %p147 = scmp.eq.s32.totalorder %s22, 0
      %p148 = por %p146, %p147
      %p149 = scmp.ne.s32.totalorder %s137, %s138
      %p150 = scmp.eq.s32.totalorder %s23, 1
      %p151 = por %p149, %p150
      %p153 = scmp.ne.s32.totalorder %s138, %s152
      %p154 = scmp.eq.s32.totalorder %s23, 0
      %p155 = por %p153, %p154
      %s157 = sadd.s32 %s156, 1
      %p160 = scmp.eq.s32.totalorder %s17, 1
      %p161 = scmp.ne.s32.totalorder %s156, %s158
      %p162 = scmp.eq.s32.totalorder %s17, 0
      %p163 = por %p161, %p162
      %p164 = scmp.ne.s32.totalorder %s156, %s158
      %p165 = scmp.eq.s32.totalorder %s22, 1
      %p166 = por %p164, %p165
      %p167 = scmp.ne.s32.totalorder %s158, %s159
      %p168 = scmp.eq.s32.totalorder %s22, 0
      %p169 = por %p167, %p168
      %p170 = scmp.ne.s32.totalorder %s158, %s159
      %p171 = scmp.eq.s32.totalorder %s23, 1
      %p172 = por %p170, %p171
      %p174 = scmp.ne.s32.totalorder %s159, %s173
      %p175 = scmp.eq.s32.totalorder %s23, 0
      %p176 = por %p174, %p175
      %s177 = ssub.s32 %s17, %s24
      %p178 = scmp.eq.s32.totalorder %s177, 0
      %s180 = sadd.s32 %s179, 1
      %s181 = scalar_select %p178, %s179, %s180
      %p184 = pneg %p178
      %p185 = scmp.eq.s32.totalorder %s17, 1
      %p186 = por %p184, %p185
      %p187 = scmp.ne.s32.totalorder %s179, %s182
      %p188 = scmp.eq.s32.totalorder %s17, 0
      %p189 = por %p187, %p188
      %p190 = scmp.ne.s32.totalorder %s179, %s182
      %p191 = scmp.eq.s32.totalorder %s22, 1
      %p192 = por %p190, %p191
      %p193 = scmp.ne.s32.totalorder %s182, %s183
      %p194 = scmp.eq.s32.totalorder %s22, 0
      %p195 = por %p193, %p194
      %p196 = scmp.ne.s32.totalorder %s182, %s183
      %p197 = scmp.eq.s32.totalorder %s23, 1
      %p198 = por %p196, %p197
      %p200 = scmp.ne.s32.totalorder %s183, %s199
      %p201 = scmp.eq.s32.totalorder %s23, 0
      %p202 = por %p200, %p201
      %p203 = scmp.le.s32.totalorder 1, %s17
      %p204 = scmp.lt.s32.totalorder %s17, 3
      %p205 = pnand %p203, %p204
      %p206 = pneg %p205
      // Predicated region
      $region9: #{_lambda_.6} parent=5 // pred_check
        _
      $region10: #{_lambda_.6} parent=5 // pred_check_branch
        %208 = sbr.rel (%p205) target = $region12
      $region11: #{_lambda_.6} parent=5 // pred_region
        %s209 = ssub.s32 %s17, 1
        // Predicated region
        $region13: #{_lambda_.6} parent=11 // pred_check
          %p210 = pneg %p64
        $region14: #{_lambda_.6} parent=11 // pred_check_branch
          %212 = sbr.rel (%p210) target = $region16
        $region15: #{_lambda_.6} parent=11 // pred_region
          %s214 = ssub.s32 2048, 2048
          %215 = vsyncadd [#allocation3], %s214
          %s216 = sshll.u32 [#allocation2], 4
          %s217 = int_to_ptr.vmem [resolvable:$true] %s216
          %222 = dma.hbm_to_vmem [thread:$0]  %s1, 2048, %s217, [#allocation3], 512, 512, 32
        $region16: #{_lambda_.6} parent=11 // pred_fallthru
          _
        // Predicated region
        $region17: #{_lambda_.6} parent=11 // pred_check
          %p223 = pneg %p85
        $region18: #{_lambda_.6} parent=11 // pred_check_branch
          %225 = sbr.rel (%p223) target = $region20
        $region19: #{_lambda_.6} parent=11 // pred_region
          %s227 = ssub.s32 128, 128
          %228 = vsyncadd [#allocation5], %s227
          %s230 = sshll.u32 [#allocation4], 4
          %s231 = int_to_ptr.vmem [resolvable:$true] %s230
          %233 = dma.hbm_to_vmem [thread:$0]  %s2, 128, %s231, [#allocation5]
        $region20: #{_lambda_.6} parent=11 // pred_fallthru
          _
        // Predicated region
        $region21: #{_lambda_.6} parent=11 // pred_check
          %p234 = pneg %p106
        $region22: #{_lambda_.6} parent=11 // pred_check_branch
          %236 = sbr.rel (%p234) target = $region24
        $region23: #{_lambda_.6} parent=11 // pred_region
          %s238 = ssub.s32 65536, 65536
          %239 = vsyncadd [#allocation5], %s238
          %s240 = sshll.u32 [#allocation6], 4
          %s241 = int_to_ptr.vmem [resolvable:$true] %s240
          %246 = dma.hbm_to_vmem [thread:$0]  %s3, 65536, %s241, [#allocation5], 512, 512, 32
        $region24: #{_lambda_.6} parent=11 // pred_fallthru
          _
        // Predicated region
        $region25: #{_lambda_.6} parent=11 // pred_check
          %p247 = pneg %p127
        $region26: #{_lambda_.6} parent=11 // pred_check_branch
          %249 = sbr.rel (%p247) target = $region28
        $region27: #{_lambda_.6} parent=11 // pred_region
          %s251 = ssub.s32 128, 128
          %252 = vsyncadd [#allocation8], %s251
          %s254 = sshll.u32 [#allocation7], 4
          %s255 = int_to_ptr.vmem [resolvable:$true] %s254
          %257 = dma.hbm_to_vmem [thread:$0]  %s4, 128, %s255, [#allocation8]
        $region28: #{_lambda_.6} parent=11 // pred_fallthru
          _
        // Predicated region
        $region29: #{_lambda_.6} parent=11 // pred_check
          %p258 = pneg %p148
        $region30: #{_lambda_.6} parent=11 // pred_check_branch
          %260 = sbr.rel (%p258) target = $region32
        $region31: #{_lambda_.6} parent=11 // pred_region
          %s262 = ssub.s32 8192, 8192
          %263 = vsyncadd [#allocation8], %s262
          %s264 = sshll.u32 [#allocation9], 4
          %s265 = int_to_ptr.vmem [resolvable:$true] %s264
          %270 = dma.hbm_to_vmem [thread:$0]  %s5, 8192, %s265, [#allocation8], 64, 64, 4
        $region32: #{_lambda_.6} parent=11 // pred_fallthru
          _
        // Predicated region
        $region33: #{_lambda_.6} parent=11 // pred_check
          %p271 = pneg %p169
        $region34: #{_lambda_.6} parent=11 // pred_check_branch
          %273 = sbr.rel (%p271) target = $region36
        $region35: #{_lambda_.6} parent=11 // pred_region
          %s275 = ssub.s32 16, 16
          %276 = vsyncadd [#allocation11], %s275
          %s278 = sshll.u32 [#allocation10], 4
          %s279 = int_to_ptr.vmem [resolvable:$true] %s278
          %281 = dma.hbm_to_vmem [thread:$0]  %s6, 16, %s279, [#allocation11]
        $region36: #{_lambda_.6} parent=11 // pred_fallthru
          _
      $region12: #{_lambda_.6} parent=5 // pred_fallthru
        _
      %p282 = scmp.lt.s32.totalorder %s17, 2
      // Predicated region
      $region37: #{_lambda_.6} parent=5 // pred_check
        %p283 = pneg %p282
      $region38: #{_lambda_.6} parent=5 // pred_check_branch
        %285 = sbr.rel (%p283) target = $region40
      $region39: #{_lambda_.6} parent=5 // pred_region
        // Predicated region
        $region41: #{_lambda_.6} parent=39 // pred_check
          %p286 = pneg %p37
        $region42: #{_lambda_.6} parent=39 // pred_check_branch
          %288 = sbr.rel (%p286) target = $region44
        $region43: #{_lambda_.6} parent=39 // pred_region
          %s289 = smul.u32 2, %s17
          %p290 = scmp.lt.s32.totalorder %s289, 3
          %s291 = scalar_select %p290, %s289, 3
          %s292 = smul.addr %s291, 8
          %s293 = scalar_lea.vmem %s0, %s292
          %s294 = smul.u32 2, %s17
        $region44: #{_lambda_.6} parent=39 // pred_fallthru
          _
      $region40: #{_lambda_.6} parent=5 // pred_fallthru
        _
      %p295 = scmp.le.s32.totalorder 1, %s17
      %p296 = scmp.lt.s32.totalorder %s17, 3
      %p297 = pnand %p295, %p296
      %p298 = pneg %p297
      // Predicated region
      $region45: #{_lambda_.6} parent=5 // pred_check
        _
      $region46: #{_lambda_.6} parent=5 // pred_check_branch
        %300 = sbr.rel (%p297) target = $region48
      $region47: #{_lambda_.6} parent=5 // pred_region
        %s301 = ssub.s32 %s17, 1
        // Predicated region
        $region49: #{_lambda_.6} parent=47 // pred_check
          %p302 = pneg %p64
        $region50: #{_lambda_.6} parent=47 // pred_check_branch
          %304 = sbr.rel (%p302) target = $region52
        $region51: #{_lambda_.6} parent=47 // pred_region
          %305 = dma.done [#allocation3], 2048
        $region52: #{_lambda_.6} parent=47 // pred_fallthru
          _
        // Predicated region
        $region53: #{_lambda_.6} parent=47 // pred_check
          %p306 = pneg %p85
        $region54: #{_lambda_.6} parent=47 // pred_check_branch
          %308 = sbr.rel (%p306) target = $region56
        $region55: #{_lambda_.6} parent=47 // pred_region
          %309 = dma.done [#allocation5], 128
        $region56: #{_lambda_.6} parent=47 // pred_fallthru
          _
        // Predicated region
        $region57: #{_lambda_.6} parent=47 // pred_check
          %p310 = pneg %p106
        $region58: #{_lambda_.6} parent=47 // pred_check_branch
          %312 = sbr.rel (%p310) target = $region60
        $region59: #{_lambda_.6} parent=47 // pred_region
          %313 = dma.done [#allocation5], 65536
        $region60: #{_lambda_.6} parent=47 // pred_fallthru
          _
        // Predicated region
        $region61: #{_lambda_.6} parent=47 // pred_check
          %p314 = pneg %p127
        $region62: #{_lambda_.6} parent=47 // pred_check_branch
          %316 = sbr.rel (%p314) target = $region64
        $region63: #{_lambda_.6} parent=47 // pred_region
          %317 = dma.done [#allocation8], 128
        $region64: #{_lambda_.6} parent=47 // pred_fallthru
          _
        // Predicated region
        $region65: #{_lambda_.6} parent=47 // pred_check
          %p318 = pneg %p148
        $region66: #{_lambda_.6} parent=47 // pred_check_branch
          %320 = sbr.rel (%p318) target = $region68
        $region67: #{_lambda_.6} parent=47 // pred_region
          %321 = dma.done [#allocation8], 8192
        $region68: #{_lambda_.6} parent=47 // pred_fallthru
          _
        // Predicated region
        $region69: #{_lambda_.6} parent=47 // pred_check
          %p322 = pneg %p169
        $region70: #{_lambda_.6} parent=47 // pred_check_branch
          %324 = sbr.rel (%p322) target = $region72
        $region71: #{_lambda_.6} parent=47 // pred_region
          %325 = dma.done [#allocation11], 16
        $region72: #{_lambda_.6} parent=47 // pred_fallthru
          _
        %s326 = smul.u32 2, %s22
        %p327 = scmp.lt.s32.totalorder %s326, 3
        %s328 = scalar_select %p327, %s326, 3
        %s329 = smul.addr %s328, 8
        %s330 = scalar_lea.vmem %s0, %s329
        %p331 = pneg %p43
        %p332 = pneg %p40
        %p333 = pneg %p64
        %p334 = pneg %p61
        %p335 = pneg %p85
        %p336 = pneg %p82
        %p337 = pneg %p106
        %p338 = pneg %p103
        %p339 = pneg %p127
        %p340 = pneg %p124
        %p341 = pneg %p148
        %p342 = pneg %p145
        %p343 = pneg %p169
        %p344 = pneg %p166
        %p345 = pneg %p195
        %p346 = pneg %p192
        %s347 = smul.u32 2, %s22
        %p348 = scmp.lt.s32.totalorder %s347, 3
        %s349 = scalar_select %p348, %s347, 3
        %s350 = smul.addr %s349, 8
        %s351 = scalar_lea.vmem %s7, %s350
        %s352 = smul.u32 2, %s22
        %p353 = scmp.lt.s32.totalorder %s352, 3
        %s354 = scalar_select %p353, %s352, 3
        %s355 = smul.addr %s354, 8
        %s356 = scalar_lea.vmem %s0, %s355
        %s357 = smul.u32 2, %s22
        %s358 = smul.u32 2, %s22
        %p359 = scmp.lt.s32.totalorder %s358, 3
        %s360 = scalar_select %p359, %s358, 3
        %s361 = smul.addr %s360, 8
        %s362 = scalar_lea.vmem %s7, %s361
        %s363 = smul.u32 2, %s22
        %v365 = vld [vmem:[%s356] sm:$0xff]
        %v366 = vld [vmem:[%s356 + $0x8] sm:$0xff]
        %v367 = vpack.c.bf16 %v366, %v365
        %v368 = vld [vmem:[#allocation2] sm:$0xff]
        %v369 = vld [vmem:[#allocation2 + $0x8] sm:$0xff]
        %v370 = vld [vmem:[#allocation2 + $0x10] sm:$0xff]
        %v371 = vld [vmem:[#allocation2 + $0x18] sm:$0xff]
        %v372 = vld [vmem:[#allocation2 + $0x20] sm:$0xff]
        %v373 = vld [vmem:[#allocation2 + $0x28] sm:$0xff]
        %v374 = vld [vmem:[#allocation2 + $0x30] sm:$0xff]
        %v375 = vld [vmem:[#allocation2 + $0x38] sm:$0xff]
        %v376 = vld [vmem:[#allocation2 + $0x40] sm:$0xff]
        %v377 = vld [vmem:[#allocation2 + $0x48] sm:$0xff]
        %v378 = vld [vmem:[#allocation2 + $0x50] sm:$0xff]
        %v379 = vld [vmem:[#allocation2 + $0x58] sm:$0xff]
        %v380 = vld [vmem:[#allocation2 + $0x60] sm:$0xff]
        %v381 = vld [vmem:[#allocation2 + $0x68] sm:$0xff]
        %v382 = vld [vmem:[#allocation2 + $0x70] sm:$0xff]
        %v383 = vld [vmem:[#allocation2 + $0x78] sm:$0xff]
        %v384 = vld [vmem:[#allocation4] sm:$0xff]
        %v386 = vlaneseq
        %v387 = vshrl.u32 %v386, 7
        %v388 = vsub.s32 0, %v387
        %v389 = vrot.slane %v384, %v388
        %v390 = vlaneseq
        %v391 = vshrl.u32 %v390, 7
        %v392 = vsub.s32 1, %v391
        %v393 = vrot.slane %v384, %v392
        %v394 = vlaneseq
        %v395 = vshrl.u32 %v394, 7
        %v396 = vsub.s32 2, %v395
        %v397 = vrot.slane %v384, %v396
        %v398 = vlaneseq
        %v399 = vshrl.u32 %v398, 7
        %v400 = vsub.s32 3, %v399
        %v401 = vrot.slane %v384, %v400
        %v402 = vlaneseq
        %v403 = vshrl.u32 %v402, 7
        %v404 = vsub.s32 4, %v403
        %v405 = vrot.slane %v384, %v404
        %v406 = vlaneseq
        %v407 = vshrl.u32 %v406, 7
        %v408 = vsub.s32 5, %v407
        %v409 = vrot.slane %v384, %v408
        %v410 = vlaneseq
        %v411 = vshrl.u32 %v410, 7
        %v412 = vsub.s32 6, %v411
        %v413 = vrot.slane %v384, %v412
        %v414 = vlaneseq
        %v415 = vshrl.u32 %v414, 7
        %v416 = vsub.s32 7, %v415
        %v417 = vrot.slane %v384, %v416
        %v442 = vunpack.c.l.b16 %v368
        %v443 = vunpack.c.h.b16 %v368
        %v444 = vunpack.c.l.b16 %v369
        %v445 = vunpack.c.h.b16 %v369
        %v446 = vunpack.c.l.b16 %v370
        %v447 = vunpack.c.h.b16 %v370
        %v448 = vunpack.c.l.b16 %v371
        %v449 = vunpack.c.h.b16 %v371
        %v450 = vunpack.c.l.b16 %v372
        %v451 = vunpack.c.h.b16 %v372
        %v452 = vunpack.c.l.b16 %v373
        %v453 = vunpack.c.h.b16 %v373
        %v454 = vunpack.c.l.b16 %v374
        %v455 = vunpack.c.h.b16 %v374
        %v456 = vunpack.c.l.b16 %v375
        %v457 = vunpack.c.h.b16 %v375
        %v458 = vunpack.c.l.b16 %v376
        %v459 = vunpack.c.h.b16 %v376
        %v460 = vunpack.c.l.b16 %v377
        %v461 = vunpack.c.h.b16 %v377
        %v462 = vunpack.c.l.b16 %v378
        %v463 = vunpack.c.h.b16 %v378
        %v464 = vunpack.c.l.b16 %v379
        %v465 = vunpack.c.h.b16 %v379
        %v466 = vunpack.c.l.b16 %v380
        %v467 = vunpack.c.h.b16 %v380
        %v468 = vunpack.c.l.b16 %v381
        %v469 = vunpack.c.h.b16 %v381
        %v470 = vunpack.c.l.b16 %v382
        %v471 = vunpack.c.h.b16 %v382
        %v472 = vunpack.c.l.b16 %v383
        %v473 = vunpack.c.h.b16 %v383
        %v474 = vpack.c.b16 %v450, %v442
        %v475 = vpack.c.b16 %v451, %v443
        %v476 = vpack.c.b16 %v452, %v444
        %v477 = vpack.c.b16 %v453, %v445
        %v478 = vpack.c.b16 %v454, %v446
        %v479 = vpack.c.b16 %v455, %v447
        %v480 = vpack.c.b16 %v456, %v448
        %v481 = vpack.c.b16 %v457, %v449
        %v482 = vpack.c.b16 %v466, %v458
        %v483 = vpack.c.b16 %v467, %v459
        %v484 = vpack.c.b16 %v468, %v460
        %v485 = vpack.c.b16 %v469, %v461
        %v486 = vpack.c.b16 %v470, %v462
        %v487 = vpack.c.b16 %v471, %v463
        %v488 = vpack.c.b16 %v472, %v464
        %v489 = vpack.c.b16 %v473, %v465
        %vm506 = vcmask 261120
        %v508 = vsel %vm506, %v367, 0
        %510 = vmatprep.subr.bf16.mxu0 0
        %511 = vmatpush1.bf16.msra.mxu0 0
        %512 = vmatprep.subr.bf16.mxu0 0
        %513 = vmatpush1.bf16.msra.mxu0 0
        %514 = vmatprep.subr.bf16.mxu0 0
        %515 = vmatpush1.bf16.msra.mxu0 0
        %516 = vmatprep.subr.bf16.mxu0 0
        %517 = vmatpush1.bf16.msra.mxu0 0
        %518 = vmatprep.subr.bf16.mxu0 0
        %519 = vmatpush1.bf16.msra.mxu0 0
        %520 = vmatprep.subr.bf16.mxu0 0
        %521 = vmatpush1.bf16.msra.mxu0 0
        %522 = vmatprep.subr.bf16.mxu0 %v483
        %523 = vmatpush1.bf16.msra.mxu0 %v482
        %524 = vmatprep.subr.bf16.mxu0 %v475
        %525 = vmatpush1.bf16.msra.mxu0 %v474
        %526 = vmatprep.subr.bf16.mxu0 0
        %527 = vmatpush2.bf16.msra.mxu0 0
        %528 = vmatprep.subr.bf16.mxu0 0
        %529 = vmatpush2.bf16.msra.mxu0 0
        %530 = vmatprep.subr.bf16.mxu0 0
        %531 = vmatpush2.bf16.msra.mxu0 0
        %532 = vmatprep.subr.bf16.mxu0 0
        %533 = vmatpush2.bf16.msra.mxu0 0
        %534 = vmatprep.subr.bf16.mxu0 0
        %535 = vmatpush2.bf16.msra.mxu0 0
        %536 = vmatprep.subr.bf16.mxu0 0
        %537 = vmatpush2.bf16.msra.mxu0 0
        %538 = vmatprep.subr.bf16.mxu0 0
        %539 = vmatpush2.bf16.msra.mxu0 0
        %540 = vmatprep.subr.bf16.mxu0 0
        %541 = vmatpush2.bf16.msra.mxu0 0
        %542 = vmatprep.mubr.bf16.mxu0 0
        %543 = vmatmul.mubr.bf16.gmra.mxu0 %v508
        %v544 = vpop.f32.mrf.mxu0
        %v545 = vadd.f32 %v389, %v544
        %v546 = vpop.f32.mrf.mxu0
        %v547 = vadd.f32 %v393, %v546
        %v548 = vpop.f32.mrf.mxu0
        %v549 = vadd.f32 %v389, %v548
        %v550 = vpop.f32.mrf.mxu0
        %v551 = vadd.f32 %v393, %v550
        %552 = vdwg.mxu0
        %553 = vmatprep.subr.bf16.mxu0 0
        %554 = vmatpush1.bf16.msra.mxu0 0
        %555 = vmatprep.subr.bf16.mxu0 0
        %556 = vmatpush1.bf16.msra.mxu0 0
        %557 = vmatprep.subr.bf16.mxu0 0
        %558 = vmatpush1.bf16.msra.mxu0 0
        %559 = vmatprep.subr.bf16.mxu0 0
        %560 = vmatpush1.bf16.msra.mxu0 0
        %561 = vmatprep.subr.bf16.mxu0 0
        %562 = vmatpush1.bf16.msra.mxu0 0
        %563 = vmatprep.subr.bf16.mxu0 0
        %564 = vmatpush1.bf16.msra.mxu0 0
        %565 = vmatprep.subr.bf16.mxu0 %v485
        %566 = vmatpush1.bf16.msra.mxu0 %v484
        %567 = vmatprep.subr.bf16.mxu0 %v477
        %568 = vmatpush1.bf16.msra.mxu0 %v476
        %569 = vmatprep.subr.bf16.mxu0 0
        %570 = vmatpush2.bf16.msra.mxu0 0
        %571 = vmatprep.subr.bf16.mxu0 0
        %572 = vmatpush2.bf16.msra.mxu0 0
        %573 = vmatprep.subr.bf16.mxu0 0
        %574 = vmatpush2.bf16.msra.mxu0 0
        %575 = vmatprep.subr.bf16.mxu0 0
        %576 = vmatpush2.bf16.msra.mxu0 0
        %577 = vmatprep.subr.bf16.mxu0 0
        %578 = vmatpush2.bf16.msra.mxu0 0
        %579 = vmatprep.subr.bf16.mxu0 0
        %580 = vmatpush2.bf16.msra.mxu0 0
        %581 = vmatprep.subr.bf16.mxu0 0
        %582 = vmatpush2.bf16.msra.mxu0 0
        %583 = vmatprep.subr.bf16.mxu0 0
        %584 = vmatpush2.bf16.msra.mxu0 0
        %585 = vmatprep.mubr.bf16.mxu0 0
        %586 = vmatmul.mubr.bf16.gmra.mxu0 %v508
        %v587 = vpop.f32.mrf.mxu0
        %v588 = vadd.f32 %v397, %v587
        %v589 = vpop.f32.mrf.mxu0
        %v590 = vadd.f32 %v401, %v589
        %v591 = vpop.f32.mrf.mxu0
        %v592 = vadd.f32 %v397, %v591
        %v593 = vpop.f32.mrf.mxu0
        %v594 = vadd.f32 %v401, %v593
        %595 = vdwg.mxu0
        %596 = vmatprep.subr.bf16.mxu0 0
        %597 = vmatpush1.bf16.msra.mxu0 0
        %598 = vmatprep.subr.bf16.mxu0 0
        %599 = vmatpush1.bf16.msra.mxu0 0
        %600 = vmatprep.subr.bf16.mxu0 0
        %601 = vmatpush1.bf16.msra.mxu0 0
        %602 = vmatprep.subr.bf16.mxu0 0
        %603 = vmatpush1.bf16.msra.mxu0 0
        %604 = vmatprep.subr.bf16.mxu0 0
        %605 = vmatpush1.bf16.msra.mxu0 0
        %606 = vmatprep.subr.bf16.mxu0 0
        %607 = vmatpush1.bf16.msra.mxu0 0
        %608 = vmatprep.subr.bf16.mxu0 %v487
        %609 = vmatpush1.bf16.msra.mxu0 %v486
        %610 = vmatprep.subr.bf16.mxu0 %v479
        %611 = vmatpush1.bf16.msra.mxu0 %v478
        %612 = vmatprep.subr.bf16.mxu0 0
        %613 = vmatpush2.bf16.msra.mxu0 0
        %614 = vmatprep.subr.bf16.mxu0 0
        %615 = vmatpush2.bf16.msra.mxu0 0
        %616 = vmatprep.subr.bf16.mxu0 0
        %617 = vmatpush2.bf16.msra.mxu0 0
        %618 = vmatprep.subr.bf16.mxu0 0
        %619 = vmatpush2.bf16.msra.mxu0 0
        %620 = vmatprep.subr.bf16.mxu0 0
        %621 = vmatpush2.bf16.msra.mxu0 0
        %622 = vmatprep.subr.bf16.mxu0 0
        %623 = vmatpush2.bf16.msra.mxu0 0
        %624 = vmatprep.subr.bf16.mxu0 0
        %625 = vmatpush2.bf16.msra.mxu0 0
        %626 = vmatprep.subr.bf16.mxu0 0
        %627 = vmatpush2.bf16.msra.mxu0 0
        %628 = vmatprep.mubr.bf16.mxu0 0
        %629 = vmatmul.mubr.bf16.gmra.mxu0 %v508
        %v630 = vpop.f32.mrf.mxu0
        %v631 = vadd.f32 %v405, %v630
        %v632 = vpop.f32.mrf.mxu0
        %v633 = vadd.f32 %v409, %v632
        %v634 = vpop.f32.mrf.mxu0
        %v635 = vadd.f32 %v405, %v634
        %v636 = vpop.f32.mrf.mxu0
        %v637 = vadd.f32 %v409, %v636
        %638 = vdwg.mxu0
        %639 = vmatprep.subr.bf16.mxu0 0
        %640 = vmatpush1.bf16.msra.mxu0 0
        %641 = vmatprep.subr.bf16.mxu0 0
        %642 = vmatpush1.bf16.msra.mxu0 0
        %643 = vmatprep.subr.bf16.mxu0 0
        %644 = vmatpush1.bf16.msra.mxu0 0
        %645 = vmatprep.subr.bf16.mxu0 0
        %646 = vmatpush1.bf16.msra.mxu0 0
        %647 = vmatprep.subr.bf16.mxu0 0
        %648 = vmatpush1.bf16.msra.mxu0 0
        %649 = vmatprep.subr.bf16.mxu0 0
        %650 = vmatpush1.bf16.msra.mxu0 0
        %651 = vmatprep.subr.bf16.mxu0 %v489
        %652 = vmatpush1.bf16.msra.mxu0 %v488
        %653 = vmatprep.subr.bf16.mxu0 %v481
        %654 = vmatpush1.bf16.msra.mxu0 %v480
        %655 = vmatprep.subr.bf16.mxu0 0
        %656 = vmatpush2.bf16.msra.mxu0 0
        %657 = vmatprep.subr.bf16.mxu0 0
        %658 = vmatpush2.bf16.msra.mxu0 0
        %659 = vmatprep.subr.bf16.mxu0 0
        %660 = vmatpush2.bf16.msra.mxu0 0
        %661 = vmatprep.subr.bf16.mxu0 0
        %662 = vmatpush2.bf16.msra.mxu0 0
        %663 = vmatprep.subr.bf16.mxu0 0
        %664 = vmatpush2.bf16.msra.mxu0 0
        %665 = vmatprep.subr.bf16.mxu0 0
        %666 = vmatpush2.bf16.msra.mxu0 0
        %667 = vmatprep.subr.bf16.mxu0 0
        %668 = vmatpush2.bf16.msra.mxu0 0
        %669 = vmatprep.subr.bf16.mxu0 0
        %670 = vmatpush2.bf16.msra.mxu0 0
        %671 = vmatprep.mubr.bf16.mxu0 0
        %672 = vmatmul.mubr.bf16.gmra.mxu0 %v508
        %v673 = vpop.f32.mrf.mxu0
        %v674 = vadd.f32 %v413, %v673
        %v675 = vpop.f32.mrf.mxu0
        %v676 = vadd.f32 %v417, %v675
        %v677 = vpop.f32.mrf.mxu0
        %v678 = vadd.f32 %v413, %v677
        %v679 = vpop.f32.mrf.mxu0
        %v680 = vadd.f32 %v417, %v679
        %681 = vdwg.mxu0
        %v682 = vmax.f32 %v545, 0.0
        %v683 = vmax.f32 %v547, 0.0
        %v684 = vmax.f32 %v588, 0.0
        %v685 = vmax.f32 %v590, 0.0
        %v686 = vmax.f32 %v631, 0.0
        %v687 = vmax.f32 %v633, 0.0
        %v688 = vmax.f32 %v674, 0.0
        %v689 = vmax.f32 %v676, 0.0
        %v690 = vmax.f32 %v549, 0.0
        %v691 = vmax.f32 %v551, 0.0
        %v692 = vmax.f32 %v592, 0.0
        %v693 = vmax.f32 %v594, 0.0
        %v694 = vmax.f32 %v635, 0.0
        %v695 = vmax.f32 %v637, 0.0
        %v696 = vmax.f32 %v678, 0.0
        %v697 = vmax.f32 %v680, 0.0
        %v698 = vpack.c.bf16 %v690, %v682
        %v699 = vpack.c.bf16 %v691, %v683
        %v700 = vpack.c.bf16 %v692, %v684
        %v701 = vpack.c.bf16 %v693, %v685
        %v702 = vpack.c.bf16 %v694, %v686
        %v703 = vpack.c.bf16 %v695, %v687
        %v704 = vpack.c.bf16 %v696, %v688
        %v705 = vpack.c.bf16 %v697, %v689
        %v706 = vld [vmem:[#allocation6] sm:$0xff]
        %v707 = vld [vmem:[#allocation6 + $0x8] sm:$0xff]
        %v708 = vld [vmem:[#allocation6 + $0x10] sm:$0xff]
        %v709 = vld [vmem:[#allocation6 + $0x18] sm:$0xff]
        %v710 = vld [vmem:[#allocation6 + $0x20] sm:$0xff]
        %v711 = vld [vmem:[#allocation6 + $0x28] sm:$0xff]
        %v712 = vld [vmem:[#allocation6 + $0x30] sm:$0xff]
        %v713 = vld [vmem:[#allocation6 + $0x38] sm:$0xff]
        %v714 = vld [vmem:[#allocation6 + $0x40] sm:$0xff]
        %v715 = vld [vmem:[#allocation6 + $0x48] sm:$0xff]
        %v716 = vld [vmem:[#allocation6 + $0x50] sm:$0xff]
        %v717 = vld [vmem:[#allocation6 + $0x58] sm:$0xff]
        %v718 = vld [vmem:[#allocation6 + $0x60] sm:$0xff]
        %v719 = vld [vmem:[#allocation6 + $0x68] sm:$0xff]
        %v720 = vld [vmem:[#allocation6 + $0x70] sm:$0xff]
        %v721 = vld [vmem:[#allocation6 + $0x78] sm:$0xff]
        %v722 = vld [vmem:[#allocation6 + $0x80] sm:$0xff]
        %v723 = vld [vmem:[#allocation6 + $0x88] sm:$0xff]
        %v724 = vld [vmem:[#allocation6 + $0x90] sm:$0xff]
        %v725 = vld [vmem:[#allocation6 + $0x98] sm:$0xff]
        %v726 = vld [vmem:[#allocation6 + $0xa0] sm:$0xff]
        %v727 = vld [vmem:[#allocation6 + $0xa8] sm:$0xff]
        %v728 = vld [vmem:[#allocation6 + $0xb0] sm:$0xff]
        %v729 = vld [vmem:[#allocation6 + $0xb8] sm:$0xff]
        %v730 = vld [vmem:[#allocation6 + $0xc0] sm:$0xff]
        %v731 = vld [vmem:[#allocation6 + $0xc8] sm:$0xff]
        %v732 = vld [vmem:[#allocation6 + $0xd0] sm:$0xff]
        %v733 = vld [vmem:[#allocation6 + $0xd8] sm:$0xff]
        %v734 = vld [vmem:[#allocation6 + $0xe0] sm:$0xff]
        %v735 = vld [vmem:[#allocation6 + $0xe8] sm:$0xff]
        %v736 = vld [vmem:[#allocation6 + $0xf0] sm:$0xff]
        %v737 = vld [vmem:[#allocation6 + $0xf8] sm:$0xff]
        %v738 = vld [vmem:[#allocation6 + $0x100] sm:$0xff]
        %v739 = vld [vmem:[#allocation6 + $0x108] sm:$0xff]
        %v740 = vld [vmem:[#allocation6 + $0x110] sm:$0xff]
        %v741 = vld [vmem:[#allocation6 + $0x118] sm:$0xff]
        %v742 = vld [vmem:[#allocation6 + $0x120] sm:$0xff]
        %v743 = vld [vmem:[#allocation6 + $0x128] sm:$0xff]
        %v744 = vld [vmem:[#allocation6 + $0x130] sm:$0xff]
        %v745 = vld [vmem:[#allocation6 + $0x138] sm:$0xff]
        %v746 = vld [vmem:[#allocation6 + $0x140] sm:$0xff]
        %v747 = vld [vmem:[#allocation6 + $0x148] sm:$0xff]
        %v748 = vld [vmem:[#allocation6 + $0x150] sm:$0xff]
        %v749 = vld [vmem:[#allocation6 + $0x158] sm:$0xff]
        %v750 = vld [vmem:[#allocation6 + $0x160] sm:$0xff]
        %v751 = vld [vmem:[#allocation6 + $0x168] sm:$0xff]
        %v752 = vld [vmem:[#allocation6 + $0x170] sm:$0xff]
        %v753 = vld [vmem:[#allocation6 + $0x178] sm:$0xff]
        %v754 = vld [vmem:[#allocation6 + $0x180] sm:$0xff]
        %v755 = vld [vmem:[#allocation6 + $0x188] sm:$0xff]
        %v756 = vld [vmem:[#allocation6 + $0x190] sm:$0xff]
        %v757 = vld [vmem:[#allocation6 + $0x198] sm:$0xff]
        %v758 = vld [vmem:[#allocation6 + $0x1a0] sm:$0xff]
        %v759 = vld [vmem:[#allocation6 + $0x1a8] sm:$0xff]
        %v760 = vld [vmem:[#allocation6 + $0x1b0] sm:$0xff]
        %v761 = vld [vmem:[#allocation6 + $0x1b8] sm:$0xff]
        %v762 = vld [vmem:[#allocation6 + $0x1c0] sm:$0xff]
        %v763 = vld [vmem:[#allocation6 + $0x1c8] sm:$0xff]
        %v764 = vld [vmem:[#allocation6 + $0x1d0] sm:$0xff]
        %v765 = vld [vmem:[#allocation6 + $0x1d8] sm:$0xff]
        %v766 = vld [vmem:[#allocation6 + $0x1e0] sm:$0xff]
        %v767 = vld [vmem:[#allocation6 + $0x1e8] sm:$0xff]
        %v768 = vld [vmem:[#allocation6 + $0x1f0] sm:$0xff]
        %v769 = vld [vmem:[#allocation6 + $0x1f8] sm:$0xff]
        %v770 = vld [vmem:[#allocation6 + $0x200] sm:$0xff]
        %v771 = vld [vmem:[#allocation6 + $0x208] sm:$0xff]
        %v772 = vld [vmem:[#allocation6 + $0x210] sm:$0xff]
        %v773 = vld [vmem:[#allocation6 + $0x218] sm:$0xff]
        %v774 = vld [vmem:[#allocation6 + $0x220] sm:$0xff]
        %v775 = vld [vmem:[#allocation6 + $0x228] sm:$0xff]
        %v776 = vld [vmem:[#allocation6 + $0x230] sm:$0xff]
        %v777 = vld [vmem:[#allocation6 + $0x238] sm:$0xff]
        %v778 = vld [vmem:[#allocation6 + $0x240] sm:$0xff]
        %v779 = vld [vmem:[#allocation6 + $0x248] sm:$0xff]
        %v780 = vld [vmem:[#allocation6 + $0x250] sm:$0xff]
        %v781 = vld [vmem:[#allocation6 + $0x258] sm:$0xff]
        %v782 = vld [vmem:[#allocation6 + $0x260] sm:$0xff]
        %v783 = vld [vmem:[#allocation6 + $0x268] sm:$0xff]
        %v784 = vld [vmem:[#allocation6 + $0x270] sm:$0xff]
        %v785 = vld [vmem:[#allocation6 + $0x278] sm:$0xff]
        %v786 = vld [vmem:[#allocation6 + $0x280] sm:$0xff]
        %v787 = vld [vmem:[#allocation6 + $0x288] sm:$0xff]
        %v788 = vld [vmem:[#allocation6 + $0x290] sm:$0xff]
        %v789 = vld [vmem:[#allocation6 + $0x298] sm:$0xff]
        %v790 = vld [vmem:[#allocation6 + $0x2a0] sm:$0xff]
        %v791 = vld [vmem:[#allocation6 + $0x2a8] sm:$0xff]
        %v792 = vld [vmem:[#allocation6 + $0x2b0] sm:$0xff]
        %v793 = vld [vmem:[#allocation6 + $0x2b8] sm:$0xff]
        %v794 = vld [vmem:[#allocation6 + $0x2c0] sm:$0xff]
        %v795 = vld [vmem:[#allocation6 + $0x2c8] sm:$0xff]
        %v796 = vld [vmem:[#allocation6 + $0x2d0] sm:$0xff]
        %v797 = vld [vmem:[#allocation6 + $0x2d8] sm:$0xff]
        %v798 = vld [vmem:[#allocation6 + $0x2e0] sm:$0xff]
        %v799 = vld [vmem:[#allocation6 + $0x2e8] sm:$0xff]
        %v800 = vld [vmem:[#allocation6 + $0x2f0] sm:$0xff]
        %v801 = vld [vmem:[#allocation6 + $0x2f8] sm:$0xff]
        %v802 = vld [vmem:[#allocation6 + $0x300] sm:$0xff]
        %v803 = vld [vmem:[#allocation6 + $0x308] sm:$0xff]
        %v804 = vld [vmem:[#allocation6 + $0x310] sm:$0xff]
        %v805 = vld [vmem:[#allocation6 + $0x318] sm:$0xff]
        %v806 = vld [vmem:[#allocation6 + $0x320] sm:$0xff]
        %v807 = vld [vmem:[#allocation6 + $0x328] sm:$0xff]
        %v808 = vld [vmem:[#allocation6 + $0x330] sm:$0xff]
        %v809 = vld [vmem:[#allocation6 + $0x338] sm:$0xff]
        %v810 = vld [vmem:[#allocation6 + $0x340] sm:$0xff]
        %v811 = vld [vmem:[#allocation6 + $0x348] sm:$0xff]
        %v812 = vld [vmem:[#allocation6 + $0x350] sm:$0xff]
        %v813 = vld [vmem:[#allocation6 + $0x358] sm:$0xff]
        %v814 = vld [vmem:[#allocation6 + $0x360] sm:$0xff]
        %v815 = vld [vmem:[#allocation6 + $0x368] sm:$0xff]
        %v816 = vld [vmem:[#allocation6 + $0x370] sm:$0xff]
        %v817 = vld [vmem:[#allocation6 + $0x378] sm:$0xff]
        %v818 = vld [vmem:[#allocation6 + $0x380] sm:$0xff]
        %v819 = vld [vmem:[#allocation6 + $0x388] sm:$0xff]
        %v820 = vld [vmem:[#allocation6 + $0x390] sm:$0xff]
        %v821 = vld [vmem:[#allocation6 + $0x398] sm:$0xff]
        %v822 = vld [vmem:[#allocation6 + $0x3a0] sm:$0xff]
        %v823 = vld [vmem:[#allocation6 + $0x3a8] sm:$0xff]
        %v824 = vld [vmem:[#allocation6 + $0x3b0] sm:$0xff]
        %v825 = vld [vmem:[#allocation6 + $0x3b8] sm:$0xff]
        %v826 = vld [vmem:[#allocation6 + $0x3c0] sm:$0xff]
        %v827 = vld [vmem:[#allocation6 + $0x3c8] sm:$0xff]
        %v828 = vld [vmem:[#allocation6 + $0x3d0] sm:$0xff]
        %v829 = vld [vmem:[#allocation6 + $0x3d8] sm:$0xff]
        %v830 = vld [vmem:[#allocation6 + $0x3e0] sm:$0xff]
        %v831 = vld [vmem:[#allocation6 + $0x3e8] sm:$0xff]
        %v832 = vld [vmem:[#allocation6 + $0x3f0] sm:$0xff]
        %v833 = vld [vmem:[#allocation6 + $0x3f8] sm:$0xff]
        %v834 = vld [vmem:[#allocation6 + $0x400] sm:$0xff]
        %v835 = vld [vmem:[#allocation6 + $0x408] sm:$0xff]
        %v836 = vld [vmem:[#allocation6 + $0x410] sm:$0xff]
        %v837 = vld [vmem:[#allocation6 + $0x418] sm:$0xff]
        %v838 = vld [vmem:[#allocation6 + $0x420] sm:$0xff]
        %v839 = vld [vmem:[#allocation6 + $0x428] sm:$0xff]
        %v840 = vld [vmem:[#allocation6 + $0x430] sm:$0xff]
        %v841 = vld [vmem:[#allocation6 + $0x438] sm:$0xff]
        %v842 = vld [vmem:[#allocation6 + $0x440] sm:$0xff]
        %v843 = vld [vmem:[#allocation6 + $0x448] sm:$0xff]
        %v844 = vld [vmem:[#allocation6 + $0x450] sm:$0xff]
        %v845 = vld [vmem:[#allocation6 + $0x458] sm:$0xff]
        %v846 = vld [vmem:[#allocation6 + $0x460] sm:$0xff]
        %v847 = vld [vmem:[#allocation6 + $0x468] sm:$0xff]
        %v848 = vld [vmem:[#allocation6 + $0x470] sm:$0xff]
        %v849 = vld [vmem:[#allocation6 + $0x478] sm:$0xff]
        %v850 = vld [vmem:[#allocation6 + $0x480] sm:$0xff]
        %v851 = vld [vmem:[#allocation6 + $0x488] sm:$0xff]
        %v852 = vld [vmem:[#allocation6 + $0x490] sm:$0xff]
        %v853 = vld [vmem:[#allocation6 + $0x498] sm:$0xff]
        %v854 = vld [vmem:[#allocation6 + $0x4a0] sm:$0xff]
        %v855 = vld [vmem:[#allocation6 + $0x4a8] sm:$0xff]
        %v856 = vld [vmem:[#allocation6 + $0x4b0] sm:$0xff]
        %v857 = vld [vmem:[#allocation6 + $0x4b8] sm:$0xff]
        %v858 = vld [vmem:[#allocation6 + $0x4c0] sm:$0xff]
        %v859 = vld [vmem:[#allocation6 + $0x4c8] sm:$0xff]
        %v860 = vld [vmem:[#allocation6 + $0x4d0] sm:$0xff]
        %v861 = vld [vmem:[#allocation6 + $0x4d8] sm:$0xff]
        %v862 = vld [vmem:[#allocation6 + $0x4e0] sm:$0xff]
        %v863 = vld [vmem:[#allocation6 + $0x4e8] sm:$0xff]
        %v864 = vld [vmem:[#allocation6 + $0x4f0] sm:$0xff]
        %v865 = vld [vmem:[#allocation6 + $0x4f8] sm:$0xff]
        %v866 = vld [vmem:[#allocation6 + $0x500] sm:$0xff]
        %v867 = vld [vmem:[#allocation6 + $0x508] sm:$0xff]
        %v868 = vld [vmem:[#allocation6 + $0x510] sm:$0xff]
        %v869 = vld [vmem:[#allocation6 + $0x518] sm:$0xff]
        %v870 = vld [vmem:[#allocation6 + $0x520] sm:$0xff]
        %v871 = vld [vmem:[#allocation6 + $0x528] sm:$0xff]
        %v872 = vld [vmem:[#allocation6 + $0x530] sm:$0xff]
        %v873 = vld [vmem:[#allocation6 + $0x538] sm:$0xff]
        %v874 = vld [vmem:[#allocation6 + $0x540] sm:$0xff]
        %v875 = vld [vmem:[#allocation6 + $0x548] sm:$0xff]
        %v876 = vld [vmem:[#allocation6 + $0x550] sm:$0xff]
        %v877 = vld [vmem:[#allocation6 + $0x558] sm:$0xff]
        %v878 = vld [vmem:[#allocation6 + $0x560] sm:$0xff]
        %v879 = vld [vmem:[#allocation6 + $0x568] sm:$0xff]
        %v880 = vld [vmem:[#allocation6 + $0x570] sm:$0xff]
        %v881 = vld [vmem:[#allocation6 + $0x578] sm:$0xff]
        %v882 = vld [vmem:[#allocation6 + $0x580] sm:$0xff]
        %v883 = vld [vmem:[#allocation6 + $0x588] sm:$0xff]
        %v884 = vld [vmem:[#allocation6 + $0x590] sm:$0xff]
        %v885 = vld [vmem:[#allocation6 + $0x598] sm:$0xff]
        %v886 = vld [vmem:[#allocation6 + $0x5a0] sm:$0xff]
        %v887 = vld [vmem:[#allocation6 + $0x5a8] sm:$0xff]
        %v888 = vld [vmem:[#allocation6 + $0x5b0] sm:$0xff]
        %v889 = vld [vmem:[#allocation6 + $0x5b8] sm:$0xff]
        %v890 = vld [vmem:[#allocation6 + $0x5c0] sm:$0xff]
        %v891 = vld [vmem:[#allocation6 + $0x5c8] sm:$0xff]
        %v892 = vld [vmem:[#allocation6 + $0x5d0] sm:$0xff]
        %v893 = vld [vmem:[#allocation6 + $0x5d8] sm:$0xff]
        %v894 = vld [vmem:[#allocation6 + $0x5e0] sm:$0xff]
        %v895 = vld [vmem:[#allocation6 + $0x5e8] sm:$0xff]
        %v896 = vld [vmem:[#allocation6 + $0x5f0] sm:$0xff]
        %v897 = vld [vmem:[#allocation6 + $0x5f8] sm:$0xff]
        %v898 = vld [vmem:[#allocation6 + $0x600] sm:$0xff]
        %v899 = vld [vmem:[#allocation6 + $0x608] sm:$0xff]
        %v900 = vld [vmem:[#allocation6 + $0x610] sm:$0xff]
        %v901 = vld [vmem:[#allocation6 + $0x618] sm:$0xff]
        %v902 = vld [vmem:[#allocation6 + $0x620] sm:$0xff]
        %v903 = vld [vmem:[#allocation6 + $0x628] sm:$0xff]
        %v904 = vld [vmem:[#allocation6 + $0x630] sm:$0xff]
        %v905 = vld [vmem:[#allocation6 + $0x638] sm:$0xff]
        %v906 = vld [vmem:[#allocation6 + $0x640] sm:$0xff]
        %v907 = vld [vmem:[#allocation6 + $0x648] sm:$0xff]
        %v908 = vld [vmem:[#allocation6 + $0x650] sm:$0xff]
        %v909 = vld [vmem:[#allocation6 + $0x658] sm:$0xff]
        %v910 = vld [vmem:[#allocation6 + $0x660] sm:$0xff]
        %v911 = vld [vmem:[#allocation6 + $0x668] sm:$0xff]
        %v912 = vld [vmem:[#allocation6 + $0x670] sm:$0xff]
        %v913 = vld [vmem:[#allocation6 + $0x678] sm:$0xff]
        %v914 = vld [vmem:[#allocation6 + $0x680] sm:$0xff]
        %v915 = vld [vmem:[#allocation6 + $0x688] sm:$0xff]
        %v916 = vld [vmem:[#allocation6 + $0x690] sm:$0xff]
        %v917 = vld [vmem:[#allocation6 + $0x698] sm:$0xff]
        %v918 = vld [vmem:[#allocation6 + $0x6a0] sm:$0xff]
        %v919 = vld [vmem:[#allocation6 + $0x6a8] sm:$0xff]
        %v920 = vld [vmem:[#allocation6 + $0x6b0] sm:$0xff]
        %v921 = vld [vmem:[#allocation6 + $0x6b8] sm:$0xff]
        %v922 = vld [vmem:[#allocation6 + $0x6c0] sm:$0xff]
        %v923 = vld [vmem:[#allocation6 + $0x6c8] sm:$0xff]
        %v924 = vld [vmem:[#allocation6 + $0x6d0] sm:$0xff]
        %v925 = vld [vmem:[#allocation6 + $0x6d8] sm:$0xff]
        %v926 = vld [vmem:[#allocation6 + $0x6e0] sm:$0xff]
        %v927 = vld [vmem:[#allocation6 + $0x6e8] sm:$0xff]
        %v928 = vld [vmem:[#allocation6 + $0x6f0] sm:$0xff]
        %v929 = vld [vmem:[#allocation6 + $0x6f8] sm:$0xff]
        %v930 = vld [vmem:[#allocation6 + $0x700] sm:$0xff]
        %v931 = vld [vmem:[#allocation6 + $0x708] sm:$0xff]
        %v932 = vld [vmem:[#allocation6 + $0x710] sm:$0xff]
        %v933 = vld [vmem:[#allocation6 + $0x718] sm:$0xff]
        %v934 = vld [vmem:[#allocation6 + $0x720] sm:$0xff]
        %v935 = vld [vmem:[#allocation6 + $0x728] sm:$0xff]
        %v936 = vld [vmem:[#allocation6 + $0x730] sm:$0xff]
        %v937 = vld [vmem:[#allocation6 + $0x738] sm:$0xff]
        %v938 = vld [vmem:[#allocation6 + $0x740] sm:$0xff]
        %v939 = vld [vmem:[#allocation6 + $0x748] sm:$0xff]
        %v940 = vld [vmem:[#allocation6 + $0x750] sm:$0xff]
        %v941 = vld [vmem:[#allocation6 + $0x758] sm:$0xff]
        %v942 = vld [vmem:[#allocation6 + $0x760] sm:$0xff]
        %v943 = vld [vmem:[#allocation6 + $0x768] sm:$0xff]
        %v944 = vld [vmem:[#allocation6 + $0x770] sm:$0xff]
        %v945 = vld [vmem:[#allocation6 + $0x778] sm:$0xff]
        %v946 = vld [vmem:[#allocation6 + $0x780] sm:$0xff]
        %v947 = vld [vmem:[#allocation6 + $0x788] sm:$0xff]
        %v948 = vld [vmem:[#allocation6 + $0x790] sm:$0xff]
        %v949 = vld [vmem:[#allocation6 + $0x798] sm:$0xff]
        %v950 = vld [vmem:[#allocation6 + $0x7a0] sm:$0xff]
        %v951 = vld [vmem:[#allocation6 + $0x7a8] sm:$0xff]
        %v952 = vld [vmem:[#allocation6 + $0x7b0] sm:$0xff]
        %v953 = vld [vmem:[#allocation6 + $0x7b8] sm:$0xff]
        %v954 = vld [vmem:[#allocation6 + $0x7c0] sm:$0xff]
        %v955 = vld [vmem:[#allocation6 + $0x7c8] sm:$0xff]
        %v956 = vld [vmem:[#allocation6 + $0x7d0] sm:$0xff]
        %v957 = vld [vmem:[#allocation6 + $0x7d8] sm:$0xff]
        %v958 = vld [vmem:[#allocation6 + $0x7e0] sm:$0xff]
        %v959 = vld [vmem:[#allocation6 + $0x7e8] sm:$0xff]
        %v960 = vld [vmem:[#allocation6 + $0x7f0] sm:$0xff]
        %v961 = vld [vmem:[#allocation6 + $0x7f8] sm:$0xff]
        %v962 = vld [vmem:[#allocation6 + $0x800] sm:$0xff]
        %v963 = vld [vmem:[#allocation6 + $0x808] sm:$0xff]
        %v964 = vld [vmem:[#allocation6 + $0x810] sm:$0xff]
        %v965 = vld [vmem:[#allocation6 + $0x818] sm:$0xff]
        %v966 = vld [vmem:[#allocation6 + $0x820] sm:$0xff]
        %v967 = vld [vmem:[#allocation6 + $0x828] sm:$0xff]
        %v968 = vld [vmem:[#allocation6 + $0x830] sm:$0xff]
        %v969 = vld [vmem:[#allocation6 + $0x838] sm:$0xff]
        %v970 = vld [vmem:[#allocation6 + $0x840] sm:$0xff]
        %v971 = vld [vmem:[#allocation6 + $0x848] sm:$0xff]
        %v972 = vld [vmem:[#allocation6 + $0x850] sm:$0xff]
        %v973 = vld [vmem:[#allocation6 + $0x858] sm:$0xff]
        %v974 = vld [vmem:[#allocation6 + $0x860] sm:$0xff]
        %v975 = vld [vmem:[#allocation6 + $0x868] sm:$0xff]
        %v976 = vld [vmem:[#allocation6 + $0x870] sm:$0xff]
        %v977 = vld [vmem:[#allocation6 + $0x878] sm:$0xff]
        %v978 = vld [vmem:[#allocation6 + $0x880] sm:$0xff]
        %v979 = vld [vmem:[#allocation6 + $0x888] sm:$0xff]
        %v980 = vld [vmem:[#allocation6 + $0x890] sm:$0xff]
        %v981 = vld [vmem:[#allocation6 + $0x898] sm:$0xff]
        %v982 = vld [vmem:[#allocation6 + $0x8a0] sm:$0xff]
        %v983 = vld [vmem:[#allocation6 + $0x8a8] sm:$0xff]
        %v984 = vld [vmem:[#allocation6 + $0x8b0] sm:$0xff]
        %v985 = vld [vmem:[#allocation6 + $0x8b8] sm:$0xff]
        %v986 = vld [vmem:[#allocation6 + $0x8c0] sm:$0xff]
        %v987 = vld [vmem:[#allocation6 + $0x8c8] sm:$0xff]
        %v988 = vld [vmem:[#allocation6 + $0x8d0] sm:$0xff]
        %v989 = vld [vmem:[#allocation6 + $0x8d8] sm:$0xff]
        %v990 = vld [vmem:[#allocation6 + $0x8e0] sm:$0xff]
        %v991 = vld [vmem:[#allocation6 + $0x8e8] sm:$0xff]
        %v992 = vld [vmem:[#allocation6 + $0x8f0] sm:$0xff]
        %v993 = vld [vmem:[#allocation6 + $0x8f8] sm:$0xff]
        %v994 = vld [vmem:[#allocation6 + $0x900] sm:$0xff]
        %v995 = vld [vmem:[#allocation6 + $0x908] sm:$0xff]
        %v996 = vld [vmem:[#allocation6 + $0x910] sm:$0xff]
        %v997 = vld [vmem:[#allocation6 + $0x918] sm:$0xff]
        %v998 = vld [vmem:[#allocation6 + $0x920] sm:$0xff]
        %v999 = vld [vmem:[#allocation6 + $0x928] sm:$0xff]
        %v1000 = vld [vmem:[#allocation6 + $0x930] sm:$0xff]
        %v1001 = vld [vmem:[#allocation6 + $0x938] sm:$0xff]
        %v1002 = vld [vmem:[#allocation6 + $0x940] sm:$0xff]
        %v1003 = vld [vmem:[#allocation6 + $0x948] sm:$0xff]
        %v1004 = vld [vmem:[#allocation6 + $0x950] sm:$0xff]
        %v1005 = vld [vmem:[#allocation6 + $0x958] sm:$0xff]
        %v1006 = vld [vmem:[#allocation6 + $0x960] sm:$0xff]
        %v1007 = vld [vmem:[#allocation6 + $0x968] sm:$0xff]
        %v1008 = vld [vmem:[#allocation6 + $0x970] sm:$0xff]
        %v1009 = vld [vmem:[#allocation6 + $0x978] sm:$0xff]
        %v1010 = vld [vmem:[#allocation6 + $0x980] sm:$0xff]
        %v1011 = vld [vmem:[#allocation6 + $0x988] sm:$0xff]
        %v1012 = vld [vmem:[#allocation6 + $0x990] sm:$0xff]
        %v1013 = vld [vmem:[#allocation6 + $0x998] sm:$0xff]
        %v1014 = vld [vmem:[#allocation6 + $0x9a0] sm:$0xff]
        %v1015 = vld [vmem:[#allocation6 + $0x9a8] sm:$0xff]
        %v1016 = vld [vmem:[#allocation6 + $0x9b0] sm:$0xff]
        %v1017 = vld [vmem:[#allocation6 + $0x9b8] sm:$0xff]
        %v1018 = vld [vmem:[#allocation6 + $0x9c0] sm:$0xff]
        %v1019 = vld [vmem:[#allocation6 + $0x9c8] sm:$0xff]
        %v1020 = vld [vmem:[#allocation6 + $0x9d0] sm:$0xff]
        %v1021 = vld [vmem:[#allocation6 + $0x9d8] sm:$0xff]
        %v1022 = vld [vmem:[#allocation6 + $0x9e0] sm:$0xff]
        %v1023 = vld [vmem:[#allocation6 + $0x9e8] sm:$0xff]
        %v1024 = vld [vmem:[#allocation6 + $0x9f0] sm:$0xff]
        %v1025 = vld [vmem:[#allocation6 + $0x9f8] sm:$0xff]
        %v1026 = vld [vmem:[#allocation6 + $0xa00] sm:$0xff]
        %v1027 = vld [vmem:[#allocation6 + $0xa08] sm:$0xff]
        %v1028 = vld [vmem:[#allocation6 + $0xa10] sm:$0xff]
        %v1029 = vld [vmem:[#allocation6 + $0xa18] sm:$0xff]
        %v1030 = vld [vmem:[#allocation6 + $0xa20] sm:$0xff]
        %v1031 = vld [vmem:[#allocation6 + $0xa28] sm:$0xff]
        %v1032 = vld [vmem:[#allocation6 + $0xa30] sm:$0xff]
        %v1033 = vld [vmem:[#allocation6 + $0xa38] sm:$0xff]
        %v1034 = vld [vmem:[#allocation6 + $0xa40] sm:$0xff]
        %v1035 = vld [vmem:[#allocation6 + $0xa48] sm:$0xff]
        %v1036 = vld [vmem:[#allocation6 + $0xa50] sm:$0xff]
        %v1037 = vld [vmem:[#allocation6 + $0xa58] sm:$0xff]
        %v1038 = vld [vmem:[#allocation6 + $0xa60] sm:$0xff]
        %v1039 = vld [vmem:[#allocation6 + $0xa68] sm:$0xff]
        %v1040 = vld [vmem:[#allocation6 + $0xa70] sm:$0xff]
        %v1041 = vld [vmem:[#allocation6 + $0xa78] sm:$0xff]
        %v1042 = vld [vmem:[#allocation6 + $0xa80] sm:$0xff]
        %v1043 = vld [vmem:[#allocation6 + $0xa88] sm:$0xff]
        %v1044 = vld [vmem:[#allocation6 + $0xa90] sm:$0xff]
        %v1045 = vld [vmem:[#allocation6 + $0xa98] sm:$0xff]
        %v1046 = vld [vmem:[#allocation6 + $0xaa0] sm:$0xff]
        %v1047 = vld [vmem:[#allocation6 + $0xaa8] sm:$0xff]
        %v1048 = vld [vmem:[#allocation6 + $0xab0] sm:$0xff]
        %v1049 = vld [vmem:[#allocation6 + $0xab8] sm:$0xff]
        %v1050 = vld [vmem:[#allocation6 + $0xac0] sm:$0xff]
        %v1051 = vld [vmem:[#allocation6 + $0xac8] sm:$0xff]
        %v1052 = vld [vmem:[#allocation6 + $0xad0] sm:$0xff]
        %v1053 = vld [vmem:[#allocation6 + $0xad8] sm:$0xff]
        %v1054 = vld [vmem:[#allocation6 + $0xae0] sm:$0xff]
        %v1055 = vld [vmem:[#allocation6 + $0xae8] sm:$0xff]
        %v1056 = vld [vmem:[#allocation6 + $0xaf0] sm:$0xff]
        %v1057 = vld [vmem:[#allocation6 + $0xaf8] sm:$0xff]
        %v1058 = vld [vmem:[#allocation6 + $0xb00] sm:$0xff]
        %v1059 = vld [vmem:[#allocation6 + $0xb08] sm:$0xff]
        %v1060 = vld [vmem:[#allocation6 + $0xb10] sm:$0xff]
        %v1061 = vld [vmem:[#allocation6 + $0xb18] sm:$0xff]
        %v1062 = vld [vmem:[#allocation6 + $0xb20] sm:$0xff]
        %v1063 = vld [vmem:[#allocation6 + $0xb28] sm:$0xff]
        %v1064 = vld [vmem:[#allocation6 + $0xb30] sm:$0xff]
        %v1065 = vld [vmem:[#allocation6 + $0xb38] sm:$0xff]
        %v1066 = vld [vmem:[#allocation6 + $0xb40] sm:$0xff]
        %v1067 = vld [vmem:[#allocation6 + $0xb48] sm:$0xff]
        %v1068 = vld [vmem:[#allocation6 + $0xb50] sm:$0xff]
        %v1069 = vld [vmem:[#allocation6 + $0xb58] sm:$0xff]
        %v1070 = vld [vmem:[#allocation6 + $0xb60] sm:$0xff]
        %v1071 = vld [vmem:[#allocation6 + $0xb68] sm:$0xff]
        %v1072 = vld [vmem:[#allocation6 + $0xb70] sm:$0xff]
        %v1073 = vld [vmem:[#allocation6 + $0xb78] sm:$0xff]
        %v1074 = vld [vmem:[#allocation6 + $0xb80] sm:$0xff]
        %v1075 = vld [vmem:[#allocation6 + $0xb88] sm:$0xff]
        %v1076 = vld [vmem:[#allocation6 + $0xb90] sm:$0xff]
        %v1077 = vld [vmem:[#allocation6 + $0xb98] sm:$0xff]
        %v1078 = vld [vmem:[#allocation6 + $0xba0] sm:$0xff]
        %v1079 = vld [vmem:[#allocation6 + $0xba8] sm:$0xff]
        %v1080 = vld [vmem:[#allocation6 + $0xbb0] sm:$0xff]
        %v1081 = vld [vmem:[#allocation6 + $0xbb8] sm:$0xff]
        %v1082 = vld [vmem:[#allocation6 + $0xbc0] sm:$0xff]
        %v1083 = vld [vmem:[#allocation6 + $0xbc8] sm:$0xff]
        %v1084 = vld [vmem:[#allocation6 + $0xbd0] sm:$0xff]
        %v1085 = vld [vmem:[#allocation6 + $0xbd8] sm:$0xff]
        %v1086 = vld [vmem:[#allocation6 + $0xbe0] sm:$0xff]
        %v1087 = vld [vmem:[#allocation6 + $0xbe8] sm:$0xff]
        %v1088 = vld [vmem:[#allocation6 + $0xbf0] sm:$0xff]
        %v1089 = vld [vmem:[#allocation6 + $0xbf8] sm:$0xff]
        %v1090 = vld [vmem:[#allocation6 + $0xc00] sm:$0xff]
        %v1091 = vld [vmem:[#allocation6 + $0xc08] sm:$0xff]
        %v1092 = vld [vmem:[#allocation6 + $0xc10] sm:$0xff]
        %v1093 = vld [vmem:[#allocation6 + $0xc18] sm:$0xff]
        %v1094 = vld [vmem:[#allocation6 + $0xc20] sm:$0xff]
        %v1095 = vld [vmem:[#allocation6 + $0xc28] sm:$0xff]
        %v1096 = vld [vmem:[#allocation6 + $0xc30] sm:$0xff]
        %v1097 = vld [vmem:[#allocation6 + $0xc38] sm:$0xff]
        %v1098 = vld [vmem:[#allocation6 + $0xc40] sm:$0xff]
        %v1099 = vld [vmem:[#allocation6 + $0xc48] sm:$0xff]
        %v1100 = vld [vmem:[#allocation6 + $0xc50] sm:$0xff]
        %v1101 = vld [vmem:[#allocation6 + $0xc58] sm:$0xff]
        %v1102 = vld [vmem:[#allocation6 + $0xc60] sm:$0xff]
        %v1103 = vld [vmem:[#allocation6 + $0xc68] sm:$0xff]
        %v1104 = vld [vmem:[#allocation6 + $0xc70] sm:$0xff]
        %v1105 = vld [vmem:[#allocation6 + $0xc78] sm:$0xff]
        %v1106 = vld [vmem:[#allocation6 + $0xc80] sm:$0xff]
        %v1107 = vld [vmem:[#allocation6 + $0xc88] sm:$0xff]
        %v1108 = vld [vmem:[#allocation6 + $0xc90] sm:$0xff]
        %v1109 = vld [vmem:[#allocation6 + $0xc98] sm:$0xff]
        %v1110 = vld [vmem:[#allocation6 + $0xca0] sm:$0xff]
        %v1111 = vld [vmem:[#allocation6 + $0xca8] sm:$0xff]
        %v1112 = vld [vmem:[#allocation6 + $0xcb0] sm:$0xff]
        %v1113 = vld [vmem:[#allocation6 + $0xcb8] sm:$0xff]
        %v1114 = vld [vmem:[#allocation6 + $0xcc0] sm:$0xff]
        %v1115 = vld [vmem:[#allocation6 + $0xcc8] sm:$0xff]
        %v1116 = vld [vmem:[#allocation6 + $0xcd0] sm:$0xff]
        %v1117 = vld [vmem:[#allocation6 + $0xcd8] sm:$0xff]
        %v1118 = vld [vmem:[#allocation6 + $0xce0] sm:$0xff]
        %v1119 = vld [vmem:[#allocation6 + $0xce8] sm:$0xff]
        %v1120 = vld [vmem:[#allocation6 + $0xcf0] sm:$0xff]
        %v1121 = vld [vmem:[#allocation6 + $0xcf8] sm:$0xff]
        %v1122 = vld [vmem:[#allocation6 + $0xd00] sm:$0xff]
        %v1123 = vld [vmem:[#allocation6 + $0xd08] sm:$0xff]
        %v1124 = vld [vmem:[#allocation6 + $0xd10] sm:$0xff]
        %v1125 = vld [vmem:[#allocation6 + $0xd18] sm:$0xff]
        %v1126 = vld [vmem:[#allocation6 + $0xd20] sm:$0xff]
        %v1127 = vld [vmem:[#allocation6 + $0xd28] sm:$0xff]
        %v1128 = vld [vmem:[#allocation6 + $0xd30] sm:$0xff]
        %v1129 = vld [vmem:[#allocation6 + $0xd38] sm:$0xff]
        %v1130 = vld [vmem:[#allocation6 + $0xd40] sm:$0xff]
        %v1131 = vld [vmem:[#allocation6 + $0xd48] sm:$0xff]
        %v1132 = vld [vmem:[#allocation6 + $0xd50] sm:$0xff]
        %v1133 = vld [vmem:[#allocation6 + $0xd58] sm:$0xff]
        %v1134 = vld [vmem:[#allocation6 + $0xd60] sm:$0xff]
        %v1135 = vld [vmem:[#allocation6 + $0xd68] sm:$0xff]
        %v1136 = vld [vmem:[#allocation6 + $0xd70] sm:$0xff]
        %v1137 = vld [vmem:[#allocation6 + $0xd78] sm:$0xff]
        %v1138 = vld [vmem:[#allocation6 + $0xd80] sm:$0xff]
        %v1139 = vld [vmem:[#allocation6 + $0xd88] sm:$0xff]
        %v1140 = vld [vmem:[#allocation6 + $0xd90] sm:$0xff]
        %v1141 = vld [vmem:[#allocation6 + $0xd98] sm:$0xff]
        %v1142 = vld [vmem:[#allocation6 + $0xda0] sm:$0xff]
        %v1143 = vld [vmem:[#allocation6 + $0xda8] sm:$0xff]
        %v1144 = vld [vmem:[#allocation6 + $0xdb0] sm:$0xff]
        %v1145 = vld [vmem:[#allocation6 + $0xdb8] sm:$0xff]
        %v1146 = vld [vmem:[#allocation6 + $0xdc0] sm:$0xff]
        %v1147 = vld [vmem:[#allocation6 + $0xdc8] sm:$0xff]
        %v1148 = vld [vmem:[#allocation6 + $0xdd0] sm:$0xff]
        %v1149 = vld [vmem:[#allocation6 + $0xdd8] sm:$0xff]
        %v1150 = vld [vmem:[#allocation6 + $0xde0] sm:$0xff]
        %v1151 = vld [vmem:[#allocation6 + $0xde8] sm:$0xff]
        %v1152 = vld [vmem:[#allocation6 + $0xdf0] sm:$0xff]
        %v1153 = vld [vmem:[#allocation6 + $0xdf8] sm:$0xff]
        %v1154 = vld [vmem:[#allocation6 + $0xe00] sm:$0xff]
        %v1155 = vld [vmem:[#allocation6 + $0xe08] sm:$0xff]
        %v1156 = vld [vmem:[#allocation6 + $0xe10] sm:$0xff]
        %v1157 = vld [vmem:[#allocation6 + $0xe18] sm:$0xff]
        %v1158 = vld [vmem:[#allocation6 + $0xe20] sm:$0xff]
        %v1159 = vld [vmem:[#allocation6 + $0xe28] sm:$0xff]
        %v1160 = vld [vmem:[#allocation6 + $0xe30] sm:$0xff]
        %v1161 = vld [vmem:[#allocation6 + $0xe38] sm:$0xff]
        %v1162 = vld [vmem:[#allocation6 + $0xe40] sm:$0xff]
        %v1163 = vld [vmem:[#allocation6 + $0xe48] sm:$0xff]
        %v1164 = vld [vmem:[#allocation6 + $0xe50] sm:$0xff]
        %v1165 = vld [vmem:[#allocation6 + $0xe58] sm:$0xff]
        %v1166 = vld [vmem:[#allocation6 + $0xe60] sm:$0xff]
        %v1167 = vld [vmem:[#allocation6 + $0xe68] sm:$0xff]
        %v1168 = vld [vmem:[#allocation6 + $0xe70] sm:$0xff]
        %v1169 = vld [vmem:[#allocation6 + $0xe78] sm:$0xff]
        %v1170 = vld [vmem:[#allocation6 + $0xe80] sm:$0xff]
        %v1171 = vld [vmem:[#allocation6 + $0xe88] sm:$0xff]
        %v1172 = vld [vmem:[#allocation6 + $0xe90] sm:$0xff]
        %v1173 = vld [vmem:[#allocation6 + $0xe98] sm:$0xff]
        %v1174 = vld [vmem:[#allocation6 + $0xea0] sm:$0xff]
        %v1175 = vld [vmem:[#allocation6 + $0xea8] sm:$0xff]
        %v1176 = vld [vmem:[#allocation6 + $0xeb0] sm:$0xff]
        %v1177 = vld [vmem:[#allocation6 + $0xeb8] sm:$0xff]
        %v1178 = vld [vmem:[#allocation6 + $0xec0] sm:$0xff]
        %v1179 = vld [vmem:[#allocation6 + $0xec8] sm:$0xff]
        %v1180 = vld [vmem:[#allocation6 + $0xed0] sm:$0xff]
        %v1181 = vld [vmem:[#allocation6 + $0xed8] sm:$0xff]
        %v1182 = vld [vmem:[#allocation6 + $0xee0] sm:$0xff]
        %v1183 = vld [vmem:[#allocation6 + $0xee8] sm:$0xff]
        %v1184 = vld [vmem:[#allocation6 + $0xef0] sm:$0xff]
        %v1185 = vld [vmem:[#allocation6 + $0xef8] sm:$0xff]
        %v1186 = vld [vmem:[#allocation6 + $0xf00] sm:$0xff]
        %v1187 = vld [vmem:[#allocation6 + $0xf08] sm:$0xff]
        %v1188 = vld [vmem:[#allocation6 + $0xf10] sm:$0xff]
        %v1189 = vld [vmem:[#allocation6 + $0xf18] sm:$0xff]
        %v1190 = vld [vmem:[#allocation6 + $0xf20] sm:$0xff]
        %v1191 = vld [vmem:[#allocation6 + $0xf28] sm:$0xff]
        %v1192 = vld [vmem:[#allocation6 + $0xf30] sm:$0xff]
        %v1193 = vld [vmem:[#allocation6 + $0xf38] sm:$0xff]
        %v1194 = vld [vmem:[#allocation6 + $0xf40] sm:$0xff]
        %v1195 = vld [vmem:[#allocation6 + $0xf48] sm:$0xff]
        %v1196 = vld [vmem:[#allocation6 + $0xf50] sm:$0xff]
        %v1197 = vld [vmem:[#allocation6 + $0xf58] sm:$0xff]
        %v1198 = vld [vmem:[#allocation6 + $0xf60] sm:$0xff]
        %v1199 = vld [vmem:[#allocation6 + $0xf68] sm:$0xff]
        %v1200 = vld [vmem:[#allocation6 + $0xf70] sm:$0xff]
        %v1201 = vld [vmem:[#allocation6 + $0xf78] sm:$0xff]
        %v1202 = vld [vmem:[#allocation6 + $0xf80] sm:$0xff]
        %v1203 = vld [vmem:[#allocation6 + $0xf88] sm:$0xff]
        %v1204 = vld [vmem:[#allocation6 + $0xf90] sm:$0xff]
        %v1205 = vld [vmem:[#allocation6 + $0xf98] sm:$0xff]
        %v1206 = vld [vmem:[#allocation6 + $0xfa0] sm:$0xff]
        %v1207 = vld [vmem:[#allocation6 + $0xfa8] sm:$0xff]
        %v1208 = vld [vmem:[#allocation6 + $0xfb0] sm:$0xff]
        %v1209 = vld [vmem:[#allocation6 + $0xfb8] sm:$0xff]
        %v1210 = vld [vmem:[#allocation6 + $0xfc0] sm:$0xff]
        %v1211 = vld [vmem:[#allocation6 + $0xfc8] sm:$0xff]
        %v1212 = vld [vmem:[#allocation6 + $0xfd0] sm:$0xff]
        %v1213 = vld [vmem:[#allocation6 + $0xfd8] sm:$0xff]
        %v1214 = vld [vmem:[#allocation6 + $0xfe0] sm:$0xff]
        %v1215 = vld [vmem:[#allocation6 + $0xfe8] sm:$0xff]
        %v1216 = vld [vmem:[#allocation6 + $0xff0] sm:$0xff]
        %v1217 = vld [vmem:[#allocation6 + $0xff8] sm:$0xff]
        %v1218 = vld [vmem:[#allocation7] sm:$0xff]
        %v1220 = vlaneseq
        %v1221 = vshrl.u32 %v1220, 7
        %v1222 = vsub.s32 0, %v1221
        %v1223 = vrot.slane %v1218, %v1222
        %v1224 = vlaneseq
        %v1225 = vshrl.u32 %v1224, 7
        %v1226 = vsub.s32 1, %v1225
        %v1227 = vrot.slane %v1218, %v1226
        %v1228 = vlaneseq
        %v1229 = vshrl.u32 %v1228, 7
        %v1230 = vsub.s32 2, %v1229
        %v1231 = vrot.slane %v1218, %v1230
        %v1232 = vlaneseq
        %v1233 = vshrl.u32 %v1232, 7
        %v1234 = vsub.s32 3, %v1233
        %v1235 = vrot.slane %v1218, %v1234
        %v1236 = vlaneseq
        %v1237 = vshrl.u32 %v1236, 7
        %v1238 = vsub.s32 4, %v1237
        %v1239 = vrot.slane %v1218, %v1238
        %v1240 = vlaneseq
        %v1241 = vshrl.u32 %v1240, 7
        %v1242 = vsub.s32 5, %v1241
        %v1243 = vrot.slane %v1218, %v1242
        %v1244 = vlaneseq
        %v1245 = vshrl.u32 %v1244, 7
        %v1246 = vsub.s32 6, %v1245
        %v1247 = vrot.slane %v1218, %v1246
        %v1248 = vlaneseq
        %v1249 = vshrl.u32 %v1248, 7
        %v1250 = vsub.s32 7, %v1249
        %v1251 = vrot.slane %v1218, %v1250
        %v1772 = vunpack.c.l.b16 %v706
        %v1773 = vunpack.c.h.b16 %v706
        %v1774 = vunpack.c.l.b16 %v707
        %v1775 = vunpack.c.h.b16 %v707
        %v1776 = vunpack.c.l.b16 %v708
        %v1777 = vunpack.c.h.b16 %v708
        %v1778 = vunpack.c.l.b16 %v709
        %v1779 = vunpack.c.h.b16 %v709
        %v1780 = vunpack.c.l.b16 %v710
        %v1781 = vunpack.c.h.b16 %v710
        %v1782 = vunpack.c.l.b16 %v711
        %v1783 = vunpack.c.h.b16 %v711
        %v1784 = vunpack.c.l.b16 %v712
        %v1785 = vunpack.c.h.b16 %v712
        %v1786 = vunpack.c.l.b16 %v713
        %v1787 = vunpack.c.h.b16 %v713
        %v1788 = vunpack.c.l.b16 %v714
        %v1789 = vunpack.c.h.b16 %v714
        %v1790 = vunpack.c.l.b16 %v715
        %v1791 = vunpack.c.h.b16 %v715
        %v1792 = vunpack.c.l.b16 %v716
        %v1793 = vunpack.c.h.b16 %v716
        %v1794 = vunpack.c.l.b16 %v717
        %v1795 = vunpack.c.h.b16 %v717
        %v1796 = vunpack.c.l.b16 %v718
        %v1797 = vunpack.c.h.b16 %v718
        %v1798 = vunpack.c.l.b16 %v719
        %v1799 = vunpack.c.h.b16 %v719
        %v1800 = vunpack.c.l.b16 %v720
        %v1801 = vunpack.c.h.b16 %v720
        %v1802 = vunpack.c.l.b16 %v721
        %v1803 = vunpack.c.h.b16 %v721
        %v1804 = vunpack.c.l.b16 %v722
        %v1805 = vunpack.c.h.b16 %v722
        %v1806 = vunpack.c.l.b16 %v723
        %v1807 = vunpack.c.h.b16 %v723
        %v1808 = vunpack.c.l.b16 %v724
        %v1809 = vunpack.c.h.b16 %v724
        %v1810 = vunpack.c.l.b16 %v725
        %v1811 = vunpack.c.h.b16 %v725
        %v1812 = vunpack.c.l.b16 %v726
        %v1813 = vunpack.c.h.b16 %v726
        %v1814 = vunpack.c.l.b16 %v727
        %v1815 = vunpack.c.h.b16 %v727
        %v1816 = vunpack.c.l.b16 %v728
        %v1817 = vunpack.c.h.b16 %v728
        %v1818 = vunpack.c.l.b16 %v729
        %v1819 = vunpack.c.h.b16 %v729
        %v1820 = vunpack.c.l.b16 %v730
        %v1821 = vunpack.c.h.b16 %v730
        %v1822 = vunpack.c.l.b16 %v731
        %v1823 = vunpack.c.h.b16 %v731
        %v1824 = vunpack.c.l.b16 %v732
        %v1825 = vunpack.c.h.b16 %v732
        %v1826 = vunpack.c.l.b16 %v733
        %v1827 = vunpack.c.h.b16 %v733
        %v1828 = vunpack.c.l.b16 %v734
        %v1829 = vunpack.c.h.b16 %v734
        %v1830 = vunpack.c.l.b16 %v735
        %v1831 = vunpack.c.h.b16 %v735
        %v1832 = vunpack.c.l.b16 %v736
        %v1833 = vunpack.c.h.b16 %v736
        %v1834 = vunpack.c.l.b16 %v737
        %v1835 = vunpack.c.h.b16 %v737
        %v1836 = vunpack.c.l.b16 %v738
        %v1837 = vunpack.c.h.b16 %v738
        %v1838 = vunpack.c.l.b16 %v739
        %v1839 = vunpack.c.h.b16 %v739
        %v1840 = vunpack.c.l.b16 %v740
        %v1841 = vunpack.c.h.b16 %v740
        %v1842 = vunpack.c.l.b16 %v741
        %v1843 = vunpack.c.h.b16 %v741
        %v1844 = vunpack.c.l.b16 %v742
        %v1845 = vunpack.c.h.b16 %v742
        %v1846 = vunpack.c.l.b16 %v743
        %v1847 = vunpack.c.h.b16 %v743
        %v1848 = vunpack.c.l.b16 %v744
        %v1849 = vunpack.c.h.b16 %v744
        %v1850 = vunpack.c.l.b16 %v745
        %v1851 = vunpack.c.h.b16 %v745
        %v1852 = vunpack.c.l.b16 %v746
        %v1853 = vunpack.c.h.b16 %v746
        %v1854 = vunpack.c.l.b16 %v747
        %v1855 = vunpack.c.h.b16 %v747
        %v1856 = vunpack.c.l.b16 %v748
        %v1857 = vunpack.c.h.b16 %v748
        %v1858 = vunpack.c.l.b16 %v749
        %v1859 = vunpack.c.h.b16 %v749
        %v1860 = vunpack.c.l.b16 %v750
        %v1861 = vunpack.c.h.b16 %v750
        %v1862 = vunpack.c.l.b16 %v751
        %v1863 = vunpack.c.h.b16 %v751
        %v1864 = vunpack.c.l.b16 %v752
        %v1865 = vunpack.c.h.b16 %v752
        %v1866 = vunpack.c.l.b16 %v753
        %v1867 = vunpack.c.h.b16 %v753
        %v1868 = vunpack.c.l.b16 %v754
        %v1869 = vunpack.c.h.b16 %v754
        %v1870 = vunpack.c.l.b16 %v755
        %v1871 = vunpack.c.h.b16 %v755
        %v1872 = vunpack.c.l.b16 %v756
        %v1873 = vunpack.c.h.b16 %v756
        %v1874 = vunpack.c.l.b16 %v757
        %v1875 = vunpack.c.h.b16 %v757
        %v1876 = vunpack.c.l.b16 %v758
        %v1877 = vunpack.c.h.b16 %v758
        %v1878 = vunpack.c.l.b16 %v759
        %v1879 = vunpack.c.h.b16 %v759
        %v1880 = vunpack.c.l.b16 %v760
        %v1881 = vunpack.c.h.b16 %v760
        %v1882 = vunpack.c.l.b16 %v761
        %v1883 = vunpack.c.h.b16 %v761
        %v1884 = vunpack.c.l.b16 %v762
        %v1885 = vunpack.c.h.b16 %v762
        %v1886 = vunpack.c.l.b16 %v763
        %v1887 = vunpack.c.h.b16 %v763
        %v1888 = vunpack.c.l.b16 %v764
        %v1889 = vunpack.c.h.b16 %v764
        %v1890 = vunpack.c.l.b16 %v765
        %v1891 = vunpack.c.h.b16 %v765
        %v1892 = vunpack.c.l.b16 %v766
        %v1893 = vunpack.c.h.b16 %v766
        %v1894 = vunpack.c.l.b16 %v767
        %v1895 = vunpack.c.h.b16 %v767
        %v1896 = vunpack.c.l.b16 %v768
        %v1897 = vunpack.c.h.b16 %v768
        %v1898 = vunpack.c.l.b16 %v769
        %v1899 = vunpack.c.h.b16 %v769
        %v1900 = vunpack.c.l.b16 %v770
        %v1901 = vunpack.c.h.b16 %v770
        %v1902 = vunpack.c.l.b16 %v771
        %v1903 = vunpack.c.h.b16 %v771
        %v1904 = vunpack.c.l.b16 %v772
        %v1905 = vunpack.c.h.b16 %v772
        %v1906 = vunpack.c.l.b16 %v773
        %v1907 = vunpack.c.h.b16 %v773
        %v1908 = vunpack.c.l.b16 %v774
        %v1909 = vunpack.c.h.b16 %v774
        %v1910 = vunpack.c.l.b16 %v775
        %v1911 = vunpack.c.h.b16 %v775
        %v1912 = vunpack.c.l.b16 %v776
        %v1913 = vunpack.c.h.b16 %v776
        %v1914 = vunpack.c.l.b16 %v777
        %v1915 = vunpack.c.h.b16 %v777
        %v1916 = vunpack.c.l.b16 %v778
        %v1917 = vunpack.c.h.b16 %v778
        %v1918 = vunpack.c.l.b16 %v779
        %v1919 = vunpack.c.h.b16 %v779
        %v1920 = vunpack.c.l.b16 %v780
        %v1921 = vunpack.c.h.b16 %v780
        %v1922 = vunpack.c.l.b16 %v781
        %v1923 = vunpack.c.h.b16 %v781
        %v1924 = vunpack.c.l.b16 %v782
        %v1925 = vunpack.c.h.b16 %v782
        %v1926 = vunpack.c.l.b16 %v783
        %v1927 = vunpack.c.h.b16 %v783
        %v1928 = vunpack.c.l.b16 %v784
        %v1929 = vunpack.c.h.b16 %v784
        %v1930 = vunpack.c.l.b16 %v785
        %v1931 = vunpack.c.h.b16 %v785
        %v1932 = vunpack.c.l.b16 %v786
        %v1933 = vunpack.c.h.b16 %v786
        %v1934 = vunpack.c.l.b16 %v787
        %v1935 = vunpack.c.h.b16 %v787
        %v1936 = vunpack.c.l.b16 %v788
        %v1937 = vunpack.c.h.b16 %v788
        %v1938 = vunpack.c.l.b16 %v789
        %v1939 = vunpack.c.h.b16 %v789
        %v1940 = vunpack.c.l.b16 %v790
        %v1941 = vunpack.c.h.b16 %v790
        %v1942 = vunpack.c.l.b16 %v791
        %v1943 = vunpack.c.h.b16 %v791
        %v1944 = vunpack.c.l.b16 %v792
        %v1945 = vunpack.c.h.b16 %v792
        %v1946 = vunpack.c.l.b16 %v793
        %v1947 = vunpack.c.h.b16 %v793
        %v1948 = vunpack.c.l.b16 %v794
        %v1949 = vunpack.c.h.b16 %v794
        %v1950 = vunpack.c.l.b16 %v795
        %v1951 = vunpack.c.h.b16 %v795
        %v1952 = vunpack.c.l.b16 %v796
        %v1953 = vunpack.c.h.b16 %v796
        %v1954 = vunpack.c.l.b16 %v797
        %v1955 = vunpack.c.h.b16 %v797
        %v1956 = vunpack.c.l.b16 %v798
        %v1957 = vunpack.c.h.b16 %v798
        %v1958 = vunpack.c.l.b16 %v799
        %v1959 = vunpack.c.h.b16 %v799
        %v1960 = vunpack.c.l.b16 %v800
        %v1961 = vunpack.c.h.b16 %v800
        %v1962 = vunpack.c.l.b16 %v801
        %v1963 = vunpack.c.h.b16 %v801
        %v1964 = vunpack.c.l.b16 %v802
        %v1965 = vunpack.c.h.b16 %v802
        %v1966 = vunpack.c.l.b16 %v803
        %v1967 = vunpack.c.h.b16 %v803
        %v1968 = vunpack.c.l.b16 %v804
        %v1969 = vunpack.c.h.b16 %v804
        %v1970 = vunpack.c.l.b16 %v805
        %v1971 = vunpack.c.h.b16 %v805
        %v1972 = vunpack.c.l.b16 %v806
        %v1973 = vunpack.c.h.b16 %v806
        %v1974 = vunpack.c.l.b16 %v807
        %v1975 = vunpack.c.h.b16 %v807
        %v1976 = vunpack.c.l.b16 %v808
        %v1977 = vunpack.c.h.b16 %v808
        %v1978 = vunpack.c.l.b16 %v809
        %v1979 = vunpack.c.h.b16 %v809
        %v1980 = vunpack.c.l.b16 %v810
        %v1981 = vunpack.c.h.b16 %v810
        %v1982 = vunpack.c.l.b16 %v811
        %v1983 = vunpack.c.h.b16 %v811
        %v1984 = vunpack.c.l.b16 %v812
        %v1985 = vunpack.c.h.b16 %v812
        %v1986 = vunpack.c.l.b16 %v813
        %v1987 = vunpack.c.h.b16 %v813
        %v1988 = vunpack.c.l.b16 %v814
        %v1989 = vunpack.c.h.b16 %v814
        %v1990 = vunpack.c.l.b16 %v815
        %v1991 = vunpack.c.h.b16 %v815
        %v1992 = vunpack.c.l.b16 %v816
        %v1993 = vunpack.c.h.b16 %v816
        %v1994 = vunpack.c.l.b16 %v817
        %v1995 = vunpack.c.h.b16 %v817
        %v1996 = vunpack.c.l.b16 %v818
        %v1997 = vunpack.c.h.b16 %v818
        %v1998 = vunpack.c.l.b16 %v819
        %v1999 = vunpack.c.h.b16 %v819
        %v2000 = vunpack.c.l.b16 %v820
        %v2001 = vunpack.c.h.b16 %v820
        %v2002 = vunpack.c.l.b16 %v821
        %v2003 = vunpack.c.h.b16 %v821
        %v2004 = vunpack.c.l.b16 %v822
        %v2005 = vunpack.c.h.b16 %v822
        %v2006 = vunpack.c.l.b16 %v823
        %v2007 = vunpack.c.h.b16 %v823
        %v2008 = vunpack.c.l.b16 %v824
        %v2009 = vunpack.c.h.b16 %v824
        %v2010 = vunpack.c.l.b16 %v825
        %v2011 = vunpack.c.h.b16 %v825
        %v2012 = vunpack.c.l.b16 %v826
        %v2013 = vunpack.c.h.b16 %v826
        %v2014 = vunpack.c.l.b16 %v827
        %v2015 = vunpack.c.h.b16 %v827
        %v2016 = vunpack.c.l.b16 %v828
        %v2017 = vunpack.c.h.b16 %v828
        %v2018 = vunpack.c.l.b16 %v829
        %v2019 = vunpack.c.h.b16 %v829
        %v2020 = vunpack.c.l.b16 %v830
        %v2021 = vunpack.c.h.b16 %v830
        %v2022 = vunpack.c.l.b16 %v831
        %v2023 = vunpack.c.h.b16 %v831
        %v2024 = vunpack.c.l.b16 %v832
        %v2025 = vunpack.c.h.b16 %v832
        %v2026 = vunpack.c.l.b16 %v833
        %v2027 = vunpack.c.h.b16 %v833
        %v2028 = vunpack.c.l.b16 %v834
        %v2029 = vunpack.c.h.b16 %v834
        %v2030 = vunpack.c.l.b16 %v835
        %v2031 = vunpack.c.h.b16 %v835
        %v2032 = vunpack.c.l.b16 %v836
        %v2033 = vunpack.c.h.b16 %v836
        %v2034 = vunpack.c.l.b16 %v837
        %v2035 = vunpack.c.h.b16 %v837
        %v2036 = vunpack.c.l.b16 %v838
        %v2037 = vunpack.c.h.b16 %v838
        %v2038 = vunpack.c.l.b16 %v839
        %v2039 = vunpack.c.h.b16 %v839
        %v2040 = vunpack.c.l.b16 %v840
        %v2041 = vunpack.c.h.b16 %v840
        %v2042 = vunpack.c.l.b16 %v841
        %v2043 = vunpack.c.h.b16 %v841
        %v2044 = vunpack.c.l.b16 %v842
        %v2045 = vunpack.c.h.b16 %v842
        %v2046 = vunpack.c.l.b16 %v843
        %v2047 = vunpack.c.h.b16 %v843
        %v2048 = vunpack.c.l.b16 %v844
        %v2049 = vunpack.c.h.b16 %v844
        %v2050 = vunpack.c.l.b16 %v845
        %v2051 = vunpack.c.h.b16 %v845
        %v2052 = vunpack.c.l.b16 %v846
        %v2053 = vunpack.c.h.b16 %v846
        %v2054 = vunpack.c.l.b16 %v847
        %v2055 = vunpack.c.h.b16 %v847
        %v2056 = vunpack.c.l.b16 %v848
        %v2057 = vunpack.c.h.b16 %v848
        %v2058 = vunpack.c.l.b16 %v849
        %v2059 = vunpack.c.h.b16 %v849
        %v2060 = vunpack.c.l.b16 %v850
        %v2061 = vunpack.c.h.b16 %v850
        %v2062 = vunpack.c.l.b16 %v851
        %v2063 = vunpack.c.h.b16 %v851
        %v2064 = vunpack.c.l.b16 %v852
        %v2065 = vunpack.c.h.b16 %v852
        %v2066 = vunpack.c.l.b16 %v853
        %v2067 = vunpack.c.h.b16 %v853
        %v2068 = vunpack.c.l.b16 %v854
        %v2069 = vunpack.c.h.b16 %v854
        %v2070 = vunpack.c.l.b16 %v855
        %v2071 = vunpack.c.h.b16 %v855
        %v2072 = vunpack.c.l.b16 %v856
        %v2073 = vunpack.c.h.b16 %v856
        %v2074 = vunpack.c.l.b16 %v857
        %v2075 = vunpack.c.h.b16 %v857
        %v2076 = vunpack.c.l.b16 %v858
        %v2077 = vunpack.c.h.b16 %v858
        %v2078 = vunpack.c.l.b16 %v859
        %v2079 = vunpack.c.h.b16 %v859
        %v2080 = vunpack.c.l.b16 %v860
        %v2081 = vunpack.c.h.b16 %v860
        %v2082 = vunpack.c.l.b16 %v861
        %v2083 = vunpack.c.h.b16 %v861
        %v2084 = vunpack.c.l.b16 %v862
        %v2085 = vunpack.c.h.b16 %v862
        %v2086 = vunpack.c.l.b16 %v863
        %v2087 = vunpack.c.h.b16 %v863
        %v2088 = vunpack.c.l.b16 %v864
        %v2089 = vunpack.c.h.b16 %v864
        %v2090 = vunpack.c.l.b16 %v865
        %v2091 = vunpack.c.h.b16 %v865
        %v2092 = vunpack.c.l.b16 %v866
        %v2093 = vunpack.c.h.b16 %v866
        %v2094 = vunpack.c.l.b16 %v867
        %v2095 = vunpack.c.h.b16 %v867
        %v2096 = vunpack.c.l.b16 %v868
        %v2097 = vunpack.c.h.b16 %v868
        %v2098 = vunpack.c.l.b16 %v869
        %v2099 = vunpack.c.h.b16 %v869
        %v2100 = vunpack.c.l.b16 %v870
        %v2101 = vunpack.c.h.b16 %v870
        %v2102 = vunpack.c.l.b16 %v871
        %v2103 = vunpack.c.h.b16 %v871
        %v2104 = vunpack.c.l.b16 %v872
        %v2105 = vunpack.c.h.b16 %v872
        %v2106 = vunpack.c.l.b16 %v873
        %v2107 = vunpack.c.h.b16 %v873
        %v2108 = vunpack.c.l.b16 %v874
        %v2109 = vunpack.c.h.b16 %v874
        %v2110 = vunpack.c.l.b16 %v875
        %v2111 = vunpack.c.h.b16 %v875
        %v2112 = vunpack.c.l.b16 %v876
        %v2113 = vunpack.c.h.b16 %v876
        %v2114 = vunpack.c.l.b16 %v877
        %v2115 = vunpack.c.h.b16 %v877
        %v2116 = vunpack.c.l.b16 %v878
        %v2117 = vunpack.c.h.b16 %v878
        %v2118 = vunpack.c.l.b16 %v879
        %v2119 = vunpack.c.h.b16 %v879
        %v2120 = vunpack.c.l.b16 %v880
        %v2121 = vunpack.c.h.b16 %v880
        %v2122 = vunpack.c.l.b16 %v881
        %v2123 = vunpack.c.h.b16 %v881
        %v2124 = vunpack.c.l.b16 %v882
        %v2125 = vunpack.c.h.b16 %v882
        %v2126 = vunpack.c.l.b16 %v883
        %v2127 = vunpack.c.h.b16 %v883
        %v2128 = vunpack.c.l.b16 %v884
        %v2129 = vunpack.c.h.b16 %v884
        %v2130 = vunpack.c.l.b16 %v885
        %v2131 = vunpack.c.h.b16 %v885
        %v2132 = vunpack.c.l.b16 %v886
        %v2133 = vunpack.c.h.b16 %v886
        %v2134 = vunpack.c.l.b16 %v887
        %v2135 = vunpack.c.h.b16 %v887
        %v2136 = vunpack.c.l.b16 %v888
        %v2137 = vunpack.c.h.b16 %v888
        %v2138 = vunpack.c.l.b16 %v889
        %v2139 = vunpack.c.h.b16 %v889
        %v2140 = vunpack.c.l.b16 %v890
        %v2141 = vunpack.c.h.b16 %v890
        %v2142 = vunpack.c.l.b16 %v891
        %v2143 = vunpack.c.h.b16 %v891
        %v2144 = vunpack.c.l.b16 %v892
        %v2145 = vunpack.c.h.b16 %v892
        %v2146 = vunpack.c.l.b16 %v893
        %v2147 = vunpack.c.h.b16 %v893
        %v2148 = vunpack.c.l.b16 %v894
        %v2149 = vunpack.c.h.b16 %v894
        %v2150 = vunpack.c.l.b16 %v895
        %v2151 = vunpack.c.h.b16 %v895
        %v2152 = vunpack.c.l.b16 %v896
        %v2153 = vunpack.c.h.b16 %v896
        %v2154 = vunpack.c.l.b16 %v897
        %v2155 = vunpack.c.h.b16 %v897
        %v2156 = vunpack.c.l.b16 %v898
        %v2157 = vunpack.c.h.b16 %v898
        %v2158 = vunpack.c.l.b16 %v899
        %v2159 = vunpack.c.h.b16 %v899
        %v2160 = vunpack.c.l.b16 %v900
        %v2161 = vunpack.c.h.b16 %v900
        %v2162 = vunpack.c.l.b16 %v901
        %v2163 = vunpack.c.h.b16 %v901
        %v2164 = vunpack.c.l.b16 %v902
        %v2165 = vunpack.c.h.b16 %v902
        %v2166 = vunpack.c.l.b16 %v903
        %v2167 = vunpack.c.h.b16 %v903
        %v2168 = vunpack.c.l.b16 %v904
        %v2169 = vunpack.c.h.b16 %v904
        %v2170 = vunpack.c.l.b16 %v905
        %v2171 = vunpack.c.h.b16 %v905
        %v2172 = vunpack.c.l.b16 %v906
        %v2173 = vunpack.c.h.b16 %v906
        %v2174 = vunpack.c.l.b16 %v907
        %v2175 = vunpack.c.h.b16 %v907
        %v2176 = vunpack.c.l.b16 %v908
        %v2177 = vunpack.c.h.b16 %v908
        %v2178 = vunpack.c.l.b16 %v909
        %v2179 = vunpack.c.h.b16 %v909
        %v2180 = vunpack.c.l.b16 %v910
        %v2181 = vunpack.c.h.b16 %v910
        %v2182 = vunpack.c.l.b16 %v911
        %v2183 = vunpack.c.h.b16 %v911
        %v2184 = vunpack.c.l.b16 %v912
        %v2185 = vunpack.c.h.b16 %v912
        %v2186 = vunpack.c.l.b16 %v913
        %v2187 = vunpack.c.h.b16 %v913
        %v2188 = vunpack.c.l.b16 %v914
        %v2189 = vunpack.c.h.b16 %v914
        %v2190 = vunpack.c.l.b16 %v915
        %v2191 = vunpack.c.h.b16 %v915
        %v2192 = vunpack.c.l.b16 %v916
        %v2193 = vunpack.c.h.b16 %v916
        %v2194 = vunpack.c.l.b16 %v917
        %v2195 = vunpack.c.h.b16 %v917
        %v2196 = vunpack.c.l.b16 %v918
        %v2197 = vunpack.c.h.b16 %v918
        %v2198 = vunpack.c.l.b16 %v919
        %v2199 = vunpack.c.h.b16 %v919
        %v2200 = vunpack.c.l.b16 %v920
        %v2201 = vunpack.c.h.b16 %v920
        %v2202 = vunpack.c.l.b16 %v921
        %v2203 = vunpack.c.h.b16 %v921
        %v2204 = vunpack.c.l.b16 %v922
        %v2205 = vunpack.c.h.b16 %v922
        %v2206 = vunpack.c.l.b16 %v923
        %v2207 = vunpack.c.h.b16 %v923
        %v2208 = vunpack.c.l.b16 %v924
        %v2209 = vunpack.c.h.b16 %v924
        %v2210 = vunpack.c.l.b16 %v925
        %v2211 = vunpack.c.h.b16 %v925
        %v2212 = vunpack.c.l.b16 %v926
        %v2213 = vunpack.c.h.b16 %v926
        %v2214 = vunpack.c.l.b16 %v927
        %v2215 = vunpack.c.h.b16 %v927
        %v2216 = vunpack.c.l.b16 %v928
        %v2217 = vunpack.c.h.b16 %v928
        %v2218 = vunpack.c.l.b16 %v929
        %v2219 = vunpack.c.h.b16 %v929
        %v2220 = vunpack.c.l.b16 %v930
        %v2221 = vunpack.c.h.b16 %v930
        %v2222 = vunpack.c.l.b16 %v931
        %v2223 = vunpack.c.h.b16 %v931
        %v2224 = vunpack.c.l.b16 %v932
        %v2225 = vunpack.c.h.b16 %v932
        %v2226 = vunpack.c.l.b16 %v933
        %v2227 = vunpack.c.h.b16 %v933
        %v2228 = vunpack.c.l.b16 %v934
        %v2229 = vunpack.c.h.b16 %v934
        %v2230 = vunpack.c.l.b16 %v935
        %v2231 = vunpack.c.h.b16 %v935
        %v2232 = vunpack.c.l.b16 %v936
        %v2233 = vunpack.c.h.b16 %v936
        %v2234 = vunpack.c.l.b16 %v937
        %v2235 = vunpack.c.h.b16 %v937
        %v2236 = vunpack.c.l.b16 %v938
        %v2237 = vunpack.c.h.b16 %v938
        %v2238 = vunpack.c.l.b16 %v939
        %v2239 = vunpack.c.h.b16 %v939
        %v2240 = vunpack.c.l.b16 %v940
        %v2241 = vunpack.c.h.b16 %v940
        %v2242 = vunpack.c.l.b16 %v941
        %v2243 = vunpack.c.h.b16 %v941
        %v2244 = vunpack.c.l.b16 %v942
        %v2245 = vunpack.c.h.b16 %v942
        %v2246 = vunpack.c.l.b16 %v943
        %v2247 = vunpack.c.h.b16 %v943
        %v2248 = vunpack.c.l.b16 %v944
        %v2249 = vunpack.c.h.b16 %v944
        %v2250 = vunpack.c.l.b16 %v945
        %v2251 = vunpack.c.h.b16 %v945
        %v2252 = vunpack.c.l.b16 %v946
        %v2253 = vunpack.c.h.b16 %v946
        %v2254 = vunpack.c.l.b16 %v947
        %v2255 = vunpack.c.h.b16 %v947
        %v2256 = vunpack.c.l.b16 %v948
        %v2257 = vunpack.c.h.b16 %v948
        %v2258 = vunpack.c.l.b16 %v949
        %v2259 = vunpack.c.h.b16 %v949
        %v2260 = vunpack.c.l.b16 %v950
        %v2261 = vunpack.c.h.b16 %v950
        %v2262 = vunpack.c.l.b16 %v951
        %v2263 = vunpack.c.h.b16 %v951
        %v2264 = vunpack.c.l.b16 %v952
        %v2265 = vunpack.c.h.b16 %v952
        %v2266 = vunpack.c.l.b16 %v953
        %v2267 = vunpack.c.h.b16 %v953
        %v2268 = vunpack.c.l.b16 %v954
        %v2269 = vunpack.c.h.b16 %v954
        %v2270 = vunpack.c.l.b16 %v955
        %v2271 = vunpack.c.h.b16 %v955
        %v2272 = vunpack.c.l.b16 %v956
        %v2273 = vunpack.c.h.b16 %v956
        %v2274 = vunpack.c.l.b16 %v957
        %v2275 = vunpack.c.h.b16 %v957
        %v2276 = vunpack.c.l.b16 %v958
        %v2277 = vunpack.c.h.b16 %v958
        %v2278 = vunpack.c.l.b16 %v959
        %v2279 = vunpack.c.h.b16 %v959
        %v2280 = vunpack.c.l.b16 %v960
        %v2281 = vunpack.c.h.b16 %v960
        %v2282 = vunpack.c.l.b16 %v961
        %v2283 = vunpack.c.h.b16 %v961
        %v2284 = vunpack.c.l.b16 %v962
        %v2285 = vunpack.c.h.b16 %v962
        %v2286 = vunpack.c.l.b16 %v963
        %v2287 = vunpack.c.h.b16 %v963
        %v2288 = vunpack.c.l.b16 %v964
        %v2289 = vunpack.c.h.b16 %v964
        %v2290 = vunpack.c.l.b16 %v965
        %v2291 = vunpack.c.h.b16 %v965
        %v2292 = vunpack.c.l.b16 %v966
        %v2293 = vunpack.c.h.b16 %v966
        %v2294 = vunpack.c.l.b16 %v967
        %v2295 = vunpack.c.h.b16 %v967
        %v2296 = vunpack.c.l.b16 %v968
        %v2297 = vunpack.c.h.b16 %v968
        %v2298 = vunpack.c.l.b16 %v969
        %v2299 = vunpack.c.h.b16 %v969
        %v2300 = vunpack.c.l.b16 %v970
        %v2301 = vunpack.c.h.b16 %v970
        %v2302 = vunpack.c.l.b16 %v971
        %v2303 = vunpack.c.h.b16 %v971
        %v2304 = vunpack.c.l.b16 %v972
        %v2305 = vunpack.c.h.b16 %v972
        %v2306 = vunpack.c.l.b16 %v973
        %v2307 = vunpack.c.h.b16 %v973
        %v2308 = vunpack.c.l.b16 %v974
        %v2309 = vunpack.c.h.b16 %v974
        %v2310 = vunpack.c.l.b16 %v975
        %v2311 = vunpack.c.h.b16 %v975
        %v2312 = vunpack.c.l.b16 %v976
        %v2313 = vunpack.c.h.b16 %v976
        %v2314 = vunpack.c.l.b16 %v977
        %v2315 = vunpack.c.h.b16 %v977
        %v2316 = vunpack.c.l.b16 %v978
        %v2317 = vunpack.c.h.b16 %v978
        %v2318 = vunpack.c.l.b16 %v979
        %v2319 = vunpack.c.h.b16 %v979
        %v2320 = vunpack.c.l.b16 %v980
        %v2321 = vunpack.c.h.b16 %v980
        %v2322 = vunpack.c.l.b16 %v981
        %v2323 = vunpack.c.h.b16 %v981
        %v2324 = vunpack.c.l.b16 %v982
        %v2325 = vunpack.c.h.b16 %v982
        %v2326 = vunpack.c.l.b16 %v983
        %v2327 = vunpack.c.h.b16 %v983
        %v2328 = vunpack.c.l.b16 %v984
        %v2329 = vunpack.c.h.b16 %v984
        %v2330 = vunpack.c.l.b16 %v985
        %v2331 = vunpack.c.h.b16 %v985
        %v2332 = vunpack.c.l.b16 %v986
        %v2333 = vunpack.c.h.b16 %v986
        %v2334 = vunpack.c.l.b16 %v987
        %v2335 = vunpack.c.h.b16 %v987
        %v2336 = vunpack.c.l.b16 %v988
        %v2337 = vunpack.c.h.b16 %v988
        %v2338 = vunpack.c.l.b16 %v989
        %v2339 = vunpack.c.h.b16 %v989
        %v2340 = vunpack.c.l.b16 %v990
        %v2341 = vunpack.c.h.b16 %v990
        %v2342 = vunpack.c.l.b16 %v991
        %v2343 = vunpack.c.h.b16 %v991
        %v2344 = vunpack.c.l.b16 %v992
        %v2345 = vunpack.c.h.b16 %v992
        %v2346 = vunpack.c.l.b16 %v993
        %v2347 = vunpack.c.h.b16 %v993
        %v2348 = vunpack.c.l.b16 %v994
        %v2349 = vunpack.c.h.b16 %v994
        %v2350 = vunpack.c.l.b16 %v995
        %v2351 = vunpack.c.h.b16 %v995
        %v2352 = vunpack.c.l.b16 %v996
        %v2353 = vunpack.c.h.b16 %v996
        %v2354 = vunpack.c.l.b16 %v997
        %v2355 = vunpack.c.h.b16 %v997
        %v2356 = vunpack.c.l.b16 %v998
        %v2357 = vunpack.c.h.b16 %v998
        %v2358 = vunpack.c.l.b16 %v999
        %v2359 = vunpack.c.h.b16 %v999
        %v2360 = vunpack.c.l.b16 %v1000
        %v2361 = vunpack.c.h.b16 %v1000
        %v2362 = vunpack.c.l.b16 %v1001
        %v2363 = vunpack.c.h.b16 %v1001
        %v2364 = vunpack.c.l.b16 %v1002
        %v2365 = vunpack.c.h.b16 %v1002
        %v2366 = vunpack.c.l.b16 %v1003
        %v2367 = vunpack.c.h.b16 %v1003
        %v2368 = vunpack.c.l.b16 %v1004
        %v2369 = vunpack.c.h.b16 %v1004
        %v2370 = vunpack.c.l.b16 %v1005
        %v2371 = vunpack.c.h.b16 %v1005
        %v2372 = vunpack.c.l.b16 %v1006
        %v2373 = vunpack.c.h.b16 %v1006
        %v2374 = vunpack.c.l.b16 %v1007
        %v2375 = vunpack.c.h.b16 %v1007
        %v2376 = vunpack.c.l.b16 %v1008
        %v2377 = vunpack.c.h.b16 %v1008
        %v2378 = vunpack.c.l.b16 %v1009
        %v2379 = vunpack.c.h.b16 %v1009
        %v2380 = vunpack.c.l.b16 %v1010
        %v2381 = vunpack.c.h.b16 %v1010
        %v2382 = vunpack.c.l.b16 %v1011
        %v2383 = vunpack.c.h.b16 %v1011
        %v2384 = vunpack.c.l.b16 %v1012
        %v2385 = vunpack.c.h.b16 %v1012
        %v2386 = vunpack.c.l.b16 %v1013
        %v2387 = vunpack.c.h.b16 %v1013
        %v2388 = vunpack.c.l.b16 %v1014
        %v2389 = vunpack.c.h.b16 %v1014
        %v2390 = vunpack.c.l.b16 %v1015
        %v2391 = vunpack.c.h.b16 %v1015
        %v2392 = vunpack.c.l.b16 %v1016
        %v2393 = vunpack.c.h.b16 %v1016
        %v2394 = vunpack.c.l.b16 %v1017
        %v2395 = vunpack.c.h.b16 %v1017
        %v2396 = vunpack.c.l.b16 %v1018
        %v2397 = vunpack.c.h.b16 %v1018
        %v2398 = vunpack.c.l.b16 %v1019
        %v2399 = vunpack.c.h.b16 %v1019
        %v2400 = vunpack.c.l.b16 %v1020
        %v2401 = vunpack.c.h.b16 %v1020
        %v2402 = vunpack.c.l.b16 %v1021
        %v2403 = vunpack.c.h.b16 %v1021
        %v2404 = vunpack.c.l.b16 %v1022
        %v2405 = vunpack.c.h.b16 %v1022
        %v2406 = vunpack.c.l.b16 %v1023
        %v2407 = vunpack.c.h.b16 %v1023
        %v2408 = vunpack.c.l.b16 %v1024
        %v2409 = vunpack.c.h.b16 %v1024
        %v2410 = vunpack.c.l.b16 %v1025
        %v2411 = vunpack.c.h.b16 %v1025
        %v2412 = vunpack.c.l.b16 %v1026
        %v2413 = vunpack.c.h.b16 %v1026
        %v2414 = vunpack.c.l.b16 %v1027
        %v2415 = vunpack.c.h.b16 %v1027
        %v2416 = vunpack.c.l.b16 %v1028
        %v2417 = vunpack.c.h.b16 %v1028
        %v2418 = vunpack.c.l.b16 %v1029
        %v2419 = vunpack.c.h.b16 %v1029
        %v2420 = vunpack.c.l.b16 %v1030
        %v2421 = vunpack.c.h.b16 %v1030
        %v2422 = vunpack.c.l.b16 %v1031
        %v2423 = vunpack.c.h.b16 %v1031
        %v2424 = vunpack.c.l.b16 %v1032
        %v2425 = vunpack.c.h.b16 %v1032
        %v2426 = vunpack.c.l.b16 %v1033
        %v2427 = vunpack.c.h.b16 %v1033
        %v2428 = vunpack.c.l.b16 %v1034
        %v2429 = vunpack.c.h.b16 %v1034
        %v2430 = vunpack.c.l.b16 %v1035
        %v2431 = vunpack.c.h.b16 %v1035
        %v2432 = vunpack.c.l.b16 %v1036
        %v2433 = vunpack.c.h.b16 %v1036
        %v2434 = vunpack.c.l.b16 %v1037
        %v2435 = vunpack.c.h.b16 %v1037
        %v2436 = vunpack.c.l.b16 %v1038
        %v2437 = vunpack.c.h.b16 %v1038
        %v2438 = vunpack.c.l.b16 %v1039
        %v2439 = vunpack.c.h.b16 %v1039
        %v2440 = vunpack.c.l.b16 %v1040
        %v2441 = vunpack.c.h.b16 %v1040
        %v2442 = vunpack.c.l.b16 %v1041
        %v2443 = vunpack.c.h.b16 %v1041
        %v2444 = vunpack.c.l.b16 %v1042
        %v2445 = vunpack.c.h.b16 %v1042
        %v2446 = vunpack.c.l.b16 %v1043
        %v2447 = vunpack.c.h.b16 %v1043
        %v2448 = vunpack.c.l.b16 %v1044
        %v2449 = vunpack.c.h.b16 %v1044
        %v2450 = vunpack.c.l.b16 %v1045
        %v2451 = vunpack.c.h.b16 %v1045
        %v2452 = vunpack.c.l.b16 %v1046
        %v2453 = vunpack.c.h.b16 %v1046
        %v2454 = vunpack.c.l.b16 %v1047
        %v2455 = vunpack.c.h.b16 %v1047
        %v2456 = vunpack.c.l.b16 %v1048
        %v2457 = vunpack.c.h.b16 %v1048
        %v2458 = vunpack.c.l.b16 %v1049
        %v2459 = vunpack.c.h.b16 %v1049
        %v2460 = vunpack.c.l.b16 %v1050
        %v2461 = vunpack.c.h.b16 %v1050
        %v2462 = vunpack.c.l.b16 %v1051
        %v2463 = vunpack.c.h.b16 %v1051
        %v2464 = vunpack.c.l.b16 %v1052
        %v2465 = vunpack.c.h.b16 %v1052
        %v2466 = vunpack.c.l.b16 %v1053
        %v2467 = vunpack.c.h.b16 %v1053
        %v2468 = vunpack.c.l.b16 %v1054
        %v2469 = vunpack.c.h.b16 %v1054
        %v2470 = vunpack.c.l.b16 %v1055
        %v2471 = vunpack.c.h.b16 %v1055
        %v2472 = vunpack.c.l.b16 %v1056
        %v2473 = vunpack.c.h.b16 %v1056
        %v2474 = vunpack.c.l.b16 %v1057
        %v2475 = vunpack.c.h.b16 %v1057
        %v2476 = vunpack.c.l.b16 %v1058
        %v2477 = vunpack.c.h.b16 %v1058
        %v2478 = vunpack.c.l.b16 %v1059
        %v2479 = vunpack.c.h.b16 %v1059
        %v2480 = vunpack.c.l.b16 %v1060
        %v2481 = vunpack.c.h.b16 %v1060
        %v2482 = vunpack.c.l.b16 %v1061
        %v2483 = vunpack.c.h.b16 %v1061
        %v2484 = vunpack.c.l.b16 %v1062
        %v2485 = vunpack.c.h.b16 %v1062
        %v2486 = vunpack.c.l.b16 %v1063
        %v2487 = vunpack.c.h.b16 %v1063
        %v2488 = vunpack.c.l.b16 %v1064
        %v2489 = vunpack.c.h.b16 %v1064
        %v2490 = vunpack.c.l.b16 %v1065
        %v2491 = vunpack.c.h.b16 %v1065
        %v2492 = vunpack.c.l.b16 %v1066
        %v2493 = vunpack.c.h.b16 %v1066
        %v2494 = vunpack.c.l.b16 %v1067
        %v2495 = vunpack.c.h.b16 %v1067
        %v2496 = vunpack.c.l.b16 %v1068
        %v2497 = vunpack.c.h.b16 %v1068
        %v2498 = vunpack.c.l.b16 %v1069
        %v2499 = vunpack.c.h.b16 %v1069
        %v2500 = vunpack.c.l.b16 %v1070
        %v2501 = vunpack.c.h.b16 %v1070
        %v2502 = vunpack.c.l.b16 %v1071
        %v2503 = vunpack.c.h.b16 %v1071
        %v2504 = vunpack.c.l.b16 %v1072
        %v2505 = vunpack.c.h.b16 %v1072
        %v2506 = vunpack.c.l.b16 %v1073
        %v2507 = vunpack.c.h.b16 %v1073
        %v2508 = vunpack.c.l.b16 %v1074
        %v2509 = vunpack.c.h.b16 %v1074
        %v2510 = vunpack.c.l.b16 %v1075
        %v2511 = vunpack.c.h.b16 %v1075
        %v2512 = vunpack.c.l.b16 %v1076
        %v2513 = vunpack.c.h.b16 %v1076
        %v2514 = vunpack.c.l.b16 %v1077
        %v2515 = vunpack.c.h.b16 %v1077
        %v2516 = vunpack.c.l.b16 %v1078
        %v2517 = vunpack.c.h.b16 %v1078
        %v2518 = vunpack.c.l.b16 %v1079
        %v2519 = vunpack.c.h.b16 %v1079
        %v2520 = vunpack.c.l.b16 %v1080
        %v2521 = vunpack.c.h.b16 %v1080
        %v2522 = vunpack.c.l.b16 %v1081
        %v2523 = vunpack.c.h.b16 %v1081
        %v2524 = vunpack.c.l.b16 %v1082
        %v2525 = vunpack.c.h.b16 %v1082
        %v2526 = vunpack.c.l.b16 %v1083
        %v2527 = vunpack.c.h.b16 %v1083
        %v2528 = vunpack.c.l.b16 %v1084
        %v2529 = vunpack.c.h.b16 %v1084
        %v2530 = vunpack.c.l.b16 %v1085
        %v2531 = vunpack.c.h.b16 %v1085
        %v2532 = vunpack.c.l.b16 %v1086
        %v2533 = vunpack.c.h.b16 %v1086
        %v2534 = vunpack.c.l.b16 %v1087
        %v2535 = vunpack.c.h.b16 %v1087
        %v2536 = vunpack.c.l.b16 %v1088
        %v2537 = vunpack.c.h.b16 %v1088
        %v2538 = vunpack.c.l.b16 %v1089
        %v2539 = vunpack.c.h.b16 %v1089
        %v2540 = vunpack.c.l.b16 %v1090
        %v2541 = vunpack.c.h.b16 %v1090
        %v2542 = vunpack.c.l.b16 %v1091
        %v2543 = vunpack.c.h.b16 %v1091
        %v2544 = vunpack.c.l.b16 %v1092
        %v2545 = vunpack.c.h.b16 %v1092
        %v2546 = vunpack.c.l.b16 %v1093
        %v2547 = vunpack.c.h.b16 %v1093
        %v2548 = vunpack.c.l.b16 %v1094
        %v2549 = vunpack.c.h.b16 %v1094
        %v2550 = vunpack.c.l.b16 %v1095
        %v2551 = vunpack.c.h.b16 %v1095
        %v2552 = vunpack.c.l.b16 %v1096
        %v2553 = vunpack.c.h.b16 %v1096
        %v2554 = vunpack.c.l.b16 %v1097
        %v2555 = vunpack.c.h.b16 %v1097
        %v2556 = vunpack.c.l.b16 %v1098
        %v2557 = vunpack.c.h.b16 %v1098
        %v2558 = vunpack.c.l.b16 %v1099
        %v2559 = vunpack.c.h.b16 %v1099
        %v2560 = vunpack.c.l.b16 %v1100
        %v2561 = vunpack.c.h.b16 %v1100
        %v2562 = vunpack.c.l.b16 %v1101
        %v2563 = vunpack.c.h.b16 %v1101
        %v2564 = vunpack.c.l.b16 %v1102
        %v2565 = vunpack.c.h.b16 %v1102
        %v2566 = vunpack.c.l.b16 %v1103
        %v2567 = vunpack.c.h.b16 %v1103
        %v2568 = vunpack.c.l.b16 %v1104
        %v2569 = vunpack.c.h.b16 %v1104
        %v2570 = vunpack.c.l.b16 %v1105
        %v2571 = vunpack.c.h.b16 %v1105
        %v2572 = vunpack.c.l.b16 %v1106
        %v2573 = vunpack.c.h.b16 %v1106
        %v2574 = vunpack.c.l.b16 %v1107
        %v2575 = vunpack.c.h.b16 %v1107
        %v2576 = vunpack.c.l.b16 %v1108
        %v2577 = vunpack.c.h.b16 %v1108
        %v2578 = vunpack.c.l.b16 %v1109
        %v2579 = vunpack.c.h.b16 %v1109
        %v2580 = vunpack.c.l.b16 %v1110
        %v2581 = vunpack.c.h.b16 %v1110
        %v2582 = vunpack.c.l.b16 %v1111
        %v2583 = vunpack.c.h.b16 %v1111
        %v2584 = vunpack.c.l.b16 %v1112
        %v2585 = vunpack.c.h.b16 %v1112
        %v2586 = vunpack.c.l.b16 %v1113
        %v2587 = vunpack.c.h.b16 %v1113
        %v2588 = vunpack.c.l.b16 %v1114
        %v2589 = vunpack.c.h.b16 %v1114
        %v2590 = vunpack.c.l.b16 %v1115
        %v2591 = vunpack.c.h.b16 %v1115
        %v2592 = vunpack.c.l.b16 %v1116
        %v2593 = vunpack.c.h.b16 %v1116
        %v2594 = vunpack.c.l.b16 %v1117
        %v2595 = vunpack.c.h.b16 %v1117
        %v2596 = vunpack.c.l.b16 %v1118
        %v2597 = vunpack.c.h.b16 %v1118
        %v2598 = vunpack.c.l.b16 %v1119
        %v2599 = vunpack.c.h.b16 %v1119
        %v2600 = vunpack.c.l.b16 %v1120
        %v2601 = vunpack.c.h.b16 %v1120
        %v2602 = vunpack.c.l.b16 %v1121
        %v2603 = vunpack.c.h.b16 %v1121
        %v2604 = vunpack.c.l.b16 %v1122
        %v2605 = vunpack.c.h.b16 %v1122
        %v2606 = vunpack.c.l.b16 %v1123
        %v2607 = vunpack.c.h.b16 %v1123
        %v2608 = vunpack.c.l.b16 %v1124
        %v2609 = vunpack.c.h.b16 %v1124
        %v2610 = vunpack.c.l.b16 %v1125
        %v2611 = vunpack.c.h.b16 %v1125
        %v2612 = vunpack.c.l.b16 %v1126
        %v2613 = vunpack.c.h.b16 %v1126
        %v2614 = vunpack.c.l.b16 %v1127
        %v2615 = vunpack.c.h.b16 %v1127
        %v2616 = vunpack.c.l.b16 %v1128
        %v2617 = vunpack.c.h.b16 %v1128
        %v2618 = vunpack.c.l.b16 %v1129
        %v2619 = vunpack.c.h.b16 %v1129
        %v2620 = vunpack.c.l.b16 %v1130
        %v2621 = vunpack.c.h.b16 %v1130
        %v2622 = vunpack.c.l.b16 %v1131
        %v2623 = vunpack.c.h.b16 %v1131
        %v2624 = vunpack.c.l.b16 %v1132
        %v2625 = vunpack.c.h.b16 %v1132
        %v2626 = vunpack.c.l.b16 %v1133
        %v2627 = vunpack.c.h.b16 %v1133
        %v2628 = vunpack.c.l.b16 %v1134
        %v2629 = vunpack.c.h.b16 %v1134
        %v2630 = vunpack.c.l.b16 %v1135
        %v2631 = vunpack.c.h.b16 %v1135
        %v2632 = vunpack.c.l.b16 %v1136
        %v2633 = vunpack.c.h.b16 %v1136
        %v2634 = vunpack.c.l.b16 %v1137
        %v2635 = vunpack.c.h.b16 %v1137
        %v2636 = vunpack.c.l.b16 %v1138
        %v2637 = vunpack.c.h.b16 %v1138
        %v2638 = vunpack.c.l.b16 %v1139
        %v2639 = vunpack.c.h.b16 %v1139
        %v2640 = vunpack.c.l.b16 %v1140
        %v2641 = vunpack.c.h.b16 %v1140
        %v2642 = vunpack.c.l.b16 %v1141
        %v2643 = vunpack.c.h.b16 %v1141
        %v2644 = vunpack.c.l.b16 %v1142
        %v2645 = vunpack.c.h.b16 %v1142
        %v2646 = vunpack.c.l.b16 %v1143
        %v2647 = vunpack.c.h.b16 %v1143
        %v2648 = vunpack.c.l.b16 %v1144
        %v2649 = vunpack.c.h.b16 %v1144
        %v2650 = vunpack.c.l.b16 %v1145
        %v2651 = vunpack.c.h.b16 %v1145
        %v2652 = vunpack.c.l.b16 %v1146
        %v2653 = vunpack.c.h.b16 %v1146
        %v2654 = vunpack.c.l.b16 %v1147
        %v2655 = vunpack.c.h.b16 %v1147
        %v2656 = vunpack.c.l.b16 %v1148
        %v2657 = vunpack.c.h.b16 %v1148
        %v2658 = vunpack.c.l.b16 %v1149
        %v2659 = vunpack.c.h.b16 %v1149
        %v2660 = vunpack.c.l.b16 %v1150
        %v2661 = vunpack.c.h.b16 %v1150
        %v2662 = vunpack.c.l.b16 %v1151
        %v2663 = vunpack.c.h.b16 %v1151
        %v2664 = vunpack.c.l.b16 %v1152
        %v2665 = vunpack.c.h.b16 %v1152
        %v2666 = vunpack.c.l.b16 %v1153
        %v2667 = vunpack.c.h.b16 %v1153
        %v2668 = vunpack.c.l.b16 %v1154
        %v2669 = vunpack.c.h.b16 %v1154
        %v2670 = vunpack.c.l.b16 %v1155
        %v2671 = vunpack.c.h.b16 %v1155
        %v2672 = vunpack.c.l.b16 %v1156
        %v2673 = vunpack.c.h.b16 %v1156
        %v2674 = vunpack.c.l.b16 %v1157
        %v2675 = vunpack.c.h.b16 %v1157
        %v2676 = vunpack.c.l.b16 %v1158
        %v2677 = vunpack.c.h.b16 %v1158
        %v2678 = vunpack.c.l.b16 %v1159
        %v2679 = vunpack.c.h.b16 %v1159
        %v2680 = vunpack.c.l.b16 %v1160
        %v2681 = vunpack.c.h.b16 %v1160
        %v2682 = vunpack.c.l.b16 %v1161
        %v2683 = vunpack.c.h.b16 %v1161
        %v2684 = vunpack.c.l.b16 %v1162
        %v2685 = vunpack.c.h.b16 %v1162
        %v2686 = vunpack.c.l.b16 %v1163
        %v2687 = vunpack.c.h.b16 %v1163
        %v2688 = vunpack.c.l.b16 %v1164
        %v2689 = vunpack.c.h.b16 %v1164
        %v2690 = vunpack.c.l.b16 %v1165
        %v2691 = vunpack.c.h.b16 %v1165
        %v2692 = vunpack.c.l.b16 %v1166
        %v2693 = vunpack.c.h.b16 %v1166
        %v2694 = vunpack.c.l.b16 %v1167
        %v2695 = vunpack.c.h.b16 %v1167
        %v2696 = vunpack.c.l.b16 %v1168
        %v2697 = vunpack.c.h.b16 %v1168
        %v2698 = vunpack.c.l.b16 %v1169
        %v2699 = vunpack.c.h.b16 %v1169
        %v2700 = vunpack.c.l.b16 %v1170
        %v2701 = vunpack.c.h.b16 %v1170
        %v2702 = vunpack.c.l.b16 %v1171
        %v2703 = vunpack.c.h.b16 %v1171
        %v2704 = vunpack.c.l.b16 %v1172
        %v2705 = vunpack.c.h.b16 %v1172
        %v2706 = vunpack.c.l.b16 %v1173
        %v2707 = vunpack.c.h.b16 %v1173
        %v2708 = vunpack.c.l.b16 %v1174
        %v2709 = vunpack.c.h.b16 %v1174
        %v2710 = vunpack.c.l.b16 %v1175
        %v2711 = vunpack.c.h.b16 %v1175
        %v2712 = vunpack.c.l.b16 %v1176
        %v2713 = vunpack.c.h.b16 %v1176
        %v2714 = vunpack.c.l.b16 %v1177
        %v2715 = vunpack.c.h.b16 %v1177
        %v2716 = vunpack.c.l.b16 %v1178
        %v2717 = vunpack.c.h.b16 %v1178
        %v2718 = vunpack.c.l.b16 %v1179
        %v2719 = vunpack.c.h.b16 %v1179
        %v2720 = vunpack.c.l.b16 %v1180
        %v2721 = vunpack.c.h.b16 %v1180
        %v2722 = vunpack.c.l.b16 %v1181
        %v2723 = vunpack.c.h.b16 %v1181
        %v2724 = vunpack.c.l.b16 %v1182
        %v2725 = vunpack.c.h.b16 %v1182
        %v2726 = vunpack.c.l.b16 %v1183
        %v2727 = vunpack.c.h.b16 %v1183
        %v2728 = vunpack.c.l.b16 %v1184
        %v2729 = vunpack.c.h.b16 %v1184
        %v2730 = vunpack.c.l.b16 %v1185
        %v2731 = vunpack.c.h.b16 %v1185
        %v2732 = vunpack.c.l.b16 %v1186
        %v2733 = vunpack.c.h.b16 %v1186
        %v2734 = vunpack.c.l.b16 %v1187
        %v2735 = vunpack.c.h.b16 %v1187
        %v2736 = vunpack.c.l.b16 %v1188
        %v2737 = vunpack.c.h.b16 %v1188
        %v2738 = vunpack.c.l.b16 %v1189
        %v2739 = vunpack.c.h.b16 %v1189
        %v2740 = vunpack.c.l.b16 %v1190
        %v2741 = vunpack.c.h.b16 %v1190
        %v2742 = vunpack.c.l.b16 %v1191
        %v2743 = vunpack.c.h.b16 %v1191
        %v2744 = vunpack.c.l.b16 %v1192
        %v2745 = vunpack.c.h.b16 %v1192
        %v2746 = vunpack.c.l.b16 %v1193
        %v2747 = vunpack.c.h.b16 %v1193
        %v2748 = vunpack.c.l.b16 %v1194
        %v2749 = vunpack.c.h.b16 %v1194
        %v2750 = vunpack.c.l.b16 %v1195
        %v2751 = vunpack.c.h.b16 %v1195
        %v2752 = vunpack.c.l.b16 %v1196
        %v2753 = vunpack.c.h.b16 %v1196
        %v2754 = vunpack.c.l.b16 %v1197
        %v2755 = vunpack.c.h.b16 %v1197
        %v2756 = vunpack.c.l.b16 %v1198
        %v2757 = vunpack.c.h.b16 %v1198
        %v2758 = vunpack.c.l.b16 %v1199
        %v2759 = vunpack.c.h.b16 %v1199
        %v2760 = vunpack.c.l.b16 %v1200
        %v2761 = vunpack.c.h.b16 %v1200
        %v2762 = vunpack.c.l.b16 %v1201
        %v2763 = vunpack.c.h.b16 %v1201
        %v2764 = vunpack.c.l.b16 %v1202
        %v2765 = vunpack.c.h.b16 %v1202
        %v2766 = vunpack.c.l.b16 %v1203
        %v2767 = vunpack.c.h.b16 %v1203
        %v2768 = vunpack.c.l.b16 %v1204
        %v2769 = vunpack.c.h.b16 %v1204
        %v2770 = vunpack.c.l.b16 %v1205
        %v2771 = vunpack.c.h.b16 %v1205
        %v2772 = vunpack.c.l.b16 %v1206
        %v2773 = vunpack.c.h.b16 %v1206
        %v2774 = vunpack.c.l.b16 %v1207
        %v2775 = vunpack.c.h.b16 %v1207
        %v2776 = vunpack.c.l.b16 %v1208
        %v2777 = vunpack.c.h.b16 %v1208
        %v2778 = vunpack.c.l.b16 %v1209
        %v2779 = vunpack.c.h.b16 %v1209
        %v2780 = vunpack.c.l.b16 %v1210
        %v2781 = vunpack.c.h.b16 %v1210
        %v2782 = vunpack.c.l.b16 %v1211
        %v2783 = vunpack.c.h.b16 %v1211
        %v2784 = vunpack.c.l.b16 %v1212
        %v2785 = vunpack.c.h.b16 %v1212
        %v2786 = vunpack.c.l.b16 %v1213
        %v2787 = vunpack.c.h.b16 %v1213
        %v2788 = vunpack.c.l.b16 %v1214
        %v2789 = vunpack.c.h.b16 %v1214
        %v2790 = vunpack.c.l.b16 %v1215
        %v2791 = vunpack.c.h.b16 %v1215
        %v2792 = vunpack.c.l.b16 %v1216
        %v2793 = vunpack.c.h.b16 %v1216
        %v2794 = vunpack.c.l.b16 %v1217
        %v2795 = vunpack.c.h.b16 %v1217
        %v2796 = vpack.c.b16 %v1780, %v1772
        %v2797 = vpack.c.b16 %v1781, %v1773
        %v2798 = vpack.c.b16 %v1782, %v1774
        %v2799 = vpack.c.b16 %v1783, %v1775
        %v2800 = vpack.c.b16 %v1784, %v1776
        %v2801 = vpack.c.b16 %v1785, %v1777
        %v2802 = vpack.c.b16 %v1786, %v1778
        %v2803 = vpack.c.b16 %v1787, %v1779
        %v2804 = vpack.c.b16 %v1796, %v1788
        %v2805 = vpack.c.b16 %v1797, %v1789
        %v2806 = vpack.c.b16 %v1798, %v1790
        %v2807 = vpack.c.b16 %v1799, %v1791
        %v2808 = vpack.c.b16 %v1800, %v1792
        %v2809 = vpack.c.b16 %v1801, %v1793
        %v2810 = vpack.c.b16 %v1802, %v1794
        %v2811 = vpack.c.b16 %v1803, %v1795
        %v2812 = vpack.c.b16 %v1812, %v1804
        %v2813 = vpack.c.b16 %v1813, %v1805
        %v2814 = vpack.c.b16 %v1814, %v1806
        %v2815 = vpack.c.b16 %v1815, %v1807
        %v2816 = vpack.c.b16 %v1816, %v1808
        %v2817 = vpack.c.b16 %v1817, %v1809
        %v2818 = vpack.c.b16 %v1818, %v1810
        %v2819 = vpack.c.b16 %v1819, %v1811
        %v2820 = vpack.c.b16 %v1828, %v1820
        %v2821 = vpack.c.b16 %v1829, %v1821
        %v2822 = vpack.c.b16 %v1830, %v1822
        %v2823 = vpack.c.b16 %v1831, %v1823
        %v2824 = vpack.c.b16 %v1832, %v1824
        %v2825 = vpack.c.b16 %v1833, %v1825
        %v2826 = vpack.c.b16 %v1834, %v1826
        %v2827 = vpack.c.b16 %v1835, %v1827
        %v2828 = vpack.c.b16 %v1844, %v1836
        %v2829 = vpack.c.b16 %v1845, %v1837
        %v2830 = vpack.c.b16 %v1846, %v1838
        %v2831 = vpack.c.b16 %v1847, %v1839
        %v2832 = vpack.c.b16 %v1848, %v1840
        %v2833 = vpack.c.b16 %v1849, %v1841
        %v2834 = vpack.c.b16 %v1850, %v1842
        %v2835 = vpack.c.b16 %v1851, %v1843
        %v2836 = vpack.c.b16 %v1860, %v1852
        %v2837 = vpack.c.b16 %v1861, %v1853
        %v2838 = vpack.c.b16 %v1862, %v1854
        %v2839 = vpack.c.b16 %v1863, %v1855
        %v2840 = vpack.c.b16 %v1864, %v1856
        %v2841 = vpack.c.b16 %v1865, %v1857
        %v2842 = vpack.c.b16 %v1866, %v1858
        %v2843 = vpack.c.b16 %v1867, %v1859
        %v2844 = vpack.c.b16 %v1876, %v1868
        %v2845 = vpack.c.b16 %v1877, %v1869
        %v2846 = vpack.c.b16 %v1878, %v1870
        %v2847 = vpack.c.b16 %v1879, %v1871
        %v2848 = vpack.c.b16 %v1880, %v1872
        %v2849 = vpack.c.b16 %v1881, %v1873
        %v2850 = vpack.c.b16 %v1882, %v1874
        %v2851 = vpack.c.b16 %v1883, %v1875
        %v2852 = vpack.c.b16 %v1892, %v1884
        %v2853 = vpack.c.b16 %v1893, %v1885
        %v2854 = vpack.c.b16 %v1894, %v1886
        %v2855 = vpack.c.b16 %v1895, %v1887
        %v2856 = vpack.c.b16 %v1896, %v1888
        %v2857 = vpack.c.b16 %v1897, %v1889
        %v2858 = vpack.c.b16 %v1898, %v1890
        %v2859 = vpack.c.b16 %v1899, %v1891
        %v2860 = vpack.c.b16 %v1908, %v1900
        %v2861 = vpack.c.b16 %v1909, %v1901
        %v2862 = vpack.c.b16 %v1910, %v1902
        %v2863 = vpack.c.b16 %v1911, %v1903
        %v2864 = vpack.c.b16 %v1912, %v1904
        %v2865 = vpack.c.b16 %v1913, %v1905
        %v2866 = vpack.c.b16 %v1914, %v1906
        %v2867 = vpack.c.b16 %v1915, %v1907
        %v2868 = vpack.c.b16 %v1924, %v1916
        %v2869 = vpack.c.b16 %v1925, %v1917
        %v2870 = vpack.c.b16 %v1926, %v1918
        %v2871 = vpack.c.b16 %v1927, %v1919
        %v2872 = vpack.c.b16 %v1928, %v1920
        %v2873 = vpack.c.b16 %v1929, %v1921
        %v2874 = vpack.c.b16 %v1930, %v1922
        %v2875 = vpack.c.b16 %v1931, %v1923
        %v2876 = vpack.c.b16 %v1940, %v1932
        %v2877 = vpack.c.b16 %v1941, %v1933
        %v2878 = vpack.c.b16 %v1942, %v1934
        %v2879 = vpack.c.b16 %v1943, %v1935
        %v2880 = vpack.c.b16 %v1944, %v1936
        %v2881 = vpack.c.b16 %v1945, %v1937
        %v2882 = vpack.c.b16 %v1946, %v1938
        %v2883 = vpack.c.b16 %v1947, %v1939
        %v2884 = vpack.c.b16 %v1956, %v1948
        %v2885 = vpack.c.b16 %v1957, %v1949
        %v2886 = vpack.c.b16 %v1958, %v1950
        %v2887 = vpack.c.b16 %v1959, %v1951
        %v2888 = vpack.c.b16 %v1960, %v1952
        %v2889 = vpack.c.b16 %v1961, %v1953
        %v2890 = vpack.c.b16 %v1962, %v1954
        %v2891 = vpack.c.b16 %v1963, %v1955
        %v2892 = vpack.c.b16 %v1972, %v1964
        %v2893 = vpack.c.b16 %v1973, %v1965
        %v2894 = vpack.c.b16 %v1974, %v1966
        %v2895 = vpack.c.b16 %v1975, %v1967
        %v2896 = vpack.c.b16 %v1976, %v1968
        %v2897 = vpack.c.b16 %v1977, %v1969
        %v2898 = vpack.c.b16 %v1978, %v1970
        %v2899 = vpack.c.b16 %v1979, %v1971
        %v2900 = vpack.c.b16 %v1988, %v1980
        %v2901 = vpack.c.b16 %v1989, %v1981
        %v2902 = vpack.c.b16 %v1990, %v1982
        %v2903 = vpack.c.b16 %v1991, %v1983
        %v2904 = vpack.c.b16 %v1992, %v1984
        %v2905 = vpack.c.b16 %v1993, %v1985
        %v2906 = vpack.c.b16 %v1994, %v1986
        %v2907 = vpack.c.b16 %v1995, %v1987
        %v2908 = vpack.c.b16 %v2004, %v1996
        %v2909 = vpack.c.b16 %v2005, %v1997
        %v2910 = vpack.c.b16 %v2006, %v1998
        %v2911 = vpack.c.b16 %v2007, %v1999
        %v2912 = vpack.c.b16 %v2008, %v2000
        %v2913 = vpack.c.b16 %v2009, %v2001
        %v2914 = vpack.c.b16 %v2010, %v2002
        %v2915 = vpack.c.b16 %v2011, %v2003
        %v2916 = vpack.c.b16 %v2020, %v2012
        %v2917 = vpack.c.b16 %v2021, %v2013
        %v2918 = vpack.c.b16 %v2022, %v2014
        %v2919 = vpack.c.b16 %v2023, %v2015
        %v2920 = vpack.c.b16 %v2024, %v2016
        %v2921 = vpack.c.b16 %v2025, %v2017
        %v2922 = vpack.c.b16 %v2026, %v2018
        %v2923 = vpack.c.b16 %v2027, %v2019
        %v2924 = vpack.c.b16 %v2036, %v2028
        %v2925 = vpack.c.b16 %v2037, %v2029
        %v2926 = vpack.c.b16 %v2038, %v2030
        %v2927 = vpack.c.b16 %v2039, %v2031
        %v2928 = vpack.c.b16 %v2040, %v2032
        %v2929 = vpack.c.b16 %v2041, %v2033
        %v2930 = vpack.c.b16 %v2042, %v2034
        %v2931 = vpack.c.b16 %v2043, %v2035
        %v2932 = vpack.c.b16 %v2052, %v2044
        %v2933 = vpack.c.b16 %v2053, %v2045
        %v2934 = vpack.c.b16 %v2054, %v2046
        %v2935 = vpack.c.b16 %v2055, %v2047
        %v2936 = vpack.c.b16 %v2056, %v2048
        %v2937 = vpack.c.b16 %v2057, %v2049
        %v2938 = vpack.c.b16 %v2058, %v2050
        %v2939 = vpack.c.b16 %v2059, %v2051
        %v2940 = vpack.c.b16 %v2068, %v2060
        %v2941 = vpack.c.b16 %v2069, %v2061
        %v2942 = vpack.c.b16 %v2070, %v2062
        %v2943 = vpack.c.b16 %v2071, %v2063
        %v2944 = vpack.c.b16 %v2072, %v2064
        %v2945 = vpack.c.b16 %v2073, %v2065
        %v2946 = vpack.c.b16 %v2074, %v2066
        %v2947 = vpack.c.b16 %v2075, %v2067
        %v2948 = vpack.c.b16 %v2084, %v2076
        %v2949 = vpack.c.b16 %v2085, %v2077
        %v2950 = vpack.c.b16 %v2086, %v2078
        %v2951 = vpack.c.b16 %v2087, %v2079
        %v2952 = vpack.c.b16 %v2088, %v2080
        %v2953 = vpack.c.b16 %v2089, %v2081
        %v2954 = vpack.c.b16 %v2090, %v2082
        %v2955 = vpack.c.b16 %v2091, %v2083
        %v2956 = vpack.c.b16 %v2100, %v2092
        %v2957 = vpack.c.b16 %v2101, %v2093
        %v2958 = vpack.c.b16 %v2102, %v2094
        %v2959 = vpack.c.b16 %v2103, %v2095
        %v2960 = vpack.c.b16 %v2104, %v2096
        %v2961 = vpack.c.b16 %v2105, %v2097
        %v2962 = vpack.c.b16 %v2106, %v2098
        %v2963 = vpack.c.b16 %v2107, %v2099
        %v2964 = vpack.c.b16 %v2116, %v2108
        %v2965 = vpack.c.b16 %v2117, %v2109
        %v2966 = vpack.c.b16 %v2118, %v2110
        %v2967 = vpack.c.b16 %v2119, %v2111
        %v2968 = vpack.c.b16 %v2120, %v2112
        %v2969 = vpack.c.b16 %v2121, %v2113
        %v2970 = vpack.c.b16 %v2122, %v2114
        %v2971 = vpack.c.b16 %v2123, %v2115
        %v2972 = vpack.c.b16 %v2132, %v2124
        %v2973 = vpack.c.b16 %v2133, %v2125
        %v2974 = vpack.c.b16 %v2134, %v2126
        %v2975 = vpack.c.b16 %v2135, %v2127
        %v2976 = vpack.c.b16 %v2136, %v2128
        %v2977 = vpack.c.b16 %v2137, %v2129
        %v2978 = vpack.c.b16 %v2138, %v2130
        %v2979 = vpack.c.b16 %v2139, %v2131
        %v2980 = vpack.c.b16 %v2148, %v2140
        %v2981 = vpack.c.b16 %v2149, %v2141
        %v2982 = vpack.c.b16 %v2150, %v2142
        %v2983 = vpack.c.b16 %v2151, %v2143
        %v2984 = vpack.c.b16 %v2152, %v2144
        %v2985 = vpack.c.b16 %v2153, %v2145
        %v2986 = vpack.c.b16 %v2154, %v2146
        %v2987 = vpack.c.b16 %v2155, %v2147
        %v2988 = vpack.c.b16 %v2164, %v2156
        %v2989 = vpack.c.b16 %v2165, %v2157
        %v2990 = vpack.c.b16 %v2166, %v2158
        %v2991 = vpack.c.b16 %v2167, %v2159
        %v2992 = vpack.c.b16 %v2168, %v2160
        %v2993 = vpack.c.b16 %v2169, %v2161
        %v2994 = vpack.c.b16 %v2170, %v2162
        %v2995 = vpack.c.b16 %v2171, %v2163
        %v2996 = vpack.c.b16 %v2180, %v2172
        %v2997 = vpack.c.b16 %v2181, %v2173
        %v2998 = vpack.c.b16 %v2182, %v2174
        %v2999 = vpack.c.b16 %v2183, %v2175
        %v3000 = vpack.c.b16 %v2184, %v2176
        %v3001 = vpack.c.b16 %v2185, %v2177
        %v3002 = vpack.c.b16 %v2186, %v2178
        %v3003 = vpack.c.b16 %v2187, %v2179
        %v3004 = vpack.c.b16 %v2196, %v2188
        %v3005 = vpack.c.b16 %v2197, %v2189
        %v3006 = vpack.c.b16 %v2198, %v2190
        %v3007 = vpack.c.b16 %v2199, %v2191
        %v3008 = vpack.c.b16 %v2200, %v2192
        %v3009 = vpack.c.b16 %v2201, %v2193
        %v3010 = vpack.c.b16 %v2202, %v2194
        %v3011 = vpack.c.b16 %v2203, %v2195
        %v3012 = vpack.c.b16 %v2212, %v2204
        %v3013 = vpack.c.b16 %v2213, %v2205
        %v3014 = vpack.c.b16 %v2214, %v2206
        %v3015 = vpack.c.b16 %v2215, %v2207
        %v3016 = vpack.c.b16 %v2216, %v2208
        %v3017 = vpack.c.b16 %v2217, %v2209
        %v3018 = vpack.c.b16 %v2218, %v2210
        %v3019 = vpack.c.b16 %v2219, %v2211
        %v3020 = vpack.c.b16 %v2228, %v2220
        %v3021 = vpack.c.b16 %v2229, %v2221
        %v3022 = vpack.c.b16 %v2230, %v2222
        %v3023 = vpack.c.b16 %v2231, %v2223
        %v3024 = vpack.c.b16 %v2232, %v2224
        %v3025 = vpack.c.b16 %v2233, %v2225
        %v3026 = vpack.c.b16 %v2234, %v2226
        %v3027 = vpack.c.b16 %v2235, %v2227
        %v3028 = vpack.c.b16 %v2244, %v2236
        %v3029 = vpack.c.b16 %v2245, %v2237
        %v3030 = vpack.c.b16 %v2246, %v2238
        %v3031 = vpack.c.b16 %v2247, %v2239
        %v3032 = vpack.c.b16 %v2248, %v2240
        %v3033 = vpack.c.b16 %v2249, %v2241
        %v3034 = vpack.c.b16 %v2250, %v2242
        %v3035 = vpack.c.b16 %v2251, %v2243
        %v3036 = vpack.c.b16 %v2260, %v2252
        %v3037 = vpack.c.b16 %v2261, %v2253
        %v3038 = vpack.c.b16 %v2262, %v2254
        %v3039 = vpack.c.b16 %v2263, %v2255
        %v3040 = vpack.c.b16 %v2264, %v2256
        %v3041 = vpack.c.b16 %v2265, %v2257
        %v3042 = vpack.c.b16 %v2266, %v2258
        %v3043 = vpack.c.b16 %v2267, %v2259
        %v3044 = vpack.c.b16 %v2276, %v2268
        %v3045 = vpack.c.b16 %v2277, %v2269
        %v3046 = vpack.c.b16 %v2278, %v2270
        %v3047 = vpack.c.b16 %v2279, %v2271
        %v3048 = vpack.c.b16 %v2280, %v2272
        %v3049 = vpack.c.b16 %v2281, %v2273
        %v3050 = vpack.c.b16 %v2282, %v2274
        %v3051 = vpack.c.b16 %v2283, %v2275
        %v3052 = vpack.c.b16 %v2292, %v2284
        %v3053 = vpack.c.b16 %v2293, %v2285
        %v3054 = vpack.c.b16 %v2294, %v2286
        %v3055 = vpack.c.b16 %v2295, %v2287
        %v3056 = vpack.c.b16 %v2296, %v2288
        %v3057 = vpack.c.b16 %v2297, %v2289
        %v3058 = vpack.c.b16 %v2298, %v2290
        %v3059 = vpack.c.b16 %v2299, %v2291
        %v3060 = vpack.c.b16 %v2308, %v2300
        %v3061 = vpack.c.b16 %v2309, %v2301
        %v3062 = vpack.c.b16 %v2310, %v2302
        %v3063 = vpack.c.b16 %v2311, %v2303
        %v3064 = vpack.c.b16 %v2312, %v2304
        %v3065 = vpack.c.b16 %v2313, %v2305
        %v3066 = vpack.c.b16 %v2314, %v2306
        %v3067 = vpack.c.b16 %v2315, %v2307
        %v3068 = vpack.c.b16 %v2324, %v2316
        %v3069 = vpack.c.b16 %v2325, %v2317
        %v3070 = vpack.c.b16 %v2326, %v2318
        %v3071 = vpack.c.b16 %v2327, %v2319
        %v3072 = vpack.c.b16 %v2328, %v2320
        %v3073 = vpack.c.b16 %v2329, %v2321
        %v3074 = vpack.c.b16 %v2330, %v2322
        %v3075 = vpack.c.b16 %v2331, %v2323
        %v3076 = vpack.c.b16 %v2340, %v2332
        %v3077 = vpack.c.b16 %v2341, %v2333
        %v3078 = vpack.c.b16 %v2342, %v2334
        %v3079 = vpack.c.b16 %v2343, %v2335
        %v3080 = vpack.c.b16 %v2344, %v2336
        %v3081 = vpack.c.b16 %v2345, %v2337
        %v3082 = vpack.c.b16 %v2346, %v2338
        %v3083 = vpack.c.b16 %v2347, %v2339
        %v3084 = vpack.c.b16 %v2356, %v2348
        %v3085 = vpack.c.b16 %v2357, %v2349
        %v3086 = vpack.c.b16 %v2358, %v2350
        %v3087 = vpack.c.b16 %v2359, %v2351
        %v3088 = vpack.c.b16 %v2360, %v2352
        %v3089 = vpack.c.b16 %v2361, %v2353
        %v3090 = vpack.c.b16 %v2362, %v2354
        %v3091 = vpack.c.b16 %v2363, %v2355
        %v3092 = vpack.c.b16 %v2372, %v2364
        %v3093 = vpack.c.b16 %v2373, %v2365
        %v3094 = vpack.c.b16 %v2374, %v2366
        %v3095 = vpack.c.b16 %v2375, %v2367
        %v3096 = vpack.c.b16 %v2376, %v2368
        %v3097 = vpack.c.b16 %v2377, %v2369
        %v3098 = vpack.c.b16 %v2378, %v2370
        %v3099 = vpack.c.b16 %v2379, %v2371
        %v3100 = vpack.c.b16 %v2388, %v2380
        %v3101 = vpack.c.b16 %v2389, %v2381
        %v3102 = vpack.c.b16 %v2390, %v2382
        %v3103 = vpack.c.b16 %v2391, %v2383
        %v3104 = vpack.c.b16 %v2392, %v2384
        %v3105 = vpack.c.b16 %v2393, %v2385
        %v3106 = vpack.c.b16 %v2394, %v2386
        %v3107 = vpack.c.b16 %v2395, %v2387
        %v3108 = vpack.c.b16 %v2404, %v2396
        %v3109 = vpack.c.b16 %v2405, %v2397
        %v3110 = vpack.c.b16 %v2406, %v2398
        %v3111 = vpack.c.b16 %v2407, %v2399
        %v3112 = vpack.c.b16 %v2408, %v2400
        %v3113 = vpack.c.b16 %v2409, %v2401
        %v3114 = vpack.c.b16 %v2410, %v2402
        %v3115 = vpack.c.b16 %v2411, %v2403
        %v3116 = vpack.c.b16 %v2420, %v2412
        %v3117 = vpack.c.b16 %v2421, %v2413
        %v3118 = vpack.c.b16 %v2422, %v2414
        %v3119 = vpack.c.b16 %v2423, %v2415
        %v3120 = vpack.c.b16 %v2424, %v2416
        %v3121 = vpack.c.b16 %v2425, %v2417
        %v3122 = vpack.c.b16 %v2426, %v2418
        %v3123 = vpack.c.b16 %v2427, %v2419
        %v3124 = vpack.c.b16 %v2436, %v2428
        %v3125 = vpack.c.b16 %v2437, %v2429
        %v3126 = vpack.c.b16 %v2438, %v2430
        %v3127 = vpack.c.b16 %v2439, %v2431
        %v3128 = vpack.c.b16 %v2440, %v2432
        %v3129 = vpack.c.b16 %v2441, %v2433
        %v3130 = vpack.c.b16 %v2442, %v2434
        %v3131 = vpack.c.b16 %v2443, %v2435
        %v3132 = vpack.c.b16 %v2452, %v2444
        %v3133 = vpack.c.b16 %v2453, %v2445
        %v3134 = vpack.c.b16 %v2454, %v2446
        %v3135 = vpack.c.b16 %v2455, %v2447
        %v3136 = vpack.c.b16 %v2456, %v2448
        %v3137 = vpack.c.b16 %v2457, %v2449
        %v3138 = vpack.c.b16 %v2458, %v2450
        %v3139 = vpack.c.b16 %v2459, %v2451
        %v3140 = vpack.c.b16 %v2468, %v2460
        %v3141 = vpack.c.b16 %v2469, %v2461
        %v3142 = vpack.c.b16 %v2470, %v2462
        %v3143 = vpack.c.b16 %v2471, %v2463
        %v3144 = vpack.c.b16 %v2472, %v2464
        %v3145 = vpack.c.b16 %v2473, %v2465
        %v3146 = vpack.c.b16 %v2474, %v2466
        %v3147 = vpack.c.b16 %v2475, %v2467
        %v3148 = vpack.c.b16 %v2484, %v2476
        %v3149 = vpack.c.b16 %v2485, %v2477
        %v3150 = vpack.c.b16 %v2486, %v2478
        %v3151 = vpack.c.b16 %v2487, %v2479
        %v3152 = vpack.c.b16 %v2488, %v2480
        %v3153 = vpack.c.b16 %v2489, %v2481
        %v3154 = vpack.c.b16 %v2490, %v2482
        %v3155 = vpack.c.b16 %v2491, %v2483
        %v3156 = vpack.c.b16 %v2500, %v2492
        %v3157 = vpack.c.b16 %v2501, %v2493
        %v3158 = vpack.c.b16 %v2502, %v2494
        %v3159 = vpack.c.b16 %v2503, %v2495
        %v3160 = vpack.c.b16 %v2504, %v2496
        %v3161 = vpack.c.b16 %v2505, %v2497
        %v3162 = vpack.c.b16 %v2506, %v2498
        %v3163 = vpack.c.b16 %v2507, %v2499
        %v3164 = vpack.c.b16 %v2516, %v2508
        %v3165 = vpack.c.b16 %v2517, %v2509
        %v3166 = vpack.c.b16 %v2518, %v2510
        %v3167 = vpack.c.b16 %v2519, %v2511
        %v3168 = vpack.c.b16 %v2520, %v2512
        %v3169 = vpack.c.b16 %v2521, %v2513
        %v3170 = vpack.c.b16 %v2522, %v2514
        %v3171 = vpack.c.b16 %v2523, %v2515
        %v3172 = vpack.c.b16 %v2532, %v2524
        %v3173 = vpack.c.b16 %v2533, %v2525
        %v3174 = vpack.c.b16 %v2534, %v2526
        %v3175 = vpack.c.b16 %v2535, %v2527
        %v3176 = vpack.c.b16 %v2536, %v2528
        %v3177 = vpack.c.b16 %v2537, %v2529
        %v3178 = vpack.c.b16 %v2538, %v2530
        %v3179 = vpack.c.b16 %v2539, %v2531
        %v3180 = vpack.c.b16 %v2548, %v2540
        %v3181 = vpack.c.b16 %v2549, %v2541
        %v3182 = vpack.c.b16 %v2550, %v2542
        %v3183 = vpack.c.b16 %v2551, %v2543
        %v3184 = vpack.c.b16 %v2552, %v2544
        %v3185 = vpack.c.b16 %v2553, %v2545
        %v3186 = vpack.c.b16 %v2554, %v2546
        %v3187 = vpack.c.b16 %v2555, %v2547
        %v3188 = vpack.c.b16 %v2564, %v2556
        %v3189 = vpack.c.b16 %v2565, %v2557
        %v3190 = vpack.c.b16 %v2566, %v2558
        %v3191 = vpack.c.b16 %v2567, %v2559
        %v3192 = vpack.c.b16 %v2568, %v2560
        %v3193 = vpack.c.b16 %v2569, %v2561
        %v3194 = vpack.c.b16 %v2570, %v2562
        %v3195 = vpack.c.b16 %v2571, %v2563
        %v3196 = vpack.c.b16 %v2580, %v2572
        %v3197 = vpack.c.b16 %v2581, %v2573
        %v3198 = vpack.c.b16 %v2582, %v2574
        %v3199 = vpack.c.b16 %v2583, %v2575
        %v3200 = vpack.c.b16 %v2584, %v2576
        %v3201 = vpack.c.b16 %v2585, %v2577
        %v3202 = vpack.c.b16 %v2586, %v2578
        %v3203 = vpack.c.b16 %v2587, %v2579
        %v3204 = vpack.c.b16 %v2596, %v2588
        %v3205 = vpack.c.b16 %v2597, %v2589
        %v3206 = vpack.c.b16 %v2598, %v2590
        %v3207 = vpack.c.b16 %v2599, %v2591
        %v3208 = vpack.c.b16 %v2600, %v2592
        %v3209 = vpack.c.b16 %v2601, %v2593
        %v3210 = vpack.c.b16 %v2602, %v2594
        %v3211 = vpack.c.b16 %v2603, %v2595
        %v3212 = vpack.c.b16 %v2612, %v2604
        %v3213 = vpack.c.b16 %v2613, %v2605
        %v3214 = vpack.c.b16 %v2614, %v2606
        %v3215 = vpack.c.b16 %v2615, %v2607
        %v3216 = vpack.c.b16 %v2616, %v2608
        %v3217 = vpack.c.b16 %v2617, %v2609
        %v3218 = vpack.c.b16 %v2618, %v2610
        %v3219 = vpack.c.b16 %v2619, %v2611
        %v3220 = vpack.c.b16 %v2628, %v2620
        %v3221 = vpack.c.b16 %v2629, %v2621
        %v3222 = vpack.c.b16 %v2630, %v2622
        %v3223 = vpack.c.b16 %v2631, %v2623
        %v3224 = vpack.c.b16 %v2632, %v2624
        %v3225 = vpack.c.b16 %v2633, %v2625
        %v3226 = vpack.c.b16 %v2634, %v2626
        %v3227 = vpack.c.b16 %v2635, %v2627
        %v3228 = vpack.c.b16 %v2644, %v2636
        %v3229 = vpack.c.b16 %v2645, %v2637
        %v3230 = vpack.c.b16 %v2646, %v2638
        %v3231 = vpack.c.b16 %v2647, %v2639
        %v3232 = vpack.c.b16 %v2648, %v2640
        %v3233 = vpack.c.b16 %v2649, %v2641
        %v3234 = vpack.c.b16 %v2650, %v2642
        %v3235 = vpack.c.b16 %v2651, %v2643
        %v3236 = vpack.c.b16 %v2660, %v2652
        %v3237 = vpack.c.b16 %v2661, %v2653
        %v3238 = vpack.c.b16 %v2662, %v2654
        %v3239 = vpack.c.b16 %v2663, %v2655
        %v3240 = vpack.c.b16 %v2664, %v2656
        %v3241 = vpack.c.b16 %v2665, %v2657
        %v3242 = vpack.c.b16 %v2666, %v2658
        %v3243 = vpack.c.b16 %v2667, %v2659
        %v3244 = vpack.c.b16 %v2676, %v2668
        %v3245 = vpack.c.b16 %v2677, %v2669
        %v3246 = vpack.c.b16 %v2678, %v2670
        %v3247 = vpack.c.b16 %v2679, %v2671
        %v3248 = vpack.c.b16 %v2680, %v2672
        %v3249 = vpack.c.b16 %v2681, %v2673
        %v3250 = vpack.c.b16 %v2682, %v2674
        %v3251 = vpack.c.b16 %v2683, %v2675
        %v3252 = vpack.c.b16 %v2692, %v2684
        %v3253 = vpack.c.b16 %v2693, %v2685
        %v3254 = vpack.c.b16 %v2694, %v2686
        %v3255 = vpack.c.b16 %v2695, %v2687
        %v3256 = vpack.c.b16 %v2696, %v2688
        %v3257 = vpack.c.b16 %v2697, %v2689
        %v3258 = vpack.c.b16 %v2698, %v2690
        %v3259 = vpack.c.b16 %v2699, %v2691
        %v3260 = vpack.c.b16 %v2708, %v2700
        %v3261 = vpack.c.b16 %v2709, %v2701
        %v3262 = vpack.c.b16 %v2710, %v2702
        %v3263 = vpack.c.b16 %v2711, %v2703
        %v3264 = vpack.c.b16 %v2712, %v2704
        %v3265 = vpack.c.b16 %v2713, %v2705
        %v3266 = vpack.c.b16 %v2714, %v2706
        %v3267 = vpack.c.b16 %v2715, %v2707
        %v3268 = vpack.c.b16 %v2724, %v2716
        %v3269 = vpack.c.b16 %v2725, %v2717
        %v3270 = vpack.c.b16 %v2726, %v2718
        %v3271 = vpack.c.b16 %v2727, %v2719
        %v3272 = vpack.c.b16 %v2728, %v2720
        %v3273 = vpack.c.b16 %v2729, %v2721
        %v3274 = vpack.c.b16 %v2730, %v2722
        %v3275 = vpack.c.b16 %v2731, %v2723
        %v3276 = vpack.c.b16 %v2740, %v2732
        %v3277 = vpack.c.b16 %v2741, %v2733
        %v3278 = vpack.c.b16 %v2742, %v2734
        %v3279 = vpack.c.b16 %v2743, %v2735
        %v3280 = vpack.c.b16 %v2744, %v2736
        %v3281 = vpack.c.b16 %v2745, %v2737
        %v3282 = vpack.c.b16 %v2746, %v2738
        %v3283 = vpack.c.b16 %v2747, %v2739
        %v3284 = vpack.c.b16 %v2756, %v2748
        %v3285 = vpack.c.b16 %v2757, %v2749
        %v3286 = vpack.c.b16 %v2758, %v2750
        %v3287 = vpack.c.b16 %v2759, %v2751
        %v3288 = vpack.c.b16 %v2760, %v2752
        %v3289 = vpack.c.b16 %v2761, %v2753
        %v3290 = vpack.c.b16 %v2762, %v2754
        %v3291 = vpack.c.b16 %v2763, %v2755
        %v3292 = vpack.c.b16 %v2772, %v2764
        %v3293 = vpack.c.b16 %v2773, %v2765
        %v3294 = vpack.c.b16 %v2774, %v2766
        %v3295 = vpack.c.b16 %v2775, %v2767
        %v3296 = vpack.c.b16 %v2776, %v2768
        %v3297 = vpack.c.b16 %v2777, %v2769
        %v3298 = vpack.c.b16 %v2778, %v2770
        %v3299 = vpack.c.b16 %v2779, %v2771
        %v3300 = vpack.c.b16 %v2788, %v2780
        %v3301 = vpack.c.b16 %v2789, %v2781
        %v3302 = vpack.c.b16 %v2790, %v2782
        %v3303 = vpack.c.b16 %v2791, %v2783
        %v3304 = vpack.c.b16 %v2792, %v2784
        %v3305 = vpack.c.b16 %v2793, %v2785
        %v3306 = vpack.c.b16 %v2794, %v2786
        %v3307 = vpack.c.b16 %v2795, %v2787
        %3820 = vmatprep.subr.bf16.mxu0 %v2853
        %3821 = vmatpush1.bf16.msra.mxu0 %v2852
        %3822 = vmatprep.subr.bf16.mxu0 %v2845
        %3823 = vmatpush1.bf16.msra.mxu0 %v2844
        %3824 = vmatprep.subr.bf16.mxu0 %v2837
        %3825 = vmatpush1.bf16.msra.mxu0 %v2836
        %3826 = vmatprep.subr.bf16.mxu0 %v2829
        %3827 = vmatpush1.bf16.msra.mxu0 %v2828
        %3828 = vmatprep.subr.bf16.mxu0 %v2821
        %3829 = vmatpush1.bf16.msra.mxu0 %v2820
        %3830 = vmatprep.subr.bf16.mxu0 %v2813
        %3831 = vmatpush1.bf16.msra.mxu0 %v2812
        %3832 = vmatprep.subr.bf16.mxu0 %v2805
        %3833 = vmatpush1.bf16.msra.mxu0 %v2804
        %3834 = vmatprep.subr.bf16.mxu0 %v2797
        %3835 = vmatpush1.bf16.msra.mxu0 %v2796
        %3836 = vmatprep.subr.bf16.mxu0 %v2917
        %3837 = vmatpush2.bf16.msra.mxu0 %v2916
        %3838 = vmatprep.subr.bf16.mxu0 %v2909
        %3839 = vmatpush2.bf16.msra.mxu0 %v2908
        %3840 = vmatprep.subr.bf16.mxu0 %v2901
        %3841 = vmatpush2.bf16.msra.mxu0 %v2900
        %3842 = vmatprep.subr.bf16.mxu0 %v2893
        %3843 = vmatpush2.bf16.msra.mxu0 %v2892
        %3844 = vmatprep.subr.bf16.mxu0 %v2885
        %3845 = vmatpush2.bf16.msra.mxu0 %v2884
        %3846 = vmatprep.subr.bf16.mxu0 %v2877
        %3847 = vmatpush2.bf16.msra.mxu0 %v2876
        %3848 = vmatprep.subr.bf16.mxu0 %v2869
        %3849 = vmatpush2.bf16.msra.mxu0 %v2868
        %3850 = vmatprep.subr.bf16.mxu0 %v2861
        %3851 = vmatpush2.bf16.msra.mxu0 %v2860
        %3852 = vmatprep.mubr.bf16.mxu0 %v699
        %3853 = vmatmul.mubr.bf16.gmra.mxu0 %v698
        %v3854 = vpop.f32.mrf.mxu0
        %v3855 = vadd.f32 %v1223, %v3854
        %v3856 = vpop.f32.mrf.mxu0
        %v3857 = vadd.f32 %v1227, %v3856
        %v3858 = vpop.f32.mrf.mxu0
        %v3859 = vadd.f32 %v1223, %v3858
        %v3860 = vpop.f32.mrf.mxu0
        %v3861 = vadd.f32 %v1227, %v3860
        %3862 = vdwg.mxu0
        %3863 = vmatprep.subr.bf16.mxu0 %v2981
        %3864 = vmatpush1.bf16.msra.mxu0 %v2980
        %3865 = vmatprep.subr.bf16.mxu0 %v2973
        %3866 = vmatpush1.bf16.msra.mxu0 %v2972
        %3867 = vmatprep.subr.bf16.mxu0 %v2965
        %3868 = vmatpush1.bf16.msra.mxu0 %v2964
        %3869 = vmatprep.subr.bf16.mxu0 %v2957
        %3870 = vmatpush1.bf16.msra.mxu0 %v2956
        %3871 = vmatprep.subr.bf16.mxu0 %v2949
        %3872 = vmatpush1.bf16.msra.mxu0 %v2948
        %3873 = vmatprep.subr.bf16.mxu0 %v2941
        %3874 = vmatpush1.bf16.msra.mxu0 %v2940
        %3875 = vmatprep.subr.bf16.mxu0 %v2933
        %3876 = vmatpush1.bf16.msra.mxu0 %v2932
        %3877 = vmatprep.subr.bf16.mxu0 %v2925
        %3878 = vmatpush1.bf16.msra.mxu0 %v2924
        %3879 = vmatprep.subr.bf16.mxu0 %v3045
        %3880 = vmatpush2.bf16.msra.mxu0 %v3044
        %3881 = vmatprep.subr.bf16.mxu0 %v3037
        %3882 = vmatpush2.bf16.msra.mxu0 %v3036
        %3883 = vmatprep.subr.bf16.mxu0 %v3029
        %3884 = vmatpush2.bf16.msra.mxu0 %v3028
        %3885 = vmatprep.subr.bf16.mxu0 %v3021
        %3886 = vmatpush2.bf16.msra.mxu0 %v3020
        %3887 = vmatprep.subr.bf16.mxu0 %v3013
        %3888 = vmatpush2.bf16.msra.mxu0 %v3012
        %3889 = vmatprep.subr.bf16.mxu0 %v3005
        %3890 = vmatpush2.bf16.msra.mxu0 %v3004
        %3891 = vmatprep.subr.bf16.mxu0 %v2997
        %3892 = vmatpush2.bf16.msra.mxu0 %v2996
        %3893 = vmatprep.subr.bf16.mxu0 %v2989
        %3894 = vmatpush2.bf16.msra.mxu0 %v2988
        %3895 = vmatprep.mubr.bf16.mxu0 %v701
        %3896 = vmatmul.mubr.bf16.gmra.mxu0 %v700
        %v3897 = vpop.f32.mrf.mxu0
        %v3898 = vadd.f32 %v3855, %v3897
        %v3899 = vpop.f32.mrf.mxu0
        %v3900 = vadd.f32 %v3857, %v3899
        %v3901 = vpop.f32.mrf.mxu0
        %v3902 = vadd.f32 %v3859, %v3901
        %v3903 = vpop.f32.mrf.mxu0
        %v3904 = vadd.f32 %v3861, %v3903
        %3905 = vdwg.mxu0
        %3906 = vmatprep.subr.bf16.mxu0 %v3109
        %3907 = vmatpush1.bf16.msra.mxu0 %v3108
        %3908 = vmatprep.subr.bf16.mxu0 %v3101
        %3909 = vmatpush1.bf16.msra.mxu0 %v3100
        %3910 = vmatprep.subr.bf16.mxu0 %v3093
        %3911 = vmatpush1.bf16.msra.mxu0 %v3092
        %3912 = vmatprep.subr.bf16.mxu0 %v3085
        %3913 = vmatpush1.bf16.msra.mxu0 %v3084
        %3914 = vmatprep.subr.bf16.mxu0 %v3077
        %3915 = vmatpush1.bf16.msra.mxu0 %v3076
        %3916 = vmatprep.subr.bf16.mxu0 %v3069
        %3917 = vmatpush1.bf16.msra.mxu0 %v3068
        %3918 = vmatprep.subr.bf16.mxu0 %v3061
        %3919 = vmatpush1.bf16.msra.mxu0 %v3060
        %3920 = vmatprep.subr.bf16.mxu0 %v3053
        %3921 = vmatpush1.bf16.msra.mxu0 %v3052
        %3922 = vmatprep.subr.bf16.mxu0 %v3173
        %3923 = vmatpush2.bf16.msra.mxu0 %v3172
        %3924 = vmatprep.subr.bf16.mxu0 %v3165
        %3925 = vmatpush2.bf16.msra.mxu0 %v3164
        %3926 = vmatprep.subr.bf16.mxu0 %v3157
        %3927 = vmatpush2.bf16.msra.mxu0 %v3156
        %3928 = vmatprep.subr.bf16.mxu0 %v3149
        %3929 = vmatpush2.bf16.msra.mxu0 %v3148
        %3930 = vmatprep.subr.bf16.mxu0 %v3141
        %3931 = vmatpush2.bf16.msra.mxu0 %v3140
        %3932 = vmatprep.subr.bf16.mxu0 %v3133
        %3933 = vmatpush2.bf16.msra.mxu0 %v3132
        %3934 = vmatprep.subr.bf16.mxu0 %v3125
        %3935 = vmatpush2.bf16.msra.mxu0 %v3124
        %3936 = vmatprep.subr.bf16.mxu0 %v3117
        %3937 = vmatpush2.bf16.msra.mxu0 %v3116
        %3938 = vmatprep.mubr.bf16.mxu0 %v703
        %3939 = vmatmul.mubr.bf16.gmra.mxu0 %v702
        %v3940 = vpop.f32.mrf.mxu0
        %v3941 = vadd.f32 %v3898, %v3940
        %v3942 = vpop.f32.mrf.mxu0
        %v3943 = vadd.f32 %v3900, %v3942
        %v3944 = vpop.f32.mrf.mxu0
        %v3945 = vadd.f32 %v3902, %v3944
        %v3946 = vpop.f32.mrf.mxu0
        %v3947 = vadd.f32 %v3904, %v3946
        %3948 = vdwg.mxu0
        %3949 = vmatprep.subr.bf16.mxu0 %v3237
        %3950 = vmatpush1.bf16.msra.mxu0 %v3236
        %3951 = vmatprep.subr.bf16.mxu0 %v3229
        %3952 = vmatpush1.bf16.msra.mxu0 %v3228
        %3953 = vmatprep.subr.bf16.mxu0 %v3221
        %3954 = vmatpush1.bf16.msra.mxu0 %v3220
        %3955 = vmatprep.subr.bf16.mxu0 %v3213
        %3956 = vmatpush1.bf16.msra.mxu0 %v3212
        %3957 = vmatprep.subr.bf16.mxu0 %v3205
        %3958 = vmatpush1.bf16.msra.mxu0 %v3204
        %3959 = vmatprep.subr.bf16.mxu0 %v3197
        %3960 = vmatpush1.bf16.msra.mxu0 %v3196
        %3961 = vmatprep.subr.bf16.mxu0 %v3189
        %3962 = vmatpush1.bf16.msra.mxu0 %v3188
        %3963 = vmatprep.subr.bf16.mxu0 %v3181
        %3964 = vmatpush1.bf16.msra.mxu0 %v3180
        %3965 = vmatprep.subr.bf16.mxu0 %v3301
        %3966 = vmatpush2.bf16.msra.mxu0 %v3300
        %3967 = vmatprep.subr.bf16.mxu0 %v3293
        %3968 = vmatpush2.bf16.msra.mxu0 %v3292
        %3969 = vmatprep.subr.bf16.mxu0 %v3285
        %3970 = vmatpush2.bf16.msra.mxu0 %v3284
        %3971 = vmatprep.subr.bf16.mxu0 %v3277
        %3972 = vmatpush2.bf16.msra.mxu0 %v3276
        %3973 = vmatprep.subr.bf16.mxu0 %v3269
        %3974 = vmatpush2.bf16.msra.mxu0 %v3268
        %3975 = vmatprep.subr.bf16.mxu0 %v3261
        %3976 = vmatpush2.bf16.msra.mxu0 %v3260
        %3977 = vmatprep.subr.bf16.mxu0 %v3253
        %3978 = vmatpush2.bf16.msra.mxu0 %v3252
        %3979 = vmatprep.subr.bf16.mxu0 %v3245
        %3980 = vmatpush2.bf16.msra.mxu0 %v3244
        %3981 = vmatprep.mubr.bf16.mxu0 %v705
        %3982 = vmatmul.mubr.bf16.gmra.mxu0 %v704
        %v3983 = vpop.f32.mrf.mxu0
        %v3984 = vadd.f32 %v3941, %v3983
        %v3985 = vpop.f32.mrf.mxu0
        %v3986 = vadd.f32 %v3943, %v3985
        %v3987 = vpop.f32.mrf.mxu0
        %v3988 = vadd.f32 %v3945, %v3987
        %v3989 = vpop.f32.mrf.mxu0
        %v3990 = vadd.f32 %v3947, %v3989
        %3991 = vdwg.mxu0
        %3992 = vmatprep.subr.bf16.mxu0 %v2855
        %3993 = vmatpush1.bf16.msra.mxu0 %v2854
        %3994 = vmatprep.subr.bf16.mxu0 %v2847
        %3995 = vmatpush1.bf16.msra.mxu0 %v2846
        %3996 = vmatprep.subr.bf16.mxu0 %v2839
        %3997 = vmatpush1.bf16.msra.mxu0 %v2838
        %3998 = vmatprep.subr.bf16.mxu0 %v2831
        %3999 = vmatpush1.bf16.msra.mxu0 %v2830
        %4000 = vmatprep.subr.bf16.mxu0 %v2823
        %4001 = vmatpush1.bf16.msra.mxu0 %v2822
        %4002 = vmatprep.subr.bf16.mxu0 %v2815
        %4003 = vmatpush1.bf16.msra.mxu0 %v2814
        %4004 = vmatprep.subr.bf16.mxu0 %v2807
        %4005 = vmatpush1.bf16.msra.mxu0 %v2806
        %4006 = vmatprep.subr.bf16.mxu0 %v2799
        %4007 = vmatpush1.bf16.msra.mxu0 %v2798
        %4008 = vmatprep.subr.bf16.mxu0 %v2919
        %4009 = vmatpush2.bf16.msra.mxu0 %v2918
        %4010 = vmatprep.subr.bf16.mxu0 %v2911
        %4011 = vmatpush2.bf16.msra.mxu0 %v2910
        %4012 = vmatprep.subr.bf16.mxu0 %v2903
        %4013 = vmatpush2.bf16.msra.mxu0 %v2902
        %4014 = vmatprep.subr.bf16.mxu0 %v2895
        %4015 = vmatpush2.bf16.msra.mxu0 %v2894
        %4016 = vmatprep.subr.bf16.mxu0 %v2887
        %4017 = vmatpush2.bf16.msra.mxu0 %v2886
        %4018 = vmatprep.subr.bf16.mxu0 %v2879
        %4019 = vmatpush2.bf16.msra.mxu0 %v2878
        %4020 = vmatprep.subr.bf16.mxu0 %v2871
        %4021 = vmatpush2.bf16.msra.mxu0 %v2870
        %4022 = vmatprep.subr.bf16.mxu0 %v2863
        %4023 = vmatpush2.bf16.msra.mxu0 %v2862
        %4024 = vmatprep.mubr.bf16.mxu0 %v699
        %4025 = vmatmul.mubr.bf16.gmra.mxu0 %v698
        %v4026 = vpop.f32.mrf.mxu0
        %v4027 = vadd.f32 %v1231, %v4026
        %v4028 = vpop.f32.mrf.mxu0
        %v4029 = vadd.f32 %v1235, %v4028
        %v4030 = vpop.f32.mrf.mxu0
        %v4031 = vadd.f32 %v1231, %v4030
        %v4032 = vpop.f32.mrf.mxu0
        %v4033 = vadd.f32 %v1235, %v4032
        %4034 = vdwg.mxu0
        %4035 = vmatprep.subr.bf16.mxu0 %v2983
        %4036 = vmatpush1.bf16.msra.mxu0 %v2982
        %4037 = vmatprep.subr.bf16.mxu0 %v2975
        %4038 = vmatpush1.bf16.msra.mxu0 %v2974
        %4039 = vmatprep.subr.bf16.mxu0 %v2967
        %4040 = vmatpush1.bf16.msra.mxu0 %v2966
        %4041 = vmatprep.subr.bf16.mxu0 %v2959
        %4042 = vmatpush1.bf16.msra.mxu0 %v2958
        %4043 = vmatprep.subr.bf16.mxu0 %v2951
        %4044 = vmatpush1.bf16.msra.mxu0 %v2950
        %4045 = vmatprep.subr.bf16.mxu0 %v2943
        %4046 = vmatpush1.bf16.msra.mxu0 %v2942
        %4047 = vmatprep.subr.bf16.mxu0 %v2935
        %4048 = vmatpush1.bf16.msra.mxu0 %v2934
        %4049 = vmatprep.subr.bf16.mxu0 %v2927
        %4050 = vmatpush1.bf16.msra.mxu0 %v2926
        %4051 = vmatprep.subr.bf16.mxu0 %v3047
        %4052 = vmatpush2.bf16.msra.mxu0 %v3046
        %4053 = vmatprep.subr.bf16.mxu0 %v3039
        %4054 = vmatpush2.bf16.msra.mxu0 %v3038
        %4055 = vmatprep.subr.bf16.mxu0 %v3031
        %4056 = vmatpush2.bf16.msra.mxu0 %v3030
        %4057 = vmatprep.subr.bf16.mxu0 %v3023
        %4058 = vmatpush2.bf16.msra.mxu0 %v3022
        %4059 = vmatprep.subr.bf16.mxu0 %v3015
        %4060 = vmatpush2.bf16.msra.mxu0 %v3014
        %4061 = vmatprep.subr.bf16.mxu0 %v3007
        %4062 = vmatpush2.bf16.msra.mxu0 %v3006
        %4063 = vmatprep.subr.bf16.mxu0 %v2999
        %4064 = vmatpush2.bf16.msra.mxu0 %v2998
        %4065 = vmatprep.subr.bf16.mxu0 %v2991
        %4066 = vmatpush2.bf16.msra.mxu0 %v2990
        %4067 = vmatprep.mubr.bf16.mxu0 %v701
        %4068 = vmatmul.mubr.bf16.gmra.mxu0 %v700
        %v4069 = vpop.f32.mrf.mxu0
        %v4070 = vadd.f32 %v4027, %v4069
        %v4071 = vpop.f32.mrf.mxu0
        %v4072 = vadd.f32 %v4029, %v4071
        %v4073 = vpop.f32.mrf.mxu0
        %v4074 = vadd.f32 %v4031, %v4073
        %v4075 = vpop.f32.mrf.mxu0
        %v4076 = vadd.f32 %v4033, %v4075
        %4077 = vdwg.mxu0
        %4078 = vmatprep.subr.bf16.mxu0 %v3111
        %4079 = vmatpush1.bf16.msra.mxu0 %v3110
        %4080 = vmatprep.subr.bf16.mxu0 %v3103
        %4081 = vmatpush1.bf16.msra.mxu0 %v3102
        %4082 = vmatprep.subr.bf16.mxu0 %v3095
        %4083 = vmatpush1.bf16.msra.mxu0 %v3094
        %4084 = vmatprep.subr.bf16.mxu0 %v3087
        %4085 = vmatpush1.bf16.msra.mxu0 %v3086
        %4086 = vmatprep.subr.bf16.mxu0 %v3079
        %4087 = vmatpush1.bf16.msra.mxu0 %v3078
        %4088 = vmatprep.subr.bf16.mxu0 %v3071
        %4089 = vmatpush1.bf16.msra.mxu0 %v3070
        %4090 = vmatprep.subr.bf16.mxu0 %v3063
        %4091 = vmatpush1.bf16.msra.mxu0 %v3062
        %4092 = vmatprep.subr.bf16.mxu0 %v3055
        %4093 = vmatpush1.bf16.msra.mxu0 %v3054
        %4094 = vmatprep.subr.bf16.mxu0 %v3175
        %4095 = vmatpush2.bf16.msra.mxu0 %v3174
        %4096 = vmatprep.subr.bf16.mxu0 %v3167
        %4097 = vmatpush2.bf16.msra.mxu0 %v3166
        %4098 = vmatprep.subr.bf16.mxu0 %v3159
        %4099 = vmatpush2.bf16.msra.mxu0 %v3158
        %4100 = vmatprep.subr.bf16.mxu0 %v3151
        %4101 = vmatpush2.bf16.msra.mxu0 %v3150
        %4102 = vmatprep.subr.bf16.mxu0 %v3143
        %4103 = vmatpush2.bf16.msra.mxu0 %v3142
        %4104 = vmatprep.subr.bf16.mxu0 %v3135
        %4105 = vmatpush2.bf16.msra.mxu0 %v3134
        %4106 = vmatprep.subr.bf16.mxu0 %v3127
        %4107 = vmatpush2.bf16.msra.mxu0 %v3126
        %4108 = vmatprep.subr.bf16.mxu0 %v3119
        %4109 = vmatpush2.bf16.msra.mxu0 %v3118
        %4110 = vmatprep.mubr.bf16.mxu0 %v703
        %4111 = vmatmul.mubr.bf16.gmra.mxu0 %v702
        %v4112 = vpop.f32.mrf.mxu0
        %v4113 = vadd.f32 %v4070, %v4112
        %v4114 = vpop.f32.mrf.mxu0
        %v4115 = vadd.f32 %v4072, %v4114
        %v4116 = vpop.f32.mrf.mxu0
        %v4117 = vadd.f32 %v4074, %v4116
        %v4118 = vpop.f32.mrf.mxu0
        %v4119 = vadd.f32 %v4076, %v4118
        %4120 = vdwg.mxu0
        %4121 = vmatprep.subr.bf16.mxu0 %v3239
        %4122 = vmatpush1.bf16.msra.mxu0 %v3238
        %4123 = vmatprep.subr.bf16.mxu0 %v3231
        %4124 = vmatpush1.bf16.msra.mxu0 %v3230
        %4125 = vmatprep.subr.bf16.mxu0 %v3223
        %4126 = vmatpush1.bf16.msra.mxu0 %v3222
        %4127 = vmatprep.subr.bf16.mxu0 %v3215
        %4128 = vmatpush1.bf16.msra.mxu0 %v3214
        %4129 = vmatprep.subr.bf16.mxu0 %v3207
        %4130 = vmatpush1.bf16.msra.mxu0 %v3206
        %4131 = vmatprep.subr.bf16.mxu0 %v3199
        %4132 = vmatpush1.bf16.msra.mxu0 %v3198
        %4133 = vmatprep.subr.bf16.mxu0 %v3191
        %4134 = vmatpush1.bf16.msra.mxu0 %v3190
        %4135 = vmatprep.subr.bf16.mxu0 %v3183
        %4136 = vmatpush1.bf16.msra.mxu0 %v3182
        %4137 = vmatprep.subr.bf16.mxu0 %v3303
        %4138 = vmatpush2.bf16.msra.mxu0 %v3302
        %4139 = vmatprep.subr.bf16.mxu0 %v3295
        %4140 = vmatpush2.bf16.msra.mxu0 %v3294
        %4141 = vmatprep.subr.bf16.mxu0 %v3287
        %4142 = vmatpush2.bf16.msra.mxu0 %v3286
        %4143 = vmatprep.subr.bf16.mxu0 %v3279
        %4144 = vmatpush2.bf16.msra.mxu0 %v3278
        %4145 = vmatprep.subr.bf16.mxu0 %v3271
        %4146 = vmatpush2.bf16.msra.mxu0 %v3270
        %4147 = vmatprep.subr.bf16.mxu0 %v3263
        %4148 = vmatpush2.bf16.msra.mxu0 %v3262
        %4149 = vmatprep.subr.bf16.mxu0 %v3255
        %4150 = vmatpush2.bf16.msra.mxu0 %v3254
        %4151 = vmatprep.subr.bf16.mxu0 %v3247
        %4152 = vmatpush2.bf16.msra.mxu0 %v3246
        %4153 = vmatprep.mubr.bf16.mxu0 %v705
        %4154 = vmatmul.mubr.bf16.gmra.mxu0 %v704
        %v4155 = vpop.f32.mrf.mxu0
        %v4156 = vadd.f32 %v4113, %v4155
        %v4157 = vpop.f32.mrf.mxu0
        %v4158 = vadd.f32 %v4115, %v4157
        %v4159 = vpop.f32.mrf.mxu0
        %v4160 = vadd.f32 %v4117, %v4159
        %v4161 = vpop.f32.mrf.mxu0
        %v4162 = vadd.f32 %v4119, %v4161
        %4163 = vdwg.mxu0
        %4164 = vmatprep.subr.bf16.mxu0 %v2857
        %4165 = vmatpush1.bf16.msra.mxu0 %v2856
        %4166 = vmatprep.subr.bf16.mxu0 %v2849
        %4167 = vmatpush1.bf16.msra.mxu0 %v2848
        %4168 = vmatprep.subr.bf16.mxu0 %v2841
        %4169 = vmatpush1.bf16.msra.mxu0 %v2840
        %4170 = vmatprep.subr.bf16.mxu0 %v2833
        %4171 = vmatpush1.bf16.msra.mxu0 %v2832
        %4172 = vmatprep.subr.bf16.mxu0 %v2825
        %4173 = vmatpush1.bf16.msra.mxu0 %v2824
        %4174 = vmatprep.subr.bf16.mxu0 %v2817
        %4175 = vmatpush1.bf16.msra.mxu0 %v2816
        %4176 = vmatprep.subr.bf16.mxu0 %v2809
        %4177 = vmatpush1.bf16.msra.mxu0 %v2808
        %4178 = vmatprep.subr.bf16.mxu0 %v2801
        %4179 = vmatpush1.bf16.msra.mxu0 %v2800
        %4180 = vmatprep.subr.bf16.mxu0 %v2921
        %4181 = vmatpush2.bf16.msra.mxu0 %v2920
        %4182 = vmatprep.subr.bf16.mxu0 %v2913
        %4183 = vmatpush2.bf16.msra.mxu0 %v2912
        %4184 = vmatprep.subr.bf16.mxu0 %v2905
        %4185 = vmatpush2.bf16.msra.mxu0 %v2904
        %4186 = vmatprep.subr.bf16.mxu0 %v2897
        %4187 = vmatpush2.bf16.msra.mxu0 %v2896
        %4188 = vmatprep.subr.bf16.mxu0 %v2889
        %4189 = vmatpush2.bf16.msra.mxu0 %v2888
        %4190 = vmatprep.subr.bf16.mxu0 %v2881
        %4191 = vmatpush2.bf16.msra.mxu0 %v2880
        %4192 = vmatprep.subr.bf16.mxu0 %v2873
        %4193 = vmatpush2.bf16.msra.mxu0 %v2872
        %4194 = vmatprep.subr.bf16.mxu0 %v2865
        %4195 = vmatpush2.bf16.msra.mxu0 %v2864
        %4196 = vmatprep.mubr.bf16.mxu0 %v699
        %4197 = vmatmul.mubr.bf16.gmra.mxu0 %v698
        %v4198 = vpop.f32.mrf.mxu0
        %v4199 = vadd.f32 %v1239, %v4198
        %v4200 = vpop.f32.mrf.mxu0
        %v4201 = vadd.f32 %v1243, %v4200
        %v4202 = vpop.f32.mrf.mxu0
        %v4203 = vadd.f32 %v1239, %v4202
        %v4204 = vpop.f32.mrf.mxu0
        %v4205 = vadd.f32 %v1243, %v4204
        %4206 = vdwg.mxu0
        %4207 = vmatprep.subr.bf16.mxu0 %v2985
        %4208 = vmatpush1.bf16.msra.mxu0 %v2984
        %4209 = vmatprep.subr.bf16.mxu0 %v2977
        %4210 = vmatpush1.bf16.msra.mxu0 %v2976
        %4211 = vmatprep.subr.bf16.mxu0 %v2969
        %4212 = vmatpush1.bf16.msra.mxu0 %v2968
        %4213 = vmatprep.subr.bf16.mxu0 %v2961
        %4214 = vmatpush1.bf16.msra.mxu0 %v2960
        %4215 = vmatprep.subr.bf16.mxu0 %v2953
        %4216 = vmatpush1.bf16.msra.mxu0 %v2952
        %4217 = vmatprep.subr.bf16.mxu0 %v2945
        %4218 = vmatpush1.bf16.msra.mxu0 %v2944
        %4219 = vmatprep.subr.bf16.mxu0 %v2937
        %4220 = vmatpush1.bf16.msra.mxu0 %v2936
        %4221 = vmatprep.subr.bf16.mxu0 %v2929
        %4222 = vmatpush1.bf16.msra.mxu0 %v2928
        %4223 = vmatprep.subr.bf16.mxu0 %v3049
        %4224 = vmatpush2.bf16.msra.mxu0 %v3048
        %4225 = vmatprep.subr.bf16.mxu0 %v3041
        %4226 = vmatpush2.bf16.msra.mxu0 %v3040
        %4227 = vmatprep.subr.bf16.mxu0 %v3033
        %4228 = vmatpush2.bf16.msra.mxu0 %v3032
        %4229 = vmatprep.subr.bf16.mxu0 %v3025
        %4230 = vmatpush2.bf16.msra.mxu0 %v3024
        %4231 = vmatprep.subr.bf16.mxu0 %v3017
        %4232 = vmatpush2.bf16.msra.mxu0 %v3016
        %4233 = vmatprep.subr.bf16.mxu0 %v3009
        %4234 = vmatpush2.bf16.msra.mxu0 %v3008
        %4235 = vmatprep.subr.bf16.mxu0 %v3001
        %4236 = vmatpush2.bf16.msra.mxu0 %v3000
        %4237 = vmatprep.subr.bf16.mxu0 %v2993
        %4238 = vmatpush2.bf16.msra.mxu0 %v2992
        %4239 = vmatprep.mubr.bf16.mxu0 %v701
        %4240 = vmatmul.mubr.bf16.gmra.mxu0 %v700
        %v4241 = vpop.f32.mrf.mxu0
        %v4242 = vadd.f32 %v4199, %v4241
        %v4243 = vpop.f32.mrf.mxu0
        %v4244 = vadd.f32 %v4201, %v4243
        %v4245 = vpop.f32.mrf.mxu0
        %v4246 = vadd.f32 %v4203, %v4245
        %v4247 = vpop.f32.mrf.mxu0
        %v4248 = vadd.f32 %v4205, %v4247
        %4249 = vdwg.mxu0
        %4250 = vmatprep.subr.bf16.mxu0 %v3113
        %4251 = vmatpush1.bf16.msra.mxu0 %v3112
        %4252 = vmatprep.subr.bf16.mxu0 %v3105
        %4253 = vmatpush1.bf16.msra.mxu0 %v3104
        %4254 = vmatprep.subr.bf16.mxu0 %v3097
        %4255 = vmatpush1.bf16.msra.mxu0 %v3096
        %4256 = vmatprep.subr.bf16.mxu0 %v3089
        %4257 = vmatpush1.bf16.msra.mxu0 %v3088
        %4258 = vmatprep.subr.bf16.mxu0 %v3081
        %4259 = vmatpush1.bf16.msra.mxu0 %v3080
        %4260 = vmatprep.subr.bf16.mxu0 %v3073
        %4261 = vmatpush1.bf16.msra.mxu0 %v3072
        %4262 = vmatprep.subr.bf16.mxu0 %v3065
        %4263 = vmatpush1.bf16.msra.mxu0 %v3064
        %4264 = vmatprep.subr.bf16.mxu0 %v3057
        %4265 = vmatpush1.bf16.msra.mxu0 %v3056
        %4266 = vmatprep.subr.bf16.mxu0 %v3177
        %4267 = vmatpush2.bf16.msra.mxu0 %v3176
        %4268 = vmatprep.subr.bf16.mxu0 %v3169
        %4269 = vmatpush2.bf16.msra.mxu0 %v3168
        %4270 = vmatprep.subr.bf16.mxu0 %v3161
        %4271 = vmatpush2.bf16.msra.mxu0 %v3160
        %4272 = vmatprep.subr.bf16.mxu0 %v3153
        %4273 = vmatpush2.bf16.msra.mxu0 %v3152
        %4274 = vmatprep.subr.bf16.mxu0 %v3145
        %4275 = vmatpush2.bf16.msra.mxu0 %v3144
        %4276 = vmatprep.subr.bf16.mxu0 %v3137
        %4277 = vmatpush2.bf16.msra.mxu0 %v3136
        %4278 = vmatprep.subr.bf16.mxu0 %v3129
        %4279 = vmatpush2.bf16.msra.mxu0 %v3128
        %4280 = vmatprep.subr.bf16.mxu0 %v3121
        %4281 = vmatpush2.bf16.msra.mxu0 %v3120
        %4282 = vmatprep.mubr.bf16.mxu0 %v703
        %4283 = vmatmul.mubr.bf16.gmra.mxu0 %v702
        %v4284 = vpop.f32.mrf.mxu0
        %v4285 = vadd.f32 %v4242, %v4284
        %v4286 = vpop.f32.mrf.mxu0
        %v4287 = vadd.f32 %v4244, %v4286
        %v4288 = vpop.f32.mrf.mxu0
        %v4289 = vadd.f32 %v4246, %v4288
        %v4290 = vpop.f32.mrf.mxu0
        %v4291 = vadd.f32 %v4248, %v4290
        %4292 = vdwg.mxu0
        %4293 = vmatprep.subr.bf16.mxu0 %v3241
        %4294 = vmatpush1.bf16.msra.mxu0 %v3240
        %4295 = vmatprep.subr.bf16.mxu0 %v3233
        %4296 = vmatpush1.bf16.msra.mxu0 %v3232
        %4297 = vmatprep.subr.bf16.mxu0 %v3225
        %4298 = vmatpush1.bf16.msra.mxu0 %v3224
        %4299 = vmatprep.subr.bf16.mxu0 %v3217
        %4300 = vmatpush1.bf16.msra.mxu0 %v3216
        %4301 = vmatprep.subr.bf16.mxu0 %v3209
        %4302 = vmatpush1.bf16.msra.mxu0 %v3208
        %4303 = vmatprep.subr.bf16.mxu0 %v3201
        %4304 = vmatpush1.bf16.msra.mxu0 %v3200
        %4305 = vmatprep.subr.bf16.mxu0 %v3193
        %4306 = vmatpush1.bf16.msra.mxu0 %v3192
        %4307 = vmatprep.subr.bf16.mxu0 %v3185
        %4308 = vmatpush1.bf16.msra.mxu0 %v3184
        %4309 = vmatprep.subr.bf16.mxu0 %v3305
        %4310 = vmatpush2.bf16.msra.mxu0 %v3304
        %4311 = vmatprep.subr.bf16.mxu0 %v3297
        %4312 = vmatpush2.bf16.msra.mxu0 %v3296
        %4313 = vmatprep.subr.bf16.mxu0 %v3289
        %4314 = vmatpush2.bf16.msra.mxu0 %v3288
        %4315 = vmatprep.subr.bf16.mxu0 %v3281
        %4316 = vmatpush2.bf16.msra.mxu0 %v3280
        %4317 = vmatprep.subr.bf16.mxu0 %v3273
        %4318 = vmatpush2.bf16.msra.mxu0 %v3272
        %4319 = vmatprep.subr.bf16.mxu0 %v3265
        %4320 = vmatpush2.bf16.msra.mxu0 %v3264
        %4321 = vmatprep.subr.bf16.mxu0 %v3257
        %4322 = vmatpush2.bf16.msra.mxu0 %v3256
        %4323 = vmatprep.subr.bf16.mxu0 %v3249
        %4324 = vmatpush2.bf16.msra.mxu0 %v3248
        %4325 = vmatprep.mubr.bf16.mxu0 %v705
        %4326 = vmatmul.mubr.bf16.gmra.mxu0 %v704
        %v4327 = vpop.f32.mrf.mxu0
        %v4328 = vadd.f32 %v4285, %v4327
        %v4329 = vpop.f32.mrf.mxu0
        %v4330 = vadd.f32 %v4287, %v4329
        %v4331 = vpop.f32.mrf.mxu0
        %v4332 = vadd.f32 %v4289, %v4331
        %v4333 = vpop.f32.mrf.mxu0
        %v4334 = vadd.f32 %v4291, %v4333
        %4335 = vdwg.mxu0
        %4336 = vmatprep.subr.bf16.mxu0 %v2859
        %4337 = vmatpush1.bf16.msra.mxu0 %v2858
        %4338 = vmatprep.subr.bf16.mxu0 %v2851
        %4339 = vmatpush1.bf16.msra.mxu0 %v2850
        %4340 = vmatprep.subr.bf16.mxu0 %v2843
        %4341 = vmatpush1.bf16.msra.mxu0 %v2842
        %4342 = vmatprep.subr.bf16.mxu0 %v2835
        %4343 = vmatpush1.bf16.msra.mxu0 %v2834
        %4344 = vmatprep.subr.bf16.mxu0 %v2827
        %4345 = vmatpush1.bf16.msra.mxu0 %v2826
        %4346 = vmatprep.subr.bf16.mxu0 %v2819
        %4347 = vmatpush1.bf16.msra.mxu0 %v2818
        %4348 = vmatprep.subr.bf16.mxu0 %v2811
        %4349 = vmatpush1.bf16.msra.mxu0 %v2810
        %4350 = vmatprep.subr.bf16.mxu0 %v2803
        %4351 = vmatpush1.bf16.msra.mxu0 %v2802
        %4352 = vmatprep.subr.bf16.mxu0 %v2923
        %4353 = vmatpush2.bf16.msra.mxu0 %v2922
        %4354 = vmatprep.subr.bf16.mxu0 %v2915
        %4355 = vmatpush2.bf16.msra.mxu0 %v2914
        %4356 = vmatprep.subr.bf16.mxu0 %v2907
        %4357 = vmatpush2.bf16.msra.mxu0 %v2906
        %4358 = vmatprep.subr.bf16.mxu0 %v2899
        %4359 = vmatpush2.bf16.msra.mxu0 %v2898
        %4360 = vmatprep.subr.bf16.mxu0 %v2891
        %4361 = vmatpush2.bf16.msra.mxu0 %v2890
        %4362 = vmatprep.subr.bf16.mxu0 %v2883
        %4363 = vmatpush2.bf16.msra.mxu0 %v2882
        %4364 = vmatprep.subr.bf16.mxu0 %v2875
        %4365 = vmatpush2.bf16.msra.mxu0 %v2874
        %4366 = vmatprep.subr.bf16.mxu0 %v2867
        %4367 = vmatpush2.bf16.msra.mxu0 %v2866
        %4368 = vmatprep.mubr.bf16.mxu0 %v699
        %4369 = vmatmul.mubr.bf16.gmra.mxu0 %v698
        %v4370 = vpop.f32.mrf.mxu0
        %v4371 = vadd.f32 %v1247, %v4370
        %v4372 = vpop.f32.mrf.mxu0
        %v4373 = vadd.f32 %v1251, %v4372
        %v4374 = vpop.f32.mrf.mxu0
        %v4375 = vadd.f32 %v1247, %v4374
        %v4376 = vpop.f32.mrf.mxu0
        %v4377 = vadd.f32 %v1251, %v4376
        %4378 = vdwg.mxu0
        %4379 = vmatprep.subr.bf16.mxu0 %v2987
        %4380 = vmatpush1.bf16.msra.mxu0 %v2986
        %4381 = vmatprep.subr.bf16.mxu0 %v2979
        %4382 = vmatpush1.bf16.msra.mxu0 %v2978
        %4383 = vmatprep.subr.bf16.mxu0 %v2971
        %4384 = vmatpush1.bf16.msra.mxu0 %v2970
        %4385 = vmatprep.subr.bf16.mxu0 %v2963
        %4386 = vmatpush1.bf16.msra.mxu0 %v2962
        %4387 = vmatprep.subr.bf16.mxu0 %v2955
        %4388 = vmatpush1.bf16.msra.mxu0 %v2954
        %4389 = vmatprep.subr.bf16.mxu0 %v2947
        %4390 = vmatpush1.bf16.msra.mxu0 %v2946
        %4391 = vmatprep.subr.bf16.mxu0 %v2939
        %4392 = vmatpush1.bf16.msra.mxu0 %v2938
        %4393 = vmatprep.subr.bf16.mxu0 %v2931
        %4394 = vmatpush1.bf16.msra.mxu0 %v2930
        %4395 = vmatprep.subr.bf16.mxu0 %v3051
        %4396 = vmatpush2.bf16.msra.mxu0 %v3050
        %4397 = vmatprep.subr.bf16.mxu0 %v3043
        %4398 = vmatpush2.bf16.msra.mxu0 %v3042
        %4399 = vmatprep.subr.bf16.mxu0 %v3035
        %4400 = vmatpush2.bf16.msra.mxu0 %v3034
        %4401 = vmatprep.subr.bf16.mxu0 %v3027
        %4402 = vmatpush2.bf16.msra.mxu0 %v3026
        %4403 = vmatprep.subr.bf16.mxu0 %v3019
        %4404 = vmatpush2.bf16.msra.mxu0 %v3018
        %4405 = vmatprep.subr.bf16.mxu0 %v3011
        %4406 = vmatpush2.bf16.msra.mxu0 %v3010
        %4407 = vmatprep.subr.bf16.mxu0 %v3003
        %4408 = vmatpush2.bf16.msra.mxu0 %v3002
        %4409 = vmatprep.subr.bf16.mxu0 %v2995
        %4410 = vmatpush2.bf16.msra.mxu0 %v2994
        %4411 = vmatprep.mubr.bf16.mxu0 %v701
        %4412 = vmatmul.mubr.bf16.gmra.mxu0 %v700
        %v4413 = vpop.f32.mrf.mxu0
        %v4414 = vadd.f32 %v4371, %v4413
        %v4415 = vpop.f32.mrf.mxu0
        %v4416 = vadd.f32 %v4373, %v4415
        %v4417 = vpop.f32.mrf.mxu0
        %v4418 = vadd.f32 %v4375, %v4417
        %v4419 = vpop.f32.mrf.mxu0
        %v4420 = vadd.f32 %v4377, %v4419
        %4421 = vdwg.mxu0
        %4422 = vmatprep.subr.bf16.mxu0 %v3115
        %4423 = vmatpush1.bf16.msra.mxu0 %v3114
        %4424 = vmatprep.subr.bf16.mxu0 %v3107
        %4425 = vmatpush1.bf16.msra.mxu0 %v3106
        %4426 = vmatprep.subr.bf16.mxu0 %v3099
        %4427 = vmatpush1.bf16.msra.mxu0 %v3098
        %4428 = vmatprep.subr.bf16.mxu0 %v3091
        %4429 = vmatpush1.bf16.msra.mxu0 %v3090
        %4430 = vmatprep.subr.bf16.mxu0 %v3083
        %4431 = vmatpush1.bf16.msra.mxu0 %v3082
        %4432 = vmatprep.subr.bf16.mxu0 %v3075
        %4433 = vmatpush1.bf16.msra.mxu0 %v3074
        %4434 = vmatprep.subr.bf16.mxu0 %v3067
        %4435 = vmatpush1.bf16.msra.mxu0 %v3066
        %4436 = vmatprep.subr.bf16.mxu0 %v3059
        %4437 = vmatpush1.bf16.msra.mxu0 %v3058
        %4438 = vmatprep.subr.bf16.mxu0 %v3179
        %4439 = vmatpush2.bf16.msra.mxu0 %v3178
        %4440 = vmatprep.subr.bf16.mxu0 %v3171
        %4441 = vmatpush2.bf16.msra.mxu0 %v3170
        %4442 = vmatprep.subr.bf16.mxu0 %v3163
        %4443 = vmatpush2.bf16.msra.mxu0 %v3162
        %4444 = vmatprep.subr.bf16.mxu0 %v3155
        %4445 = vmatpush2.bf16.msra.mxu0 %v3154
        %4446 = vmatprep.subr.bf16.mxu0 %v3147
        %4447 = vmatpush2.bf16.msra.mxu0 %v3146
        %4448 = vmatprep.subr.bf16.mxu0 %v3139
        %4449 = vmatpush2.bf16.msra.mxu0 %v3138
        %4450 = vmatprep.subr.bf16.mxu0 %v3131
        %4451 = vmatpush2.bf16.msra.mxu0 %v3130
        %4452 = vmatprep.subr.bf16.mxu0 %v3123
        %4453 = vmatpush2.bf16.msra.mxu0 %v3122
        %4454 = vmatprep.mubr.bf16.mxu0 %v703
        %4455 = vmatmul.mubr.bf16.gmra.mxu0 %v702
        %v4456 = vpop.f32.mrf.mxu0
        %v4457 = vadd.f32 %v4414, %v4456
        %v4458 = vpop.f32.mrf.mxu0
        %v4459 = vadd.f32 %v4416, %v4458
        %v4460 = vpop.f32.mrf.mxu0
        %v4461 = vadd.f32 %v4418, %v4460
        %v4462 = vpop.f32.mrf.mxu0
        %v4463 = vadd.f32 %v4420, %v4462
        %4464 = vdwg.mxu0
        %4465 = vmatprep.subr.bf16.mxu0 %v3243
        %4466 = vmatpush1.bf16.msra.mxu0 %v3242
        %4467 = vmatprep.subr.bf16.mxu0 %v3235
        %4468 = vmatpush1.bf16.msra.mxu0 %v3234
        %4469 = vmatprep.subr.bf16.mxu0 %v3227
        %4470 = vmatpush1.bf16.msra.mxu0 %v3226
        %4471 = vmatprep.subr.bf16.mxu0 %v3219
        %4472 = vmatpush1.bf16.msra.mxu0 %v3218
        %4473 = vmatprep.subr.bf16.mxu0 %v3211
        %4474 = vmatpush1.bf16.msra.mxu0 %v3210
        %4475 = vmatprep.subr.bf16.mxu0 %v3203
        %4476 = vmatpush1.bf16.msra.mxu0 %v3202
        %4477 = vmatprep.subr.bf16.mxu0 %v3195
        %4478 = vmatpush1.bf16.msra.mxu0 %v3194
        %4479 = vmatprep.subr.bf16.mxu0 %v3187
        %4480 = vmatpush1.bf16.msra.mxu0 %v3186
        %4481 = vmatprep.subr.bf16.mxu0 %v3307
        %4482 = vmatpush2.bf16.msra.mxu0 %v3306
        %4483 = vmatprep.subr.bf16.mxu0 %v3299
        %4484 = vmatpush2.bf16.msra.mxu0 %v3298
        %4485 = vmatprep.subr.bf16.mxu0 %v3291
        %4486 = vmatpush2.bf16.msra.mxu0 %v3290
        %4487 = vmatprep.subr.bf16.mxu0 %v3283
        %4488 = vmatpush2.bf16.msra.mxu0 %v3282
        %4489 = vmatprep.subr.bf16.mxu0 %v3275
        %4490 = vmatpush2.bf16.msra.mxu0 %v3274
        %4491 = vmatprep.subr.bf16.mxu0 %v3267
        %4492 = vmatpush2.bf16.msra.mxu0 %v3266
        %4493 = vmatprep.subr.bf16.mxu0 %v3259
        %4494 = vmatpush2.bf16.msra.mxu0 %v3258
        %4495 = vmatprep.subr.bf16.mxu0 %v3251
        %4496 = vmatpush2.bf16.msra.mxu0 %v3250
        %4497 = vmatprep.mubr.bf16.mxu0 %v705
        %4498 = vmatmul.mubr.bf16.gmra.mxu0 %v704
        %v4499 = vpop.f32.mrf.mxu0
        %v4500 = vadd.f32 %v4457, %v4499
        %v4501 = vpop.f32.mrf.mxu0
        %v4502 = vadd.f32 %v4459, %v4501
        %v4503 = vpop.f32.mrf.mxu0
        %v4504 = vadd.f32 %v4461, %v4503
        %v4505 = vpop.f32.mrf.mxu0
        %v4506 = vadd.f32 %v4463, %v4505
        %4507 = vdwg.mxu0
        %v4508 = vmax.f32 %v3984, 0.0
        %v4509 = vmax.f32 %v3986, 0.0
        %v4510 = vmax.f32 %v4156, 0.0
        %v4511 = vmax.f32 %v4158, 0.0
        %v4512 = vmax.f32 %v4328, 0.0
        %v4513 = vmax.f32 %v4330, 0.0
        %v4514 = vmax.f32 %v4500, 0.0
        %v4515 = vmax.f32 %v4502, 0.0
        %v4516 = vmax.f32 %v3988, 0.0
        %v4517 = vmax.f32 %v3990, 0.0
        %v4518 = vmax.f32 %v4160, 0.0
        %v4519 = vmax.f32 %v4162, 0.0
        %v4520 = vmax.f32 %v4332, 0.0
        %v4521 = vmax.f32 %v4334, 0.0
        %v4522 = vmax.f32 %v4504, 0.0
        %v4523 = vmax.f32 %v4506, 0.0
        %v4524 = vpack.c.bf16 %v4516, %v4508
        %v4525 = vpack.c.bf16 %v4517, %v4509
        %v4526 = vpack.c.bf16 %v4518, %v4510
        %v4527 = vpack.c.bf16 %v4519, %v4511
        %v4528 = vpack.c.bf16 %v4520, %v4512
        %v4529 = vpack.c.bf16 %v4521, %v4513
        %v4530 = vpack.c.bf16 %v4522, %v4514
        %v4531 = vpack.c.bf16 %v4523, %v4515
        %v4532 = vld [vmem:[#allocation9] sm:$0xf]
        %v4533 = vld [vmem:[#allocation9 + $0x4] sm:$0xf]
        %v4534 = vld [vmem:[#allocation9 + $0x8] sm:$0xf]
        %v4535 = vld [vmem:[#allocation9 + $0xc] sm:$0xf]
        %v4536 = vld [vmem:[#allocation9 + $0x10] sm:$0xf]
        %v4537 = vld [vmem:[#allocation9 + $0x14] sm:$0xf]
        %v4538 = vld [vmem:[#allocation9 + $0x18] sm:$0xf]
        %v4539 = vld [vmem:[#allocation9 + $0x1c] sm:$0xf]
        %v4540 = vld [vmem:[#allocation9 + $0x20] sm:$0xf]
        %v4541 = vld [vmem:[#allocation9 + $0x24] sm:$0xf]
        %v4542 = vld [vmem:[#allocation9 + $0x28] sm:$0xf]
        %v4543 = vld [vmem:[#allocation9 + $0x2c] sm:$0xf]
        %v4544 = vld [vmem:[#allocation9 + $0x30] sm:$0xf]
        %v4545 = vld [vmem:[#allocation9 + $0x34] sm:$0xf]
        %v4546 = vld [vmem:[#allocation9 + $0x38] sm:$0xf]
        %v4547 = vld [vmem:[#allocation9 + $0x3c] sm:$0xf]
        %v4548 = vld [vmem:[#allocation9 + $0x40] sm:$0xf]
        %v4549 = vld [vmem:[#allocation9 + $0x44] sm:$0xf]
        %v4550 = vld [vmem:[#allocation9 + $0x48] sm:$0xf]
        %v4551 = vld [vmem:[#allocation9 + $0x4c] sm:$0xf]
        %v4552 = vld [vmem:[#allocation9 + $0x50] sm:$0xf]
        %v4553 = vld [vmem:[#allocation9 + $0x54] sm:$0xf]
        %v4554 = vld [vmem:[#allocation9 + $0x58] sm:$0xf]
        %v4555 = vld [vmem:[#allocation9 + $0x5c] sm:$0xf]
        %v4556 = vld [vmem:[#allocation9 + $0x60] sm:$0xf]
        %v4557 = vld [vmem:[#allocation9 + $0x64] sm:$0xf]
        %v4558 = vld [vmem:[#allocation9 + $0x68] sm:$0xf]
        %v4559 = vld [vmem:[#allocation9 + $0x6c] sm:$0xf]
        %v4560 = vld [vmem:[#allocation9 + $0x70] sm:$0xf]
        %v4561 = vld [vmem:[#allocation9 + $0x74] sm:$0xf]
        %v4562 = vld [vmem:[#allocation9 + $0x78] sm:$0xf]
        %v4563 = vld [vmem:[#allocation9 + $0x7c] sm:$0xf]
        %v4564 = vld [vmem:[#allocation9 + $0x80] sm:$0xf]
        %v4565 = vld [vmem:[#allocation9 + $0x84] sm:$0xf]
        %v4566 = vld [vmem:[#allocation9 + $0x88] sm:$0xf]
        %v4567 = vld [vmem:[#allocation9 + $0x8c] sm:$0xf]
        %v4568 = vld [vmem:[#allocation9 + $0x90] sm:$0xf]
        %v4569 = vld [vmem:[#allocation9 + $0x94] sm:$0xf]
        %v4570 = vld [vmem:[#allocation9 + $0x98] sm:$0xf]
        %v4571 = vld [vmem:[#allocation9 + $0x9c] sm:$0xf]
        %v4572 = vld [vmem:[#allocation9 + $0xa0] sm:$0xf]
        %v4573 = vld [vmem:[#allocation9 + $0xa4] sm:$0xf]
        %v4574 = vld [vmem:[#allocation9 + $0xa8] sm:$0xf]
        %v4575 = vld [vmem:[#allocation9 + $0xac] sm:$0xf]
        %v4576 = vld [vmem:[#allocation9 + $0xb0] sm:$0xf]
        %v4577 = vld [vmem:[#allocation9 + $0xb4] sm:$0xf]
        %v4578 = vld [vmem:[#allocation9 + $0xb8] sm:$0xf]
        %v4579 = vld [vmem:[#allocation9 + $0xbc] sm:$0xf]
        %v4580 = vld [vmem:[#allocation9 + $0xc0] sm:$0xf]
        %v4581 = vld [vmem:[#allocation9 + $0xc4] sm:$0xf]
        %v4582 = vld [vmem:[#allocation9 + $0xc8] sm:$0xf]
        %v4583 = vld [vmem:[#allocation9 + $0xcc] sm:$0xf]
        %v4584 = vld [vmem:[#allocation9 + $0xd0] sm:$0xf]
        %v4585 = vld [vmem:[#allocation9 + $0xd4] sm:$0xf]
        %v4586 = vld [vmem:[#allocation9 + $0xd8] sm:$0xf]
        %v4587 = vld [vmem:[#allocation9 + $0xdc] sm:$0xf]
        %v4588 = vld [vmem:[#allocation9 + $0xe0] sm:$0xf]
        %v4589 = vld [vmem:[#allocation9 + $0xe4] sm:$0xf]
        %v4590 = vld [vmem:[#allocation9 + $0xe8] sm:$0xf]
        %v4591 = vld [vmem:[#allocation9 + $0xec] sm:$0xf]
        %v4592 = vld [vmem:[#allocation9 + $0xf0] sm:$0xf]
        %v4593 = vld [vmem:[#allocation9 + $0xf4] sm:$0xf]
        %v4594 = vld [vmem:[#allocation9 + $0xf8] sm:$0xf]
        %v4595 = vld [vmem:[#allocation9 + $0xfc] sm:$0xf]
        %v4596 = vld [vmem:[#allocation9 + $0x100] sm:$0xf]
        %v4597 = vld [vmem:[#allocation9 + $0x104] sm:$0xf]
        %v4598 = vld [vmem:[#allocation9 + $0x108] sm:$0xf]
        %v4599 = vld [vmem:[#allocation9 + $0x10c] sm:$0xf]
        %v4600 = vld [vmem:[#allocation9 + $0x110] sm:$0xf]
        %v4601 = vld [vmem:[#allocation9 + $0x114] sm:$0xf]
        %v4602 = vld [vmem:[#allocation9 + $0x118] sm:$0xf]
        %v4603 = vld [vmem:[#allocation9 + $0x11c] sm:$0xf]
        %v4604 = vld [vmem:[#allocation9 + $0x120] sm:$0xf]
        %v4605 = vld [vmem:[#allocation9 + $0x124] sm:$0xf]
        %v4606 = vld [vmem:[#allocation9 + $0x128] sm:$0xf]
        %v4607 = vld [vmem:[#allocation9 + $0x12c] sm:$0xf]
        %v4608 = vld [vmem:[#allocation9 + $0x130] sm:$0xf]
        %v4609 = vld [vmem:[#allocation9 + $0x134] sm:$0xf]
        %v4610 = vld [vmem:[#allocation9 + $0x138] sm:$0xf]
        %v4611 = vld [vmem:[#allocation9 + $0x13c] sm:$0xf]
        %v4612 = vld [vmem:[#allocation9 + $0x140] sm:$0xf]
        %v4613 = vld [vmem:[#allocation9 + $0x144] sm:$0xf]
        %v4614 = vld [vmem:[#allocation9 + $0x148] sm:$0xf]
        %v4615 = vld [vmem:[#allocation9 + $0x14c] sm:$0xf]
        %v4616 = vld [vmem:[#allocation9 + $0x150] sm:$0xf]
        %v4617 = vld [vmem:[#allocation9 + $0x154] sm:$0xf]
        %v4618 = vld [vmem:[#allocation9 + $0x158] sm:$0xf]
        %v4619 = vld [vmem:[#allocation9 + $0x15c] sm:$0xf]
        %v4620 = vld [vmem:[#allocation9 + $0x160] sm:$0xf]
        %v4621 = vld [vmem:[#allocation9 + $0x164] sm:$0xf]
        %v4622 = vld [vmem:[#allocation9 + $0x168] sm:$0xf]
        %v4623 = vld [vmem:[#allocation9 + $0x16c] sm:$0xf]
        %v4624 = vld [vmem:[#allocation9 + $0x170] sm:$0xf]
        %v4625 = vld [vmem:[#allocation9 + $0x174] sm:$0xf]
        %v4626 = vld [vmem:[#allocation9 + $0x178] sm:$0xf]
        %v4627 = vld [vmem:[#allocation9 + $0x17c] sm:$0xf]
        %v4628 = vld [vmem:[#allocation9 + $0x180] sm:$0xf]
        %v4629 = vld [vmem:[#allocation9 + $0x184] sm:$0xf]
        %v4630 = vld [vmem:[#allocation9 + $0x188] sm:$0xf]
        %v4631 = vld [vmem:[#allocation9 + $0x18c] sm:$0xf]
        %v4632 = vld [vmem:[#allocation9 + $0x190] sm:$0xf]
        %v4633 = vld [vmem:[#allocation9 + $0x194] sm:$0xf]
        %v4634 = vld [vmem:[#allocation9 + $0x198] sm:$0xf]
        %v4635 = vld [vmem:[#allocation9 + $0x19c] sm:$0xf]
        %v4636 = vld [vmem:[#allocation9 + $0x1a0] sm:$0xf]
        %v4637 = vld [vmem:[#allocation9 + $0x1a4] sm:$0xf]
        %v4638 = vld [vmem:[#allocation9 + $0x1a8] sm:$0xf]
        %v4639 = vld [vmem:[#allocation9 + $0x1ac] sm:$0xf]
        %v4640 = vld [vmem:[#allocation9 + $0x1b0] sm:$0xf]
        %v4641 = vld [vmem:[#allocation9 + $0x1b4] sm:$0xf]
        %v4642 = vld [vmem:[#allocation9 + $0x1b8] sm:$0xf]
        %v4643 = vld [vmem:[#allocation9 + $0x1bc] sm:$0xf]
        %v4644 = vld [vmem:[#allocation9 + $0x1c0] sm:$0xf]
        %v4645 = vld [vmem:[#allocation9 + $0x1c4] sm:$0xf]
        %v4646 = vld [vmem:[#allocation9 + $0x1c8] sm:$0xf]
        %v4647 = vld [vmem:[#allocation9 + $0x1cc] sm:$0xf]
        %v4648 = vld [vmem:[#allocation9 + $0x1d0] sm:$0xf]
        %v4649 = vld [vmem:[#allocation9 + $0x1d4] sm:$0xf]
        %v4650 = vld [vmem:[#allocation9 + $0x1d8] sm:$0xf]
        %v4651 = vld [vmem:[#allocation9 + $0x1dc] sm:$0xf]
        %v4652 = vld [vmem:[#allocation9 + $0x1e0] sm:$0xf]
        %v4653 = vld [vmem:[#allocation9 + $0x1e4] sm:$0xf]
        %v4654 = vld [vmem:[#allocation9 + $0x1e8] sm:$0xf]
        %v4655 = vld [vmem:[#allocation9 + $0x1ec] sm:$0xf]
        %v4656 = vld [vmem:[#allocation9 + $0x1f0] sm:$0xf]
        %v4657 = vld [vmem:[#allocation9 + $0x1f4] sm:$0xf]
        %v4658 = vld [vmem:[#allocation9 + $0x1f8] sm:$0xf]
        %v4659 = vld [vmem:[#allocation9 + $0x1fc] sm:$0xf]
        %v4660 = vld [vmem:[#allocation10] sm:$0x1]
        %v4662 = vlaneseq
        %v4663 = vshrl.u32 %v4662, 7
        %v4664 = vsub.s32 0, %v4663
        %v4665 = vrot.slane %v4660, %v4664
        %v4795 = vunpack.c.l.b16 %v4532
        %v4796 = vunpack.c.l.b16 %v4533
        %v4797 = vunpack.c.l.b16 %v4534
        %v4798 = vunpack.c.l.b16 %v4535
        %v4799 = vunpack.c.l.b16 %v4536
        %v4800 = vunpack.c.l.b16 %v4537
        %v4801 = vunpack.c.l.b16 %v4538
        %v4802 = vunpack.c.l.b16 %v4539
        %v4803 = vunpack.c.l.b16 %v4540
        %v4804 = vunpack.c.l.b16 %v4541
        %v4805 = vunpack.c.l.b16 %v4542
        %v4806 = vunpack.c.l.b16 %v4543
        %v4807 = vunpack.c.l.b16 %v4544
        %v4808 = vunpack.c.l.b16 %v4545
        %v4809 = vunpack.c.l.b16 %v4546
        %v4810 = vunpack.c.l.b16 %v4547
        %v4811 = vunpack.c.l.b16 %v4548
        %v4812 = vunpack.c.l.b16 %v4549
        %v4813 = vunpack.c.l.b16 %v4550
        %v4814 = vunpack.c.l.b16 %v4551
        %v4815 = vunpack.c.l.b16 %v4552
        %v4816 = vunpack.c.l.b16 %v4553
        %v4817 = vunpack.c.l.b16 %v4554
        %v4818 = vunpack.c.l.b16 %v4555
        %v4819 = vunpack.c.l.b16 %v4556
        %v4820 = vunpack.c.l.b16 %v4557
        %v4821 = vunpack.c.l.b16 %v4558
        %v4822 = vunpack.c.l.b16 %v4559
        %v4823 = vunpack.c.l.b16 %v4560
        %v4824 = vunpack.c.l.b16 %v4561
        %v4825 = vunpack.c.l.b16 %v4562
        %v4826 = vunpack.c.l.b16 %v4563
        %v4827 = vunpack.c.l.b16 %v4564
        %v4828 = vunpack.c.l.b16 %v4565
        %v4829 = vunpack.c.l.b16 %v4566
        %v4830 = vunpack.c.l.b16 %v4567
        %v4831 = vunpack.c.l.b16 %v4568
        %v4832 = vunpack.c.l.b16 %v4569
        %v4833 = vunpack.c.l.b16 %v4570
        %v4834 = vunpack.c.l.b16 %v4571
        %v4835 = vunpack.c.l.b16 %v4572
        %v4836 = vunpack.c.l.b16 %v4573
        %v4837 = vunpack.c.l.b16 %v4574
        %v4838 = vunpack.c.l.b16 %v4575
        %v4839 = vunpack.c.l.b16 %v4576
        %v4840 = vunpack.c.l.b16 %v4577
        %v4841 = vunpack.c.l.b16 %v4578
        %v4842 = vunpack.c.l.b16 %v4579
        %v4843 = vunpack.c.l.b16 %v4580
        %v4844 = vunpack.c.l.b16 %v4581
        %v4845 = vunpack.c.l.b16 %v4582
        %v4846 = vunpack.c.l.b16 %v4583
        %v4847 = vunpack.c.l.b16 %v4584
        %v4848 = vunpack.c.l.b16 %v4585
        %v4849 = vunpack.c.l.b16 %v4586
        %v4850 = vunpack.c.l.b16 %v4587
        %v4851 = vunpack.c.l.b16 %v4588
        %v4852 = vunpack.c.l.b16 %v4589
        %v4853 = vunpack.c.l.b16 %v4590
        %v4854 = vunpack.c.l.b16 %v4591
        %v4855 = vunpack.c.l.b16 %v4592
        %v4856 = vunpack.c.l.b16 %v4593
        %v4857 = vunpack.c.l.b16 %v4594
        %v4858 = vunpack.c.l.b16 %v4595
        %v4859 = vunpack.c.l.b16 %v4596
        %v4860 = vunpack.c.l.b16 %v4597
        %v4861 = vunpack.c.l.b16 %v4598
        %v4862 = vunpack.c.l.b16 %v4599
        %v4863 = vunpack.c.l.b16 %v4600
        %v4864 = vunpack.c.l.b16 %v4601
        %v4865 = vunpack.c.l.b16 %v4602
        %v4866 = vunpack.c.l.b16 %v4603
        %v4867 = vunpack.c.l.b16 %v4604
        %v4868 = vunpack.c.l.b16 %v4605
        %v4869 = vunpack.c.l.b16 %v4606
        %v4870 = vunpack.c.l.b16 %v4607
        %v4871 = vunpack.c.l.b16 %v4608
        %v4872 = vunpack.c.l.b16 %v4609
        %v4873 = vunpack.c.l.b16 %v4610
        %v4874 = vunpack.c.l.b16 %v4611
        %v4875 = vunpack.c.l.b16 %v4612
        %v4876 = vunpack.c.l.b16 %v4613
        %v4877 = vunpack.c.l.b16 %v4614
        %v4878 = vunpack.c.l.b16 %v4615
        %v4879 = vunpack.c.l.b16 %v4616
        %v4880 = vunpack.c.l.b16 %v4617
        %v4881 = vunpack.c.l.b16 %v4618
        %v4882 = vunpack.c.l.b16 %v4619
        %v4883 = vunpack.c.l.b16 %v4620
        %v4884 = vunpack.c.l.b16 %v4621
        %v4885 = vunpack.c.l.b16 %v4622
        %v4886 = vunpack.c.l.b16 %v4623
        %v4887 = vunpack.c.l.b16 %v4624
        %v4888 = vunpack.c.l.b16 %v4625
        %v4889 = vunpack.c.l.b16 %v4626
        %v4890 = vunpack.c.l.b16 %v4627
        %v4891 = vunpack.c.l.b16 %v4628
        %v4892 = vunpack.c.l.b16 %v4629
        %v4893 = vunpack.c.l.b16 %v4630
        %v4894 = vunpack.c.l.b16 %v4631
        %v4895 = vunpack.c.l.b16 %v4632
        %v4896 = vunpack.c.l.b16 %v4633
        %v4897 = vunpack.c.l.b16 %v4634
        %v4898 = vunpack.c.l.b16 %v4635
        %v4899 = vunpack.c.l.b16 %v4636
        %v4900 = vunpack.c.l.b16 %v4637
        %v4901 = vunpack.c.l.b16 %v4638
        %v4902 = vunpack.c.l.b16 %v4639
        %v4903 = vunpack.c.l.b16 %v4640
        %v4904 = vunpack.c.l.b16 %v4641
        %v4905 = vunpack.c.l.b16 %v4642
        %v4906 = vunpack.c.l.b16 %v4643
        %v4907 = vunpack.c.l.b16 %v4644
        %v4908 = vunpack.c.l.b16 %v4645
        %v4909 = vunpack.c.l.b16 %v4646
        %v4910 = vunpack.c.l.b16 %v4647
        %v4911 = vunpack.c.l.b16 %v4648
        %v4912 = vunpack.c.l.b16 %v4649
        %v4913 = vunpack.c.l.b16 %v4650
        %v4914 = vunpack.c.l.b16 %v4651
        %v4915 = vunpack.c.l.b16 %v4652
        %v4916 = vunpack.c.l.b16 %v4653
        %v4917 = vunpack.c.l.b16 %v4654
        %v4918 = vunpack.c.l.b16 %v4655
        %v4919 = vunpack.c.l.b16 %v4656
        %v4920 = vunpack.c.l.b16 %v4657
        %v4921 = vunpack.c.l.b16 %v4658
        %v4922 = vunpack.c.l.b16 %v4659
        %v4923 = vpack.c.b16 %v4796, %v4795
        %v4924 = vpack.c.b16 %v4798, %v4797
        %v4925 = vpack.c.b16 %v4800, %v4799
        %v4926 = vpack.c.b16 %v4802, %v4801
        %v4927 = vpack.c.b16 %v4804, %v4803
        %v4928 = vpack.c.b16 %v4806, %v4805
        %v4929 = vpack.c.b16 %v4808, %v4807
        %v4930 = vpack.c.b16 %v4810, %v4809
        %v4931 = vpack.c.b16 %v4812, %v4811
        %v4932 = vpack.c.b16 %v4814, %v4813
        %v4933 = vpack.c.b16 %v4816, %v4815
        %v4934 = vpack.c.b16 %v4818, %v4817
        %v4935 = vpack.c.b16 %v4820, %v4819
        %v4936 = vpack.c.b16 %v4822, %v4821
        %v4937 = vpack.c.b16 %v4824, %v4823
        %v4938 = vpack.c.b16 %v4826, %v4825
        %v4939 = vpack.c.b16 %v4828, %v4827
        %v4940 = vpack.c.b16 %v4830, %v4829
        %v4941 = vpack.c.b16 %v4832, %v4831
        %v4942 = vpack.c.b16 %v4834, %v4833
        %v4943 = vpack.c.b16 %v4836, %v4835
        %v4944 = vpack.c.b16 %v4838, %v4837
        %v4945 = vpack.c.b16 %v4840, %v4839
        %v4946 = vpack.c.b16 %v4842, %v4841
        %v4947 = vpack.c.b16 %v4844, %v4843
        %v4948 = vpack.c.b16 %v4846, %v4845
        %v4949 = vpack.c.b16 %v4848, %v4847
        %v4950 = vpack.c.b16 %v4850, %v4849
        %v4951 = vpack.c.b16 %v4852, %v4851
        %v4952 = vpack.c.b16 %v4854, %v4853
        %v4953 = vpack.c.b16 %v4856, %v4855
        %v4954 = vpack.c.b16 %v4858, %v4857
        %v4955 = vpack.c.b16 %v4860, %v4859
        %v4956 = vpack.c.b16 %v4862, %v4861
        %v4957 = vpack.c.b16 %v4864, %v4863
        %v4958 = vpack.c.b16 %v4866, %v4865
        %v4959 = vpack.c.b16 %v4868, %v4867
        %v4960 = vpack.c.b16 %v4870, %v4869
        %v4961 = vpack.c.b16 %v4872, %v4871
        %v4962 = vpack.c.b16 %v4874, %v4873
        %v4963 = vpack.c.b16 %v4876, %v4875
        %v4964 = vpack.c.b16 %v4878, %v4877
        %v4965 = vpack.c.b16 %v4880, %v4879
        %v4966 = vpack.c.b16 %v4882, %v4881
        %v4967 = vpack.c.b16 %v4884, %v4883
        %v4968 = vpack.c.b16 %v4886, %v4885
        %v4969 = vpack.c.b16 %v4888, %v4887
        %v4970 = vpack.c.b16 %v4890, %v4889
        %v4971 = vpack.c.b16 %v4892, %v4891
        %v4972 = vpack.c.b16 %v4894, %v4893
        %v4973 = vpack.c.b16 %v4896, %v4895
        %v4974 = vpack.c.b16 %v4898, %v4897
        %v4975 = vpack.c.b16 %v4900, %v4899
        %v4976 = vpack.c.b16 %v4902, %v4901
        %v4977 = vpack.c.b16 %v4904, %v4903
        %v4978 = vpack.c.b16 %v4906, %v4905
        %v4979 = vpack.c.b16 %v4908, %v4907
        %v4980 = vpack.c.b16 %v4910, %v4909
        %v4981 = vpack.c.b16 %v4912, %v4911
        %v4982 = vpack.c.b16 %v4914, %v4913
        %v4983 = vpack.c.b16 %v4916, %v4915
        %v4984 = vpack.c.b16 %v4918, %v4917
        %v4985 = vpack.c.b16 %v4920, %v4919
        %v4986 = vpack.c.b16 %v4922, %v4921
        %5051 = vmatprep.subr.bf16.mxu0 0
        %5052 = vmatpush1.bf16.msra.mxu0 %v4930
        %5053 = vmatprep.subr.bf16.mxu0 0
        %5054 = vmatpush1.bf16.msra.mxu0 %v4929
        %5055 = vmatprep.subr.bf16.mxu0 0
        %5056 = vmatpush1.bf16.msra.mxu0 %v4928
        %5057 = vmatprep.subr.bf16.mxu0 0
        %5058 = vmatpush1.bf16.msra.mxu0 %v4927
        %5059 = vmatprep.subr.bf16.mxu0 0
        %5060 = vmatpush1.bf16.msra.mxu0 %v4926
        %5061 = vmatprep.subr.bf16.mxu0 0
        %5062 = vmatpush1.bf16.msra.mxu0 %v4925
        %5063 = vmatprep.subr.bf16.mxu0 0
        %5064 = vmatpush1.bf16.msra.mxu0 %v4924
        %5065 = vmatprep.subr.bf16.mxu0 0
        %5066 = vmatpush1.bf16.msra.mxu0 %v4923
        %5067 = vmatprep.subr.bf16.mxu0 0
        %5068 = vmatpush2.bf16.msra.mxu0 %v4938
        %5069 = vmatprep.subr.bf16.mxu0 0
        %5070 = vmatpush2.bf16.msra.mxu0 %v4937
        %5071 = vmatprep.subr.bf16.mxu0 0
        %5072 = vmatpush2.bf16.msra.mxu0 %v4936
        %5073 = vmatprep.subr.bf16.mxu0 0
        %5074 = vmatpush2.bf16.msra.mxu0 %v4935
        %5075 = vmatprep.subr.bf16.mxu0 0
        %5076 = vmatpush2.bf16.msra.mxu0 %v4934
        %5077 = vmatprep.subr.bf16.mxu0 0
        %5078 = vmatpush2.bf16.msra.mxu0 %v4933
        %5079 = vmatprep.subr.bf16.mxu0 0
        %5080 = vmatpush2.bf16.msra.mxu0 %v4932
        %5081 = vmatprep.subr.bf16.mxu0 0
        %5082 = vmatpush2.bf16.msra.mxu0 %v4931
        %5083 = vmatprep.mubr.bf16.mxu0 %v4525
        %5084 = vmatmul.mubr.bf16.gmra.mxu0 %v4524
        %v5085 = vpop.f32.mrf.mxu0
        %v5086 = vadd.f32 %v4665, %v5085
        %v5087 = vpop.f32.mrf.mxu0
        %v5088 = vpop.f32.mrf.mxu0
        %v5089 = vadd.f32 %v4665, %v5088
        %v5090 = vpop.f32.mrf.mxu0
        %5091 = vdwg.mxu0
        %5092 = vmatprep.subr.bf16.mxu0 0
        %5093 = vmatpush1.bf16.msra.mxu0 %v4946
        %5094 = vmatprep.subr.bf16.mxu0 0
        %5095 = vmatpush1.bf16.msra.mxu0 %v4945
        %5096 = vmatprep.subr.bf16.mxu0 0
        %5097 = vmatpush1.bf16.msra.mxu0 %v4944
        %5098 = vmatprep.subr.bf16.mxu0 0
        %5099 = vmatpush1.bf16.msra.mxu0 %v4943
        %5100 = vmatprep.subr.bf16.mxu0 0
        %5101 = vmatpush1.bf16.msra.mxu0 %v4942
        %5102 = vmatprep.subr.bf16.mxu0 0
        %5103 = vmatpush1.bf16.msra.mxu0 %v4941
        %5104 = vmatprep.subr.bf16.mxu0 0
        %5105 = vmatpush1.bf16.msra.mxu0 %v4940
        %5106 = vmatprep.subr.bf16.mxu0 0
        %5107 = vmatpush1.bf16.msra.mxu0 %v4939
        %5108 = vmatprep.subr.bf16.mxu0 0
        %5109 = vmatpush2.bf16.msra.mxu0 %v4954
        %5110 = vmatprep.subr.bf16.mxu0 0
        %5111 = vmatpush2.bf16.msra.mxu0 %v4953
        %5112 = vmatprep.subr.bf16.mxu0 0
        %5113 = vmatpush2.bf16.msra.mxu0 %v4952
        %5114 = vmatprep.subr.bf16.mxu0 0
        %5115 = vmatpush2.bf16.msra.mxu0 %v4951
        %5116 = vmatprep.subr.bf16.mxu0 0
        %5117 = vmatpush2.bf16.msra.mxu0 %v4950
        %5118 = vmatprep.subr.bf16.mxu0 0
        %5119 = vmatpush2.bf16.msra.mxu0 %v4949
        %5120 = vmatprep.subr.bf16.mxu0 0
        %5121 = vmatpush2.bf16.msra.mxu0 %v4948
        %5122 = vmatprep.subr.bf16.mxu0 0
        %5123 = vmatpush2.bf16.msra.mxu0 %v4947
        %5124 = vmatprep.mubr.bf16.mxu0 %v4527
        %5125 = vmatmul.mubr.bf16.gmra.mxu0 %v4526
        %v5126 = vpop.f32.mrf.mxu0
        %v5127 = vadd.f32 %v5086, %v5126
        %v5128 = vpop.f32.mrf.mxu0
        %v5129 = vpop.f32.mrf.mxu0
        %v5130 = vadd.f32 %v5089, %v5129
        %v5131 = vpop.f32.mrf.mxu0
        %5132 = vdwg.mxu0
        %5133 = vmatprep.subr.bf16.mxu0 0
        %5134 = vmatpush1.bf16.msra.mxu0 %v4962
        %5135 = vmatprep.subr.bf16.mxu0 0
        %5136 = vmatpush1.bf16.msra.mxu0 %v4961
        %5137 = vmatprep.subr.bf16.mxu0 0
        %5138 = vmatpush1.bf16.msra.mxu0 %v4960
        %5139 = vmatprep.subr.bf16.mxu0 0
        %5140 = vmatpush1.bf16.msra.mxu0 %v4959
        %5141 = vmatprep.subr.bf16.mxu0 0
        %5142 = vmatpush1.bf16.msra.mxu0 %v4958
        %5143 = vmatprep.subr.bf16.mxu0 0
        %5144 = vmatpush1.bf16.msra.mxu0 %v4957
        %5145 = vmatprep.subr.bf16.mxu0 0
        %5146 = vmatpush1.bf16.msra.mxu0 %v4956
        %5147 = vmatprep.subr.bf16.mxu0 0
        %5148 = vmatpush1.bf16.msra.mxu0 %v4955
        %5149 = vmatprep.subr.bf16.mxu0 0
        %5150 = vmatpush2.bf16.msra.mxu0 %v4970
        %5151 = vmatprep.subr.bf16.mxu0 0
        %5152 = vmatpush2.bf16.msra.mxu0 %v4969
        %5153 = vmatprep.subr.bf16.mxu0 0
        %5154 = vmatpush2.bf16.msra.mxu0 %v4968
        %5155 = vmatprep.subr.bf16.mxu0 0
        %5156 = vmatpush2.bf16.msra.mxu0 %v4967
        %5157 = vmatprep.subr.bf16.mxu0 0
        %5158 = vmatpush2.bf16.msra.mxu0 %v4966
        %5159 = vmatprep.subr.bf16.mxu0 0
        %5160 = vmatpush2.bf16.msra.mxu0 %v4965
        %5161 = vmatprep.subr.bf16.mxu0 0
        %5162 = vmatpush2.bf16.msra.mxu0 %v4964
        %5163 = vmatprep.subr.bf16.mxu0 0
        %5164 = vmatpush2.bf16.msra.mxu0 %v4963
        %5165 = vmatprep.mubr.bf16.mxu0 %v4529
        %5166 = vmatmul.mubr.bf16.gmra.mxu0 %v4528
        %v5167 = vpop.f32.mrf.mxu0
        %v5168 = vadd.f32 %v5127, %v5167
        %v5169 = vpop.f32.mrf.mxu0
        %v5170 = vpop.f32.mrf.mxu0
        %v5171 = vadd.f32 %v5130, %v5170
        %v5172 = vpop.f32.mrf.mxu0
        %5173 = vdwg.mxu0
        %5174 = vmatprep.subr.bf16.mxu0 0
        %5175 = vmatpush1.bf16.msra.mxu0 %v4978
        %5176 = vmatprep.subr.bf16.mxu0 0
        %5177 = vmatpush1.bf16.msra.mxu0 %v4977
        %5178 = vmatprep.subr.bf16.mxu0 0
        %5179 = vmatpush1.bf16.msra.mxu0 %v4976
        %5180 = vmatprep.subr.bf16.mxu0 0
        %5181 = vmatpush1.bf16.msra.mxu0 %v4975
        %5182 = vmatprep.subr.bf16.mxu0 0
        %5183 = vmatpush1.bf16.msra.mxu0 %v4974
        %5184 = vmatprep.subr.bf16.mxu0 0
        %5185 = vmatpush1.bf16.msra.mxu0 %v4973
        %5186 = vmatprep.subr.bf16.mxu0 0
        %5187 = vmatpush1.bf16.msra.mxu0 %v4972
        %5188 = vmatprep.subr.bf16.mxu0 0
        %5189 = vmatpush1.bf16.msra.mxu0 %v4971
        %5190 = vmatprep.subr.bf16.mxu0 0
        %5191 = vmatpush2.bf16.msra.mxu0 %v4986
        %5192 = vmatprep.subr.bf16.mxu0 0
        %5193 = vmatpush2.bf16.msra.mxu0 %v4985
        %5194 = vmatprep.subr.bf16.mxu0 0
        %5195 = vmatpush2.bf16.msra.mxu0 %v4984
        %5196 = vmatprep.subr.bf16.mxu0 0
        %5197 = vmatpush2.bf16.msra.mxu0 %v4983
        %5198 = vmatprep.subr.bf16.mxu0 0
        %5199 = vmatpush2.bf16.msra.mxu0 %v4982
        %5200 = vmatprep.subr.bf16.mxu0 0
        %5201 = vmatpush2.bf16.msra.mxu0 %v4981
        %5202 = vmatprep.subr.bf16.mxu0 0
        %5203 = vmatpush2.bf16.msra.mxu0 %v4980
        %5204 = vmatprep.subr.bf16.mxu0 0
        %5205 = vmatpush2.bf16.msra.mxu0 %v4979
        %5206 = vmatprep.mubr.bf16.mxu0 %v4531
        %5207 = vmatmul.mubr.bf16.gmra.mxu0 %v4530
        %v5208 = vpop.f32.mrf.mxu0
        %v5209 = vadd.f32 %v5168, %v5208
        %v5210 = vpop.f32.mrf.mxu0
        %v5211 = vpop.f32.mrf.mxu0
        %v5212 = vadd.f32 %v5171, %v5211
        %v5213 = vpop.f32.mrf.mxu0
        %5214 = vdwg.mxu0
        %5215 = vst [vmem:[%s362] sm:$0xff] %v5209
        %5216 = vst [vmem:[%s362 + $0x8] sm:$0xff] %v5212
        %s5217 = smul.u32 2, %s22
        %p5218 = scmp.lt.s32.totalorder %s5217, 3
        %s5219 = scalar_select %p5218, %s5217, 3
        %s5220 = smul.addr %s5219, 8
        %s5221 = scalar_lea.vmem %s7, %s5220
        // Predicated region
        $region73: #{_lambda_.6} parent=47 // pred_check
          %p5222 = pneg %p192
        $region74: #{_lambda_.6} parent=47 // pred_check_branch
          %5224 = sbr.rel (%p5222) target = $region76
        $region75: #{_lambda_.6} parent=47 // pred_region
          %s5225 = smul.u32 2, %s22
        $region76: #{_lambda_.6} parent=47 // pred_fallthru
          _
      $region48: #{_lambda_.6} parent=5 // pred_fallthru
        _
      %p5226 = scmp.le.s32.totalorder 2, %s17
      // Predicated region
      $region77: #{_lambda_.6} parent=5 // pred_check
        %p5227 = pneg %p5226
      $region78: #{_lambda_.6} parent=5 // pred_check_branch
        %5229 = sbr.rel (%p5227) target = $region80
      $region79: #{_lambda_.6} parent=5 // pred_region
        %s5230 = ssub.s32 %s17, 2
        // Predicated region
        $region81: #{_lambda_.6} parent=79 // pred_check
          %p5231 = pneg %p198
        $region82: #{_lambda_.6} parent=79 // pred_check_branch
          %5233 = sbr.rel (%p5231) target = $region84
        $region83: #{_lambda_.6} parent=79 // pred_region
          %s5234 = smul.u32 2, %s23
          %p5235 = scmp.lt.s32.totalorder %s5234, 3
          %s5236 = scalar_select %p5235, %s5234, 3
          %s5237 = smul.addr %s5236, 8
          %s5238 = scalar_lea.vmem %s7, %s5237
        $region84: #{_lambda_.6} parent=79 // pred_fallthru
          _
      $region80: #{_lambda_.6} parent=5 // pred_fallthru
        _
    $region6: #{_lambda_.6} parent=1 // loop_footer
      %s21 = sadd.s32 1, %s17
    $region7: #{_lambda_.6} parent=1 // loop_footer_branch
      %16 = sbr.rel target = $region3
    $region8: #{_lambda_.6} parent=1 // loop_exit
      _
    %5239 = vsyncpa [#allocation3], 1
    %s5240 = scalar_lea.sflag [#allocation3], 1
    %5241 = vsyncpa %s5240, 1
    %5242 = vsyncpa [#allocation5], 1
    %5243 = vsyncpa [#allocation8], 1
    %5244 = vsyncpa [#allocation11], 1

</llo_original>
